<compile_context>
chip_gen: v5e
topology: v5e:2x2
jax: 0.10.0
libtpu: 0.0.40
codegen_flags: <defaults>
</compile_context>

<pallas_src>
import jax
import jax.numpy as jnp
from jax.experimental import pallas as pl
from jax.experimental.pallas import tpu as pltpu

INPUT_DIM = 256
HIDDEN_DIM = 256
OUTPUT_DIM = 128


def _mlp_kernel(x_ref,
                w1, b1, w2, b2, w3, b3, w4, b4,
                w5, b5, w6, b6, w7, b7, w8, b8,
                o_ref):
    """Whole 8-layer MLP for one tile of rows, weights resident in VMEM."""

    def linear(h, w_ref, b_ref):
        # Cast activations to the weight dtype (bf16 fast path or f32),
        # accumulate in f32 on the MXU, add bias in f32.
        return jnp.dot(h.astype(w_ref.dtype), w_ref[...],
                       preferred_element_type=jnp.float32) + b_ref[...]

    h = x_ref[...]
    h = jnp.maximum(linear(h, w1, b1), 0.0)
    h = jnp.maximum(linear(h, w2, b2), 0.0)
    h = jnp.maximum(linear(h, w3, b3), 0.0)
    h = jnp.maximum(linear(h, w4, b4), 0.0)
    h = jnp.maximum(linear(h, w5, b5), 0.0)
    h = jnp.maximum(linear(h, w6, b6), 0.0)
    h = jnp.maximum(linear(h, w7, b7), 0.0)
    o_ref[...] = linear(h, w8, b8).astype(o_ref.dtype)   # fc8: no ReLU


def feature_aligner_forward(x, params, *, tile_m=256, use_bf16=True):
    """x: [N, INPUT_DIM].  params: list of (w[in, out], b[1, out]) f32 pairs."""
    n, d = x.shape
    assert d == params[0][0].shape[0]
    out_dim = params[-1][0].shape[1]

    w_dtype = jnp.bfloat16 if use_bf16 else jnp.float32
    flat_params = []
    for w, b in params:
        flat_params.append(w.astype(w_dtype))        # MXU operand dtype
        flat_params.append(b.astype(jnp.float32))    # bias stays f32

    # Pad ragged N up to a tile multiple with zero rows (sliced off at the end).
    x_in = x.astype(w_dtype)
    n_pad = int(pl.cdiv(n, tile_m)) * tile_m
    if n_pad != n:
        x_in = jnp.pad(x_in, ((0, n_pad - n), (0, 0)))
    grid = (n_pad // tile_m,)

    # Advisory cost estimate for the XLA scheduler.
    flops = 2 * n_pad * sum(w.shape[0] * w.shape[1] for w, _ in params)
    bytes_accessed = (x_in.size * x_in.dtype.itemsize
                      + n_pad * out_dim * 4
                      + sum(a.size * a.dtype.itemsize for a in flat_params))
    cost = pl.CostEstimate(flops=flops, transcendentals=0,
                           bytes_accessed=bytes_accessed)

    def make_specs(weight_pipeline_mode):
        in_specs = [pl.BlockSpec((tile_m, d), lambda i: (i, 0))]
        for w, b in params:
            kw = ({} if weight_pipeline_mode is None
                  else dict(pipeline_mode=weight_pipeline_mode))
            # Constant index_map: full weight/bias resident across all steps.
            in_specs.append(pl.BlockSpec(w.shape, lambda i: (0, 0), **kw))
            in_specs.append(pl.BlockSpec(b.shape, lambda i: (0, 0), **kw))
        return in_specs

    def run(in_specs):
        return pl.pallas_call(
            _mlp_kernel,
            out_shape=jax.ShapeDtypeStruct((n_pad, out_dim), jnp.float32),
            grid_spec=pltpu.PrefetchScalarGridSpec(
                num_scalar_prefetch=0,
                grid=grid,
                in_specs=in_specs,
                out_specs=pl.BlockSpec((tile_m, out_dim), lambda i: (i, 0)),
            ),
            compiler_params=pltpu.CompilerParams(
                dimension_semantics=("parallel",)),
            cost_estimate=cost,
        )(x_in, *flat_params)

    try:
        # Constant operands only need a single VMEM buffer (no re-DMA happens).
        out = run(make_specs(pl.Buffered(1)))
    except Exception:
        # Fall back to default double-buffering if single-buffering is rejected.
        out = run(make_specs(None))

    return out[:n] if n_pad != n else out


def init_params(key):
    """Deterministic init mimicking PyTorch Linear default U(-1/sqrt(in), 1/sqrt(in))."""
    dims = [
        (INPUT_DIM, HIDDEN_DIM),   # fc1
        (HIDDEN_DIM, HIDDEN_DIM),  # fc2
        (HIDDEN_DIM, HIDDEN_DIM),  # fc3
        (HIDDEN_DIM, HIDDEN_DIM),  # fc4
        (HIDDEN_DIM, OUTPUT_DIM),  # fc5
        (OUTPUT_DIM, OUTPUT_DIM),  # fc6
        (OUTPUT_DIM, OUTPUT_DIM),  # fc7
        (OUTPUT_DIM, OUTPUT_DIM),  # fc8
    ]
    params = []
    for (fan_in, fan_out) in dims:
        key, kw, kb = jax.random.split(key, 3)
        bound = 1.0 / jnp.sqrt(fan_in)
        # Stored already transposed: [in, out]  (PyTorch stores [out, in]).
        w = jax.random.uniform(kw, (fan_in, fan_out), jnp.float32, -bound, bound)
        b = jax.random.uniform(kb, (1, fan_out), jnp.float32, -bound, bound)
        params.append((w, b))
    return params


def reference_forward(x, params, *, use_bf16=True):
    """Pure-JAX reference with the same per-layer precision as the kernel."""
    w_dtype = jnp.bfloat16 if use_bf16 else jnp.float32
    h = x.astype(w_dtype)
    for i, (w, b) in enumerate(params):
        y = jnp.dot(h.astype(w_dtype), w.astype(w_dtype),
                    preferred_element_type=jnp.float32) + b.astype(jnp.float32)
        if i < len(params) - 1:
            y = jnp.maximum(y, 0.0)
        h = y
    return h


if __name__ == "__main__":
    key = jax.random.PRNGKey(0)
    k_x, k_p = jax.random.split(key)

    # Small batch of feature vectors; N=300 is deliberately NOT a multiple of
    # the 256-row tile so the padding path and a 2-step grid are exercised.
    n = 300
    x = jax.random.normal(k_x, (n, INPUT_DIM), jnp.float32)
    params = init_params(k_p)

    # Fast path: bf16 MXU operands, f32 accumulation.
    out_bf16 = jax.block_until_ready(
        feature_aligner_forward(x, params, tile_m=256, use_bf16=True))
    ref_bf16 = reference_forward(x, params, use_bf16=True)
    assert out_bf16.shape == (n, OUTPUT_DIM)
    assert jnp.allclose(out_bf16, ref_bf16, atol=1e-3, rtol=1e-3)

    # Exact-semantics fallback path: full f32 matmuls.
    out_f32 = jax.block_until_ready(
        feature_aligner_forward(x, params, tile_m=256, use_bf16=False))
    ref_f32 = reference_forward(x, params, use_bf16=False)
    assert jnp.allclose(out_f32, ref_f32, atol=1e-4, rtol=1e-4)

    print("KERNEL_OK")
</pallas_src>

<mosaic_0001>
module attributes {stable_mosaic.version = 11 : i64} {
  func.func @_mlp_kernel(%arg0: i32, %arg1: memref<256x256xbf16, #tpu.memory_space<vmem>>, %arg2: memref<256x256xbf16, #tpu.memory_space<vmem>>, %arg3: memref<1x256xf32, #tpu.memory_space<vmem>>, %arg4: memref<256x256xbf16, #tpu.memory_space<vmem>>, %arg5: memref<1x256xf32, #tpu.memory_space<vmem>>, %arg6: memref<256x256xbf16, #tpu.memory_space<vmem>>, %arg7: memref<1x256xf32, #tpu.memory_space<vmem>>, %arg8: memref<256x256xbf16, #tpu.memory_space<vmem>>, %arg9: memref<1x256xf32, #tpu.memory_space<vmem>>, %arg10: memref<256x128xbf16, #tpu.memory_space<vmem>>, %arg11: memref<1x128xf32, #tpu.memory_space<vmem>>, %arg12: memref<128x128xbf16, #tpu.memory_space<vmem>>, %arg13: memref<1x128xf32, #tpu.memory_space<vmem>>, %arg14: memref<128x128xbf16, #tpu.memory_space<vmem>>, %arg15: memref<1x128xf32, #tpu.memory_space<vmem>>, %arg16: memref<128x128xbf16, #tpu.memory_space<vmem>>, %arg17: memref<1x128xf32, #tpu.memory_space<vmem>>, %arg18: memref<256x128xf32, #tpu.memory_space<vmem>>) attributes {dimension_semantics = [#tpu.dimension_semantics<parallel>], iteration_bounds = array<i64: 2>, scalar_prefetch = 0 : i64, scratch_operands = 0 : i64, tpu.core_type = #tpu.core_type<tc>, window_params = [{transform_indices = @transform_0, window_bounds = array<i64: 256, 256>}, {pipeline_mode = #tpu.pipeline_mode<synchronous>, transform_indices = @transform_1, window_bounds = array<i64: 256, 256>}, {pipeline_mode = #tpu.pipeline_mode<synchronous>, transform_indices = @transform_2, window_bounds = array<i64: 1, 256>}, {pipeline_mode = #tpu.pipeline_mode<synchronous>, transform_indices = @transform_3, window_bounds = array<i64: 256, 256>}, {pipeline_mode = #tpu.pipeline_mode<synchronous>, transform_indices = @transform_4, window_bounds = array<i64: 1, 256>}, {pipeline_mode = #tpu.pipeline_mode<synchronous>, transform_indices = @transform_5, window_bounds = array<i64: 256, 256>}, {pipeline_mode = #tpu.pipeline_mode<synchronous>, transform_indices = @transform_6, window_bounds = array<i64: 1, 256>}, {pipeline_mode = #tpu.pipeline_mode<synchronous>, transform_indices = @transform_7, window_bounds = array<i64: 256, 256>}, {pipeline_mode = #tpu.pipeline_mode<synchronous>, transform_indices = @transform_8, window_bounds = array<i64: 1, 256>}, {pipeline_mode = #tpu.pipeline_mode<synchronous>, transform_indices = @transform_9, window_bounds = array<i64: 256, 128>}, {pipeline_mode = #tpu.pipeline_mode<synchronous>, transform_indices = @transform_10, window_bounds = array<i64: 1, 128>}, {pipeline_mode = #tpu.pipeline_mode<synchronous>, transform_indices = @transform_11, window_bounds = array<i64: 128, 128>}, {pipeline_mode = #tpu.pipeline_mode<synchronous>, transform_indices = @transform_12, window_bounds = array<i64: 1, 128>}, {pipeline_mode = #tpu.pipeline_mode<synchronous>, transform_indices = @transform_13, window_bounds = array<i64: 128, 128>}, {pipeline_mode = #tpu.pipeline_mode<synchronous>, transform_indices = @transform_14, window_bounds = array<i64: 1, 128>}, {pipeline_mode = #tpu.pipeline_mode<synchronous>, transform_indices = @transform_15, window_bounds = array<i64: 128, 128>}, {pipeline_mode = #tpu.pipeline_mode<synchronous>, transform_indices = @transform_16, window_bounds = array<i64: 1, 128>}, {transform_indices = @transform_17, window_bounds = array<i64: 256, 128>}]} {
    %c0 = arith.constant 0 : index
    %c0_0 = arith.constant 0 : index
    %0 = vector.load %arg1[%c0, %c0_0] : memref<256x256xbf16, #tpu.memory_space<vmem>>, vector<256x256xbf16>
    %c0_1 = arith.constant 0 : index
    %c0_2 = arith.constant 0 : index
    %1 = vector.load %arg2[%c0_1, %c0_2] : memref<256x256xbf16, #tpu.memory_space<vmem>>, vector<256x256xbf16>
    %cst = arith.constant dense<0.000000e+00> : vector<256x256xf32>
    %2 = tpu.matmul %0, %1, %cst {dimension_numbers = #tpu.dot_dimension_numbers<[1], [0], [0], [1], [0, 0, 1, 1], [], []>} : vector<256x256xbf16>, vector<256x256xbf16>, vector<256x256xf32> -> vector<256x256xf32>
    %c0_3 = arith.constant 0 : index
    %c0_4 = arith.constant 0 : index
    %3 = vector.load %arg3[%c0_3, %c0_4] : memref<1x256xf32, #tpu.memory_space<vmem>>, vector<1x256xf32>
    %4 = vector.broadcast %3 : vector<1x256xf32> to vector<256x256xf32>
    %5 = arith.addf %2, %4 : vector<256x256xf32>
    %cst_5 = arith.constant 0.000000e+00 : f32
    %6 = vector.broadcast %cst_5 : f32 to vector<256x256xf32>
    %7 = arith.maximumf %5, %6 : vector<256x256xf32>
    %8 = arith.truncf %7 : vector<256x256xf32> to vector<256x256xbf16>
    %c0_6 = arith.constant 0 : index
    %c0_7 = arith.constant 0 : index
    %9 = vector.load %arg4[%c0_6, %c0_7] : memref<256x256xbf16, #tpu.memory_space<vmem>>, vector<256x256xbf16>
    %cst_8 = arith.constant dense<0.000000e+00> : vector<256x256xf32>
    %10 = tpu.matmul %8, %9, %cst_8 {dimension_numbers = #tpu.dot_dimension_numbers<[1], [0], [0], [1], [0, 0, 1, 1], [], []>} : vector<256x256xbf16>, vector<256x256xbf16>, vector<256x256xf32> -> vector<256x256xf32>
    %c0_9 = arith.constant 0 : index
    %c0_10 = arith.constant 0 : index
    %11 = vector.load %arg5[%c0_9, %c0_10] : memref<1x256xf32, #tpu.memory_space<vmem>>, vector<1x256xf32>
    %12 = vector.broadcast %11 : vector<1x256xf32> to vector<256x256xf32>
    %13 = arith.addf %10, %12 : vector<256x256xf32>
    %cst_11 = arith.constant 0.000000e+00 : f32
    %14 = vector.broadcast %cst_11 : f32 to vector<256x256xf32>
    %15 = arith.maximumf %13, %14 : vector<256x256xf32>
    %16 = arith.truncf %15 : vector<256x256xf32> to vector<256x256xbf16>
    %c0_12 = arith.constant 0 : index
    %c0_13 = arith.constant 0 : index
    %17 = vector.load %arg6[%c0_12, %c0_13] : memref<256x256xbf16, #tpu.memory_space<vmem>>, vector<256x256xbf16>
    %cst_14 = arith.constant dense<0.000000e+00> : vector<256x256xf32>
    %18 = tpu.matmul %16, %17, %cst_14 {dimension_numbers = #tpu.dot_dimension_numbers<[1], [0], [0], [1], [0, 0, 1, 1], [], []>} : vector<256x256xbf16>, vector<256x256xbf16>, vector<256x256xf32> -> vector<256x256xf32>
    %c0_15 = arith.constant 0 : index
    %c0_16 = arith.constant 0 : index
    %19 = vector.load %arg7[%c0_15, %c0_16] : memref<1x256xf32, #tpu.memory_space<vmem>>, vector<1x256xf32>
    %20 = vector.broadcast %19 : vector<1x256xf32> to vector<256x256xf32>
    %21 = arith.addf %18, %20 : vector<256x256xf32>
    %cst_17 = arith.constant 0.000000e+00 : f32
    %22 = vector.broadcast %cst_17 : f32 to vector<256x256xf32>
    %23 = arith.maximumf %21, %22 : vector<256x256xf32>
    %24 = arith.truncf %23 : vector<256x256xf32> to vector<256x256xbf16>
    %c0_18 = arith.constant 0 : index
    %c0_19 = arith.constant 0 : index
    %25 = vector.load %arg8[%c0_18, %c0_19] : memref<256x256xbf16, #tpu.memory_space<vmem>>, vector<256x256xbf16>
    %cst_20 = arith.constant dense<0.000000e+00> : vector<256x256xf32>
    %26 = tpu.matmul %24, %25, %cst_20 {dimension_numbers = #tpu.dot_dimension_numbers<[1], [0], [0], [1], [0, 0, 1, 1], [], []>} : vector<256x256xbf16>, vector<256x256xbf16>, vector<256x256xf32> -> vector<256x256xf32>
    %c0_21 = arith.constant 0 : index
    %c0_22 = arith.constant 0 : index
    %27 = vector.load %arg9[%c0_21, %c0_22] : memref<1x256xf32, #tpu.memory_space<vmem>>, vector<1x256xf32>
    %28 = vector.broadcast %27 : vector<1x256xf32> to vector<256x256xf32>
    %29 = arith.addf %26, %28 : vector<256x256xf32>
    %cst_23 = arith.constant 0.000000e+00 : f32
    %30 = vector.broadcast %cst_23 : f32 to vector<256x256xf32>
    %31 = arith.maximumf %29, %30 : vector<256x256xf32>
    %32 = arith.truncf %31 : vector<256x256xf32> to vector<256x256xbf16>
    %c0_24 = arith.constant 0 : index
    %c0_25 = arith.constant 0 : index
    %33 = vector.load %arg10[%c0_24, %c0_25] : memref<256x128xbf16, #tpu.memory_space<vmem>>, vector<256x128xbf16>
    %cst_26 = arith.constant dense<0.000000e+00> : vector<256x128xf32>
    %34 = tpu.matmul %32, %33, %cst_26 {dimension_numbers = #tpu.dot_dimension_numbers<[1], [0], [0], [1], [0, 0, 1, 1], [], []>} : vector<256x256xbf16>, vector<256x128xbf16>, vector<256x128xf32> -> vector<256x128xf32>
    %c0_27 = arith.constant 0 : index
    %c0_28 = arith.constant 0 : index
    %35 = vector.load %arg11[%c0_27, %c0_28] : memref<1x128xf32, #tpu.memory_space<vmem>>, vector<1x128xf32>
    %36 = vector.broadcast %35 : vector<1x128xf32> to vector<256x128xf32>
    %37 = arith.addf %34, %36 : vector<256x128xf32>
    %cst_29 = arith.constant 0.000000e+00 : f32
    %38 = vector.broadcast %cst_29 : f32 to vector<256x128xf32>
    %39 = arith.maximumf %37, %38 : vector<256x128xf32>
    %40 = arith.truncf %39 : vector<256x128xf32> to vector<256x128xbf16>
    %c0_30 = arith.constant 0 : index
    %c0_31 = arith.constant 0 : index
    %41 = vector.load %arg12[%c0_30, %c0_31] : memref<128x128xbf16, #tpu.memory_space<vmem>>, vector<128x128xbf16>
    %cst_32 = arith.constant dense<0.000000e+00> : vector<256x128xf32>
    %42 = tpu.matmul %40, %41, %cst_32 {dimension_numbers = #tpu.dot_dimension_numbers<[1], [0], [0], [1], [0, 0, 1, 1], [], []>} : vector<256x128xbf16>, vector<128x128xbf16>, vector<256x128xf32> -> vector<256x128xf32>
    %c0_33 = arith.constant 0 : index
    %c0_34 = arith.constant 0 : index
    %43 = vector.load %arg13[%c0_33, %c0_34] : memref<1x128xf32, #tpu.memory_space<vmem>>, vector<1x128xf32>
    %44 = vector.broadcast %43 : vector<1x128xf32> to vector<256x128xf32>
    %45 = arith.addf %42, %44 : vector<256x128xf32>
    %cst_35 = arith.constant 0.000000e+00 : f32
    %46 = vector.broadcast %cst_35 : f32 to vector<256x128xf32>
    %47 = arith.maximumf %45, %46 : vector<256x128xf32>
    %48 = arith.truncf %47 : vector<256x128xf32> to vector<256x128xbf16>
    %c0_36 = arith.constant 0 : index
    %c0_37 = arith.constant 0 : index
    %49 = vector.load %arg14[%c0_36, %c0_37] : memref<128x128xbf16, #tpu.memory_space<vmem>>, vector<128x128xbf16>
    %cst_38 = arith.constant dense<0.000000e+00> : vector<256x128xf32>
    %50 = tpu.matmul %48, %49, %cst_38 {dimension_numbers = #tpu.dot_dimension_numbers<[1], [0], [0], [1], [0, 0, 1, 1], [], []>} : vector<256x128xbf16>, vector<128x128xbf16>, vector<256x128xf32> -> vector<256x128xf32>
    %c0_39 = arith.constant 0 : index
    %c0_40 = arith.constant 0 : index
    %51 = vector.load %arg15[%c0_39, %c0_40] : memref<1x128xf32, #tpu.memory_space<vmem>>, vector<1x128xf32>
    %52 = vector.broadcast %51 : vector<1x128xf32> to vector<256x128xf32>
    %53 = arith.addf %50, %52 : vector<256x128xf32>
    %cst_41 = arith.constant 0.000000e+00 : f32
    %54 = vector.broadcast %cst_41 : f32 to vector<256x128xf32>
    %55 = arith.maximumf %53, %54 : vector<256x128xf32>
    %56 = arith.truncf %55 : vector<256x128xf32> to vector<256x128xbf16>
    %c0_42 = arith.constant 0 : index
    %c0_43 = arith.constant 0 : index
    %57 = vector.load %arg16[%c0_42, %c0_43] : memref<128x128xbf16, #tpu.memory_space<vmem>>, vector<128x128xbf16>
    %cst_44 = arith.constant dense<0.000000e+00> : vector<256x128xf32>
    %58 = tpu.matmul %56, %57, %cst_44 {dimension_numbers = #tpu.dot_dimension_numbers<[1], [0], [0], [1], [0, 0, 1, 1], [], []>} : vector<256x128xbf16>, vector<128x128xbf16>, vector<256x128xf32> -> vector<256x128xf32>
    %c0_45 = arith.constant 0 : index
    %c0_46 = arith.constant 0 : index
    %59 = vector.load %arg17[%c0_45, %c0_46] : memref<1x128xf32, #tpu.memory_space<vmem>>, vector<1x128xf32>
    %60 = vector.broadcast %59 : vector<1x128xf32> to vector<256x128xf32>
    %61 = arith.addf %58, %60 : vector<256x128xf32>
    %c0_47 = arith.constant 0 : index
    %c0_48 = arith.constant 0 : index
    %62 = vector.load %arg18[%c0_47, %c0_48] : memref<256x128xf32, #tpu.memory_space<vmem>>, vector<256x128xf32>
    tpu.vector_store %arg18[%c0_47, %c0_48], %61 {strides = array<i32>} : memref<256x128xf32, #tpu.memory_space<vmem>>, vector<256x128xf32>,
    return
  }
  func.func @transform_0(%arg0: i32) -> (i32, i32) {
    %c0_i32 = arith.constant 0 : i32
    %c0_i32_0 = arith.constant 0 : i32
    return %arg0, %c0_i32 : i32, i32
  }
  func.func @transform_1(%arg0: i32) -> (i32, i32) {
    %c0_i32 = arith.constant 0 : i32
    %c0_i32_0 = arith.constant 0 : i32
    %c0_i32_1 = arith.constant 0 : i32
    return %c0_i32, %c0_i32_0 : i32, i32
  }
  func.func @transform_2(%arg0: i32) -> (i32, i32) {
    %c0_i32 = arith.constant 0 : i32
    %c0_i32_0 = arith.constant 0 : i32
    %c0_i32_1 = arith.constant 0 : i32
    return %c0_i32, %c0_i32_0 : i32, i32
  }
  func.func @transform_3(%arg0: i32) -> (i32, i32) {
    %c0_i32 = arith.constant 0 : i32
    %c0_i32_0 = arith.constant 0 : i32
    %c0_i32_1 = arith.constant 0 : i32
    return %c0_i32, %c0_i32_0 : i32, i32
  }
  func.func @transform_4(%arg0: i32) -> (i32, i32) {
    %c0_i32 = arith.constant 0 : i32
    %c0_i32_0 = arith.constant 0 : i32
    %c0_i32_1 = arith.constant 0 : i32
    return %c0_i32, %c0_i32_0 : i32, i32
  }
  func.func @transform_5(%arg0: i32) -> (i32, i32) {
    %c0_i32 = arith.constant 0 : i32
    %c0_i32_0 = arith.constant 0 : i32
    %c0_i32_1 = arith.constant 0 : i32
    return %c0_i32, %c0_i32_0 : i32, i32
  }
  func.func @transform_6(%arg0: i32) -> (i32, i32) {
    %c0_i32 = arith.constant 0 : i32
    %c0_i32_0 = arith.constant 0 : i32
    %c0_i32_1 = arith.constant 0 : i32
    return %c0_i32, %c0_i32_0 : i32, i32
  }
  func.func @transform_7(%arg0: i32) -> (i32, i32) {
    %c0_i32 = arith.constant 0 : i32
    %c0_i32_0 = arith.constant 0 : i32
    %c0_i32_1 = arith.constant 0 : i32
    return %c0_i32, %c0_i32_0 : i32, i32
  }
  func.func @transform_8(%arg0: i32) -> (i32, i32) {
    %c0_i32 = arith.constant 0 : i32
    %c0_i32_0 = arith.constant 0 : i32
    %c0_i32_1 = arith.constant 0 : i32
    return %c0_i32, %c0_i32_0 : i32, i32
  }
  func.func @transform_9(%arg0: i32) -> (i32, i32) {
    %c0_i32 = arith.constant 0 : i32
    %c0_i32_0 = arith.constant 0 : i32
    %c0_i32_1 = arith.constant 0 : i32
    return %c0_i32, %c0_i32_0 : i32, i32
  }
  func.func @transform_10(%arg0: i32) -> (i32, i32) {
    %c0_i32 = arith.constant 0 : i32
    %c0_i32_0 = arith.constant 0 : i32
    %c0_i32_1 = arith.constant 0 : i32
    return %c0_i32, %c0_i32_0 : i32, i32
  }
  func.func @transform_11(%arg0: i32) -> (i32, i32) {
    %c0_i32 = arith.constant 0 : i32
    %c0_i32_0 = arith.constant 0 : i32
    %c0_i32_1 = arith.constant 0 : i32
    return %c0_i32, %c0_i32_0 : i32, i32
  }
  func.func @transform_12(%arg0: i32) -> (i32, i32) {
    %c0_i32 = arith.constant 0 : i32
    %c0_i32_0 = arith.constant 0 : i32
    %c0_i32_1 = arith.constant 0 : i32
    return %c0_i32, %c0_i32_0 : i32, i32
  }
  func.func @transform_13(%arg0: i32) -> (i32, i32) {
    %c0_i32 = arith.constant 0 : i32
    %c0_i32_0 = arith.constant 0 : i32
    %c0_i32_1 = arith.constant 0 : i32
    return %c0_i32, %c0_i32_0 : i32, i32
  }
  func.func @transform_14(%arg0: i32) -> (i32, i32) {
    %c0_i32 = arith.constant 0 : i32
    %c0_i32_0 = arith.constant 0 : i32
    %c0_i32_1 = arith.constant 0 : i32
    return %c0_i32, %c0_i32_0 : i32, i32
  }
  func.func @transform_15(%arg0: i32) -> (i32, i32) {
    %c0_i32 = arith.constant 0 : i32
    %c0_i32_0 = arith.constant 0 : i32
    %c0_i32_1 = arith.constant 0 : i32
    return %c0_i32, %c0_i32_0 : i32, i32
  }
  func.func @transform_16(%arg0: i32) -> (i32, i32) {
    %c0_i32 = arith.constant 0 : i32
    %c0_i32_0 = arith.constant 0 : i32
    %c0_i32_1 = arith.constant 0 : i32
    return %c0_i32, %c0_i32_0 : i32, i32
  }
  func.func @transform_17(%arg0: i32) -> (i32, i32) {
    %c0_i32 = arith.constant 0 : i32
    %c0_i32_0 = arith.constant 0 : i32
    return %arg0, %c0_i32 : i32, i32
  }
}

module attributes {stable_mosaic.version = 11 : i64} {
  func.func @_mlp_kernel(%arg0: i32, %arg1: memref<256x256xbf16, #tpu.memory_space<vmem>>, %arg2: memref<256x256xbf16, #tpu.memory_space<vmem>>, %arg3: memref<1x256xf32, #tpu.memory_space<vmem>>, %arg4: memref<256x256xbf16, #tpu.memory_space<vmem>>, %arg5: memref<1x256xf32, #tpu.memory_space<vmem>>, %arg6: memref<256x256xbf16, #tpu.memory_space<vmem>>, %arg7: memref<1x256xf32, #tpu.memory_space<vmem>>, %arg8: memref<256x256xbf16, #tpu.memory_space<vmem>>, %arg9: memref<1x256xf32, #tpu.memory_space<vmem>>, %arg10: memref<256x128xbf16, #tpu.memory_space<vmem>>, %arg11: memref<1x128xf32, #tpu.memory_space<vmem>>, %arg12: memref<128x128xbf16, #tpu.memory_space<vmem>>, %arg13: memref<1x128xf32, #tpu.memory_space<vmem>>, %arg14: memref<128x128xbf16, #tpu.memory_space<vmem>>, %arg15: memref<1x128xf32, #tpu.memory_space<vmem>>, %arg16: memref<128x128xbf16, #tpu.memory_space<vmem>>, %arg17: memref<1x128xf32, #tpu.memory_space<vmem>>, %arg18: memref<256x128xf32, #tpu.memory_space<vmem>>) attributes {dimension_semantics = [#tpu.dimension_semantics<parallel>], iteration_bounds = array<i64: 2>, scalar_prefetch = 0 : i64, scratch_operands = 0 : i64, tpu.core_type = #tpu.core_type<tc>, window_params = [{transform_indices = @transform_0, window_bounds = array<i64: 256, 256>}, {pipeline_mode = #tpu.pipeline_mode<synchronous>, transform_indices = @transform_1, window_bounds = array<i64: 256, 256>}, {pipeline_mode = #tpu.pipeline_mode<synchronous>, transform_indices = @transform_2, window_bounds = array<i64: 1, 256>}, {pipeline_mode = #tpu.pipeline_mode<synchronous>, transform_indices = @transform_3, window_bounds = array<i64: 256, 256>}, {pipeline_mode = #tpu.pipeline_mode<synchronous>, transform_indices = @transform_4, window_bounds = array<i64: 1, 256>}, {pipeline_mode = #tpu.pipeline_mode<synchronous>, transform_indices = @transform_5, window_bounds = array<i64: 256, 256>}, {pipeline_mode = #tpu.pipeline_mode<synchronous>, transform_indices = @transform_6, window_bounds = array<i64: 1, 256>}, {pipeline_mode = #tpu.pipeline_mode<synchronous>, transform_indices = @transform_7, window_bounds = array<i64: 256, 256>}, {pipeline_mode = #tpu.pipeline_mode<synchronous>, transform_indices = @transform_8, window_bounds = array<i64: 1, 256>}, {pipeline_mode = #tpu.pipeline_mode<synchronous>, transform_indices = @transform_9, window_bounds = array<i64: 256, 128>}, {pipeline_mode = #tpu.pipeline_mode<synchronous>, transform_indices = @transform_10, window_bounds = array<i64: 1, 128>}, {pipeline_mode = #tpu.pipeline_mode<synchronous>, transform_indices = @transform_11, window_bounds = array<i64: 128, 128>}, {pipeline_mode = #tpu.pipeline_mode<synchronous>, transform_indices = @transform_12, window_bounds = array<i64: 1, 128>}, {pipeline_mode = #tpu.pipeline_mode<synchronous>, transform_indices = @transform_13, window_bounds = array<i64: 128, 128>}, {pipeline_mode = #tpu.pipeline_mode<synchronous>, transform_indices = @transform_14, window_bounds = array<i64: 1, 128>}, {pipeline_mode = #tpu.pipeline_mode<synchronous>, transform_indices = @transform_15, window_bounds = array<i64: 128, 128>}, {pipeline_mode = #tpu.pipeline_mode<synchronous>, transform_indices = @transform_16, window_bounds = array<i64: 1, 128>}, {transform_indices = @transform_17, window_bounds = array<i64: 256, 128>}]} {
    %c0 = arith.constant 0 : index
    %c0_0 = arith.constant 0 : index
    %0 = vector.load %arg1[%c0, %c0_0] : memref<256x256xbf16, #tpu.memory_space<vmem>>, vector<256x256xbf16>
    %c0_1 = arith.constant 0 : index
    %c0_2 = arith.constant 0 : index
    %1 = vector.load %arg2[%c0_1, %c0_2] : memref<256x256xbf16, #tpu.memory_space<vmem>>, vector<256x256xbf16>
    %cst = arith.constant dense<0.000000e+00> : vector<256x256xf32>
    %2 = tpu.matmul %0, %1, %cst {dimension_numbers = #tpu.dot_dimension_numbers<[1], [0], [0], [1], [0, 0, 1, 1], [], []>} : vector<256x256xbf16>, vector<256x256xbf16>, vector<256x256xf32> -> vector<256x256xf32>
    %c0_3 = arith.constant 0 : index
    %c0_4 = arith.constant 0 : index
    %3 = vector.load %arg3[%c0_3, %c0_4] : memref<1x256xf32, #tpu.memory_space<vmem>>, vector<1x256xf32>
    %4 = vector.broadcast %3 : vector<1x256xf32> to vector<256x256xf32>
    %5 = arith.addf %2, %4 : vector<256x256xf32>
    %cst_5 = arith.constant 0.000000e+00 : f32
    %6 = vector.broadcast %cst_5 : f32 to vector<256x256xf32>
    %7 = arith.maximumf %5, %6 : vector<256x256xf32>
    %8 = arith.truncf %7 : vector<256x256xf32> to vector<256x256xbf16>
    %c0_6 = arith.constant 0 : index
    %c0_7 = arith.constant 0 : index
    %9 = vector.load %arg4[%c0_6, %c0_7] : memref<256x256xbf16, #tpu.memory_space<vmem>>, vector<256x256xbf16>
    %cst_8 = arith.constant dense<0.000000e+00> : vector<256x256xf32>
    %10 = tpu.matmul %8, %9, %cst_8 {dimension_numbers = #tpu.dot_dimension_numbers<[1], [0], [0], [1], [0, 0, 1, 1], [], []>} : vector<256x256xbf16>, vector<256x256xbf16>, vector<256x256xf32> -> vector<256x256xf32>
    %c0_9 = arith.constant 0 : index
    %c0_10 = arith.constant 0 : index
    %11 = vector.load %arg5[%c0_9, %c0_10] : memref<1x256xf32, #tpu.memory_space<vmem>>, vector<1x256xf32>
    %12 = vector.broadcast %11 : vector<1x256xf32> to vector<256x256xf32>
    %13 = arith.addf %10, %12 : vector<256x256xf32>
    %cst_11 = arith.constant 0.000000e+00 : f32
    %14 = vector.broadcast %cst_11 : f32 to vector<256x256xf32>
    %15 = arith.maximumf %13, %14 : vector<256x256xf32>
    %16 = arith.truncf %15 : vector<256x256xf32> to vector<256x256xbf16>
    %c0_12 = arith.constant 0 : index
    %c0_13 = arith.constant 0 : index
    %17 = vector.load %arg6[%c0_12, %c0_13] : memref<256x256xbf16, #tpu.memory_space<vmem>>, vector<256x256xbf16>
    %cst_14 = arith.constant dense<0.000000e+00> : vector<256x256xf32>
    %18 = tpu.matmul %16, %17, %cst_14 {dimension_numbers = #tpu.dot_dimension_numbers<[1], [0], [0], [1], [0, 0, 1, 1], [], []>} : vector<256x256xbf16>, vector<256x256xbf16>, vector<256x256xf32> -> vector<256x256xf32>
    %c0_15 = arith.constant 0 : index
    %c0_16 = arith.constant 0 : index
    %19 = vector.load %arg7[%c0_15, %c0_16] : memref<1x256xf32, #tpu.memory_space<vmem>>, vector<1x256xf32>
    %20 = vector.broadcast %19 : vector<1x256xf32> to vector<256x256xf32>
    %21 = arith.addf %18, %20 : vector<256x256xf32>
    %cst_17 = arith.constant 0.000000e+00 : f32
    %22 = vector.broadcast %cst_17 : f32 to vector<256x256xf32>
    %23 = arith.maximumf %21, %22 : vector<256x256xf32>
    %24 = arith.truncf %23 : vector<256x256xf32> to vector<256x256xbf16>
    %c0_18 = arith.constant 0 : index
    %c0_19 = arith.constant 0 : index
    %25 = vector.load %arg8[%c0_18, %c0_19] : memref<256x256xbf16, #tpu.memory_space<vmem>>, vector<256x256xbf16>
    %cst_20 = arith.constant dense<0.000000e+00> : vector<256x256xf32>
    %26 = tpu.matmul %24, %25, %cst_20 {dimension_numbers = #tpu.dot_dimension_numbers<[1], [0], [0], [1], [0, 0, 1, 1], [], []>} : vector<256x256xbf16>, vector<256x256xbf16>, vector<256x256xf32> -> vector<256x256xf32>
    %c0_21 = arith.constant 0 : index
    %c0_22 = arith.constant 0 : index
    %27 = vector.load %arg9[%c0_21, %c0_22] : memref<1x256xf32, #tpu.memory_space<vmem>>, vector<1x256xf32>
    %28 = vector.broadcast %27 : vector<1x256xf32> to vector<256x256xf32>
    %29 = arith.addf %26, %28 : vector<256x256xf32>
    %cst_23 = arith.constant 0.000000e+00 : f32
    %30 = vector.broadcast %cst_23 : f32 to vector<256x256xf32>
    %31 = arith.maximumf %29, %30 : vector<256x256xf32>
    %32 = arith.truncf %31 : vector<256x256xf32> to vector<256x256xbf16>
    %c0_24 = arith.constant 0 : index
    %c0_25 = arith.constant 0 : index
    %33 = vector.load %arg10[%c0_24, %c0_25] : memref<256x128xbf16, #tpu.memory_space<vmem>>, vector<256x128xbf16>
    %cst_26 = arith.constant dense<0.000000e+00> : vector<256x128xf32>
    %34 = tpu.matmul %32, %33, %cst_26 {dimension_numbers = #tpu.dot_dimension_numbers<[1], [0], [0], [1], [0, 0, 1, 1], [], []>} : vector<256x256xbf16>, vector<256x128xbf16>, vector<256x128xf32> -> vector<256x128xf32>
    %c0_27 = arith.constant 0 : index
    %c0_28 = arith.constant 0 : index
    %35 = vector.load %arg11[%c0_27, %c0_28] : memref<1x128xf32, #tpu.memory_space<vmem>>, vector<1x128xf32>
    %36 = vector.broadcast %35 : vector<1x128xf32> to vector<256x128xf32>
    %37 = arith.addf %34, %36 : vector<256x128xf32>
    %cst_29 = arith.constant 0.000000e+00 : f32
    %38 = vector.broadcast %cst_29 : f32 to vector<256x128xf32>
    %39 = arith.maximumf %37, %38 : vector<256x128xf32>
    %40 = arith.truncf %39 : vector<256x128xf32> to vector<256x128xbf16>
    %c0_30 = arith.constant 0 : index
    %c0_31 = arith.constant 0 : index
    %41 = vector.load %arg12[%c0_30, %c0_31] : memref<128x128xbf16, #tpu.memory_space<vmem>>, vector<128x128xbf16>
    %cst_32 = arith.constant dense<0.000000e+00> : vector<256x128xf32>
    %42 = tpu.matmul %40, %41, %cst_32 {dimension_numbers = #tpu.dot_dimension_numbers<[1], [0], [0], [1], [0, 0, 1, 1], [], []>} : vector<256x128xbf16>, vector<128x128xbf16>, vector<256x128xf32> -> vector<256x128xf32>
    %c0_33 = arith.constant 0 : index
    %c0_34 = arith.constant 0 : index
    %43 = vector.load %arg13[%c0_33, %c0_34] : memref<1x128xf32, #tpu.memory_space<vmem>>, vector<1x128xf32>
    %44 = vector.broadcast %43 : vector<1x128xf32> to vector<256x128xf32>
    %45 = arith.addf %42, %44 : vector<256x128xf32>
    %cst_35 = arith.constant 0.000000e+00 : f32
    %46 = vector.broadcast %cst_35 : f32 to vector<256x128xf32>
    %47 = arith.maximumf %45, %46 : vector<256x128xf32>
    %48 = arith.truncf %47 : vector<256x128xf32> to vector<256x128xbf16>
    %c0_36 = arith.constant 0 : index
    %c0_37 = arith.constant 0 : index
    %49 = vector.load %arg14[%c0_36, %c0_37] : memref<128x128xbf16, #tpu.memory_space<vmem>>, vector<128x128xbf16>
    %cst_38 = arith.constant dense<0.000000e+00> : vector<256x128xf32>
    %50 = tpu.matmul %48, %49, %cst_38 {dimension_numbers = #tpu.dot_dimension_numbers<[1], [0], [0], [1], [0, 0, 1, 1], [], []>} : vector<256x128xbf16>, vector<128x128xbf16>, vector<256x128xf32> -> vector<256x128xf32>
    %c0_39 = arith.constant 0 : index
    %c0_40 = arith.constant 0 : index
    %51 = vector.load %arg15[%c0_39, %c0_40] : memref<1x128xf32, #tpu.memory_space<vmem>>, vector<1x128xf32>
    %52 = vector.broadcast %51 : vector<1x128xf32> to vector<256x128xf32>
    %53 = arith.addf %50, %52 : vector<256x128xf32>
    %cst_41 = arith.constant 0.000000e+00 : f32
    %54 = vector.broadcast %cst_41 : f32 to vector<256x128xf32>
    %55 = arith.maximumf %53, %54 : vector<256x128xf32>
    %56 = arith.truncf %55 : vector<256x128xf32> to vector<256x128xbf16>
    %c0_42 = arith.constant 0 : index
    %c0_43 = arith.constant 0 : index
    %57 = vector.load %arg16[%c0_42, %c0_43] : memref<128x128xbf16, #tpu.memory_space<vmem>>, vector<128x128xbf16>
    %cst_44 = arith.constant dense<0.000000e+00> : vector<256x128xf32>
    %58 = tpu.matmul %56, %57, %cst_44 {dimension_numbers = #tpu.dot_dimension_numbers<[1], [0], [0], [1], [0, 0, 1, 1], [], []>} : vector<256x128xbf16>, vector<128x128xbf16>, vector<256x128xf32> -> vector<256x128xf32>
    %c0_45 = arith.constant 0 : index
    %c0_46 = arith.constant 0 : index
    %59 = vector.load %arg17[%c0_45, %c0_46] : memref<1x128xf32, #tpu.memory_space<vmem>>, vector<1x128xf32>
    %60 = vector.broadcast %59 : vector<1x128xf32> to vector<256x128xf32>
    %61 = arith.addf %58, %60 : vector<256x128xf32>
    %c0_47 = arith.constant 0 : index
    %c0_48 = arith.constant 0 : index
    %62 = vector.load %arg18[%c0_47, %c0_48] : memref<256x128xf32, #tpu.memory_space<vmem>>, vector<256x128xf32>
    tpu.vector_store %arg18[%c0_47, %c0_48], %61 {strides = array<i32>} : memref<256x128xf32, #tpu.memory_space<vmem>>, vector<256x128xf32>,
    return
  }
  func.func @transform_0(%arg0: i32) -> (i32, i32) {
    %c0_i32 = arith.constant 0 : i32
    %c0_i32_0 = arith.constant 0 : i32
    return %arg0, %c0_i32 : i32, i32
  }
  func.func @transform_1(%arg0: i32) -> (i32, i32) {
    %c0_i32 = arith.constant 0 : i32
    %c0_i32_0 = arith.constant 0 : i32
    %c0_i32_1 = arith.constant 0 : i32
    return %c0_i32, %c0_i32_0 : i32, i32
  }
  func.func @transform_2(%arg0: i32) -> (i32, i32) {
    %c0_i32 = arith.constant 0 : i32
    %c0_i32_0 = arith.constant 0 : i32
    %c0_i32_1 = arith.constant 0 : i32
    return %c0_i32, %c0_i32_0 : i32, i32
  }
  func.func @transform_3(%arg0: i32) -> (i32, i32) {
    %c0_i32 = arith.constant 0 : i32
    %c0_i32_0 = arith.constant 0 : i32
    %c0_i32_1 = arith.constant 0 : i32
    return %c0_i32, %c0_i32_0 : i32, i32
  }
  func.func @transform_4(%arg0: i32) -> (i32, i32) {
    %c0_i32 = arith.constant 0 : i32
    %c0_i32_0 = arith.constant 0 : i32
    %c0_i32_1 = arith.constant 0 : i32
    return %c0_i32, %c0_i32_0 : i32, i32
  }
  func.func @transform_5(%arg0: i32) -> (i32, i32) {
    %c0_i32 = arith.constant 0 : i32
    %c0_i32_0 = arith.constant 0 : i32
    %c0_i32_1 = arith.constant 0 : i32
    return %c0_i32, %c0_i32_0 : i32, i32
  }
  func.func @transform_6(%arg0: i32) -> (i32, i32) {
    %c0_i32 = arith.constant 0 : i32
    %c0_i32_0 = arith.constant 0 : i32
    %c0_i32_1 = arith.constant 0 : i32
    return %c0_i32, %c0_i32_0 : i32, i32
  }
  func.func @transform_7(%arg0: i32) -> (i32, i32) {
    %c0_i32 = arith.constant 0 : i32
    %c0_i32_0 = arith.constant 0 : i32
    %c0_i32_1 = arith.constant 0 : i32
    return %c0_i32, %c0_i32_0 : i32, i32
  }
  func.func @transform_8(%arg0: i32) -> (i32, i32) {
    %c0_i32 = arith.constant 0 : i32
    %c0_i32_0 = arith.constant 0 : i32
    %c0_i32_1 = arith.constant 0 : i32
    return %c0_i32, %c0_i32_0 : i32, i32
  }
  func.func @transform_9(%arg0: i32) -> (i32, i32) {
    %c0_i32 = arith.constant 0 : i32
    %c0_i32_0 = arith.constant 0 : i32
    %c0_i32_1 = arith.constant 0 : i32
    return %c0_i32, %c0_i32_0 : i32, i32
  }
  func.func @transform_10(%arg0: i32) -> (i32, i32) {
    %c0_i32 = arith.constant 0 : i32
    %c0_i32_0 = arith.constant 0 : i32
    %c0_i32_1 = arith.constant 0 : i32
    return %c0_i32, %c0_i32_0 : i32, i32
  }
  func.func @transform_11(%arg0: i32) -> (i32, i32) {
    %c0_i32 = arith.constant 0 : i32
    %c0_i32_0 = arith.constant 0 : i32
    %c0_i32_1 = arith.constant 0 : i32
    return %c0_i32, %c0_i32_0 : i32, i32
  }
  func.func @transform_12(%arg0: i32) -> (i32, i32) {
    %c0_i32 = arith.constant 0 : i32
    %c0_i32_0 = arith.constant 0 : i32
    %c0_i32_1 = arith.constant 0 : i32
    return %c0_i32, %c0_i32_0 : i32, i32
  }
  func.func @transform_13(%arg0: i32) -> (i32, i32) {
    %c0_i32 = arith.constant 0 : i32
    %c0_i32_0 = arith.constant 0 : i32
    %c0_i32_1 = arith.constant 0 : i32
    return %c0_i32, %c0_i32_0 : i32, i32
  }
  func.func @transform_14(%arg0: i32) -> (i32, i32) {
    %c0_i32 = arith.constant 0 : i32
    %c0_i32_0 = arith.constant 0 : i32
    %c0_i32_1 = arith.constant 0 : i32
    return %c0_i32, %c0_i32_0 : i32, i32
  }
  func.func @transform_15(%arg0: i32) -> (i32, i32) {
    %c0_i32 = arith.constant 0 : i32
    %c0_i32_0 = arith.constant 0 : i32
    %c0_i32_1 = arith.constant 0 : i32
    return %c0_i32, %c0_i32_0 : i32, i32
  }
  func.func @transform_16(%arg0: i32) -> (i32, i32) {
    %c0_i32 = arith.constant 0 : i32
    %c0_i32_0 = arith.constant 0 : i32
    %c0_i32_1 = arith.constant 0 : i32
    return %c0_i32, %c0_i32_0 : i32, i32
  }
  func.func @transform_17(%arg0: i32) -> (i32, i32) {
    %c0_i32 = arith.constant 0 : i32
    %c0_i32_0 = arith.constant 0 : i32
    return %arg0, %c0_i32 : i32, i32
  }
}

</mosaic_0001>

<llo_original>
// kernel: tpu_custom_call.1
$region0: #{tpu_custom_call.1}
  #allocation0 [shape = 'u32[]', space=smem, size = 0x4, offset = 0x4, fixed_abs, tag = 'smem constant byte address 0x4 - core index']
  #allocation1 [shape = 'u32[72,128]{1,0:T(1,128)}', space=vmem, size = 0x9000, scoped, tag = 'internal scratch']
  %s0 = inlined_call_operand.hbm [shape: bf16[512,256], index: 0, kind: input, shape index: {}]
  %s1 = inlined_call_operand.hbm [shape: bf16[256,256], index: 1, kind: input, shape index: {}]
  %s2 = inlined_call_operand.hbm [shape: f32[1,256], index: 2, kind: input, shape index: {}]
  %s3 = inlined_call_operand.hbm [shape: bf16[256,256], index: 3, kind: input, shape index: {}]
  %s4 = inlined_call_operand.vmem [shape: f32[1,256], index: 4, kind: input, shape index: {}]
  %s5 = inlined_call_operand.hbm [shape: bf16[256,256], index: 5, kind: input, shape index: {}]
  %s6 = inlined_call_operand.vmem [shape: f32[1,256], index: 6, kind: input, shape index: {}]
  %s7 = inlined_call_operand.hbm [shape: bf16[256,256], index: 7, kind: input, shape index: {}]
  %s8 = inlined_call_operand.vmem [shape: f32[1,256], index: 8, kind: input, shape index: {}]
  %s9 = inlined_call_operand.hbm [shape: bf16[256,128], index: 9, kind: input, shape index: {}]
  %s10 = inlined_call_operand.vmem [shape: f32[1,128], index: 10, kind: input, shape index: {}]
  %s11 = inlined_call_operand.hbm [shape: bf16[128,128], index: 11, kind: input, shape index: {}]
  %s12 = inlined_call_operand.vmem [shape: f32[1,128], index: 12, kind: input, shape index: {}]
  %s13 = inlined_call_operand.hbm [shape: bf16[128,128], index: 13, kind: input, shape index: {}]
  %s14 = inlined_call_operand.vmem [shape: f32[1,128], index: 14, kind: input, shape index: {}]
  %s15 = inlined_call_operand.hbm [shape: bf16[128,128], index: 15, kind: input, shape index: {}]
  %s16 = inlined_call_operand.vmem [shape: f32[1,128], index: 16, kind: input, shape index: {}]
  %s17 = inlined_call_operand.hbm [shape: f32[512,128], index: 17, kind: output, shape index: {}]
  %s18 = sld [smem:[#allocation0]]
  $region141: #{tpu_custom_call.1} parent=0
    _
  %s20 = ssub.s32 1, %s18
  %s21 = scalar_select 0, %s20, %s18
  $region1: #{tpu_custom_call.1} parent=0
    #allocation2 [shape = 'u8[262144]{0}', space=vmem, size = 0x40000, scoped, tag = 'input window, operand 0']
    #allocation3 [shape = 's32[2]{0}', space=sflag, size = 0x8, scoped, tag = 'scoped memory for tpu_custom_call.1']
    #allocation4 [shape = 's32[2]{0}', space=sflag, size = 0x8, scoped, tag = 'scoped memory for tpu_custom_call.1']
    #allocation5 [shape = 'u8[131072]{0}', space=vmem, size = 0x20000, scoped, tag = 'input window, operand 1, single buffered']
    #allocation6 [shape = 's32[1]{0}', space=sflag, size = 0x4, scoped, tag = 'scoped memory for tpu_custom_call.1']
    #allocation7 [shape = 'u8[1024]{0}', space=vmem, size = 0x400, scoped, tag = 'input window, operand 2, single buffered']
    #allocation8 [shape = 'u8[131072]{0}', space=vmem, size = 0x20000, scoped, tag = 'input window, operand 3, single buffered']
    #allocation9 [shape = 's32[1]{0}', space=sflag, size = 0x4, scoped, tag = 'scoped memory for tpu_custom_call.1']
    #allocation10 [shape = 'u8[131072]{0}', space=vmem, size = 0x20000, scoped, tag = 'input window, operand 5, single buffered']
    #allocation11 [shape = 'u8[131072]{0}', space=vmem, size = 0x20000, scoped, tag = 'input window, operand 7, single buffered']
    #allocation12 [shape = 's32[1]{0}', space=sflag, size = 0x4, scoped, tag = 'scoped memory for tpu_custom_call.1']
    #allocation13 [shape = 'u8[65536]{0}', space=vmem, size = 0x10000, scoped, tag = 'input window, operand 9, single buffered']
    #allocation14 [shape = 'u8[32768]{0}', space=vmem, size = 0x8000, scoped, tag = 'input window, operand 11, single buffered']
    #allocation15 [shape = 's32[1]{0}', space=sflag, size = 0x4, scoped, tag = 'scoped memory for tpu_custom_call.1']
    #allocation16 [shape = 'u8[32768]{0}', space=vmem, size = 0x8000, scoped, tag = 'input window, operand 13, single buffered']
    #allocation17 [shape = 'u8[32768]{0}', space=vmem, size = 0x8000, scoped, tag = 'input window, operand 15, single buffered']
    #allocation18 [shape = 's32[1]{0}', space=sflag, size = 0x4, scoped, tag = 'scoped memory for tpu_custom_call.1']
    #allocation19 [shape = 'u8[262144]{0}', space=vmem, size = 0x40000, scoped, tag = 'output window, operand 0']
    %22 = vsyncpa [#allocation3], 0
    %s23 = scalar_lea.sflag [#allocation3], 1
    %24 = vsyncpa %s23, 0
    %25 = vsyncpa [#allocation6], 0
    %26 = vsyncpa [#allocation9], 0
    %27 = vsyncpa [#allocation12], 0
    %28 = vsyncpa [#allocation15], 0
    %29 = vsyncpa [#allocation18], 0
    %30 = vsyncpa [#allocation4], 0
    %s31 = scalar_lea.sflag [#allocation4], 1
    %32 = vsyncpa %s31, 0
    loop: start=0, step=1, limit=4
    $region2: #{tpu_custom_call.1} parent=1 // loop_pre_header
      _
    $region3: #{tpu_custom_call.1} parent=1 // loop_header
      %s34 = sphi 0, %s38
      %p35 = scmp.ge.s32.totalorder %s34, 4
      %s44 = sphi 0, %s46
      %s47 = sphi 0, %s44
      %s48 = sphi 0, %s47
      %s64 = sphi 0, %s48
      %s68 = sphi 0, %s68
      %s70 = sphi 0, %s68
      %s71 = sphi 0, %s70
      %s85 = sphi 0, %s71
      %s89 = sphi 0, %s89
      %s91 = sphi 0, %s89
      %s92 = sphi 0, %s91
      %s106 = sphi 0, %s92
      %s110 = sphi 0, %s110
      %s112 = sphi 0, %s110
      %s113 = sphi 0, %s112
      %s127 = sphi 0, %s113
      %s131 = sphi 0, %s131
      %s133 = sphi 0, %s131
      %s134 = sphi 0, %s133
      %s148 = sphi 0, %s134
      %s152 = sphi 0, %s152
      %s154 = sphi 0, %s152
      %s155 = sphi 0, %s154
      %s169 = sphi 0, %s155
      %s173 = sphi 0, %s173
      %s175 = sphi 0, %s173
      %s176 = sphi 0, %s175
      %s190 = sphi 0, %s176
      %s194 = sphi 0, %s194
      %s196 = sphi 0, %s194
      %s197 = sphi 0, %s196
      %s211 = sphi 0, %s197
      %s215 = sphi 0, %s215
      %s217 = sphi 0, %s215
      %s218 = sphi 0, %s217
      %s232 = sphi 0, %s218
      %s236 = sphi 0, %s236
      %s238 = sphi 0, %s236
      %s239 = sphi 0, %s238
      %s253 = sphi 0, %s239
      %s257 = sphi 0, %s257
      %s259 = sphi 0, %s257
      %s260 = sphi 0, %s259
      %s274 = sphi 0, %s260
      %s278 = sphi 0, %s278
      %s280 = sphi 0, %s278
      %s281 = sphi 0, %s280
      %s295 = sphi 0, %s281
      %s299 = sphi 0, %s299
      %s301 = sphi 0, %s299
      %s302 = sphi 0, %s301
      %s316 = sphi 0, %s302
      %s320 = sphi 0, %s320
      %s322 = sphi 0, %s320
      %s323 = sphi 0, %s322
      %s337 = sphi 0, %s323
      %s341 = sphi 0, %s341
      %s343 = sphi 0, %s341
      %s344 = sphi 0, %s343
      %s358 = sphi 0, %s344
      %s362 = sphi 0, %s362
      %s364 = sphi 0, %s362
      %s365 = sphi 0, %s364
      %s379 = sphi 0, %s365
      %s383 = sphi 0, %s383
      %s385 = sphi 0, %s383
      %s386 = sphi 0, %s385
      %s400 = sphi 0, %s386
      %s406 = sphi 0, %s408
      %s409 = sphi 0, %s406
      %s410 = sphi 0, %s409
      %s426 = sphi 0, %s410
    $region4: #{tpu_custom_call.1} parent=1 // loop_header_branch
      %37 = sbr.rel (%p35) target = $region8
    $region5: #{tpu_custom_call.1} parent=1 // loop_body
      %s39 = ssub.s32 %s34, 1
      %s40 = ssub.s32 %s34, 2
      %s41 = sadd.s32 %s34, 1
      %s42 = ssub.s32 %s34, %s41
      %p43 = scmp.eq.s32.totalorder %s42, 0
      %s45 = sadd.s32 %s44, 1
      %s46 = scalar_select %p43, %s44, %s45
      %p49 = pneg %p43
      %p50 = scmp.eq.s32.totalorder %s34, 1
      %p51 = por %p49, %p50
      %p52 = scmp.ne.s32.totalorder %s44, %s47
      %p53 = scmp.eq.s32.totalorder %s34, 0
      %p54 = por %p52, %p53
      %p55 = scmp.ne.s32.totalorder %s44, %s47
      %p56 = scmp.eq.s32.totalorder %s39, 1
      %p57 = por %p55, %p56
      %p58 = scmp.ne.s32.totalorder %s47, %s48
      %p59 = scmp.eq.s32.totalorder %s39, 0
      %p60 = por %p58, %p59
      %p61 = scmp.ne.s32.totalorder %s47, %s48
      %p62 = scmp.eq.s32.totalorder %s40, 1
      %p63 = por %p61, %p62
      %p65 = scmp.ne.s32.totalorder %s48, %s64
      %p66 = scmp.eq.s32.totalorder %s40, 0
      %p67 = por %p65, %p66
      %s69 = sadd.s32 %s68, 1
      %p72 = scmp.eq.s32.totalorder %s34, 1
      %p73 = scmp.ne.s32.totalorder %s68, %s70
      %p74 = scmp.eq.s32.totalorder %s34, 0
      %p75 = por %p73, %p74
      %p76 = scmp.ne.s32.totalorder %s68, %s70
      %p77 = scmp.eq.s32.totalorder %s39, 1
      %p78 = por %p76, %p77
      %p79 = scmp.ne.s32.totalorder %s70, %s71
      %p80 = scmp.eq.s32.totalorder %s39, 0
      %p81 = por %p79, %p80
      %p82 = scmp.ne.s32.totalorder %s70, %s71
      %p83 = scmp.eq.s32.totalorder %s40, 1
      %p84 = por %p82, %p83
      %p86 = scmp.ne.s32.totalorder %s71, %s85
      %p87 = scmp.eq.s32.totalorder %s40, 0
      %p88 = por %p86, %p87
      %s90 = sadd.s32 %s89, 1
      %p93 = scmp.eq.s32.totalorder %s34, 1
      %p94 = scmp.ne.s32.totalorder %s89, %s91
      %p95 = scmp.eq.s32.totalorder %s34, 0
      %p96 = por %p94, %p95
      %p97 = scmp.ne.s32.totalorder %s89, %s91
      %p98 = scmp.eq.s32.totalorder %s39, 1
      %p99 = por %p97, %p98
      %p100 = scmp.ne.s32.totalorder %s91, %s92
      %p101 = scmp.eq.s32.totalorder %s39, 0
      %p102 = por %p100, %p101
      %p103 = scmp.ne.s32.totalorder %s91, %s92
      %p104 = scmp.eq.s32.totalorder %s40, 1
      %p105 = por %p103, %p104
      %p107 = scmp.ne.s32.totalorder %s92, %s106
      %p108 = scmp.eq.s32.totalorder %s40, 0
      %p109 = por %p107, %p108
      %s111 = sadd.s32 %s110, 1
      %p114 = scmp.eq.s32.totalorder %s34, 1
      %p115 = scmp.ne.s32.totalorder %s110, %s112
      %p116 = scmp.eq.s32.totalorder %s34, 0
      %p117 = por %p115, %p116
      %p118 = scmp.ne.s32.totalorder %s110, %s112
      %p119 = scmp.eq.s32.totalorder %s39, 1
      %p120 = por %p118, %p119
      %p121 = scmp.ne.s32.totalorder %s112, %s113
      %p122 = scmp.eq.s32.totalorder %s39, 0
      %p123 = por %p121, %p122
      %p124 = scmp.ne.s32.totalorder %s112, %s113
      %p125 = scmp.eq.s32.totalorder %s40, 1
      %p126 = por %p124, %p125
      %p128 = scmp.ne.s32.totalorder %s113, %s127
      %p129 = scmp.eq.s32.totalorder %s40, 0
      %p130 = por %p128, %p129
      %s132 = sadd.s32 %s131, 1
      %p135 = scmp.eq.s32.totalorder %s34, 1
      %p136 = scmp.ne.s32.totalorder %s131, %s133
      %p137 = scmp.eq.s32.totalorder %s34, 0
      %p138 = por %p136, %p137
      %p139 = scmp.ne.s32.totalorder %s131, %s133
      %p140 = scmp.eq.s32.totalorder %s39, 1
      %p141 = por %p139, %p140
      %p142 = scmp.ne.s32.totalorder %s133, %s134
      %p143 = scmp.eq.s32.totalorder %s39, 0
      %p144 = por %p142, %p143
      %p145 = scmp.ne.s32.totalorder %s133, %s134
      %p146 = scmp.eq.s32.totalorder %s40, 1
      %p147 = por %p145, %p146
      %p149 = scmp.ne.s32.totalorder %s134, %s148
      %p150 = scmp.eq.s32.totalorder %s40, 0
      %p151 = por %p149, %p150
      %s153 = sadd.s32 %s152, 1
      %p156 = scmp.eq.s32.totalorder %s34, 1
      %p157 = scmp.ne.s32.totalorder %s152, %s154
      %p158 = scmp.eq.s32.totalorder %s34, 0
      %p159 = por %p157, %p158
      %p160 = scmp.ne.s32.totalorder %s152, %s154
      %p161 = scmp.eq.s32.totalorder %s39, 1
      %p162 = por %p160, %p161
      %p163 = scmp.ne.s32.totalorder %s154, %s155
      %p164 = scmp.eq.s32.totalorder %s39, 0
      %p165 = por %p163, %p164
      %p166 = scmp.ne.s32.totalorder %s154, %s155
      %p167 = scmp.eq.s32.totalorder %s40, 1
      %p168 = por %p166, %p167
      %p170 = scmp.ne.s32.totalorder %s155, %s169
      %p171 = scmp.eq.s32.totalorder %s40, 0
      %p172 = por %p170, %p171
      %s174 = sadd.s32 %s173, 1
      %p177 = scmp.eq.s32.totalorder %s34, 1
      %p178 = scmp.ne.s32.totalorder %s173, %s175
      %p179 = scmp.eq.s32.totalorder %s34, 0
      %p180 = por %p178, %p179
      %p181 = scmp.ne.s32.totalorder %s173, %s175
      %p182 = scmp.eq.s32.totalorder %s39, 1
      %p183 = por %p181, %p182
      %p184 = scmp.ne.s32.totalorder %s175, %s176
      %p185 = scmp.eq.s32.totalorder %s39, 0
      %p186 = por %p184, %p185
      %p187 = scmp.ne.s32.totalorder %s175, %s176
      %p188 = scmp.eq.s32.totalorder %s40, 1
      %p189 = por %p187, %p188
      %p191 = scmp.ne.s32.totalorder %s176, %s190
      %p192 = scmp.eq.s32.totalorder %s40, 0
      %p193 = por %p191, %p192
      %s195 = sadd.s32 %s194, 1
      %p198 = scmp.eq.s32.totalorder %s34, 1
      %p199 = scmp.ne.s32.totalorder %s194, %s196
      %p200 = scmp.eq.s32.totalorder %s34, 0
      %p201 = por %p199, %p200
      %p202 = scmp.ne.s32.totalorder %s194, %s196
      %p203 = scmp.eq.s32.totalorder %s39, 1
      %p204 = por %p202, %p203
      %p205 = scmp.ne.s32.totalorder %s196, %s197
      %p206 = scmp.eq.s32.totalorder %s39, 0
      %p207 = por %p205, %p206
      %p208 = scmp.ne.s32.totalorder %s196, %s197
      %p209 = scmp.eq.s32.totalorder %s40, 1
      %p210 = por %p208, %p209
      %p212 = scmp.ne.s32.totalorder %s197, %s211
      %p213 = scmp.eq.s32.totalorder %s40, 0
      %p214 = por %p212, %p213
      %s216 = sadd.s32 %s215, 1
      %p219 = scmp.eq.s32.totalorder %s34, 1
      %p220 = scmp.ne.s32.totalorder %s215, %s217
      %p221 = scmp.eq.s32.totalorder %s34, 0
      %p222 = por %p220, %p221
      %p223 = scmp.ne.s32.totalorder %s215, %s217
      %p224 = scmp.eq.s32.totalorder %s39, 1
      %p225 = por %p223, %p224
      %p226 = scmp.ne.s32.totalorder %s217, %s218
      %p227 = scmp.eq.s32.totalorder %s39, 0
      %p228 = por %p226, %p227
      %p229 = scmp.ne.s32.totalorder %s217, %s218
      %p230 = scmp.eq.s32.totalorder %s40, 1
      %p231 = por %p229, %p230
      %p233 = scmp.ne.s32.totalorder %s218, %s232
      %p234 = scmp.eq.s32.totalorder %s40, 0
      %p235 = por %p233, %p234
      %s237 = sadd.s32 %s236, 1
      %p240 = scmp.eq.s32.totalorder %s34, 1
      %p241 = scmp.ne.s32.totalorder %s236, %s238
      %p242 = scmp.eq.s32.totalorder %s34, 0
      %p243 = por %p241, %p242
      %p244 = scmp.ne.s32.totalorder %s236, %s238
      %p245 = scmp.eq.s32.totalorder %s39, 1
      %p246 = por %p244, %p245
      %p247 = scmp.ne.s32.totalorder %s238, %s239
      %p248 = scmp.eq.s32.totalorder %s39, 0
      %p249 = por %p247, %p248
      %p250 = scmp.ne.s32.totalorder %s238, %s239
      %p251 = scmp.eq.s32.totalorder %s40, 1
      %p252 = por %p250, %p251
      %p254 = scmp.ne.s32.totalorder %s239, %s253
      %p255 = scmp.eq.s32.totalorder %s40, 0
      %p256 = por %p254, %p255
      %s258 = sadd.s32 %s257, 1
      %p261 = scmp.eq.s32.totalorder %s34, 1
      %p262 = scmp.ne.s32.totalorder %s257, %s259
      %p263 = scmp.eq.s32.totalorder %s34, 0
      %p264 = por %p262, %p263
      %p265 = scmp.ne.s32.totalorder %s257, %s259
      %p266 = scmp.eq.s32.totalorder %s39, 1
      %p267 = por %p265, %p266
      %p268 = scmp.ne.s32.totalorder %s259, %s260
      %p269 = scmp.eq.s32.totalorder %s39, 0
      %p270 = por %p268, %p269
      %p271 = scmp.ne.s32.totalorder %s259, %s260
      %p272 = scmp.eq.s32.totalorder %s40, 1
      %p273 = por %p271, %p272
      %p275 = scmp.ne.s32.totalorder %s260, %s274
      %p276 = scmp.eq.s32.totalorder %s40, 0
      %p277 = por %p275, %p276
      %s279 = sadd.s32 %s278, 1
      %p282 = scmp.eq.s32.totalorder %s34, 1
      %p283 = scmp.ne.s32.totalorder %s278, %s280
      %p284 = scmp.eq.s32.totalorder %s34, 0
      %p285 = por %p283, %p284
      %p286 = scmp.ne.s32.totalorder %s278, %s280
      %p287 = scmp.eq.s32.totalorder %s39, 1
      %p288 = por %p286, %p287
      %p289 = scmp.ne.s32.totalorder %s280, %s281
      %p290 = scmp.eq.s32.totalorder %s39, 0
      %p291 = por %p289, %p290
      %p292 = scmp.ne.s32.totalorder %s280, %s281
      %p293 = scmp.eq.s32.totalorder %s40, 1
      %p294 = por %p292, %p293
      %p296 = scmp.ne.s32.totalorder %s281, %s295
      %p297 = scmp.eq.s32.totalorder %s40, 0
      %p298 = por %p296, %p297
      %s300 = sadd.s32 %s299, 1
      %p303 = scmp.eq.s32.totalorder %s34, 1
      %p304 = scmp.ne.s32.totalorder %s299, %s301
      %p305 = scmp.eq.s32.totalorder %s34, 0
      %p306 = por %p304, %p305
      %p307 = scmp.ne.s32.totalorder %s299, %s301
      %p308 = scmp.eq.s32.totalorder %s39, 1
      %p309 = por %p307, %p308
      %p310 = scmp.ne.s32.totalorder %s301, %s302
      %p311 = scmp.eq.s32.totalorder %s39, 0
      %p312 = por %p310, %p311
      %p313 = scmp.ne.s32.totalorder %s301, %s302
      %p314 = scmp.eq.s32.totalorder %s40, 1
      %p315 = por %p313, %p314
      %p317 = scmp.ne.s32.totalorder %s302, %s316
      %p318 = scmp.eq.s32.totalorder %s40, 0
      %p319 = por %p317, %p318
      %s321 = sadd.s32 %s320, 1
      %p324 = scmp.eq.s32.totalorder %s34, 1
      %p325 = scmp.ne.s32.totalorder %s320, %s322
      %p326 = scmp.eq.s32.totalorder %s34, 0
      %p327 = por %p325, %p326
      %p328 = scmp.ne.s32.totalorder %s320, %s322
      %p329 = scmp.eq.s32.totalorder %s39, 1
      %p330 = por %p328, %p329
      %p331 = scmp.ne.s32.totalorder %s322, %s323
      %p332 = scmp.eq.s32.totalorder %s39, 0
      %p333 = por %p331, %p332
      %p334 = scmp.ne.s32.totalorder %s322, %s323
      %p335 = scmp.eq.s32.totalorder %s40, 1
      %p336 = por %p334, %p335
      %p338 = scmp.ne.s32.totalorder %s323, %s337
      %p339 = scmp.eq.s32.totalorder %s40, 0
      %p340 = por %p338, %p339
      %s342 = sadd.s32 %s341, 1
      %p345 = scmp.eq.s32.totalorder %s34, 1
      %p346 = scmp.ne.s32.totalorder %s341, %s343
      %p347 = scmp.eq.s32.totalorder %s34, 0
      %p348 = por %p346, %p347
      %p349 = scmp.ne.s32.totalorder %s341, %s343
      %p350 = scmp.eq.s32.totalorder %s39, 1
      %p351 = por %p349, %p350
      %p352 = scmp.ne.s32.totalorder %s343, %s344
      %p353 = scmp.eq.s32.totalorder %s39, 0
      %p354 = por %p352, %p353
      %p355 = scmp.ne.s32.totalorder %s343, %s344
      %p356 = scmp.eq.s32.totalorder %s40, 1
      %p357 = por %p355, %p356
      %p359 = scmp.ne.s32.totalorder %s344, %s358
      %p360 = scmp.eq.s32.totalorder %s40, 0
      %p361 = por %p359, %p360
      %s363 = sadd.s32 %s362, 1
      %p366 = scmp.eq.s32.totalorder %s34, 1
      %p367 = scmp.ne.s32.totalorder %s362, %s364
      %p368 = scmp.eq.s32.totalorder %s34, 0
      %p369 = por %p367, %p368
      %p370 = scmp.ne.s32.totalorder %s362, %s364
      %p371 = scmp.eq.s32.totalorder %s39, 1
      %p372 = por %p370, %p371
      %p373 = scmp.ne.s32.totalorder %s364, %s365
      %p374 = scmp.eq.s32.totalorder %s39, 0
      %p375 = por %p373, %p374
      %p376 = scmp.ne.s32.totalorder %s364, %s365
      %p377 = scmp.eq.s32.totalorder %s40, 1
      %p378 = por %p376, %p377
      %p380 = scmp.ne.s32.totalorder %s365, %s379
      %p381 = scmp.eq.s32.totalorder %s40, 0
      %p382 = por %p380, %p381
      %s384 = sadd.s32 %s383, 1
      %p387 = scmp.eq.s32.totalorder %s34, 1
      %p388 = scmp.ne.s32.totalorder %s383, %s385
      %p389 = scmp.eq.s32.totalorder %s34, 0
      %p390 = por %p388, %p389
      %p391 = scmp.ne.s32.totalorder %s383, %s385
      %p392 = scmp.eq.s32.totalorder %s39, 1
      %p393 = por %p391, %p392
      %p394 = scmp.ne.s32.totalorder %s385, %s386
      %p395 = scmp.eq.s32.totalorder %s39, 0
      %p396 = por %p394, %p395
      %p397 = scmp.ne.s32.totalorder %s385, %s386
      %p398 = scmp.eq.s32.totalorder %s40, 1
      %p399 = por %p397, %p398
      %p401 = scmp.ne.s32.totalorder %s386, %s400
      %p402 = scmp.eq.s32.totalorder %s40, 0
      %p403 = por %p401, %p402
      %s404 = ssub.s32 %s34, %s41
      %p405 = scmp.eq.s32.totalorder %s404, 0
      %s407 = sadd.s32 %s406, 1
      %s408 = scalar_select %p405, %s406, %s407
      %p411 = pneg %p405
      %p412 = scmp.eq.s32.totalorder %s34, 1
      %p413 = por %p411, %p412
      %p414 = scmp.ne.s32.totalorder %s406, %s409
      %p415 = scmp.eq.s32.totalorder %s34, 0
      %p416 = por %p414, %p415
      %p417 = scmp.ne.s32.totalorder %s406, %s409
      %p418 = scmp.eq.s32.totalorder %s39, 1
      %p419 = por %p417, %p418
      %p420 = scmp.ne.s32.totalorder %s409, %s410
      %p421 = scmp.eq.s32.totalorder %s39, 0
      %p422 = por %p420, %p421
      %p423 = scmp.ne.s32.totalorder %s409, %s410
      %p424 = scmp.eq.s32.totalorder %s40, 1
      %p425 = por %p423, %p424
      %p427 = scmp.ne.s32.totalorder %s410, %s426
      %p428 = scmp.eq.s32.totalorder %s40, 0
      %p429 = por %p427, %p428
      %p430 = scmp.le.s32.totalorder 1, %s34
      %p431 = scmp.lt.s32.totalorder %s34, 3
      %p432 = pnand %p430, %p431
      %p433 = pneg %p432
      // Predicated region
      $region9: #{tpu_custom_call.1} parent=5 // pred_check
        _
      $region10: #{tpu_custom_call.1} parent=5 // pred_check_branch
        %435 = sbr.rel (%p432) target = $region12
      $region11: #{tpu_custom_call.1} parent=5 // pred_region
        %s436 = ssub.s32 %s34, 1
        // Predicated region
        $region13: #{tpu_custom_call.1} parent=11 // pred_check
          %p437 = pneg %p81
        $region14: #{tpu_custom_call.1} parent=11 // pred_check_branch
          %439 = sbr.rel (%p437) target = $region16
        $region15: #{tpu_custom_call.1} parent=11 // pred_region
          %441 = vsyncadd [#allocation6], 0
          %s442 = sshll.u32 %s1, 4
          %s443 = int_to_ptr.hbm [resolvable:$true] %s442
          %s444 = sshll.u32 [#allocation5], 4
          %s445 = int_to_ptr.vmem [resolvable:$true] %s444
          %450 = dma.hbm_to_vmem [thread:$0]  %s443, 4096, %s445, [#allocation6], 128, 128, 8
        $region16: #{tpu_custom_call.1} parent=11 // pred_fallthru
          _
        // Predicated region
        $region17: #{tpu_custom_call.1} parent=11 // pred_check
          %p451 = pneg %p102
        $region18: #{tpu_custom_call.1} parent=11 // pred_check_branch
          %453 = sbr.rel (%p451) target = $region20
        $region19: #{tpu_custom_call.1} parent=11 // pred_region
          %455 = vsyncadd [#allocation6], 0
          %s457 = sshll.u32 %s2, 4
          %s458 = int_to_ptr.hbm [resolvable:$true] %s457
          %s459 = sshll.u32 [#allocation7], 4
          %s460 = int_to_ptr.vmem [resolvable:$true] %s459
          %462 = dma.hbm_to_vmem [thread:$0]  %s458, 32, %s460, [#allocation6]
        $region20: #{tpu_custom_call.1} parent=11 // pred_fallthru
          _
        // Predicated region
        $region21: #{tpu_custom_call.1} parent=11 // pred_check
          %p463 = pneg %p123
        $region22: #{tpu_custom_call.1} parent=11 // pred_check_branch
          %465 = sbr.rel (%p463) target = $region24
        $region23: #{tpu_custom_call.1} parent=11 // pred_region
          %467 = vsyncadd [#allocation9], 0
          %s468 = sshll.u32 %s3, 4
          %s469 = int_to_ptr.hbm [resolvable:$true] %s468
          %s470 = sshll.u32 [#allocation8], 4
          %s471 = int_to_ptr.vmem [resolvable:$true] %s470
          %476 = dma.hbm_to_vmem [thread:$0]  %s469, 4096, %s471, [#allocation9], 128, 128, 8
        $region24: #{tpu_custom_call.1} parent=11 // pred_fallthru
          _
        // Predicated region
        $region25: #{tpu_custom_call.1} parent=11 // pred_check
          %p477 = pneg %p144
        $region26: #{tpu_custom_call.1} parent=11 // pred_check_branch
          %479 = sbr.rel (%p477) target = $region28
        $region27: #{tpu_custom_call.1} parent=11 // pred_region
          _
        $region28: #{tpu_custom_call.1} parent=11 // pred_fallthru
          _
        // Predicated region
        $region29: #{tpu_custom_call.1} parent=11 // pred_check
          %p480 = pneg %p165
        $region30: #{tpu_custom_call.1} parent=11 // pred_check_branch
          %482 = sbr.rel (%p480) target = $region32
        $region31: #{tpu_custom_call.1} parent=11 // pred_region
          %484 = vsyncadd [#allocation9], 0
          %s485 = sshll.u32 %s5, 4
          %s486 = int_to_ptr.hbm [resolvable:$true] %s485
          %s487 = sshll.u32 [#allocation10], 4
          %s488 = int_to_ptr.vmem [resolvable:$true] %s487
          %493 = dma.hbm_to_vmem [thread:$0]  %s486, 4096, %s488, [#allocation9], 128, 128, 8
        $region32: #{tpu_custom_call.1} parent=11 // pred_fallthru
          _
        // Predicated region
        $region33: #{tpu_custom_call.1} parent=11 // pred_check
          %p494 = pneg %p186
        $region34: #{tpu_custom_call.1} parent=11 // pred_check_branch
          %496 = sbr.rel (%p494) target = $region36
        $region35: #{tpu_custom_call.1} parent=11 // pred_region
          _
        $region36: #{tpu_custom_call.1} parent=11 // pred_fallthru
          _
        // Predicated region
        $region37: #{tpu_custom_call.1} parent=11 // pred_check
          %p497 = pneg %p207
        $region38: #{tpu_custom_call.1} parent=11 // pred_check_branch
          %499 = sbr.rel (%p497) target = $region40
        $region39: #{tpu_custom_call.1} parent=11 // pred_region
          %501 = vsyncadd [#allocation12], 0
          %s502 = sshll.u32 %s7, 4
          %s503 = int_to_ptr.hbm [resolvable:$true] %s502
          %s504 = sshll.u32 [#allocation11], 4
          %s505 = int_to_ptr.vmem [resolvable:$true] %s504
          %510 = dma.hbm_to_vmem [thread:$0]  %s503, 4096, %s505, [#allocation12], 128, 128, 8
        $region40: #{tpu_custom_call.1} parent=11 // pred_fallthru
          _
        // Predicated region
        $region41: #{tpu_custom_call.1} parent=11 // pred_check
          %p511 = pneg %p228
        $region42: #{tpu_custom_call.1} parent=11 // pred_check_branch
          %513 = sbr.rel (%p511) target = $region44
        $region43: #{tpu_custom_call.1} parent=11 // pred_region
          _
        $region44: #{tpu_custom_call.1} parent=11 // pred_fallthru
          _
        // Predicated region
        $region45: #{tpu_custom_call.1} parent=11 // pred_check
          %p514 = pneg %p249
        $region46: #{tpu_custom_call.1} parent=11 // pred_check_branch
          %516 = sbr.rel (%p514) target = $region48
        $region47: #{tpu_custom_call.1} parent=11 // pred_region
          %518 = vsyncadd [#allocation12], 0
          %s519 = sshll.u32 %s9, 4
          %s520 = int_to_ptr.hbm [resolvable:$true] %s519
          %s521 = sshll.u32 [#allocation13], 4
          %s522 = int_to_ptr.vmem [resolvable:$true] %s521
          %527 = dma.hbm_to_vmem [thread:$0]  %s520, 2048, %s522, [#allocation12], 64, 64, 4
        $region48: #{tpu_custom_call.1} parent=11 // pred_fallthru
          _
        // Predicated region
        $region49: #{tpu_custom_call.1} parent=11 // pred_check
          %p528 = pneg %p270
        $region50: #{tpu_custom_call.1} parent=11 // pred_check_branch
          %530 = sbr.rel (%p528) target = $region52
        $region51: #{tpu_custom_call.1} parent=11 // pred_region
          _
        $region52: #{tpu_custom_call.1} parent=11 // pred_fallthru
          _
        // Predicated region
        $region53: #{tpu_custom_call.1} parent=11 // pred_check
          %p531 = pneg %p291
        $region54: #{tpu_custom_call.1} parent=11 // pred_check_branch
          %533 = sbr.rel (%p531) target = $region56
        $region55: #{tpu_custom_call.1} parent=11 // pred_region
          %535 = vsyncadd [#allocation15], 0
          %s536 = sshll.u32 %s11, 4
          %s537 = int_to_ptr.hbm [resolvable:$true] %s536
          %s538 = sshll.u32 [#allocation14], 4
          %s539 = int_to_ptr.vmem [resolvable:$true] %s538
          %544 = dma.hbm_to_vmem [thread:$0]  %s537, 1024, %s539, [#allocation15], 64, 64, 4
        $region56: #{tpu_custom_call.1} parent=11 // pred_fallthru
          _
        // Predicated region
        $region57: #{tpu_custom_call.1} parent=11 // pred_check
          %p545 = pneg %p312
        $region58: #{tpu_custom_call.1} parent=11 // pred_check_branch
          %547 = sbr.rel (%p545) target = $region60
        $region59: #{tpu_custom_call.1} parent=11 // pred_region
          _
        $region60: #{tpu_custom_call.1} parent=11 // pred_fallthru
          _
        // Predicated region
        $region61: #{tpu_custom_call.1} parent=11 // pred_check
          %p548 = pneg %p333
        $region62: #{tpu_custom_call.1} parent=11 // pred_check_branch
          %550 = sbr.rel (%p548) target = $region64
        $region63: #{tpu_custom_call.1} parent=11 // pred_region
          %552 = vsyncadd [#allocation15], 0
          %s553 = sshll.u32 %s13, 4
          %s554 = int_to_ptr.hbm [resolvable:$true] %s553
          %s555 = sshll.u32 [#allocation16], 4
          %s556 = int_to_ptr.vmem [resolvable:$true] %s555
          %561 = dma.hbm_to_vmem [thread:$0]  %s554, 1024, %s556, [#allocation15], 64, 64, 4
        $region64: #{tpu_custom_call.1} parent=11 // pred_fallthru
          _
        // Predicated region
        $region65: #{tpu_custom_call.1} parent=11 // pred_check
          %p562 = pneg %p354
        $region66: #{tpu_custom_call.1} parent=11 // pred_check_branch
          %564 = sbr.rel (%p562) target = $region68
        $region67: #{tpu_custom_call.1} parent=11 // pred_region
          _
        $region68: #{tpu_custom_call.1} parent=11 // pred_fallthru
          _
        // Predicated region
        $region69: #{tpu_custom_call.1} parent=11 // pred_check
          %p565 = pneg %p375
        $region70: #{tpu_custom_call.1} parent=11 // pred_check_branch
          %567 = sbr.rel (%p565) target = $region72
        $region71: #{tpu_custom_call.1} parent=11 // pred_region
          %569 = vsyncadd [#allocation18], 0
          %s570 = sshll.u32 %s15, 4
          %s571 = int_to_ptr.hbm [resolvable:$true] %s570
          %s572 = sshll.u32 [#allocation17], 4
          %s573 = int_to_ptr.vmem [resolvable:$true] %s572
          %578 = dma.hbm_to_vmem [thread:$0]  %s571, 1024, %s573, [#allocation18], 64, 64, 4
        $region72: #{tpu_custom_call.1} parent=11 // pred_fallthru
          _
        // Predicated region
        $region73: #{tpu_custom_call.1} parent=11 // pred_check
          %p579 = pneg %p396
        $region74: #{tpu_custom_call.1} parent=11 // pred_check_branch
          %581 = sbr.rel (%p579) target = $region76
        $region75: #{tpu_custom_call.1} parent=11 // pred_region
          _
        $region76: #{tpu_custom_call.1} parent=11 // pred_fallthru
          _
      $region12: #{tpu_custom_call.1} parent=5 // pred_fallthru
        _
      %p582 = scmp.lt.s32.totalorder %s34, 2
      // Predicated region
      $region77: #{tpu_custom_call.1} parent=5 // pred_check
        %p583 = pneg %p582
      $region78: #{tpu_custom_call.1} parent=5 // pred_check_branch
        %585 = sbr.rel (%p583) target = $region80
      $region79: #{tpu_custom_call.1} parent=5 // pred_region
        // Predicated region
        $region81: #{tpu_custom_call.1} parent=79 // pred_check
          %p586 = pneg %p54
        $region82: #{tpu_custom_call.1} parent=79 // pred_check_branch
          %588 = sbr.rel (%p586) target = $region84
        $region83: #{tpu_custom_call.1} parent=79 // pred_region
          %s589 = sand.u32 %s44, 1
          %s590 = scalar_lea.sflag [#allocation3], %s589
          %s591 = sand.u32 %s44, 1
          %s592 = smul.addr %s591, 256
          %s593 = scalar_lea.vmem [#allocation2], %s592
          %s594 = smul.u32 32, %s34
          %596 = vsyncadd %s590, 0
          %s597 = smul.addr %s594, 2
          %s598 = smul.addr %s597, 4
          %s599 = scalar_lea.hbm %s0, %s598
          %s600 = sshll.u32 %s599, 4
          %s601 = int_to_ptr.hbm [resolvable:$true] %s600
          %s602 = sshll.u32 %s593, 4
          %s603 = int_to_ptr.vmem [resolvable:$true] %s602
          %608 = dma.hbm_to_vmem [thread:$0]  %s601, 4096, %s603, %s590, 128, 128, 8
        $region84: #{tpu_custom_call.1} parent=79 // pred_fallthru
          _
      $region80: #{tpu_custom_call.1} parent=5 // pred_fallthru
        _
      %p609 = scmp.le.s32.totalorder 1, %s34
      %p610 = scmp.lt.s32.totalorder %s34, 3
      %p611 = pnand %p609, %p610
      %p612 = pneg %p611
      // Predicated region
      $region85: #{tpu_custom_call.1} parent=5 // pred_check
        _
      $region86: #{tpu_custom_call.1} parent=5 // pred_check_branch
        %614 = sbr.rel (%p611) target = $region88
      $region87: #{tpu_custom_call.1} parent=5 // pred_region
        %s615 = ssub.s32 %s34, 1
        %s616 = sand.u32 %s47, 1
        %s617 = scalar_lea.sflag [#allocation3], %s616
        %s618 = sand.u32 %s47, 1
        %s619 = smul.addr %s618, 256
        %s620 = scalar_lea.vmem [#allocation2], %s619
        // Predicated region
        $region89: #{tpu_custom_call.1} parent=87 // pred_check
          %p621 = pneg %p60
        $region90: #{tpu_custom_call.1} parent=87 // pred_check_branch
          %623 = sbr.rel (%p621) target = $region92
        $region91: #{tpu_custom_call.1} parent=87 // pred_region
          %625 = dma.done %s617, 4096
        $region92: #{tpu_custom_call.1} parent=87 // pred_fallthru
          _
        // Predicated region
        $region93: #{tpu_custom_call.1} parent=87 // pred_check
          %p626 = pneg %p81
        $region94: #{tpu_custom_call.1} parent=87 // pred_check_branch
          %628 = sbr.rel (%p626) target = $region96
        $region95: #{tpu_custom_call.1} parent=87 // pred_region
          %630 = dma.done [#allocation6], 4096
        $region96: #{tpu_custom_call.1} parent=87 // pred_fallthru
          _
        // Predicated region
        $region97: #{tpu_custom_call.1} parent=87 // pred_check
          %p631 = pneg %p102
        $region98: #{tpu_custom_call.1} parent=87 // pred_check_branch
          %633 = sbr.rel (%p631) target = $region100
        $region99: #{tpu_custom_call.1} parent=87 // pred_region
          %635 = dma.done [#allocation6], 32
        $region100: #{tpu_custom_call.1} parent=87 // pred_fallthru
          _
        // Predicated region
        $region101: #{tpu_custom_call.1} parent=87 // pred_check
          %p636 = pneg %p123
        $region102: #{tpu_custom_call.1} parent=87 // pred_check_branch
          %638 = sbr.rel (%p636) target = $region104
        $region103: #{tpu_custom_call.1} parent=87 // pred_region
          %640 = dma.done [#allocation9], 4096
        $region104: #{tpu_custom_call.1} parent=87 // pred_fallthru
          _
        // Predicated region
        $region105: #{tpu_custom_call.1} parent=87 // pred_check
          %p641 = pneg %p165
        $region106: #{tpu_custom_call.1} parent=87 // pred_check_branch
          %643 = sbr.rel (%p641) target = $region108
        $region107: #{tpu_custom_call.1} parent=87 // pred_region
          %645 = dma.done [#allocation9], 4096
        $region108: #{tpu_custom_call.1} parent=87 // pred_fallthru
          _
        // Predicated region
        $region109: #{tpu_custom_call.1} parent=87 // pred_check
          %p646 = pneg %p207
        $region110: #{tpu_custom_call.1} parent=87 // pred_check_branch
          %648 = sbr.rel (%p646) target = $region112
        $region111: #{tpu_custom_call.1} parent=87 // pred_region
          %650 = dma.done [#allocation12], 4096
        $region112: #{tpu_custom_call.1} parent=87 // pred_fallthru
          _
        // Predicated region
        $region113: #{tpu_custom_call.1} parent=87 // pred_check
          %p651 = pneg %p249
        $region114: #{tpu_custom_call.1} parent=87 // pred_check_branch
          %653 = sbr.rel (%p651) target = $region116
        $region115: #{tpu_custom_call.1} parent=87 // pred_region
          %655 = dma.done [#allocation12], 2048
        $region116: #{tpu_custom_call.1} parent=87 // pred_fallthru
          _
        // Predicated region
        $region117: #{tpu_custom_call.1} parent=87 // pred_check
          %p656 = pneg %p291
        $region118: #{tpu_custom_call.1} parent=87 // pred_check_branch
          %658 = sbr.rel (%p656) target = $region120
        $region119: #{tpu_custom_call.1} parent=87 // pred_region
          %660 = dma.done [#allocation15], 1024
        $region120: #{tpu_custom_call.1} parent=87 // pred_fallthru
          _
        // Predicated region
        $region121: #{tpu_custom_call.1} parent=87 // pred_check
          %p661 = pneg %p333
        $region122: #{tpu_custom_call.1} parent=87 // pred_check_branch
          %663 = sbr.rel (%p661) target = $region124
        $region123: #{tpu_custom_call.1} parent=87 // pred_region
          %665 = dma.done [#allocation15], 1024
        $region124: #{tpu_custom_call.1} parent=87 // pred_fallthru
          _
        // Predicated region
        $region125: #{tpu_custom_call.1} parent=87 // pred_check
          %p666 = pneg %p375
        $region126: #{tpu_custom_call.1} parent=87 // pred_check_branch
          %668 = sbr.rel (%p666) target = $region128
        $region127: #{tpu_custom_call.1} parent=87 // pred_region
          %670 = dma.done [#allocation18], 1024
        $region128: #{tpu_custom_call.1} parent=87 // pred_fallthru
          _
        %s671 = sand.u32 %s47, 1
        %s672 = scalar_lea.sflag [#allocation3], %s671
        %s673 = sand.u32 %s47, 1
        %s674 = smul.addr %s673, 256
        %s675 = scalar_lea.vmem [#allocation2], %s674
        %p676 = pneg %p60
        %p677 = pneg %p57
        %p678 = pneg %p81
        %p679 = pneg %p78
        %p680 = pneg %p102
        %p681 = pneg %p99
        %p682 = pneg %p123
        %p683 = pneg %p120
        %p684 = pneg %p144
        %p685 = pneg %p141
        %p686 = pneg %p165
        %p687 = pneg %p162
        %p688 = pneg %p186
        %p689 = pneg %p183
        %p690 = pneg %p207
        %p691 = pneg %p204
        %p692 = pneg %p228
        %p693 = pneg %p225
        %p694 = pneg %p249
        %p695 = pneg %p246
        %p696 = pneg %p270
        %p697 = pneg %p267
        %p698 = pneg %p291
        %p699 = pneg %p288
        %p700 = pneg %p312
        %p701 = pneg %p309
        %p702 = pneg %p333
        %p703 = pneg %p330
        %p704 = pneg %p354
        %p705 = pneg %p351
        %p706 = pneg %p375
        %p707 = pneg %p372
        %p708 = pneg %p396
        %p709 = pneg %p393
        %p710 = pneg %p422
        %p711 = pneg %p419
        %s712 = sand.u32 %s409, 1
        %s713 = scalar_lea.sflag [#allocation4], %s712
        %s714 = sand.u32 %s409, 1
        %s715 = smul.addr %s714, 256
        %s716 = scalar_lea.vmem [#allocation19], %s715
        %s717 = smul.u32 32, %s39
        %s718 = smul.u32 32, %s39
        %v719 = vld [vmem:[%s620] sm:$0xff]
        %v720 = vld [vmem:[%s620 + $0x8] sm:$0xff]
        %v721 = vld [vmem:[%s620 + $0x10] sm:$0xff]
        %v722 = vld [vmem:[%s620 + $0x18] sm:$0xff]
        %v723 = vld [vmem:[%s620 + $0x20] sm:$0xff]
        %v724 = vld [vmem:[%s620 + $0x28] sm:$0xff]
        %v725 = vld [vmem:[%s620 + $0x30] sm:$0xff]
        %v726 = vld [vmem:[%s620 + $0x38] sm:$0xff]
        %v727 = vld [vmem:[%s620 + $0x40] sm:$0xff]
        %v728 = vld [vmem:[%s620 + $0x48] sm:$0xff]
        %v729 = vld [vmem:[%s620 + $0x50] sm:$0xff]
        %v730 = vld [vmem:[%s620 + $0x58] sm:$0xff]
        %v731 = vld [vmem:[%s620 + $0x60] sm:$0xff]
        %v732 = vld [vmem:[%s620 + $0x68] sm:$0xff]
        %v733 = vld [vmem:[%s620 + $0x70] sm:$0xff]
        %v734 = vld [vmem:[%s620 + $0x78] sm:$0xff]
        %v735 = vld [vmem:[%s620 + $0x80] sm:$0xff]
        %v736 = vld [vmem:[%s620 + $0x88] sm:$0xff]
        %v737 = vld [vmem:[%s620 + $0x90] sm:$0xff]
        %v738 = vld [vmem:[%s620 + $0x98] sm:$0xff]
        %v739 = vld [vmem:[%s620 + $0xa0] sm:$0xff]
        %v740 = vld [vmem:[%s620 + $0xa8] sm:$0xff]
        %v741 = vld [vmem:[%s620 + $0xb0] sm:$0xff]
        %v742 = vld [vmem:[%s620 + $0xb8] sm:$0xff]
        %v743 = vld [vmem:[%s620 + $0xc0] sm:$0xff]
        %v744 = vld [vmem:[%s620 + $0xc8] sm:$0xff]
        %v745 = vld [vmem:[%s620 + $0xd0] sm:$0xff]
        %v746 = vld [vmem:[%s620 + $0xd8] sm:$0xff]
        %v747 = vld [vmem:[%s620 + $0xe0] sm:$0xff]
        %v748 = vld [vmem:[%s620 + $0xe8] sm:$0xff]
        %v749 = vld [vmem:[%s620 + $0xf0] sm:$0xff]
        %v750 = vld [vmem:[%s620 + $0xf8] sm:$0xff]
        %v751 = vld [vmem:[#allocation5] sm:$0xff]
        %v752 = vld [vmem:[#allocation5 + $0x8] sm:$0xff]
        %v753 = vld [vmem:[#allocation5 + $0x10] sm:$0xff]
        %v754 = vld [vmem:[#allocation5 + $0x18] sm:$0xff]
        %v755 = vld [vmem:[#allocation5 + $0x20] sm:$0xff]
        %v756 = vld [vmem:[#allocation5 + $0x28] sm:$0xff]
        %v757 = vld [vmem:[#allocation5 + $0x30] sm:$0xff]
        %v758 = vld [vmem:[#allocation5 + $0x38] sm:$0xff]
        %v759 = vld [vmem:[#allocation5 + $0x40] sm:$0xff]
        %v760 = vld [vmem:[#allocation5 + $0x48] sm:$0xff]
        %v761 = vld [vmem:[#allocation5 + $0x50] sm:$0xff]
        %v762 = vld [vmem:[#allocation5 + $0x58] sm:$0xff]
        %v763 = vld [vmem:[#allocation5 + $0x60] sm:$0xff]
        %v764 = vld [vmem:[#allocation5 + $0x68] sm:$0xff]
        %v765 = vld [vmem:[#allocation5 + $0x70] sm:$0xff]
        %v766 = vld [vmem:[#allocation5 + $0x78] sm:$0xff]
        %v767 = vld [vmem:[#allocation5 + $0x80] sm:$0xff]
        %v768 = vld [vmem:[#allocation5 + $0x88] sm:$0xff]
        %v769 = vld [vmem:[#allocation5 + $0x90] sm:$0xff]
        %v770 = vld [vmem:[#allocation5 + $0x98] sm:$0xff]
        %v771 = vld [vmem:[#allocation5 + $0xa0] sm:$0xff]
        %v772 = vld [vmem:[#allocation5 + $0xa8] sm:$0xff]
        %v773 = vld [vmem:[#allocation5 + $0xb0] sm:$0xff]
        %v774 = vld [vmem:[#allocation5 + $0xb8] sm:$0xff]
        %v775 = vld [vmem:[#allocation5 + $0xc0] sm:$0xff]
        %v776 = vld [vmem:[#allocation5 + $0xc8] sm:$0xff]
        %v777 = vld [vmem:[#allocation5 + $0xd0] sm:$0xff]
        %v778 = vld [vmem:[#allocation5 + $0xd8] sm:$0xff]
        %v779 = vld [vmem:[#allocation5 + $0xe0] sm:$0xff]
        %v780 = vld [vmem:[#allocation5 + $0xe8] sm:$0xff]
        %v781 = vld [vmem:[#allocation5 + $0xf0] sm:$0xff]
        %v782 = vld [vmem:[#allocation5 + $0xf8] sm:$0xff]
        %v783 = vld [vmem:[#allocation7] sm:$0x3]
        %v785 = vperm.slane %v783, 0
        %v786 = vperm.slane %v783, 1
        %v821 = vunpack.c.l.b16 %v719
        %v822 = vunpack.c.h.b16 %v719
        %v823 = vunpack.c.l.b16 %v720
        %v824 = vunpack.c.h.b16 %v720
        %v825 = vunpack.c.l.b16 %v721
        %v826 = vunpack.c.h.b16 %v721
        %v827 = vunpack.c.l.b16 %v722
        %v828 = vunpack.c.h.b16 %v722
        %v829 = vunpack.c.l.b16 %v723
        %v830 = vunpack.c.h.b16 %v723
        %v831 = vunpack.c.l.b16 %v724
        %v832 = vunpack.c.h.b16 %v724
        %v833 = vunpack.c.l.b16 %v725
        %v834 = vunpack.c.h.b16 %v725
        %v835 = vunpack.c.l.b16 %v726
        %v836 = vunpack.c.h.b16 %v726
        %v837 = vunpack.c.l.b16 %v727
        %v838 = vunpack.c.h.b16 %v727
        %v839 = vunpack.c.l.b16 %v728
        %v840 = vunpack.c.h.b16 %v728
        %v841 = vunpack.c.l.b16 %v729
        %v842 = vunpack.c.h.b16 %v729
        %v843 = vunpack.c.l.b16 %v730
        %v844 = vunpack.c.h.b16 %v730
        %v845 = vunpack.c.l.b16 %v731
        %v846 = vunpack.c.h.b16 %v731
        %v847 = vunpack.c.l.b16 %v732
        %v848 = vunpack.c.h.b16 %v732
        %v849 = vunpack.c.l.b16 %v733
        %v850 = vunpack.c.h.b16 %v733
        %v851 = vunpack.c.l.b16 %v734
        %v852 = vunpack.c.h.b16 %v734
        %v853 = vunpack.c.l.b16 %v735
        %v854 = vunpack.c.h.b16 %v735
        %v855 = vunpack.c.l.b16 %v736
        %v856 = vunpack.c.h.b16 %v736
        %v857 = vunpack.c.l.b16 %v737
        %v858 = vunpack.c.h.b16 %v737
        %v859 = vunpack.c.l.b16 %v738
        %v860 = vunpack.c.h.b16 %v738
        %v861 = vunpack.c.l.b16 %v739
        %v862 = vunpack.c.h.b16 %v739
        %v863 = vunpack.c.l.b16 %v740
        %v864 = vunpack.c.h.b16 %v740
        %v865 = vunpack.c.l.b16 %v741
        %v866 = vunpack.c.h.b16 %v741
        %v867 = vunpack.c.l.b16 %v742
        %v868 = vunpack.c.h.b16 %v742
        %v869 = vunpack.c.l.b16 %v743
        %v870 = vunpack.c.h.b16 %v743
        %v871 = vunpack.c.l.b16 %v744
        %v872 = vunpack.c.h.b16 %v744
        %v873 = vunpack.c.l.b16 %v745
        %v874 = vunpack.c.h.b16 %v745
        %v875 = vunpack.c.l.b16 %v746
        %v876 = vunpack.c.h.b16 %v746
        %v877 = vunpack.c.l.b16 %v747
        %v878 = vunpack.c.h.b16 %v747
        %v879 = vunpack.c.l.b16 %v748
        %v880 = vunpack.c.h.b16 %v748
        %v881 = vunpack.c.l.b16 %v749
        %v882 = vunpack.c.h.b16 %v749
        %v883 = vunpack.c.l.b16 %v750
        %v884 = vunpack.c.h.b16 %v750
        %v885 = vpack.c.b16 %v823, %v821
        %v886 = vpack.c.b16 %v824, %v822
        %v887 = vpack.c.b16 %v827, %v825
        %v888 = vpack.c.b16 %v828, %v826
        %v889 = vpack.c.b16 %v831, %v829
        %v890 = vpack.c.b16 %v832, %v830
        %v891 = vpack.c.b16 %v835, %v833
        %v892 = vpack.c.b16 %v836, %v834
        %v893 = vpack.c.b16 %v839, %v837
        %v894 = vpack.c.b16 %v840, %v838
        %v895 = vpack.c.b16 %v843, %v841
        %v896 = vpack.c.b16 %v844, %v842
        %v897 = vpack.c.b16 %v847, %v845
        %v898 = vpack.c.b16 %v848, %v846
        %v899 = vpack.c.b16 %v851, %v849
        %v900 = vpack.c.b16 %v852, %v850
        %v901 = vpack.c.b16 %v855, %v853
        %v902 = vpack.c.b16 %v856, %v854
        %v903 = vpack.c.b16 %v859, %v857
        %v904 = vpack.c.b16 %v860, %v858
        %v905 = vpack.c.b16 %v863, %v861
        %v906 = vpack.c.b16 %v864, %v862
        %v907 = vpack.c.b16 %v867, %v865
        %v908 = vpack.c.b16 %v868, %v866
        %v909 = vpack.c.b16 %v871, %v869
        %v910 = vpack.c.b16 %v872, %v870
        %v911 = vpack.c.b16 %v875, %v873
        %v912 = vpack.c.b16 %v876, %v874
        %v913 = vpack.c.b16 %v879, %v877
        %v914 = vpack.c.b16 %v880, %v878
        %v915 = vpack.c.b16 %v883, %v881
        %v916 = vpack.c.b16 %v884, %v882
        %v981 = vunpack.c.l.b16 %v751
        %v982 = vunpack.c.h.b16 %v751
        %v983 = vunpack.c.l.b16 %v752
        %v984 = vunpack.c.h.b16 %v752
        %v985 = vunpack.c.l.b16 %v753
        %v986 = vunpack.c.h.b16 %v753
        %v987 = vunpack.c.l.b16 %v754
        %v988 = vunpack.c.h.b16 %v754
        %v989 = vunpack.c.l.b16 %v755
        %v990 = vunpack.c.h.b16 %v755
        %v991 = vunpack.c.l.b16 %v756
        %v992 = vunpack.c.h.b16 %v756
        %v993 = vunpack.c.l.b16 %v757
        %v994 = vunpack.c.h.b16 %v757
        %v995 = vunpack.c.l.b16 %v758
        %v996 = vunpack.c.h.b16 %v758
        %v997 = vunpack.c.l.b16 %v759
        %v998 = vunpack.c.h.b16 %v759
        %v999 = vunpack.c.l.b16 %v760
        %v1000 = vunpack.c.h.b16 %v760
        %v1001 = vunpack.c.l.b16 %v761
        %v1002 = vunpack.c.h.b16 %v761
        %v1003 = vunpack.c.l.b16 %v762
        %v1004 = vunpack.c.h.b16 %v762
        %v1005 = vunpack.c.l.b16 %v763
        %v1006 = vunpack.c.h.b16 %v763
        %v1007 = vunpack.c.l.b16 %v764
        %v1008 = vunpack.c.h.b16 %v764
        %v1009 = vunpack.c.l.b16 %v765
        %v1010 = vunpack.c.h.b16 %v765
        %v1011 = vunpack.c.l.b16 %v766
        %v1012 = vunpack.c.h.b16 %v766
        %v1013 = vunpack.c.l.b16 %v767
        %v1014 = vunpack.c.h.b16 %v767
        %v1015 = vunpack.c.l.b16 %v768
        %v1016 = vunpack.c.h.b16 %v768
        %v1017 = vunpack.c.l.b16 %v769
        %v1018 = vunpack.c.h.b16 %v769
        %v1019 = vunpack.c.l.b16 %v770
        %v1020 = vunpack.c.h.b16 %v770
        %v1021 = vunpack.c.l.b16 %v771
        %v1022 = vunpack.c.h.b16 %v771
        %v1023 = vunpack.c.l.b16 %v772
        %v1024 = vunpack.c.h.b16 %v772
        %v1025 = vunpack.c.l.b16 %v773
        %v1026 = vunpack.c.h.b16 %v773
        %v1027 = vunpack.c.l.b16 %v774
        %v1028 = vunpack.c.h.b16 %v774
        %v1029 = vunpack.c.l.b16 %v775
        %v1030 = vunpack.c.h.b16 %v775
        %v1031 = vunpack.c.l.b16 %v776
        %v1032 = vunpack.c.h.b16 %v776
        %v1033 = vunpack.c.l.b16 %v777
        %v1034 = vunpack.c.h.b16 %v777
        %v1035 = vunpack.c.l.b16 %v778
        %v1036 = vunpack.c.h.b16 %v778
        %v1037 = vunpack.c.l.b16 %v779
        %v1038 = vunpack.c.h.b16 %v779
        %v1039 = vunpack.c.l.b16 %v780
        %v1040 = vunpack.c.h.b16 %v780
        %v1041 = vunpack.c.l.b16 %v781
        %v1042 = vunpack.c.h.b16 %v781
        %v1043 = vunpack.c.l.b16 %v782
        %v1044 = vunpack.c.h.b16 %v782
        %v1045 = vpack.c.b16 %v983, %v981
        %v1046 = vpack.c.b16 %v984, %v982
        %v1047 = vpack.c.b16 %v987, %v985
        %v1048 = vpack.c.b16 %v988, %v986
        %v1049 = vpack.c.b16 %v991, %v989
        %v1050 = vpack.c.b16 %v992, %v990
        %v1051 = vpack.c.b16 %v995, %v993
        %v1052 = vpack.c.b16 %v996, %v994
        %v1053 = vpack.c.b16 %v999, %v997
        %v1054 = vpack.c.b16 %v1000, %v998
        %v1055 = vpack.c.b16 %v1003, %v1001
        %v1056 = vpack.c.b16 %v1004, %v1002
        %v1057 = vpack.c.b16 %v1007, %v1005
        %v1058 = vpack.c.b16 %v1008, %v1006
        %v1059 = vpack.c.b16 %v1011, %v1009
        %v1060 = vpack.c.b16 %v1012, %v1010
        %v1061 = vpack.c.b16 %v1015, %v1013
        %v1062 = vpack.c.b16 %v1016, %v1014
        %v1063 = vpack.c.b16 %v1019, %v1017
        %v1064 = vpack.c.b16 %v1020, %v1018
        %v1065 = vpack.c.b16 %v1023, %v1021
        %v1066 = vpack.c.b16 %v1024, %v1022
        %v1067 = vpack.c.b16 %v1027, %v1025
        %v1068 = vpack.c.b16 %v1028, %v1026
        %v1069 = vpack.c.b16 %v1031, %v1029
        %v1070 = vpack.c.b16 %v1032, %v1030
        %v1071 = vpack.c.b16 %v1035, %v1033
        %v1072 = vpack.c.b16 %v1036, %v1034
        %v1073 = vpack.c.b16 %v1039, %v1037
        %v1074 = vpack.c.b16 %v1040, %v1038
        %v1075 = vpack.c.b16 %v1043, %v1041
        %v1076 = vpack.c.b16 %v1044, %v1042
        %1109 = vmatpush.bf16.msra.mxu0 %v1059
        %1110 = vmatpush.bf16.msra.mxu0 %v1057
        %1111 = vmatpush.bf16.msra.mxu0 %v1055
        %1112 = vmatpush.bf16.msra.mxu0 %v1053
        %1113 = vmatpush.bf16.msra.mxu0 %v1051
        %1114 = vmatpush.bf16.msra.mxu0 %v1049
        %1115 = vmatpush.bf16.msra.mxu0 %v1047
        %1116 = vmatpush.bf16.msra.mxu0 %v1045
        %1117 = vmatmul.bf16.gmra.mxu0 %v885
        %v1118 = vpop.f32.mrf.mxu0
        %v1119 = vadd.f32 %v785, %v1118
        %v1120 = vpop.f32.mrf.mxu0
        %v1121 = vadd.f32 %v785, %v1120
        %1122 = vmatmul.bf16.gmra.mxu0 %v887
        %v1123 = vpop.f32.mrf.mxu0
        %v1124 = vadd.f32 %v785, %v1123
        %v1125 = vpop.f32.mrf.mxu0
        %v1126 = vadd.f32 %v785, %v1125
        %1127 = vmatmul.bf16.gmra.mxu0 %v889
        %v1128 = vpop.f32.mrf.mxu0
        %v1129 = vadd.f32 %v785, %v1128
        %v1130 = vpop.f32.mrf.mxu0
        %v1131 = vadd.f32 %v785, %v1130
        %1132 = vmatmul.bf16.gmra.mxu0 %v891
        %v1133 = vpop.f32.mrf.mxu0
        %v1134 = vadd.f32 %v785, %v1133
        %v1135 = vpop.f32.mrf.mxu0
        %v1136 = vadd.f32 %v785, %v1135
        %1137 = vmatmul.bf16.gmra.mxu0 %v893
        %v1138 = vpop.f32.mrf.mxu0
        %v1139 = vadd.f32 %v785, %v1138
        %v1140 = vpop.f32.mrf.mxu0
        %v1141 = vadd.f32 %v785, %v1140
        %1142 = vmatmul.bf16.gmra.mxu0 %v895
        %v1143 = vpop.f32.mrf.mxu0
        %v1144 = vadd.f32 %v785, %v1143
        %v1145 = vpop.f32.mrf.mxu0
        %v1146 = vadd.f32 %v785, %v1145
        %1147 = vmatmul.bf16.gmra.mxu0 %v897
        %v1148 = vpop.f32.mrf.mxu0
        %v1149 = vadd.f32 %v785, %v1148
        %v1150 = vpop.f32.mrf.mxu0
        %v1151 = vadd.f32 %v785, %v1150
        %1152 = vmatmul.bf16.gmra.mxu0 %v899
        %v1153 = vpop.f32.mrf.mxu0
        %v1154 = vadd.f32 %v785, %v1153
        %v1155 = vpop.f32.mrf.mxu0
        %v1156 = vadd.f32 %v785, %v1155
        %1157 = vmatmul.bf16.gmra.mxu0 %v901
        %v1158 = vpop.f32.mrf.mxu0
        %v1159 = vadd.f32 %v785, %v1158
        %v1160 = vpop.f32.mrf.mxu0
        %v1161 = vadd.f32 %v785, %v1160
        %1162 = vmatmul.bf16.gmra.mxu0 %v903
        %v1163 = vpop.f32.mrf.mxu0
        %v1164 = vadd.f32 %v785, %v1163
        %v1165 = vpop.f32.mrf.mxu0
        %v1166 = vadd.f32 %v785, %v1165
        %1167 = vmatmul.bf16.gmra.mxu0 %v905
        %v1168 = vpop.f32.mrf.mxu0
        %v1169 = vadd.f32 %v785, %v1168
        %v1170 = vpop.f32.mrf.mxu0
        %v1171 = vadd.f32 %v785, %v1170
        %1172 = vmatmul.bf16.gmra.mxu0 %v907
        %v1173 = vpop.f32.mrf.mxu0
        %v1174 = vadd.f32 %v785, %v1173
        %v1175 = vpop.f32.mrf.mxu0
        %v1176 = vadd.f32 %v785, %v1175
        %1177 = vmatmul.bf16.gmra.mxu0 %v909
        %v1178 = vpop.f32.mrf.mxu0
        %v1179 = vadd.f32 %v785, %v1178
        %v1180 = vpop.f32.mrf.mxu0
        %v1181 = vadd.f32 %v785, %v1180
        %1182 = vmatmul.bf16.gmra.mxu0 %v911
        %v1183 = vpop.f32.mrf.mxu0
        %v1184 = vadd.f32 %v785, %v1183
        %v1185 = vpop.f32.mrf.mxu0
        %v1186 = vadd.f32 %v785, %v1185
        %1187 = vmatmul.bf16.gmra.mxu0 %v913
        %v1188 = vpop.f32.mrf.mxu0
        %v1189 = vadd.f32 %v785, %v1188
        %v1190 = vpop.f32.mrf.mxu0
        %v1191 = vadd.f32 %v785, %v1190
        %1192 = vmatmul.bf16.gmra.mxu0 %v915
        %v1193 = vpop.f32.mrf.mxu0
        %v1194 = vadd.f32 %v785, %v1193
        %v1195 = vpop.f32.mrf.mxu0
        %v1196 = vadd.f32 %v785, %v1195
        %1197 = vdwg.mxu0
        %1198 = vmatpush.bf16.msra.mxu0 %v1075
        %1199 = vmatpush.bf16.msra.mxu0 %v1073
        %1200 = vmatpush.bf16.msra.mxu0 %v1071
        %1201 = vmatpush.bf16.msra.mxu0 %v1069
        %1202 = vmatpush.bf16.msra.mxu0 %v1067
        %1203 = vmatpush.bf16.msra.mxu0 %v1065
        %1204 = vmatpush.bf16.msra.mxu0 %v1063
        %1205 = vmatpush.bf16.msra.mxu0 %v1061
        %1206 = vmatmul.bf16.gmra.mxu0 %v886
        %v1207 = vpop.f32.mrf.mxu0
        %v1208 = vadd.f32 %v1119, %v1207
        %v1209 = vpop.f32.mrf.mxu0
        %v1210 = vadd.f32 %v1121, %v1209
        %1211 = vmatmul.bf16.gmra.mxu0 %v888
        %v1212 = vpop.f32.mrf.mxu0
        %v1213 = vadd.f32 %v1124, %v1212
        %v1214 = vpop.f32.mrf.mxu0
        %v1215 = vadd.f32 %v1126, %v1214
        %1216 = vmatmul.bf16.gmra.mxu0 %v890
        %v1217 = vpop.f32.mrf.mxu0
        %v1218 = vadd.f32 %v1129, %v1217
        %v1219 = vpop.f32.mrf.mxu0
        %v1220 = vadd.f32 %v1131, %v1219
        %1221 = vmatmul.bf16.gmra.mxu0 %v892
        %v1222 = vpop.f32.mrf.mxu0
        %v1223 = vadd.f32 %v1134, %v1222
        %v1224 = vpop.f32.mrf.mxu0
        %v1225 = vadd.f32 %v1136, %v1224
        %1226 = vmatmul.bf16.gmra.mxu0 %v894
        %v1227 = vpop.f32.mrf.mxu0
        %v1228 = vadd.f32 %v1139, %v1227
        %v1229 = vpop.f32.mrf.mxu0
        %v1230 = vadd.f32 %v1141, %v1229
        %1231 = vmatmul.bf16.gmra.mxu0 %v896
        %v1232 = vpop.f32.mrf.mxu0
        %v1233 = vadd.f32 %v1144, %v1232
        %v1234 = vpop.f32.mrf.mxu0
        %v1235 = vadd.f32 %v1146, %v1234
        %1236 = vmatmul.bf16.gmra.mxu0 %v898
        %v1237 = vpop.f32.mrf.mxu0
        %v1238 = vadd.f32 %v1149, %v1237
        %v1239 = vpop.f32.mrf.mxu0
        %v1240 = vadd.f32 %v1151, %v1239
        %1241 = vmatmul.bf16.gmra.mxu0 %v900
        %v1242 = vpop.f32.mrf.mxu0
        %v1243 = vadd.f32 %v1154, %v1242
        %v1244 = vpop.f32.mrf.mxu0
        %v1245 = vadd.f32 %v1156, %v1244
        %1246 = vmatmul.bf16.gmra.mxu0 %v902
        %v1247 = vpop.f32.mrf.mxu0
        %v1248 = vadd.f32 %v1159, %v1247
        %v1249 = vpop.f32.mrf.mxu0
        %v1250 = vadd.f32 %v1161, %v1249
        %1251 = vmatmul.bf16.gmra.mxu0 %v904
        %v1252 = vpop.f32.mrf.mxu0
        %v1253 = vadd.f32 %v1164, %v1252
        %v1254 = vpop.f32.mrf.mxu0
        %v1255 = vadd.f32 %v1166, %v1254
        %1256 = vmatmul.bf16.gmra.mxu0 %v906
        %v1257 = vpop.f32.mrf.mxu0
        %v1258 = vadd.f32 %v1169, %v1257
        %v1259 = vpop.f32.mrf.mxu0
        %v1260 = vadd.f32 %v1171, %v1259
        %1261 = vmatmul.bf16.gmra.mxu0 %v908
        %v1262 = vpop.f32.mrf.mxu0
        %v1263 = vadd.f32 %v1174, %v1262
        %v1264 = vpop.f32.mrf.mxu0
        %v1265 = vadd.f32 %v1176, %v1264
        %1266 = vmatmul.bf16.gmra.mxu0 %v910
        %v1267 = vpop.f32.mrf.mxu0
        %v1268 = vadd.f32 %v1179, %v1267
        %v1269 = vpop.f32.mrf.mxu0
        %v1270 = vadd.f32 %v1181, %v1269
        %1271 = vmatmul.bf16.gmra.mxu0 %v912
        %v1272 = vpop.f32.mrf.mxu0
        %v1273 = vadd.f32 %v1184, %v1272
        %v1274 = vpop.f32.mrf.mxu0
        %v1275 = vadd.f32 %v1186, %v1274
        %1276 = vmatmul.bf16.gmra.mxu0 %v914
        %v1277 = vpop.f32.mrf.mxu0
        %v1278 = vadd.f32 %v1189, %v1277
        %v1279 = vpop.f32.mrf.mxu0
        %v1280 = vadd.f32 %v1191, %v1279
        %1281 = vmatmul.bf16.gmra.mxu0 %v916
        %v1282 = vpop.f32.mrf.mxu0
        %v1283 = vadd.f32 %v1194, %v1282
        %v1284 = vpop.f32.mrf.mxu0
        %v1285 = vadd.f32 %v1196, %v1284
        %1286 = vdwg.mxu0
        %1287 = vmatpush.bf16.msra.mxu0 %v1060
        %1288 = vmatpush.bf16.msra.mxu0 %v1058
        %1289 = vmatpush.bf16.msra.mxu0 %v1056
        %1290 = vmatpush.bf16.msra.mxu0 %v1054
        %1291 = vmatpush.bf16.msra.mxu0 %v1052
        %1292 = vmatpush.bf16.msra.mxu0 %v1050
        %1293 = vmatpush.bf16.msra.mxu0 %v1048
        %1294 = vmatpush.bf16.msra.mxu0 %v1046
        %1295 = vmatmul.bf16.gmra.mxu0 %v885
        %v1296 = vpop.f32.mrf.mxu0
        %v1297 = vadd.f32 %v786, %v1296
        %v1298 = vpop.f32.mrf.mxu0
        %v1299 = vadd.f32 %v786, %v1298
        %1300 = vmatmul.bf16.gmra.mxu0 %v887
        %v1301 = vpop.f32.mrf.mxu0
        %v1302 = vadd.f32 %v786, %v1301
        %v1303 = vpop.f32.mrf.mxu0
        %v1304 = vadd.f32 %v786, %v1303
        %1305 = vmatmul.bf16.gmra.mxu0 %v889
        %v1306 = vpop.f32.mrf.mxu0
        %v1307 = vadd.f32 %v786, %v1306
        %v1308 = vpop.f32.mrf.mxu0
        %v1309 = vadd.f32 %v786, %v1308
        %1310 = vmatmul.bf16.gmra.mxu0 %v891
        %v1311 = vpop.f32.mrf.mxu0
        %v1312 = vadd.f32 %v786, %v1311
        %v1313 = vpop.f32.mrf.mxu0
        %v1314 = vadd.f32 %v786, %v1313
        %1315 = vmatmul.bf16.gmra.mxu0 %v893
        %v1316 = vpop.f32.mrf.mxu0
        %v1317 = vadd.f32 %v786, %v1316
        %v1318 = vpop.f32.mrf.mxu0
        %v1319 = vadd.f32 %v786, %v1318
        %1320 = vmatmul.bf16.gmra.mxu0 %v895
        %v1321 = vpop.f32.mrf.mxu0
        %v1322 = vadd.f32 %v786, %v1321
        %v1323 = vpop.f32.mrf.mxu0
        %v1324 = vadd.f32 %v786, %v1323
        %1325 = vmatmul.bf16.gmra.mxu0 %v897
        %v1326 = vpop.f32.mrf.mxu0
        %v1327 = vadd.f32 %v786, %v1326
        %v1328 = vpop.f32.mrf.mxu0
        %v1329 = vadd.f32 %v786, %v1328
        %1330 = vmatmul.bf16.gmra.mxu0 %v899
        %v1331 = vpop.f32.mrf.mxu0
        %v1332 = vadd.f32 %v786, %v1331
        %v1333 = vpop.f32.mrf.mxu0
        %v1334 = vadd.f32 %v786, %v1333
        %1335 = vmatmul.bf16.gmra.mxu0 %v901
        %v1336 = vpop.f32.mrf.mxu0
        %v1337 = vadd.f32 %v786, %v1336
        %v1338 = vpop.f32.mrf.mxu0
        %v1339 = vadd.f32 %v786, %v1338
        %1340 = vmatmul.bf16.gmra.mxu0 %v903
        %v1341 = vpop.f32.mrf.mxu0
        %v1342 = vadd.f32 %v786, %v1341
        %v1343 = vpop.f32.mrf.mxu0
        %v1344 = vadd.f32 %v786, %v1343
        %1345 = vmatmul.bf16.gmra.mxu0 %v905
        %v1346 = vpop.f32.mrf.mxu0
        %v1347 = vadd.f32 %v786, %v1346
        %v1348 = vpop.f32.mrf.mxu0
        %v1349 = vadd.f32 %v786, %v1348
        %1350 = vmatmul.bf16.gmra.mxu0 %v907
        %v1351 = vpop.f32.mrf.mxu0
        %v1352 = vadd.f32 %v786, %v1351
        %v1353 = vpop.f32.mrf.mxu0
        %v1354 = vadd.f32 %v786, %v1353
        %1355 = vmatmul.bf16.gmra.mxu0 %v909
        %v1356 = vpop.f32.mrf.mxu0
        %v1357 = vadd.f32 %v786, %v1356
        %v1358 = vpop.f32.mrf.mxu0
        %v1359 = vadd.f32 %v786, %v1358
        %1360 = vmatmul.bf16.gmra.mxu0 %v911
        %v1361 = vpop.f32.mrf.mxu0
        %v1362 = vadd.f32 %v786, %v1361
        %v1363 = vpop.f32.mrf.mxu0
        %v1364 = vadd.f32 %v786, %v1363
        %1365 = vmatmul.bf16.gmra.mxu0 %v913
        %v1366 = vpop.f32.mrf.mxu0
        %v1367 = vadd.f32 %v786, %v1366
        %v1368 = vpop.f32.mrf.mxu0
        %v1369 = vadd.f32 %v786, %v1368
        %1370 = vmatmul.bf16.gmra.mxu0 %v915
        %v1371 = vpop.f32.mrf.mxu0
        %v1372 = vadd.f32 %v786, %v1371
        %v1373 = vpop.f32.mrf.mxu0
        %v1374 = vadd.f32 %v786, %v1373
        %1375 = vdwg.mxu0
        %1376 = vmatpush.bf16.msra.mxu0 %v1076
        %1377 = vmatpush.bf16.msra.mxu0 %v1074
        %1378 = vmatpush.bf16.msra.mxu0 %v1072
        %1379 = vmatpush.bf16.msra.mxu0 %v1070
        %1380 = vmatpush.bf16.msra.mxu0 %v1068
        %1381 = vmatpush.bf16.msra.mxu0 %v1066
        %1382 = vmatpush.bf16.msra.mxu0 %v1064
        %1383 = vmatpush.bf16.msra.mxu0 %v1062
        %1384 = vmatmul.bf16.gmra.mxu0 %v886
        %v1385 = vpop.f32.mrf.mxu0
        %v1386 = vadd.f32 %v1297, %v1385
        %v1387 = vpop.f32.mrf.mxu0
        %v1388 = vadd.f32 %v1299, %v1387
        %1389 = vmatmul.bf16.gmra.mxu0 %v888
        %v1390 = vpop.f32.mrf.mxu0
        %v1391 = vadd.f32 %v1302, %v1390
        %v1392 = vpop.f32.mrf.mxu0
        %v1393 = vadd.f32 %v1304, %v1392
        %1394 = vmatmul.bf16.gmra.mxu0 %v890
        %v1395 = vpop.f32.mrf.mxu0
        %v1396 = vadd.f32 %v1307, %v1395
        %v1397 = vpop.f32.mrf.mxu0
        %v1398 = vadd.f32 %v1309, %v1397
        %1399 = vmatmul.bf16.gmra.mxu0 %v892
        %v1400 = vpop.f32.mrf.mxu0
        %v1401 = vadd.f32 %v1312, %v1400
        %v1402 = vpop.f32.mrf.mxu0
        %v1403 = vadd.f32 %v1314, %v1402
        %1404 = vmatmul.bf16.gmra.mxu0 %v894
        %v1405 = vpop.f32.mrf.mxu0
        %v1406 = vadd.f32 %v1317, %v1405
        %v1407 = vpop.f32.mrf.mxu0
        %v1408 = vadd.f32 %v1319, %v1407
        %1409 = vmatmul.bf16.gmra.mxu0 %v896
        %v1410 = vpop.f32.mrf.mxu0
        %v1411 = vadd.f32 %v1322, %v1410
        %v1412 = vpop.f32.mrf.mxu0
        %v1413 = vadd.f32 %v1324, %v1412
        %1414 = vmatmul.bf16.gmra.mxu0 %v898
        %v1415 = vpop.f32.mrf.mxu0
        %v1416 = vadd.f32 %v1327, %v1415
        %v1417 = vpop.f32.mrf.mxu0
        %v1418 = vadd.f32 %v1329, %v1417
        %1419 = vmatmul.bf16.gmra.mxu0 %v900
        %v1420 = vpop.f32.mrf.mxu0
        %v1421 = vadd.f32 %v1332, %v1420
        %v1422 = vpop.f32.mrf.mxu0
        %v1423 = vadd.f32 %v1334, %v1422
        %1424 = vmatmul.bf16.gmra.mxu0 %v902
        %v1425 = vpop.f32.mrf.mxu0
        %v1426 = vadd.f32 %v1337, %v1425
        %v1427 = vpop.f32.mrf.mxu0
        %v1428 = vadd.f32 %v1339, %v1427
        %1429 = vmatmul.bf16.gmra.mxu0 %v904
        %v1430 = vpop.f32.mrf.mxu0
        %v1431 = vadd.f32 %v1342, %v1430
        %v1432 = vpop.f32.mrf.mxu0
        %v1433 = vadd.f32 %v1344, %v1432
        %1434 = vmatmul.bf16.gmra.mxu0 %v906
        %v1435 = vpop.f32.mrf.mxu0
        %v1436 = vadd.f32 %v1347, %v1435
        %v1437 = vpop.f32.mrf.mxu0
        %v1438 = vadd.f32 %v1349, %v1437
        %1439 = vmatmul.bf16.gmra.mxu0 %v908
        %v1440 = vpop.f32.mrf.mxu0
        %v1441 = vadd.f32 %v1352, %v1440
        %v1442 = vpop.f32.mrf.mxu0
        %v1443 = vadd.f32 %v1354, %v1442
        %1444 = vmatmul.bf16.gmra.mxu0 %v910
        %v1445 = vpop.f32.mrf.mxu0
        %v1446 = vadd.f32 %v1357, %v1445
        %v1447 = vpop.f32.mrf.mxu0
        %v1448 = vadd.f32 %v1359, %v1447
        %1449 = vmatmul.bf16.gmra.mxu0 %v912
        %v1450 = vpop.f32.mrf.mxu0
        %v1451 = vadd.f32 %v1362, %v1450
        %v1452 = vpop.f32.mrf.mxu0
        %v1453 = vadd.f32 %v1364, %v1452
        %1454 = vmatmul.bf16.gmra.mxu0 %v914
        %v1455 = vpop.f32.mrf.mxu0
        %v1456 = vadd.f32 %v1367, %v1455
        %v1457 = vpop.f32.mrf.mxu0
        %v1458 = vadd.f32 %v1369, %v1457
        %1459 = vmatmul.bf16.gmra.mxu0 %v916
        %v1460 = vpop.f32.mrf.mxu0
        %v1461 = vadd.f32 %v1372, %v1460
        %v1462 = vpop.f32.mrf.mxu0
        %v1463 = vadd.f32 %v1374, %v1462
        %1464 = vdwg.mxu0
        %v1465 = vmax.f32 %v1208, 0.0
        %v1466 = vmax.f32 %v1386, 0.0
        %v1467 = vmax.f32 %v1210, 0.0
        %v1468 = vmax.f32 %v1388, 0.0
        %v1469 = vmax.f32 %v1213, 0.0
        %v1470 = vmax.f32 %v1391, 0.0
        %v1471 = vmax.f32 %v1215, 0.0
        %v1472 = vmax.f32 %v1393, 0.0
        %v1473 = vmax.f32 %v1218, 0.0
        %v1474 = vmax.f32 %v1396, 0.0
        %v1475 = vmax.f32 %v1220, 0.0
        %v1476 = vmax.f32 %v1398, 0.0
        %v1477 = vmax.f32 %v1223, 0.0
        %v1478 = vmax.f32 %v1401, 0.0
        %v1479 = vmax.f32 %v1225, 0.0
        %v1480 = vmax.f32 %v1403, 0.0
        %v1481 = vmax.f32 %v1228, 0.0
        %v1482 = vmax.f32 %v1406, 0.0
        %v1483 = vmax.f32 %v1230, 0.0
        %v1484 = vmax.f32 %v1408, 0.0
        %v1485 = vmax.f32 %v1233, 0.0
        %v1486 = vmax.f32 %v1411, 0.0
        %v1487 = vmax.f32 %v1235, 0.0
        %v1488 = vmax.f32 %v1413, 0.0
        %v1489 = vmax.f32 %v1238, 0.0
        %v1490 = vmax.f32 %v1416, 0.0
        %v1491 = vmax.f32 %v1240, 0.0
        %v1492 = vmax.f32 %v1418, 0.0
        %v1493 = vmax.f32 %v1243, 0.0
        %v1494 = vmax.f32 %v1421, 0.0
        %v1495 = vmax.f32 %v1245, 0.0
        %v1496 = vmax.f32 %v1423, 0.0
        %v1497 = vmax.f32 %v1248, 0.0
        %v1498 = vmax.f32 %v1426, 0.0
        %v1499 = vmax.f32 %v1250, 0.0
        %v1500 = vmax.f32 %v1428, 0.0
        %v1501 = vmax.f32 %v1253, 0.0
        %v1502 = vmax.f32 %v1431, 0.0
        %v1503 = vmax.f32 %v1255, 0.0
        %v1504 = vmax.f32 %v1433, 0.0
        %v1505 = vmax.f32 %v1258, 0.0
        %v1506 = vmax.f32 %v1436, 0.0
        %v1507 = vmax.f32 %v1260, 0.0
        %v1508 = vmax.f32 %v1438, 0.0
        %v1509 = vmax.f32 %v1263, 0.0
        %v1510 = vmax.f32 %v1441, 0.0
        %v1511 = vmax.f32 %v1265, 0.0
        %v1512 = vmax.f32 %v1443, 0.0
        %v1513 = vmax.f32 %v1268, 0.0
        %v1514 = vmax.f32 %v1446, 0.0
        %v1515 = vmax.f32 %v1270, 0.0
        %v1516 = vmax.f32 %v1448, 0.0
        %v1517 = vmax.f32 %v1273, 0.0
        %v1518 = vmax.f32 %v1451, 0.0
        %v1519 = vmax.f32 %v1275, 0.0
        %v1520 = vmax.f32 %v1453, 0.0
        %v1521 = vmax.f32 %v1278, 0.0
        %v1522 = vmax.f32 %v1456, 0.0
        %v1523 = vmax.f32 %v1280, 0.0
        %v1524 = vmax.f32 %v1458, 0.0
        %v1525 = vmax.f32 %v1283, 0.0
        %v1526 = vmax.f32 %v1461, 0.0
        %v1527 = vmax.f32 %v1285, 0.0
        %v1528 = vmax.f32 %v1463, 0.0
        %v1529 = vpack.c.bf16 %v1467, %v1465
        %v1530 = vpack.c.bf16 %v1468, %v1466
        %v1531 = vpack.c.bf16 %v1471, %v1469
        %v1532 = vpack.c.bf16 %v1472, %v1470
        %v1533 = vpack.c.bf16 %v1475, %v1473
        %v1534 = vpack.c.bf16 %v1476, %v1474
        %v1535 = vpack.c.bf16 %v1479, %v1477
        %v1536 = vpack.c.bf16 %v1480, %v1478
        %v1537 = vpack.c.bf16 %v1483, %v1481
        %v1538 = vpack.c.bf16 %v1484, %v1482
        %v1539 = vpack.c.bf16 %v1487, %v1485
        %v1540 = vpack.c.bf16 %v1488, %v1486
        %v1541 = vpack.c.bf16 %v1491, %v1489
        %v1542 = vpack.c.bf16 %v1492, %v1490
        %v1543 = vpack.c.bf16 %v1495, %v1493
        %v1544 = vpack.c.bf16 %v1496, %v1494
        %v1545 = vpack.c.bf16 %v1499, %v1497
        %v1546 = vpack.c.bf16 %v1500, %v1498
        %v1547 = vpack.c.bf16 %v1503, %v1501
        %v1548 = vpack.c.bf16 %v1504, %v1502
        %v1549 = vpack.c.bf16 %v1507, %v1505
        %v1550 = vpack.c.bf16 %v1508, %v1506
        %v1551 = vpack.c.bf16 %v1511, %v1509
        %v1552 = vpack.c.bf16 %v1512, %v1510
        %v1553 = vpack.c.bf16 %v1515, %v1513
        %v1554 = vpack.c.bf16 %v1516, %v1514
        %v1555 = vpack.c.bf16 %v1519, %v1517
        %v1556 = vpack.c.bf16 %v1520, %v1518
        %v1557 = vpack.c.bf16 %v1523, %v1521
        %v1558 = vpack.c.bf16 %v1524, %v1522
        %v1559 = vpack.c.bf16 %v1527, %v1525
        %v1560 = vpack.c.bf16 %v1528, %v1526
        %v1561 = vld [vmem:[#allocation8] sm:$0xff]
        %v1562 = vld [vmem:[#allocation8 + $0x8] sm:$0xff]
        %v1563 = vld [vmem:[#allocation8 + $0x10] sm:$0xff]
        %v1564 = vld [vmem:[#allocation8 + $0x18] sm:$0xff]
        %v1565 = vld [vmem:[#allocation8 + $0x20] sm:$0xff]
        %v1566 = vld [vmem:[#allocation8 + $0x28] sm:$0xff]
        %v1567 = vld [vmem:[#allocation8 + $0x30] sm:$0xff]
        %v1568 = vld [vmem:[#allocation8 + $0x38] sm:$0xff]
        %v1569 = vld [vmem:[#allocation8 + $0x40] sm:$0xff]
        %v1570 = vld [vmem:[#allocation8 + $0x48] sm:$0xff]
        %v1571 = vld [vmem:[#allocation8 + $0x50] sm:$0xff]
        %v1572 = vld [vmem:[#allocation8 + $0x58] sm:$0xff]
        %v1573 = vld [vmem:[#allocation8 + $0x60] sm:$0xff]
        %v1574 = vld [vmem:[#allocation8 + $0x68] sm:$0xff]
        %v1575 = vld [vmem:[#allocation8 + $0x70] sm:$0xff]
        %v1576 = vld [vmem:[#allocation8 + $0x78] sm:$0xff]
        %v1577 = vld [vmem:[#allocation8 + $0x80] sm:$0xff]
        %v1578 = vld [vmem:[#allocation8 + $0x88] sm:$0xff]
        %v1579 = vld [vmem:[#allocation8 + $0x90] sm:$0xff]
        %v1580 = vld [vmem:[#allocation8 + $0x98] sm:$0xff]
        %v1581 = vld [vmem:[#allocation8 + $0xa0] sm:$0xff]
        %v1582 = vld [vmem:[#allocation8 + $0xa8] sm:$0xff]
        %v1583 = vld [vmem:[#allocation8 + $0xb0] sm:$0xff]
        %v1584 = vld [vmem:[#allocation8 + $0xb8] sm:$0xff]
        %v1585 = vld [vmem:[#allocation8 + $0xc0] sm:$0xff]
        %v1586 = vld [vmem:[#allocation8 + $0xc8] sm:$0xff]
        %v1587 = vld [vmem:[#allocation8 + $0xd0] sm:$0xff]
        %v1588 = vld [vmem:[#allocation8 + $0xd8] sm:$0xff]
        %v1589 = vld [vmem:[#allocation8 + $0xe0] sm:$0xff]
        %v1590 = vld [vmem:[#allocation8 + $0xe8] sm:$0xff]
        %v1591 = vld [vmem:[#allocation8 + $0xf0] sm:$0xff]
        %v1592 = vld [vmem:[#allocation8 + $0xf8] sm:$0xff]
        %v1593 = vld [vmem:[%s4] sm:$0x3]
        %v1595 = vperm.slane %v1593, 0
        %v1596 = vperm.slane %v1593, 1
        %v1631 = vunpack.c.l.b16 %v1561
        %v1632 = vunpack.c.h.b16 %v1561
        %v1633 = vunpack.c.l.b16 %v1562
        %v1634 = vunpack.c.h.b16 %v1562
        %v1635 = vunpack.c.l.b16 %v1563
        %v1636 = vunpack.c.h.b16 %v1563
        %v1637 = vunpack.c.l.b16 %v1564
        %v1638 = vunpack.c.h.b16 %v1564
        %v1639 = vunpack.c.l.b16 %v1565
        %v1640 = vunpack.c.h.b16 %v1565
        %v1641 = vunpack.c.l.b16 %v1566
        %v1642 = vunpack.c.h.b16 %v1566
        %v1643 = vunpack.c.l.b16 %v1567
        %v1644 = vunpack.c.h.b16 %v1567
        %v1645 = vunpack.c.l.b16 %v1568
        %v1646 = vunpack.c.h.b16 %v1568
        %v1647 = vunpack.c.l.b16 %v1569
        %v1648 = vunpack.c.h.b16 %v1569
        %v1649 = vunpack.c.l.b16 %v1570
        %v1650 = vunpack.c.h.b16 %v1570
        %v1651 = vunpack.c.l.b16 %v1571
        %v1652 = vunpack.c.h.b16 %v1571
        %v1653 = vunpack.c.l.b16 %v1572
        %v1654 = vunpack.c.h.b16 %v1572
        %v1655 = vunpack.c.l.b16 %v1573
        %v1656 = vunpack.c.h.b16 %v1573
        %v1657 = vunpack.c.l.b16 %v1574
        %v1658 = vunpack.c.h.b16 %v1574
        %v1659 = vunpack.c.l.b16 %v1575
        %v1660 = vunpack.c.h.b16 %v1575
        %v1661 = vunpack.c.l.b16 %v1576
        %v1662 = vunpack.c.h.b16 %v1576
        %v1663 = vunpack.c.l.b16 %v1577
        %v1664 = vunpack.c.h.b16 %v1577
        %v1665 = vunpack.c.l.b16 %v1578
        %v1666 = vunpack.c.h.b16 %v1578
        %v1667 = vunpack.c.l.b16 %v1579
        %v1668 = vunpack.c.h.b16 %v1579
        %v1669 = vunpack.c.l.b16 %v1580
        %v1670 = vunpack.c.h.b16 %v1580
        %v1671 = vunpack.c.l.b16 %v1581
        %v1672 = vunpack.c.h.b16 %v1581
        %v1673 = vunpack.c.l.b16 %v1582
        %v1674 = vunpack.c.h.b16 %v1582
        %v1675 = vunpack.c.l.b16 %v1583
        %v1676 = vunpack.c.h.b16 %v1583
        %v1677 = vunpack.c.l.b16 %v1584
        %v1678 = vunpack.c.h.b16 %v1584
        %v1679 = vunpack.c.l.b16 %v1585
        %v1680 = vunpack.c.h.b16 %v1585
        %v1681 = vunpack.c.l.b16 %v1586
        %v1682 = vunpack.c.h.b16 %v1586
        %v1683 = vunpack.c.l.b16 %v1587
        %v1684 = vunpack.c.h.b16 %v1587
        %v1685 = vunpack.c.l.b16 %v1588
        %v1686 = vunpack.c.h.b16 %v1588
        %v1687 = vunpack.c.l.b16 %v1589
        %v1688 = vunpack.c.h.b16 %v1589
        %v1689 = vunpack.c.l.b16 %v1590
        %v1690 = vunpack.c.h.b16 %v1590
        %v1691 = vunpack.c.l.b16 %v1591
        %v1692 = vunpack.c.h.b16 %v1591
        %v1693 = vunpack.c.l.b16 %v1592
        %v1694 = vunpack.c.h.b16 %v1592
        %v1695 = vpack.c.b16 %v1633, %v1631
        %v1696 = vpack.c.b16 %v1634, %v1632
        %v1697 = vpack.c.b16 %v1637, %v1635
        %v1698 = vpack.c.b16 %v1638, %v1636
        %v1699 = vpack.c.b16 %v1641, %v1639
        %v1700 = vpack.c.b16 %v1642, %v1640
        %v1701 = vpack.c.b16 %v1645, %v1643
        %v1702 = vpack.c.b16 %v1646, %v1644
        %v1703 = vpack.c.b16 %v1649, %v1647
        %v1704 = vpack.c.b16 %v1650, %v1648
        %v1705 = vpack.c.b16 %v1653, %v1651
        %v1706 = vpack.c.b16 %v1654, %v1652
        %v1707 = vpack.c.b16 %v1657, %v1655
        %v1708 = vpack.c.b16 %v1658, %v1656
        %v1709 = vpack.c.b16 %v1661, %v1659
        %v1710 = vpack.c.b16 %v1662, %v1660
        %v1711 = vpack.c.b16 %v1665, %v1663
        %v1712 = vpack.c.b16 %v1666, %v1664
        %v1713 = vpack.c.b16 %v1669, %v1667
        %v1714 = vpack.c.b16 %v1670, %v1668
        %v1715 = vpack.c.b16 %v1673, %v1671
        %v1716 = vpack.c.b16 %v1674, %v1672
        %v1717 = vpack.c.b16 %v1677, %v1675
        %v1718 = vpack.c.b16 %v1678, %v1676
        %v1719 = vpack.c.b16 %v1681, %v1679
        %v1720 = vpack.c.b16 %v1682, %v1680
        %v1721 = vpack.c.b16 %v1685, %v1683
        %v1722 = vpack.c.b16 %v1686, %v1684
        %v1723 = vpack.c.b16 %v1689, %v1687
        %v1724 = vpack.c.b16 %v1690, %v1688
        %v1725 = vpack.c.b16 %v1693, %v1691
        %v1726 = vpack.c.b16 %v1694, %v1692
        %1759 = vmatpush.bf16.msra.mxu0 %v1709
        %1760 = vmatpush.bf16.msra.mxu0 %v1707
        %1761 = vmatpush.bf16.msra.mxu0 %v1705
        %1762 = vmatpush.bf16.msra.mxu0 %v1703
        %1763 = vmatpush.bf16.msra.mxu0 %v1701
        %1764 = vmatpush.bf16.msra.mxu0 %v1699
        %1765 = vmatpush.bf16.msra.mxu0 %v1697
        %1766 = vmatpush.bf16.msra.mxu0 %v1695
        %1767 = vmatmul.bf16.gmra.mxu0 %v1529
        %v1768 = vpop.f32.mrf.mxu0
        %v1769 = vadd.f32 %v1595, %v1768
        %v1770 = vpop.f32.mrf.mxu0
        %v1771 = vadd.f32 %v1595, %v1770
        %1772 = vmatmul.bf16.gmra.mxu0 %v1531
        %v1773 = vpop.f32.mrf.mxu0
        %v1774 = vadd.f32 %v1595, %v1773
        %v1775 = vpop.f32.mrf.mxu0
        %v1776 = vadd.f32 %v1595, %v1775
        %1777 = vmatmul.bf16.gmra.mxu0 %v1533
        %v1778 = vpop.f32.mrf.mxu0
        %v1779 = vadd.f32 %v1595, %v1778
        %v1780 = vpop.f32.mrf.mxu0
        %v1781 = vadd.f32 %v1595, %v1780
        %1782 = vmatmul.bf16.gmra.mxu0 %v1535
        %v1783 = vpop.f32.mrf.mxu0
        %v1784 = vadd.f32 %v1595, %v1783
        %v1785 = vpop.f32.mrf.mxu0
        %v1786 = vadd.f32 %v1595, %v1785
        %1787 = vmatmul.bf16.gmra.mxu0 %v1537
        %v1788 = vpop.f32.mrf.mxu0
        %v1789 = vadd.f32 %v1595, %v1788
        %v1790 = vpop.f32.mrf.mxu0
        %v1791 = vadd.f32 %v1595, %v1790
        %1792 = vmatmul.bf16.gmra.mxu0 %v1539
        %v1793 = vpop.f32.mrf.mxu0
        %v1794 = vadd.f32 %v1595, %v1793
        %v1795 = vpop.f32.mrf.mxu0
        %v1796 = vadd.f32 %v1595, %v1795
        %1797 = vmatmul.bf16.gmra.mxu0 %v1541
        %v1798 = vpop.f32.mrf.mxu0
        %v1799 = vadd.f32 %v1595, %v1798
        %v1800 = vpop.f32.mrf.mxu0
        %v1801 = vadd.f32 %v1595, %v1800
        %1802 = vmatmul.bf16.gmra.mxu0 %v1543
        %v1803 = vpop.f32.mrf.mxu0
        %v1804 = vadd.f32 %v1595, %v1803
        %v1805 = vpop.f32.mrf.mxu0
        %v1806 = vadd.f32 %v1595, %v1805
        %1807 = vmatmul.bf16.gmra.mxu0 %v1545
        %v1808 = vpop.f32.mrf.mxu0
        %v1809 = vadd.f32 %v1595, %v1808
        %v1810 = vpop.f32.mrf.mxu0
        %v1811 = vadd.f32 %v1595, %v1810
        %1812 = vmatmul.bf16.gmra.mxu0 %v1547
        %v1813 = vpop.f32.mrf.mxu0
        %v1814 = vadd.f32 %v1595, %v1813
        %v1815 = vpop.f32.mrf.mxu0
        %v1816 = vadd.f32 %v1595, %v1815
        %1817 = vmatmul.bf16.gmra.mxu0 %v1549
        %v1818 = vpop.f32.mrf.mxu0
        %v1819 = vadd.f32 %v1595, %v1818
        %v1820 = vpop.f32.mrf.mxu0
        %v1821 = vadd.f32 %v1595, %v1820
        %1822 = vmatmul.bf16.gmra.mxu0 %v1551
        %v1823 = vpop.f32.mrf.mxu0
        %v1824 = vadd.f32 %v1595, %v1823
        %v1825 = vpop.f32.mrf.mxu0
        %v1826 = vadd.f32 %v1595, %v1825
        %1827 = vmatmul.bf16.gmra.mxu0 %v1553
        %v1828 = vpop.f32.mrf.mxu0
        %v1829 = vadd.f32 %v1595, %v1828
        %v1830 = vpop.f32.mrf.mxu0
        %v1831 = vadd.f32 %v1595, %v1830
        %1832 = vmatmul.bf16.gmra.mxu0 %v1555
        %v1833 = vpop.f32.mrf.mxu0
        %v1834 = vadd.f32 %v1595, %v1833
        %v1835 = vpop.f32.mrf.mxu0
        %v1836 = vadd.f32 %v1595, %v1835
        %1837 = vmatmul.bf16.gmra.mxu0 %v1557
        %v1838 = vpop.f32.mrf.mxu0
        %v1839 = vadd.f32 %v1595, %v1838
        %v1840 = vpop.f32.mrf.mxu0
        %v1841 = vadd.f32 %v1595, %v1840
        %1842 = vmatmul.bf16.gmra.mxu0 %v1559
        %v1843 = vpop.f32.mrf.mxu0
        %v1844 = vadd.f32 %v1595, %v1843
        %v1845 = vpop.f32.mrf.mxu0
        %v1846 = vadd.f32 %v1595, %v1845
        %1847 = vdwg.mxu0
        %1848 = vmatpush.bf16.msra.mxu0 %v1725
        %1849 = vmatpush.bf16.msra.mxu0 %v1723
        %1850 = vmatpush.bf16.msra.mxu0 %v1721
        %1851 = vmatpush.bf16.msra.mxu0 %v1719
        %1852 = vmatpush.bf16.msra.mxu0 %v1717
        %1853 = vmatpush.bf16.msra.mxu0 %v1715
        %1854 = vmatpush.bf16.msra.mxu0 %v1713
        %1855 = vmatpush.bf16.msra.mxu0 %v1711
        %1856 = vmatmul.bf16.gmra.mxu0 %v1530
        %v1857 = vpop.f32.mrf.mxu0
        %v1858 = vadd.f32 %v1769, %v1857
        %v1859 = vpop.f32.mrf.mxu0
        %v1860 = vadd.f32 %v1771, %v1859
        %1861 = vmatmul.bf16.gmra.mxu0 %v1532
        %v1862 = vpop.f32.mrf.mxu0
        %v1863 = vadd.f32 %v1774, %v1862
        %v1864 = vpop.f32.mrf.mxu0
        %v1865 = vadd.f32 %v1776, %v1864
        %1866 = vmatmul.bf16.gmra.mxu0 %v1534
        %v1867 = vpop.f32.mrf.mxu0
        %v1868 = vadd.f32 %v1779, %v1867
        %v1869 = vpop.f32.mrf.mxu0
        %v1870 = vadd.f32 %v1781, %v1869
        %1871 = vmatmul.bf16.gmra.mxu0 %v1536
        %v1872 = vpop.f32.mrf.mxu0
        %v1873 = vadd.f32 %v1784, %v1872
        %v1874 = vpop.f32.mrf.mxu0
        %v1875 = vadd.f32 %v1786, %v1874
        %1876 = vmatmul.bf16.gmra.mxu0 %v1538
        %v1877 = vpop.f32.mrf.mxu0
        %v1878 = vadd.f32 %v1789, %v1877
        %v1879 = vpop.f32.mrf.mxu0
        %v1880 = vadd.f32 %v1791, %v1879
        %1881 = vmatmul.bf16.gmra.mxu0 %v1540
        %v1882 = vpop.f32.mrf.mxu0
        %v1883 = vadd.f32 %v1794, %v1882
        %v1884 = vpop.f32.mrf.mxu0
        %v1885 = vadd.f32 %v1796, %v1884
        %1886 = vmatmul.bf16.gmra.mxu0 %v1542
        %v1887 = vpop.f32.mrf.mxu0
        %v1888 = vadd.f32 %v1799, %v1887
        %v1889 = vpop.f32.mrf.mxu0
        %v1890 = vadd.f32 %v1801, %v1889
        %1891 = vmatmul.bf16.gmra.mxu0 %v1544
        %v1892 = vpop.f32.mrf.mxu0
        %v1893 = vadd.f32 %v1804, %v1892
        %v1894 = vpop.f32.mrf.mxu0
        %v1895 = vadd.f32 %v1806, %v1894
        %1896 = vmatmul.bf16.gmra.mxu0 %v1546
        %v1897 = vpop.f32.mrf.mxu0
        %v1898 = vadd.f32 %v1809, %v1897
        %v1899 = vpop.f32.mrf.mxu0
        %v1900 = vadd.f32 %v1811, %v1899
        %1901 = vmatmul.bf16.gmra.mxu0 %v1548
        %v1902 = vpop.f32.mrf.mxu0
        %v1903 = vadd.f32 %v1814, %v1902
        %v1904 = vpop.f32.mrf.mxu0
        %v1905 = vadd.f32 %v1816, %v1904
        %1906 = vmatmul.bf16.gmra.mxu0 %v1550
        %v1907 = vpop.f32.mrf.mxu0
        %v1908 = vadd.f32 %v1819, %v1907
        %v1909 = vpop.f32.mrf.mxu0
        %v1910 = vadd.f32 %v1821, %v1909
        %1911 = vmatmul.bf16.gmra.mxu0 %v1552
        %v1912 = vpop.f32.mrf.mxu0
        %v1913 = vadd.f32 %v1824, %v1912
        %v1914 = vpop.f32.mrf.mxu0
        %v1915 = vadd.f32 %v1826, %v1914
        %1916 = vmatmul.bf16.gmra.mxu0 %v1554
        %v1917 = vpop.f32.mrf.mxu0
        %v1918 = vadd.f32 %v1829, %v1917
        %v1919 = vpop.f32.mrf.mxu0
        %v1920 = vadd.f32 %v1831, %v1919
        %1921 = vmatmul.bf16.gmra.mxu0 %v1556
        %v1922 = vpop.f32.mrf.mxu0
        %v1923 = vadd.f32 %v1834, %v1922
        %v1924 = vpop.f32.mrf.mxu0
        %v1925 = vadd.f32 %v1836, %v1924
        %1926 = vmatmul.bf16.gmra.mxu0 %v1558
        %v1927 = vpop.f32.mrf.mxu0
        %v1928 = vadd.f32 %v1839, %v1927
        %v1929 = vpop.f32.mrf.mxu0
        %v1930 = vadd.f32 %v1841, %v1929
        %1931 = vmatmul.bf16.gmra.mxu0 %v1560
        %v1932 = vpop.f32.mrf.mxu0
        %v1933 = vadd.f32 %v1844, %v1932
        %v1934 = vpop.f32.mrf.mxu0
        %v1935 = vadd.f32 %v1846, %v1934
        %1936 = vdwg.mxu0
        %1937 = vmatpush.bf16.msra.mxu0 %v1710
        %1938 = vmatpush.bf16.msra.mxu0 %v1708
        %1939 = vmatpush.bf16.msra.mxu0 %v1706
        %1940 = vmatpush.bf16.msra.mxu0 %v1704
        %1941 = vmatpush.bf16.msra.mxu0 %v1702
        %1942 = vmatpush.bf16.msra.mxu0 %v1700
        %1943 = vmatpush.bf16.msra.mxu0 %v1698
        %1944 = vmatpush.bf16.msra.mxu0 %v1696
        %1945 = vmatmul.bf16.gmra.mxu0 %v1529
        %v1946 = vpop.f32.mrf.mxu0
        %v1947 = vadd.f32 %v1596, %v1946
        %v1948 = vpop.f32.mrf.mxu0
        %v1949 = vadd.f32 %v1596, %v1948
        %1950 = vmatmul.bf16.gmra.mxu0 %v1531
        %v1951 = vpop.f32.mrf.mxu0
        %v1952 = vadd.f32 %v1596, %v1951
        %v1953 = vpop.f32.mrf.mxu0
        %v1954 = vadd.f32 %v1596, %v1953
        %1955 = vmatmul.bf16.gmra.mxu0 %v1533
        %v1956 = vpop.f32.mrf.mxu0
        %v1957 = vadd.f32 %v1596, %v1956
        %v1958 = vpop.f32.mrf.mxu0
        %v1959 = vadd.f32 %v1596, %v1958
        %1960 = vmatmul.bf16.gmra.mxu0 %v1535
        %v1961 = vpop.f32.mrf.mxu0
        %v1962 = vadd.f32 %v1596, %v1961
        %v1963 = vpop.f32.mrf.mxu0
        %v1964 = vadd.f32 %v1596, %v1963
        %1965 = vmatmul.bf16.gmra.mxu0 %v1537
        %v1966 = vpop.f32.mrf.mxu0
        %v1967 = vadd.f32 %v1596, %v1966
        %v1968 = vpop.f32.mrf.mxu0
        %v1969 = vadd.f32 %v1596, %v1968
        %1970 = vmatmul.bf16.gmra.mxu0 %v1539
        %v1971 = vpop.f32.mrf.mxu0
        %v1972 = vadd.f32 %v1596, %v1971
        %v1973 = vpop.f32.mrf.mxu0
        %v1974 = vadd.f32 %v1596, %v1973
        %1975 = vmatmul.bf16.gmra.mxu0 %v1541
        %v1976 = vpop.f32.mrf.mxu0
        %v1977 = vadd.f32 %v1596, %v1976
        %v1978 = vpop.f32.mrf.mxu0
        %v1979 = vadd.f32 %v1596, %v1978
        %1980 = vmatmul.bf16.gmra.mxu0 %v1543
        %v1981 = vpop.f32.mrf.mxu0
        %v1982 = vadd.f32 %v1596, %v1981
        %v1983 = vpop.f32.mrf.mxu0
        %v1984 = vadd.f32 %v1596, %v1983
        %1985 = vmatmul.bf16.gmra.mxu0 %v1545
        %v1986 = vpop.f32.mrf.mxu0
        %v1987 = vadd.f32 %v1596, %v1986
        %v1988 = vpop.f32.mrf.mxu0
        %v1989 = vadd.f32 %v1596, %v1988
        %1990 = vmatmul.bf16.gmra.mxu0 %v1547
        %v1991 = vpop.f32.mrf.mxu0
        %v1992 = vadd.f32 %v1596, %v1991
        %v1993 = vpop.f32.mrf.mxu0
        %v1994 = vadd.f32 %v1596, %v1993
        %1995 = vmatmul.bf16.gmra.mxu0 %v1549
        %v1996 = vpop.f32.mrf.mxu0
        %v1997 = vadd.f32 %v1596, %v1996
        %v1998 = vpop.f32.mrf.mxu0
        %v1999 = vadd.f32 %v1596, %v1998
        %2000 = vmatmul.bf16.gmra.mxu0 %v1551
        %v2001 = vpop.f32.mrf.mxu0
        %v2002 = vadd.f32 %v1596, %v2001
        %v2003 = vpop.f32.mrf.mxu0
        %v2004 = vadd.f32 %v1596, %v2003
        %2005 = vmatmul.bf16.gmra.mxu0 %v1553
        %v2006 = vpop.f32.mrf.mxu0
        %v2007 = vadd.f32 %v1596, %v2006
        %v2008 = vpop.f32.mrf.mxu0
        %v2009 = vadd.f32 %v1596, %v2008
        %2010 = vmatmul.bf16.gmra.mxu0 %v1555
        %v2011 = vpop.f32.mrf.mxu0
        %v2012 = vadd.f32 %v1596, %v2011
        %v2013 = vpop.f32.mrf.mxu0
        %v2014 = vadd.f32 %v1596, %v2013
        %2015 = vmatmul.bf16.gmra.mxu0 %v1557
        %v2016 = vpop.f32.mrf.mxu0
        %v2017 = vadd.f32 %v1596, %v2016
        %v2018 = vpop.f32.mrf.mxu0
        %v2019 = vadd.f32 %v1596, %v2018
        %2020 = vmatmul.bf16.gmra.mxu0 %v1559
        %v2021 = vpop.f32.mrf.mxu0
        %v2022 = vadd.f32 %v1596, %v2021
        %v2023 = vpop.f32.mrf.mxu0
        %v2024 = vadd.f32 %v1596, %v2023
        %2025 = vdwg.mxu0
        %2026 = vmatpush.bf16.msra.mxu0 %v1726
        %2027 = vmatpush.bf16.msra.mxu0 %v1724
        %2028 = vmatpush.bf16.msra.mxu0 %v1722
        %2029 = vmatpush.bf16.msra.mxu0 %v1720
        %2030 = vmatpush.bf16.msra.mxu0 %v1718
        %2031 = vmatpush.bf16.msra.mxu0 %v1716
        %2032 = vmatpush.bf16.msra.mxu0 %v1714
        %2033 = vmatpush.bf16.msra.mxu0 %v1712
        %2034 = vmatmul.bf16.gmra.mxu0 %v1530
        %v2035 = vpop.f32.mrf.mxu0
        %v2036 = vadd.f32 %v1947, %v2035
        %v2037 = vpop.f32.mrf.mxu0
        %v2038 = vadd.f32 %v1949, %v2037
        %2039 = vmatmul.bf16.gmra.mxu0 %v1532
        %v2040 = vpop.f32.mrf.mxu0
        %v2041 = vadd.f32 %v1952, %v2040
        %v2042 = vpop.f32.mrf.mxu0
        %v2043 = vadd.f32 %v1954, %v2042
        %2044 = vmatmul.bf16.gmra.mxu0 %v1534
        %v2045 = vpop.f32.mrf.mxu0
        %v2046 = vadd.f32 %v1957, %v2045
        %v2047 = vpop.f32.mrf.mxu0
        %v2048 = vadd.f32 %v1959, %v2047
        %2049 = vmatmul.bf16.gmra.mxu0 %v1536
        %v2050 = vpop.f32.mrf.mxu0
        %v2051 = vadd.f32 %v1962, %v2050
        %v2052 = vpop.f32.mrf.mxu0
        %v2053 = vadd.f32 %v1964, %v2052
        %2054 = vmatmul.bf16.gmra.mxu0 %v1538
        %v2055 = vpop.f32.mrf.mxu0
        %v2056 = vadd.f32 %v1967, %v2055
        %v2057 = vpop.f32.mrf.mxu0
        %v2058 = vadd.f32 %v1969, %v2057
        %2059 = vmatmul.bf16.gmra.mxu0 %v1540
        %v2060 = vpop.f32.mrf.mxu0
        %v2061 = vadd.f32 %v1972, %v2060
        %v2062 = vpop.f32.mrf.mxu0
        %v2063 = vadd.f32 %v1974, %v2062
        %2064 = vmatmul.bf16.gmra.mxu0 %v1542
        %v2065 = vpop.f32.mrf.mxu0
        %v2066 = vadd.f32 %v1977, %v2065
        %v2067 = vpop.f32.mrf.mxu0
        %v2068 = vadd.f32 %v1979, %v2067
        %2069 = vmatmul.bf16.gmra.mxu0 %v1544
        %v2070 = vpop.f32.mrf.mxu0
        %v2071 = vadd.f32 %v1982, %v2070
        %v2072 = vpop.f32.mrf.mxu0
        %v2073 = vadd.f32 %v1984, %v2072
        %2074 = vmatmul.bf16.gmra.mxu0 %v1546
        %v2075 = vpop.f32.mrf.mxu0
        %v2076 = vadd.f32 %v1987, %v2075
        %v2077 = vpop.f32.mrf.mxu0
        %v2078 = vadd.f32 %v1989, %v2077
        %2079 = vmatmul.bf16.gmra.mxu0 %v1548
        %v2080 = vpop.f32.mrf.mxu0
        %v2081 = vadd.f32 %v1992, %v2080
        %v2082 = vpop.f32.mrf.mxu0
        %v2083 = vadd.f32 %v1994, %v2082
        %2084 = vmatmul.bf16.gmra.mxu0 %v1550
        %v2085 = vpop.f32.mrf.mxu0
        %v2086 = vadd.f32 %v1997, %v2085
        %v2087 = vpop.f32.mrf.mxu0
        %v2088 = vadd.f32 %v1999, %v2087
        %2089 = vmatmul.bf16.gmra.mxu0 %v1552
        %v2090 = vpop.f32.mrf.mxu0
        %v2091 = vadd.f32 %v2002, %v2090
        %v2092 = vpop.f32.mrf.mxu0
        %v2093 = vadd.f32 %v2004, %v2092
        %2094 = vmatmul.bf16.gmra.mxu0 %v1554
        %v2095 = vpop.f32.mrf.mxu0
        %v2096 = vadd.f32 %v2007, %v2095
        %v2097 = vpop.f32.mrf.mxu0
        %v2098 = vadd.f32 %v2009, %v2097
        %2099 = vmatmul.bf16.gmra.mxu0 %v1556
        %v2100 = vpop.f32.mrf.mxu0
        %v2101 = vadd.f32 %v2012, %v2100
        %v2102 = vpop.f32.mrf.mxu0
        %v2103 = vadd.f32 %v2014, %v2102
        %2104 = vmatmul.bf16.gmra.mxu0 %v1558
        %v2105 = vpop.f32.mrf.mxu0
        %v2106 = vadd.f32 %v2017, %v2105
        %v2107 = vpop.f32.mrf.mxu0
        %v2108 = vadd.f32 %v2019, %v2107
        %2109 = vmatmul.bf16.gmra.mxu0 %v1560
        %v2110 = vpop.f32.mrf.mxu0
        %v2111 = vadd.f32 %v2022, %v2110
        %v2112 = vpop.f32.mrf.mxu0
        %v2113 = vadd.f32 %v2024, %v2112
        %2114 = vdwg.mxu0
        %v2115 = vmax.f32 %v1858, 0.0
        %v2116 = vmax.f32 %v2036, 0.0
        %v2117 = vmax.f32 %v1860, 0.0
        %v2118 = vmax.f32 %v2038, 0.0
        %v2119 = vmax.f32 %v1863, 0.0
        %v2120 = vmax.f32 %v2041, 0.0
        %v2121 = vmax.f32 %v1865, 0.0
        %v2122 = vmax.f32 %v2043, 0.0
        %v2123 = vmax.f32 %v1868, 0.0
        %v2124 = vmax.f32 %v2046, 0.0
        %v2125 = vmax.f32 %v1870, 0.0
        %v2126 = vmax.f32 %v2048, 0.0
        %v2127 = vmax.f32 %v1873, 0.0
        %v2128 = vmax.f32 %v2051, 0.0
        %v2129 = vmax.f32 %v1875, 0.0
        %v2130 = vmax.f32 %v2053, 0.0
        %v2131 = vmax.f32 %v1878, 0.0
        %v2132 = vmax.f32 %v2056, 0.0
        %v2133 = vmax.f32 %v1880, 0.0
        %v2134 = vmax.f32 %v2058, 0.0
        %v2135 = vmax.f32 %v1883, 0.0
        %v2136 = vmax.f32 %v2061, 0.0
        %v2137 = vmax.f32 %v1885, 0.0
        %v2138 = vmax.f32 %v2063, 0.0
        %v2139 = vmax.f32 %v1888, 0.0
        %v2140 = vmax.f32 %v2066, 0.0
        %v2141 = vmax.f32 %v1890, 0.0
        %v2142 = vmax.f32 %v2068, 0.0
        %v2143 = vmax.f32 %v1893, 0.0
        %v2144 = vmax.f32 %v2071, 0.0
        %v2145 = vmax.f32 %v1895, 0.0
        %v2146 = vmax.f32 %v2073, 0.0
        %v2147 = vmax.f32 %v1898, 0.0
        %v2148 = vmax.f32 %v2076, 0.0
        %v2149 = vmax.f32 %v1900, 0.0
        %v2150 = vmax.f32 %v2078, 0.0
        %v2151 = vmax.f32 %v1903, 0.0
        %v2152 = vmax.f32 %v2081, 0.0
        %v2153 = vmax.f32 %v1905, 0.0
        %v2154 = vmax.f32 %v2083, 0.0
        %v2155 = vmax.f32 %v1908, 0.0
        %v2156 = vmax.f32 %v2086, 0.0
        %v2157 = vmax.f32 %v1910, 0.0
        %v2158 = vmax.f32 %v2088, 0.0
        %v2159 = vmax.f32 %v1913, 0.0
        %v2160 = vmax.f32 %v2091, 0.0
        %v2161 = vmax.f32 %v1915, 0.0
        %v2162 = vmax.f32 %v2093, 0.0
        %v2163 = vmax.f32 %v1918, 0.0
        %v2164 = vmax.f32 %v2096, 0.0
        %v2165 = vmax.f32 %v1920, 0.0
        %v2166 = vmax.f32 %v2098, 0.0
        %v2167 = vmax.f32 %v1923, 0.0
        %v2168 = vmax.f32 %v2101, 0.0
        %v2169 = vmax.f32 %v1925, 0.0
        %v2170 = vmax.f32 %v2103, 0.0
        %v2171 = vmax.f32 %v1928, 0.0
        %v2172 = vmax.f32 %v2106, 0.0
        %v2173 = vmax.f32 %v1930, 0.0
        %v2174 = vmax.f32 %v2108, 0.0
        %v2175 = vmax.f32 %v1933, 0.0
        %v2176 = vmax.f32 %v2111, 0.0
        %v2177 = vmax.f32 %v1935, 0.0
        %v2178 = vmax.f32 %v2113, 0.0
        %v2179 = vpack.c.bf16 %v2117, %v2115
        %v2180 = vpack.c.bf16 %v2118, %v2116
        %v2181 = vpack.c.bf16 %v2121, %v2119
        %v2182 = vpack.c.bf16 %v2122, %v2120
        %v2183 = vpack.c.bf16 %v2125, %v2123
        %v2184 = vpack.c.bf16 %v2126, %v2124
        %v2185 = vpack.c.bf16 %v2129, %v2127
        %v2186 = vpack.c.bf16 %v2130, %v2128
        %v2187 = vpack.c.bf16 %v2133, %v2131
        %v2188 = vpack.c.bf16 %v2134, %v2132
        %v2189 = vpack.c.bf16 %v2137, %v2135
        %v2190 = vpack.c.bf16 %v2138, %v2136
        %v2191 = vpack.c.bf16 %v2141, %v2139
        %v2192 = vpack.c.bf16 %v2142, %v2140
        %v2193 = vpack.c.bf16 %v2145, %v2143
        %v2194 = vpack.c.bf16 %v2146, %v2144
        %v2195 = vpack.c.bf16 %v2149, %v2147
        %v2196 = vpack.c.bf16 %v2150, %v2148
        %v2197 = vpack.c.bf16 %v2153, %v2151
        %v2198 = vpack.c.bf16 %v2154, %v2152
        %v2199 = vpack.c.bf16 %v2157, %v2155
        %v2200 = vpack.c.bf16 %v2158, %v2156
        %v2201 = vpack.c.bf16 %v2161, %v2159
        %v2202 = vpack.c.bf16 %v2162, %v2160
        %v2203 = vpack.c.bf16 %v2165, %v2163
        %v2204 = vpack.c.bf16 %v2166, %v2164
        %v2205 = vpack.c.bf16 %v2169, %v2167
        %v2206 = vpack.c.bf16 %v2170, %v2168
        %v2207 = vpack.c.bf16 %v2173, %v2171
        %v2208 = vpack.c.bf16 %v2174, %v2172
        %v2209 = vpack.c.bf16 %v2177, %v2175
        %v2210 = vpack.c.bf16 %v2178, %v2176
        %v2211 = vld [vmem:[#allocation10] sm:$0xff]
        %v2212 = vld [vmem:[#allocation10 + $0x8] sm:$0xff]
        %v2213 = vld [vmem:[#allocation10 + $0x10] sm:$0xff]
        %v2214 = vld [vmem:[#allocation10 + $0x18] sm:$0xff]
        %v2215 = vld [vmem:[#allocation10 + $0x20] sm:$0xff]
        %v2216 = vld [vmem:[#allocation10 + $0x28] sm:$0xff]
        %v2217 = vld [vmem:[#allocation10 + $0x30] sm:$0xff]
        %v2218 = vld [vmem:[#allocation10 + $0x38] sm:$0xff]
        %v2219 = vld [vmem:[#allocation10 + $0x40] sm:$0xff]
        %v2220 = vld [vmem:[#allocation10 + $0x48] sm:$0xff]
        %v2221 = vld [vmem:[#allocation10 + $0x50] sm:$0xff]
        %v2222 = vld [vmem:[#allocation10 + $0x58] sm:$0xff]
        %v2223 = vld [vmem:[#allocation10 + $0x60] sm:$0xff]
        %v2224 = vld [vmem:[#allocation10 + $0x68] sm:$0xff]
        %v2225 = vld [vmem:[#allocation10 + $0x70] sm:$0xff]
        %v2226 = vld [vmem:[#allocation10 + $0x78] sm:$0xff]
        %v2227 = vld [vmem:[#allocation10 + $0x80] sm:$0xff]
        %v2228 = vld [vmem:[#allocation10 + $0x88] sm:$0xff]
        %v2229 = vld [vmem:[#allocation10 + $0x90] sm:$0xff]
        %v2230 = vld [vmem:[#allocation10 + $0x98] sm:$0xff]
        %v2231 = vld [vmem:[#allocation10 + $0xa0] sm:$0xff]
        %v2232 = vld [vmem:[#allocation10 + $0xa8] sm:$0xff]
        %v2233 = vld [vmem:[#allocation10 + $0xb0] sm:$0xff]
        %v2234 = vld [vmem:[#allocation10 + $0xb8] sm:$0xff]
        %v2235 = vld [vmem:[#allocation10 + $0xc0] sm:$0xff]
        %v2236 = vld [vmem:[#allocation10 + $0xc8] sm:$0xff]
        %v2237 = vld [vmem:[#allocation10 + $0xd0] sm:$0xff]
        %v2238 = vld [vmem:[#allocation10 + $0xd8] sm:$0xff]
        %v2239 = vld [vmem:[#allocation10 + $0xe0] sm:$0xff]
        %v2240 = vld [vmem:[#allocation10 + $0xe8] sm:$0xff]
        %v2241 = vld [vmem:[#allocation10 + $0xf0] sm:$0xff]
        %v2242 = vld [vmem:[#allocation10 + $0xf8] sm:$0xff]
        %v2243 = vld [vmem:[%s6] sm:$0x3]
        %v2245 = vperm.slane %v2243, 0
        %v2246 = vperm.slane %v2243, 1
        %v2281 = vunpack.c.l.b16 %v2211
        %v2282 = vunpack.c.h.b16 %v2211
        %v2283 = vunpack.c.l.b16 %v2212
        %v2284 = vunpack.c.h.b16 %v2212
        %v2285 = vunpack.c.l.b16 %v2213
        %v2286 = vunpack.c.h.b16 %v2213
        %v2287 = vunpack.c.l.b16 %v2214
        %v2288 = vunpack.c.h.b16 %v2214
        %v2289 = vunpack.c.l.b16 %v2215
        %v2290 = vunpack.c.h.b16 %v2215
        %v2291 = vunpack.c.l.b16 %v2216
        %v2292 = vunpack.c.h.b16 %v2216
        %v2293 = vunpack.c.l.b16 %v2217
        %v2294 = vunpack.c.h.b16 %v2217
        %v2295 = vunpack.c.l.b16 %v2218
        %v2296 = vunpack.c.h.b16 %v2218
        %v2297 = vunpack.c.l.b16 %v2219
        %v2298 = vunpack.c.h.b16 %v2219
        %v2299 = vunpack.c.l.b16 %v2220
        %v2300 = vunpack.c.h.b16 %v2220
        %v2301 = vunpack.c.l.b16 %v2221
        %v2302 = vunpack.c.h.b16 %v2221
        %v2303 = vunpack.c.l.b16 %v2222
        %v2304 = vunpack.c.h.b16 %v2222
        %v2305 = vunpack.c.l.b16 %v2223
        %v2306 = vunpack.c.h.b16 %v2223
        %v2307 = vunpack.c.l.b16 %v2224
        %v2308 = vunpack.c.h.b16 %v2224
        %v2309 = vunpack.c.l.b16 %v2225
        %v2310 = vunpack.c.h.b16 %v2225
        %v2311 = vunpack.c.l.b16 %v2226
        %v2312 = vunpack.c.h.b16 %v2226
        %v2313 = vunpack.c.l.b16 %v2227
        %v2314 = vunpack.c.h.b16 %v2227
        %v2315 = vunpack.c.l.b16 %v2228
        %v2316 = vunpack.c.h.b16 %v2228
        %v2317 = vunpack.c.l.b16 %v2229
        %v2318 = vunpack.c.h.b16 %v2229
        %v2319 = vunpack.c.l.b16 %v2230
        %v2320 = vunpack.c.h.b16 %v2230
        %v2321 = vunpack.c.l.b16 %v2231
        %v2322 = vunpack.c.h.b16 %v2231
        %v2323 = vunpack.c.l.b16 %v2232
        %v2324 = vunpack.c.h.b16 %v2232
        %v2325 = vunpack.c.l.b16 %v2233
        %v2326 = vunpack.c.h.b16 %v2233
        %v2327 = vunpack.c.l.b16 %v2234
        %v2328 = vunpack.c.h.b16 %v2234
        %v2329 = vunpack.c.l.b16 %v2235
        %v2330 = vunpack.c.h.b16 %v2235
        %v2331 = vunpack.c.l.b16 %v2236
        %v2332 = vunpack.c.h.b16 %v2236
        %v2333 = vunpack.c.l.b16 %v2237
        %v2334 = vunpack.c.h.b16 %v2237
        %v2335 = vunpack.c.l.b16 %v2238
        %v2336 = vunpack.c.h.b16 %v2238
        %v2337 = vunpack.c.l.b16 %v2239
        %v2338 = vunpack.c.h.b16 %v2239
        %v2339 = vunpack.c.l.b16 %v2240
        %v2340 = vunpack.c.h.b16 %v2240
        %v2341 = vunpack.c.l.b16 %v2241
        %v2342 = vunpack.c.h.b16 %v2241
        %v2343 = vunpack.c.l.b16 %v2242
        %v2344 = vunpack.c.h.b16 %v2242
        %v2345 = vpack.c.b16 %v2283, %v2281
        %v2346 = vpack.c.b16 %v2284, %v2282
        %v2347 = vpack.c.b16 %v2287, %v2285
        %v2348 = vpack.c.b16 %v2288, %v2286
        %v2349 = vpack.c.b16 %v2291, %v2289
        %v2350 = vpack.c.b16 %v2292, %v2290
        %v2351 = vpack.c.b16 %v2295, %v2293
        %v2352 = vpack.c.b16 %v2296, %v2294
        %v2353 = vpack.c.b16 %v2299, %v2297
        %v2354 = vpack.c.b16 %v2300, %v2298
        %v2355 = vpack.c.b16 %v2303, %v2301
        %v2356 = vpack.c.b16 %v2304, %v2302
        %v2357 = vpack.c.b16 %v2307, %v2305
        %v2358 = vpack.c.b16 %v2308, %v2306
        %v2359 = vpack.c.b16 %v2311, %v2309
        %v2360 = vpack.c.b16 %v2312, %v2310
        %v2361 = vpack.c.b16 %v2315, %v2313
        %v2362 = vpack.c.b16 %v2316, %v2314
        %v2363 = vpack.c.b16 %v2319, %v2317
        %v2364 = vpack.c.b16 %v2320, %v2318
        %v2365 = vpack.c.b16 %v2323, %v2321
        %v2366 = vpack.c.b16 %v2324, %v2322
        %v2367 = vpack.c.b16 %v2327, %v2325
        %v2368 = vpack.c.b16 %v2328, %v2326
        %v2369 = vpack.c.b16 %v2331, %v2329
        %v2370 = vpack.c.b16 %v2332, %v2330
        %v2371 = vpack.c.b16 %v2335, %v2333
        %v2372 = vpack.c.b16 %v2336, %v2334
        %v2373 = vpack.c.b16 %v2339, %v2337
        %v2374 = vpack.c.b16 %v2340, %v2338
        %v2375 = vpack.c.b16 %v2343, %v2341
        %v2376 = vpack.c.b16 %v2344, %v2342
        %2409 = vmatpush.bf16.msra.mxu0 %v2359
        %2410 = vmatpush.bf16.msra.mxu0 %v2357
        %2411 = vmatpush.bf16.msra.mxu0 %v2355
        %2412 = vmatpush.bf16.msra.mxu0 %v2353
        %2413 = vmatpush.bf16.msra.mxu0 %v2351
        %2414 = vmatpush.bf16.msra.mxu0 %v2349
        %2415 = vmatpush.bf16.msra.mxu0 %v2347
        %2416 = vmatpush.bf16.msra.mxu0 %v2345
        %2417 = vmatmul.bf16.gmra.mxu0 %v2179
        %v2418 = vpop.f32.mrf.mxu0
        %v2419 = vadd.f32 %v2245, %v2418
        %v2420 = vpop.f32.mrf.mxu0
        %v2421 = vadd.f32 %v2245, %v2420
        %2422 = vmatmul.bf16.gmra.mxu0 %v2181
        %v2423 = vpop.f32.mrf.mxu0
        %v2424 = vadd.f32 %v2245, %v2423
        %v2425 = vpop.f32.mrf.mxu0
        %v2426 = vadd.f32 %v2245, %v2425
        %2427 = vmatmul.bf16.gmra.mxu0 %v2183
        %v2428 = vpop.f32.mrf.mxu0
        %v2429 = vadd.f32 %v2245, %v2428
        %v2430 = vpop.f32.mrf.mxu0
        %v2431 = vadd.f32 %v2245, %v2430
        %2432 = vmatmul.bf16.gmra.mxu0 %v2185
        %v2433 = vpop.f32.mrf.mxu0
        %v2434 = vadd.f32 %v2245, %v2433
        %v2435 = vpop.f32.mrf.mxu0
        %v2436 = vadd.f32 %v2245, %v2435
        %2437 = vmatmul.bf16.gmra.mxu0 %v2187
        %v2438 = vpop.f32.mrf.mxu0
        %v2439 = vadd.f32 %v2245, %v2438
        %v2440 = vpop.f32.mrf.mxu0
        %v2441 = vadd.f32 %v2245, %v2440
        %2442 = vmatmul.bf16.gmra.mxu0 %v2189
        %v2443 = vpop.f32.mrf.mxu0
        %v2444 = vadd.f32 %v2245, %v2443
        %v2445 = vpop.f32.mrf.mxu0
        %v2446 = vadd.f32 %v2245, %v2445
        %2447 = vmatmul.bf16.gmra.mxu0 %v2191
        %v2448 = vpop.f32.mrf.mxu0
        %v2449 = vadd.f32 %v2245, %v2448
        %v2450 = vpop.f32.mrf.mxu0
        %v2451 = vadd.f32 %v2245, %v2450
        %2452 = vmatmul.bf16.gmra.mxu0 %v2193
        %v2453 = vpop.f32.mrf.mxu0
        %v2454 = vadd.f32 %v2245, %v2453
        %v2455 = vpop.f32.mrf.mxu0
        %v2456 = vadd.f32 %v2245, %v2455
        %2457 = vmatmul.bf16.gmra.mxu0 %v2195
        %v2458 = vpop.f32.mrf.mxu0
        %v2459 = vadd.f32 %v2245, %v2458
        %v2460 = vpop.f32.mrf.mxu0
        %v2461 = vadd.f32 %v2245, %v2460
        %2462 = vmatmul.bf16.gmra.mxu0 %v2197
        %v2463 = vpop.f32.mrf.mxu0
        %v2464 = vadd.f32 %v2245, %v2463
        %v2465 = vpop.f32.mrf.mxu0
        %v2466 = vadd.f32 %v2245, %v2465
        %2467 = vmatmul.bf16.gmra.mxu0 %v2199
        %v2468 = vpop.f32.mrf.mxu0
        %v2469 = vadd.f32 %v2245, %v2468
        %v2470 = vpop.f32.mrf.mxu0
        %v2471 = vadd.f32 %v2245, %v2470
        %2472 = vmatmul.bf16.gmra.mxu0 %v2201
        %v2473 = vpop.f32.mrf.mxu0
        %v2474 = vadd.f32 %v2245, %v2473
        %v2475 = vpop.f32.mrf.mxu0
        %v2476 = vadd.f32 %v2245, %v2475
        %2477 = vmatmul.bf16.gmra.mxu0 %v2203
        %v2478 = vpop.f32.mrf.mxu0
        %v2479 = vadd.f32 %v2245, %v2478
        %v2480 = vpop.f32.mrf.mxu0
        %v2481 = vadd.f32 %v2245, %v2480
        %2482 = vmatmul.bf16.gmra.mxu0 %v2205
        %v2483 = vpop.f32.mrf.mxu0
        %v2484 = vadd.f32 %v2245, %v2483
        %v2485 = vpop.f32.mrf.mxu0
        %v2486 = vadd.f32 %v2245, %v2485
        %2487 = vmatmul.bf16.gmra.mxu0 %v2207
        %v2488 = vpop.f32.mrf.mxu0
        %v2489 = vadd.f32 %v2245, %v2488
        %v2490 = vpop.f32.mrf.mxu0
        %v2491 = vadd.f32 %v2245, %v2490
        %2492 = vmatmul.bf16.gmra.mxu0 %v2209
        %v2493 = vpop.f32.mrf.mxu0
        %v2494 = vadd.f32 %v2245, %v2493
        %v2495 = vpop.f32.mrf.mxu0
        %v2496 = vadd.f32 %v2245, %v2495
        %2497 = vdwg.mxu0
        %2498 = vmatpush.bf16.msra.mxu0 %v2375
        %2499 = vmatpush.bf16.msra.mxu0 %v2373
        %2500 = vmatpush.bf16.msra.mxu0 %v2371
        %2501 = vmatpush.bf16.msra.mxu0 %v2369
        %2502 = vmatpush.bf16.msra.mxu0 %v2367
        %2503 = vmatpush.bf16.msra.mxu0 %v2365
        %2504 = vmatpush.bf16.msra.mxu0 %v2363
        %2505 = vmatpush.bf16.msra.mxu0 %v2361
        %2506 = vmatmul.bf16.gmra.mxu0 %v2180
        %v2507 = vpop.f32.mrf.mxu0
        %v2508 = vadd.f32 %v2419, %v2507
        %v2509 = vpop.f32.mrf.mxu0
        %v2510 = vadd.f32 %v2421, %v2509
        %2511 = vmatmul.bf16.gmra.mxu0 %v2182
        %v2512 = vpop.f32.mrf.mxu0
        %v2513 = vadd.f32 %v2424, %v2512
        %v2514 = vpop.f32.mrf.mxu0
        %v2515 = vadd.f32 %v2426, %v2514
        %2516 = vmatmul.bf16.gmra.mxu0 %v2184
        %v2517 = vpop.f32.mrf.mxu0
        %v2518 = vadd.f32 %v2429, %v2517
        %v2519 = vpop.f32.mrf.mxu0
        %v2520 = vadd.f32 %v2431, %v2519
        %2521 = vmatmul.bf16.gmra.mxu0 %v2186
        %v2522 = vpop.f32.mrf.mxu0
        %v2523 = vadd.f32 %v2434, %v2522
        %v2524 = vpop.f32.mrf.mxu0
        %v2525 = vadd.f32 %v2436, %v2524
        %2526 = vmatmul.bf16.gmra.mxu0 %v2188
        %v2527 = vpop.f32.mrf.mxu0
        %v2528 = vadd.f32 %v2439, %v2527
        %v2529 = vpop.f32.mrf.mxu0
        %v2530 = vadd.f32 %v2441, %v2529
        %2531 = vmatmul.bf16.gmra.mxu0 %v2190
        %v2532 = vpop.f32.mrf.mxu0
        %v2533 = vadd.f32 %v2444, %v2532
        %v2534 = vpop.f32.mrf.mxu0
        %v2535 = vadd.f32 %v2446, %v2534
        %2536 = vmatmul.bf16.gmra.mxu0 %v2192
        %v2537 = vpop.f32.mrf.mxu0
        %v2538 = vadd.f32 %v2449, %v2537
        %v2539 = vpop.f32.mrf.mxu0
        %v2540 = vadd.f32 %v2451, %v2539
        %2541 = vmatmul.bf16.gmra.mxu0 %v2194
        %v2542 = vpop.f32.mrf.mxu0
        %v2543 = vadd.f32 %v2454, %v2542
        %v2544 = vpop.f32.mrf.mxu0
        %v2545 = vadd.f32 %v2456, %v2544
        %2546 = vmatmul.bf16.gmra.mxu0 %v2196
        %v2547 = vpop.f32.mrf.mxu0
        %v2548 = vadd.f32 %v2459, %v2547
        %v2549 = vpop.f32.mrf.mxu0
        %v2550 = vadd.f32 %v2461, %v2549
        %2551 = vmatmul.bf16.gmra.mxu0 %v2198
        %v2552 = vpop.f32.mrf.mxu0
        %v2553 = vadd.f32 %v2464, %v2552
        %v2554 = vpop.f32.mrf.mxu0
        %v2555 = vadd.f32 %v2466, %v2554
        %2556 = vmatmul.bf16.gmra.mxu0 %v2200
        %v2557 = vpop.f32.mrf.mxu0
        %v2558 = vadd.f32 %v2469, %v2557
        %v2559 = vpop.f32.mrf.mxu0
        %v2560 = vadd.f32 %v2471, %v2559
        %2561 = vmatmul.bf16.gmra.mxu0 %v2202
        %v2562 = vpop.f32.mrf.mxu0
        %v2563 = vadd.f32 %v2474, %v2562
        %v2564 = vpop.f32.mrf.mxu0
        %v2565 = vadd.f32 %v2476, %v2564
        %2566 = vmatmul.bf16.gmra.mxu0 %v2204
        %v2567 = vpop.f32.mrf.mxu0
        %v2568 = vadd.f32 %v2479, %v2567
        %v2569 = vpop.f32.mrf.mxu0
        %v2570 = vadd.f32 %v2481, %v2569
        %2571 = vmatmul.bf16.gmra.mxu0 %v2206
        %v2572 = vpop.f32.mrf.mxu0
        %v2573 = vadd.f32 %v2484, %v2572
        %v2574 = vpop.f32.mrf.mxu0
        %v2575 = vadd.f32 %v2486, %v2574
        %2576 = vmatmul.bf16.gmra.mxu0 %v2208
        %v2577 = vpop.f32.mrf.mxu0
        %v2578 = vadd.f32 %v2489, %v2577
        %v2579 = vpop.f32.mrf.mxu0
        %v2580 = vadd.f32 %v2491, %v2579
        %2581 = vmatmul.bf16.gmra.mxu0 %v2210
        %v2582 = vpop.f32.mrf.mxu0
        %v2583 = vadd.f32 %v2494, %v2582
        %v2584 = vpop.f32.mrf.mxu0
        %v2585 = vadd.f32 %v2496, %v2584
        %2586 = vdwg.mxu0
        %2587 = vmatpush.bf16.msra.mxu0 %v2360
        %2588 = vmatpush.bf16.msra.mxu0 %v2358
        %2589 = vmatpush.bf16.msra.mxu0 %v2356
        %2590 = vmatpush.bf16.msra.mxu0 %v2354
        %2591 = vmatpush.bf16.msra.mxu0 %v2352
        %2592 = vmatpush.bf16.msra.mxu0 %v2350
        %2593 = vmatpush.bf16.msra.mxu0 %v2348
        %2594 = vmatpush.bf16.msra.mxu0 %v2346
        %2595 = vmatmul.bf16.gmra.mxu0 %v2179
        %v2596 = vpop.f32.mrf.mxu0
        %v2597 = vadd.f32 %v2246, %v2596
        %v2598 = vpop.f32.mrf.mxu0
        %v2599 = vadd.f32 %v2246, %v2598
        %2600 = vmatmul.bf16.gmra.mxu0 %v2181
        %v2601 = vpop.f32.mrf.mxu0
        %v2602 = vadd.f32 %v2246, %v2601
        %v2603 = vpop.f32.mrf.mxu0
        %v2604 = vadd.f32 %v2246, %v2603
        %2605 = vmatmul.bf16.gmra.mxu0 %v2183
        %v2606 = vpop.f32.mrf.mxu0
        %v2607 = vadd.f32 %v2246, %v2606
        %v2608 = vpop.f32.mrf.mxu0
        %v2609 = vadd.f32 %v2246, %v2608
        %2610 = vmatmul.bf16.gmra.mxu0 %v2185
        %v2611 = vpop.f32.mrf.mxu0
        %v2612 = vadd.f32 %v2246, %v2611
        %v2613 = vpop.f32.mrf.mxu0
        %v2614 = vadd.f32 %v2246, %v2613
        %2615 = vmatmul.bf16.gmra.mxu0 %v2187
        %v2616 = vpop.f32.mrf.mxu0
        %v2617 = vadd.f32 %v2246, %v2616
        %v2618 = vpop.f32.mrf.mxu0
        %v2619 = vadd.f32 %v2246, %v2618
        %2620 = vmatmul.bf16.gmra.mxu0 %v2189
        %v2621 = vpop.f32.mrf.mxu0
        %v2622 = vadd.f32 %v2246, %v2621
        %v2623 = vpop.f32.mrf.mxu0
        %v2624 = vadd.f32 %v2246, %v2623
        %2625 = vmatmul.bf16.gmra.mxu0 %v2191
        %v2626 = vpop.f32.mrf.mxu0
        %v2627 = vadd.f32 %v2246, %v2626
        %v2628 = vpop.f32.mrf.mxu0
        %v2629 = vadd.f32 %v2246, %v2628
        %2630 = vmatmul.bf16.gmra.mxu0 %v2193
        %v2631 = vpop.f32.mrf.mxu0
        %v2632 = vadd.f32 %v2246, %v2631
        %v2633 = vpop.f32.mrf.mxu0
        %v2634 = vadd.f32 %v2246, %v2633
        %2635 = vmatmul.bf16.gmra.mxu0 %v2195
        %v2636 = vpop.f32.mrf.mxu0
        %v2637 = vadd.f32 %v2246, %v2636
        %v2638 = vpop.f32.mrf.mxu0
        %v2639 = vadd.f32 %v2246, %v2638
        %2640 = vmatmul.bf16.gmra.mxu0 %v2197
        %v2641 = vpop.f32.mrf.mxu0
        %v2642 = vadd.f32 %v2246, %v2641
        %v2643 = vpop.f32.mrf.mxu0
        %v2644 = vadd.f32 %v2246, %v2643
        %2645 = vmatmul.bf16.gmra.mxu0 %v2199
        %v2646 = vpop.f32.mrf.mxu0
        %v2647 = vadd.f32 %v2246, %v2646
        %v2648 = vpop.f32.mrf.mxu0
        %v2649 = vadd.f32 %v2246, %v2648
        %2650 = vmatmul.bf16.gmra.mxu0 %v2201
        %v2651 = vpop.f32.mrf.mxu0
        %v2652 = vadd.f32 %v2246, %v2651
        %v2653 = vpop.f32.mrf.mxu0
        %v2654 = vadd.f32 %v2246, %v2653
        %2655 = vmatmul.bf16.gmra.mxu0 %v2203
        %v2656 = vpop.f32.mrf.mxu0
        %v2657 = vadd.f32 %v2246, %v2656
        %v2658 = vpop.f32.mrf.mxu0
        %v2659 = vadd.f32 %v2246, %v2658
        %2660 = vmatmul.bf16.gmra.mxu0 %v2205
        %v2661 = vpop.f32.mrf.mxu0
        %v2662 = vadd.f32 %v2246, %v2661
        %v2663 = vpop.f32.mrf.mxu0
        %v2664 = vadd.f32 %v2246, %v2663
        %2665 = vmatmul.bf16.gmra.mxu0 %v2207
        %v2666 = vpop.f32.mrf.mxu0
        %v2667 = vadd.f32 %v2246, %v2666
        %v2668 = vpop.f32.mrf.mxu0
        %v2669 = vadd.f32 %v2246, %v2668
        %2670 = vmatmul.bf16.gmra.mxu0 %v2209
        %v2671 = vpop.f32.mrf.mxu0
        %v2672 = vadd.f32 %v2246, %v2671
        %v2673 = vpop.f32.mrf.mxu0
        %v2674 = vadd.f32 %v2246, %v2673
        %2675 = vdwg.mxu0
        %2676 = vmatpush.bf16.msra.mxu0 %v2376
        %2677 = vmatpush.bf16.msra.mxu0 %v2374
        %2678 = vmatpush.bf16.msra.mxu0 %v2372
        %2679 = vmatpush.bf16.msra.mxu0 %v2370
        %2680 = vmatpush.bf16.msra.mxu0 %v2368
        %2681 = vmatpush.bf16.msra.mxu0 %v2366
        %2682 = vmatpush.bf16.msra.mxu0 %v2364
        %2683 = vmatpush.bf16.msra.mxu0 %v2362
        %2684 = vmatmul.bf16.gmra.mxu0 %v2180
        %v2685 = vpop.f32.mrf.mxu0
        %v2686 = vadd.f32 %v2597, %v2685
        %v2687 = vpop.f32.mrf.mxu0
        %v2688 = vadd.f32 %v2599, %v2687
        %2689 = vmatmul.bf16.gmra.mxu0 %v2182
        %v2690 = vpop.f32.mrf.mxu0
        %v2691 = vadd.f32 %v2602, %v2690
        %v2692 = vpop.f32.mrf.mxu0
        %v2693 = vadd.f32 %v2604, %v2692
        %2694 = vmatmul.bf16.gmra.mxu0 %v2184
        %v2695 = vpop.f32.mrf.mxu0
        %v2696 = vadd.f32 %v2607, %v2695
        %v2697 = vpop.f32.mrf.mxu0
        %v2698 = vadd.f32 %v2609, %v2697
        %2699 = vmatmul.bf16.gmra.mxu0 %v2186
        %v2700 = vpop.f32.mrf.mxu0
        %v2701 = vadd.f32 %v2612, %v2700
        %v2702 = vpop.f32.mrf.mxu0
        %v2703 = vadd.f32 %v2614, %v2702
        %2704 = vmatmul.bf16.gmra.mxu0 %v2188
        %v2705 = vpop.f32.mrf.mxu0
        %v2706 = vadd.f32 %v2617, %v2705
        %v2707 = vpop.f32.mrf.mxu0
        %v2708 = vadd.f32 %v2619, %v2707
        %2709 = vmatmul.bf16.gmra.mxu0 %v2190
        %v2710 = vpop.f32.mrf.mxu0
        %v2711 = vadd.f32 %v2622, %v2710
        %v2712 = vpop.f32.mrf.mxu0
        %v2713 = vadd.f32 %v2624, %v2712
        %2714 = vmatmul.bf16.gmra.mxu0 %v2192
        %v2715 = vpop.f32.mrf.mxu0
        %v2716 = vadd.f32 %v2627, %v2715
        %v2717 = vpop.f32.mrf.mxu0
        %v2718 = vadd.f32 %v2629, %v2717
        %2719 = vmatmul.bf16.gmra.mxu0 %v2194
        %v2720 = vpop.f32.mrf.mxu0
        %v2721 = vadd.f32 %v2632, %v2720
        %v2722 = vpop.f32.mrf.mxu0
        %v2723 = vadd.f32 %v2634, %v2722
        %2724 = vmatmul.bf16.gmra.mxu0 %v2196
        %v2725 = vpop.f32.mrf.mxu0
        %v2726 = vadd.f32 %v2637, %v2725
        %v2727 = vpop.f32.mrf.mxu0
        %v2728 = vadd.f32 %v2639, %v2727
        %2729 = vmatmul.bf16.gmra.mxu0 %v2198
        %v2730 = vpop.f32.mrf.mxu0
        %v2731 = vadd.f32 %v2642, %v2730
        %v2732 = vpop.f32.mrf.mxu0
        %v2733 = vadd.f32 %v2644, %v2732
        %2734 = vmatmul.bf16.gmra.mxu0 %v2200
        %v2735 = vpop.f32.mrf.mxu0
        %v2736 = vadd.f32 %v2647, %v2735
        %v2737 = vpop.f32.mrf.mxu0
        %v2738 = vadd.f32 %v2649, %v2737
        %2739 = vmatmul.bf16.gmra.mxu0 %v2202
        %v2740 = vpop.f32.mrf.mxu0
        %v2741 = vadd.f32 %v2652, %v2740
        %v2742 = vpop.f32.mrf.mxu0
        %v2743 = vadd.f32 %v2654, %v2742
        %2744 = vmatmul.bf16.gmra.mxu0 %v2204
        %v2745 = vpop.f32.mrf.mxu0
        %v2746 = vadd.f32 %v2657, %v2745
        %v2747 = vpop.f32.mrf.mxu0
        %v2748 = vadd.f32 %v2659, %v2747
        %2749 = vmatmul.bf16.gmra.mxu0 %v2206
        %v2750 = vpop.f32.mrf.mxu0
        %v2751 = vadd.f32 %v2662, %v2750
        %v2752 = vpop.f32.mrf.mxu0
        %v2753 = vadd.f32 %v2664, %v2752
        %2754 = vmatmul.bf16.gmra.mxu0 %v2208
        %v2755 = vpop.f32.mrf.mxu0
        %v2756 = vadd.f32 %v2667, %v2755
        %v2757 = vpop.f32.mrf.mxu0
        %v2758 = vadd.f32 %v2669, %v2757
        %2759 = vmatmul.bf16.gmra.mxu0 %v2210
        %v2760 = vpop.f32.mrf.mxu0
        %v2761 = vadd.f32 %v2672, %v2760
        %v2762 = vpop.f32.mrf.mxu0
        %v2763 = vadd.f32 %v2674, %v2762
        %2764 = vdwg.mxu0
        %v2765 = vmax.f32 %v2508, 0.0
        %v2766 = vmax.f32 %v2686, 0.0
        %v2767 = vmax.f32 %v2510, 0.0
        %v2768 = vmax.f32 %v2688, 0.0
        %v2769 = vmax.f32 %v2513, 0.0
        %v2770 = vmax.f32 %v2691, 0.0
        %v2771 = vmax.f32 %v2515, 0.0
        %v2772 = vmax.f32 %v2693, 0.0
        %v2773 = vmax.f32 %v2518, 0.0
        %v2774 = vmax.f32 %v2696, 0.0
        %v2775 = vmax.f32 %v2520, 0.0
        %v2776 = vmax.f32 %v2698, 0.0
        %v2777 = vmax.f32 %v2523, 0.0
        %v2778 = vmax.f32 %v2701, 0.0
        %v2779 = vmax.f32 %v2525, 0.0
        %v2780 = vmax.f32 %v2703, 0.0
        %v2781 = vmax.f32 %v2528, 0.0
        %v2782 = vmax.f32 %v2706, 0.0
        %v2783 = vmax.f32 %v2530, 0.0
        %v2784 = vmax.f32 %v2708, 0.0
        %v2785 = vmax.f32 %v2533, 0.0
        %v2786 = vmax.f32 %v2711, 0.0
        %v2787 = vmax.f32 %v2535, 0.0
        %v2788 = vmax.f32 %v2713, 0.0
        %v2789 = vmax.f32 %v2538, 0.0
        %v2790 = vmax.f32 %v2716, 0.0
        %v2791 = vmax.f32 %v2540, 0.0
        %v2792 = vmax.f32 %v2718, 0.0
        %v2793 = vmax.f32 %v2543, 0.0
        %v2794 = vmax.f32 %v2721, 0.0
        %v2795 = vmax.f32 %v2545, 0.0
        %v2796 = vmax.f32 %v2723, 0.0
        %v2797 = vmax.f32 %v2548, 0.0
        %v2798 = vmax.f32 %v2726, 0.0
        %v2799 = vmax.f32 %v2550, 0.0
        %v2800 = vmax.f32 %v2728, 0.0
        %v2801 = vmax.f32 %v2553, 0.0
        %v2802 = vmax.f32 %v2731, 0.0
        %v2803 = vmax.f32 %v2555, 0.0
        %v2804 = vmax.f32 %v2733, 0.0
        %v2805 = vmax.f32 %v2558, 0.0
        %v2806 = vmax.f32 %v2736, 0.0
        %v2807 = vmax.f32 %v2560, 0.0
        %v2808 = vmax.f32 %v2738, 0.0
        %v2809 = vmax.f32 %v2563, 0.0
        %v2810 = vmax.f32 %v2741, 0.0
        %v2811 = vmax.f32 %v2565, 0.0
        %v2812 = vmax.f32 %v2743, 0.0
        %v2813 = vmax.f32 %v2568, 0.0
        %v2814 = vmax.f32 %v2746, 0.0
        %v2815 = vmax.f32 %v2570, 0.0
        %v2816 = vmax.f32 %v2748, 0.0
        %v2817 = vmax.f32 %v2573, 0.0
        %v2818 = vmax.f32 %v2751, 0.0
        %v2819 = vmax.f32 %v2575, 0.0
        %v2820 = vmax.f32 %v2753, 0.0
        %v2821 = vmax.f32 %v2578, 0.0
        %v2822 = vmax.f32 %v2756, 0.0
        %v2823 = vmax.f32 %v2580, 0.0
        %v2824 = vmax.f32 %v2758, 0.0
        %v2825 = vmax.f32 %v2583, 0.0
        %v2826 = vmax.f32 %v2761, 0.0
        %v2827 = vmax.f32 %v2585, 0.0
        %v2828 = vmax.f32 %v2763, 0.0
        %v2829 = vpack.c.bf16 %v2767, %v2765
        %v2830 = vpack.c.bf16 %v2768, %v2766
        %v2831 = vpack.c.bf16 %v2771, %v2769
        %v2832 = vpack.c.bf16 %v2772, %v2770
        %v2833 = vpack.c.bf16 %v2775, %v2773
        %v2834 = vpack.c.bf16 %v2776, %v2774
        %v2835 = vpack.c.bf16 %v2779, %v2777
        %v2836 = vpack.c.bf16 %v2780, %v2778
        %v2837 = vpack.c.bf16 %v2783, %v2781
        %v2838 = vpack.c.bf16 %v2784, %v2782
        %v2839 = vpack.c.bf16 %v2787, %v2785
        %v2840 = vpack.c.bf16 %v2788, %v2786
        %v2841 = vpack.c.bf16 %v2791, %v2789
        %v2842 = vpack.c.bf16 %v2792, %v2790
        %v2843 = vpack.c.bf16 %v2795, %v2793
        %v2844 = vpack.c.bf16 %v2796, %v2794
        %v2845 = vpack.c.bf16 %v2799, %v2797
        %v2846 = vpack.c.bf16 %v2800, %v2798
        %v2847 = vpack.c.bf16 %v2803, %v2801
        %v2848 = vpack.c.bf16 %v2804, %v2802
        %v2849 = vpack.c.bf16 %v2807, %v2805
        %v2850 = vpack.c.bf16 %v2808, %v2806
        %v2851 = vpack.c.bf16 %v2811, %v2809
        %v2852 = vpack.c.bf16 %v2812, %v2810
        %v2853 = vpack.c.bf16 %v2815, %v2813
        %v2854 = vpack.c.bf16 %v2816, %v2814
        %v2855 = vpack.c.bf16 %v2819, %v2817
        %v2856 = vpack.c.bf16 %v2820, %v2818
        %v2857 = vpack.c.bf16 %v2823, %v2821
        %v2858 = vpack.c.bf16 %v2824, %v2822
        %v2859 = vpack.c.bf16 %v2827, %v2825
        %v2860 = vpack.c.bf16 %v2828, %v2826
        %v2861 = vld [vmem:[#allocation11] sm:$0xff]
        %v2862 = vld [vmem:[#allocation11 + $0x8] sm:$0xff]
        %v2863 = vld [vmem:[#allocation11 + $0x10] sm:$0xff]
        %v2864 = vld [vmem:[#allocation11 + $0x18] sm:$0xff]
        %v2865 = vld [vmem:[#allocation11 + $0x20] sm:$0xff]
        %v2866 = vld [vmem:[#allocation11 + $0x28] sm:$0xff]
        %v2867 = vld [vmem:[#allocation11 + $0x30] sm:$0xff]
        %v2868 = vld [vmem:[#allocation11 + $0x38] sm:$0xff]
        %v2869 = vld [vmem:[#allocation11 + $0x40] sm:$0xff]
        %v2870 = vld [vmem:[#allocation11 + $0x48] sm:$0xff]
        %v2871 = vld [vmem:[#allocation11 + $0x50] sm:$0xff]
        %v2872 = vld [vmem:[#allocation11 + $0x58] sm:$0xff]
        %v2873 = vld [vmem:[#allocation11 + $0x60] sm:$0xff]
        %v2874 = vld [vmem:[#allocation11 + $0x68] sm:$0xff]
        %v2875 = vld [vmem:[#allocation11 + $0x70] sm:$0xff]
        %v2876 = vld [vmem:[#allocation11 + $0x78] sm:$0xff]
        %v2877 = vld [vmem:[#allocation11 + $0x80] sm:$0xff]
        %v2878 = vld [vmem:[#allocation11 + $0x88] sm:$0xff]
        %v2879 = vld [vmem:[#allocation11 + $0x90] sm:$0xff]
        %v2880 = vld [vmem:[#allocation11 + $0x98] sm:$0xff]
        %v2881 = vld [vmem:[#allocation11 + $0xa0] sm:$0xff]
        %v2882 = vld [vmem:[#allocation11 + $0xa8] sm:$0xff]
        %v2883 = vld [vmem:[#allocation11 + $0xb0] sm:$0xff]
        %v2884 = vld [vmem:[#allocation11 + $0xb8] sm:$0xff]
        %v2885 = vld [vmem:[#allocation11 + $0xc0] sm:$0xff]
        %v2886 = vld [vmem:[#allocation11 + $0xc8] sm:$0xff]
        %v2887 = vld [vmem:[#allocation11 + $0xd0] sm:$0xff]
        %v2888 = vld [vmem:[#allocation11 + $0xd8] sm:$0xff]
        %v2889 = vld [vmem:[#allocation11 + $0xe0] sm:$0xff]
        %v2890 = vld [vmem:[#allocation11 + $0xe8] sm:$0xff]
        %v2891 = vld [vmem:[#allocation11 + $0xf0] sm:$0xff]
        %v2892 = vld [vmem:[#allocation11 + $0xf8] sm:$0xff]
        %v2893 = vld [vmem:[%s8] sm:$0x3]
        %v2895 = vperm.slane %v2893, 0
        %v2896 = vperm.slane %v2893, 1
        %v2931 = vunpack.c.l.b16 %v2861
        %v2932 = vunpack.c.h.b16 %v2861
        %v2933 = vunpack.c.l.b16 %v2862
        %v2934 = vunpack.c.h.b16 %v2862
        %v2935 = vunpack.c.l.b16 %v2863
        %v2936 = vunpack.c.h.b16 %v2863
        %v2937 = vunpack.c.l.b16 %v2864
        %v2938 = vunpack.c.h.b16 %v2864
        %v2939 = vunpack.c.l.b16 %v2865
        %v2940 = vunpack.c.h.b16 %v2865
        %v2941 = vunpack.c.l.b16 %v2866
        %v2942 = vunpack.c.h.b16 %v2866
        %v2943 = vunpack.c.l.b16 %v2867
        %v2944 = vunpack.c.h.b16 %v2867
        %v2945 = vunpack.c.l.b16 %v2868
        %v2946 = vunpack.c.h.b16 %v2868
        %v2947 = vunpack.c.l.b16 %v2869
        %v2948 = vunpack.c.h.b16 %v2869
        %v2949 = vunpack.c.l.b16 %v2870
        %v2950 = vunpack.c.h.b16 %v2870
        %v2951 = vunpack.c.l.b16 %v2871
        %v2952 = vunpack.c.h.b16 %v2871
        %v2953 = vunpack.c.l.b16 %v2872
        %v2954 = vunpack.c.h.b16 %v2872
        %v2955 = vunpack.c.l.b16 %v2873
        %v2956 = vunpack.c.h.b16 %v2873
        %v2957 = vunpack.c.l.b16 %v2874
        %v2958 = vunpack.c.h.b16 %v2874
        %v2959 = vunpack.c.l.b16 %v2875
        %v2960 = vunpack.c.h.b16 %v2875
        %v2961 = vunpack.c.l.b16 %v2876
        %v2962 = vunpack.c.h.b16 %v2876
        %v2963 = vunpack.c.l.b16 %v2877
        %v2964 = vunpack.c.h.b16 %v2877
        %v2965 = vunpack.c.l.b16 %v2878
        %v2966 = vunpack.c.h.b16 %v2878
        %v2967 = vunpack.c.l.b16 %v2879
        %v2968 = vunpack.c.h.b16 %v2879
        %v2969 = vunpack.c.l.b16 %v2880
        %v2970 = vunpack.c.h.b16 %v2880
        %v2971 = vunpack.c.l.b16 %v2881
        %v2972 = vunpack.c.h.b16 %v2881
        %v2973 = vunpack.c.l.b16 %v2882
        %v2974 = vunpack.c.h.b16 %v2882
        %v2975 = vunpack.c.l.b16 %v2883
        %v2976 = vunpack.c.h.b16 %v2883
        %v2977 = vunpack.c.l.b16 %v2884
        %v2978 = vunpack.c.h.b16 %v2884
        %v2979 = vunpack.c.l.b16 %v2885
        %v2980 = vunpack.c.h.b16 %v2885
        %v2981 = vunpack.c.l.b16 %v2886
        %v2982 = vunpack.c.h.b16 %v2886
        %v2983 = vunpack.c.l.b16 %v2887
        %v2984 = vunpack.c.h.b16 %v2887
        %v2985 = vunpack.c.l.b16 %v2888
        %v2986 = vunpack.c.h.b16 %v2888
        %v2987 = vunpack.c.l.b16 %v2889
        %v2988 = vunpack.c.h.b16 %v2889
        %v2989 = vunpack.c.l.b16 %v2890
        %v2990 = vunpack.c.h.b16 %v2890
        %v2991 = vunpack.c.l.b16 %v2891
        %v2992 = vunpack.c.h.b16 %v2891
        %v2993 = vunpack.c.l.b16 %v2892
        %v2994 = vunpack.c.h.b16 %v2892
        %v2995 = vpack.c.b16 %v2933, %v2931
        %v2996 = vpack.c.b16 %v2934, %v2932
        %v2997 = vpack.c.b16 %v2937, %v2935
        %v2998 = vpack.c.b16 %v2938, %v2936
        %v2999 = vpack.c.b16 %v2941, %v2939
        %v3000 = vpack.c.b16 %v2942, %v2940
        %v3001 = vpack.c.b16 %v2945, %v2943
        %v3002 = vpack.c.b16 %v2946, %v2944
        %v3003 = vpack.c.b16 %v2949, %v2947
        %v3004 = vpack.c.b16 %v2950, %v2948
        %v3005 = vpack.c.b16 %v2953, %v2951
        %v3006 = vpack.c.b16 %v2954, %v2952
        %v3007 = vpack.c.b16 %v2957, %v2955
        %v3008 = vpack.c.b16 %v2958, %v2956
        %v3009 = vpack.c.b16 %v2961, %v2959
        %v3010 = vpack.c.b16 %v2962, %v2960
        %v3011 = vpack.c.b16 %v2965, %v2963
        %v3012 = vpack.c.b16 %v2966, %v2964
        %v3013 = vpack.c.b16 %v2969, %v2967
        %v3014 = vpack.c.b16 %v2970, %v2968
        %v3015 = vpack.c.b16 %v2973, %v2971
        %v3016 = vpack.c.b16 %v2974, %v2972
        %v3017 = vpack.c.b16 %v2977, %v2975
        %v3018 = vpack.c.b16 %v2978, %v2976
        %v3019 = vpack.c.b16 %v2981, %v2979
        %v3020 = vpack.c.b16 %v2982, %v2980
        %v3021 = vpack.c.b16 %v2985, %v2983
        %v3022 = vpack.c.b16 %v2986, %v2984
        %v3023 = vpack.c.b16 %v2989, %v2987
        %v3024 = vpack.c.b16 %v2990, %v2988
        %v3025 = vpack.c.b16 %v2993, %v2991
        %v3026 = vpack.c.b16 %v2994, %v2992
        %3059 = vmatpush.bf16.msra.mxu0 %v3009
        %3060 = vmatpush.bf16.msra.mxu0 %v3007
        %3061 = vmatpush.bf16.msra.mxu0 %v3005
        %3062 = vmatpush.bf16.msra.mxu0 %v3003
        %3063 = vmatpush.bf16.msra.mxu0 %v3001
        %3064 = vmatpush.bf16.msra.mxu0 %v2999
        %3065 = vmatpush.bf16.msra.mxu0 %v2997
        %3066 = vmatpush.bf16.msra.mxu0 %v2995
        %3067 = vmatmul.bf16.gmra.mxu0 %v2829
        %v3068 = vpop.f32.mrf.mxu0
        %v3069 = vadd.f32 %v2895, %v3068
        %v3070 = vpop.f32.mrf.mxu0
        %v3071 = vadd.f32 %v2895, %v3070
        %3072 = vmatmul.bf16.gmra.mxu0 %v2831
        %v3073 = vpop.f32.mrf.mxu0
        %v3074 = vadd.f32 %v2895, %v3073
        %v3075 = vpop.f32.mrf.mxu0
        %v3076 = vadd.f32 %v2895, %v3075
        %3077 = vmatmul.bf16.gmra.mxu0 %v2833
        %v3078 = vpop.f32.mrf.mxu0
        %v3079 = vadd.f32 %v2895, %v3078
        %v3080 = vpop.f32.mrf.mxu0
        %v3081 = vadd.f32 %v2895, %v3080
        %3082 = vmatmul.bf16.gmra.mxu0 %v2835
        %v3083 = vpop.f32.mrf.mxu0
        %v3084 = vadd.f32 %v2895, %v3083
        %v3085 = vpop.f32.mrf.mxu0
        %v3086 = vadd.f32 %v2895, %v3085
        %3087 = vmatmul.bf16.gmra.mxu0 %v2837
        %v3088 = vpop.f32.mrf.mxu0
        %v3089 = vadd.f32 %v2895, %v3088
        %v3090 = vpop.f32.mrf.mxu0
        %v3091 = vadd.f32 %v2895, %v3090
        %3092 = vmatmul.bf16.gmra.mxu0 %v2839
        %v3093 = vpop.f32.mrf.mxu0
        %v3094 = vadd.f32 %v2895, %v3093
        %v3095 = vpop.f32.mrf.mxu0
        %v3096 = vadd.f32 %v2895, %v3095
        %3097 = vmatmul.bf16.gmra.mxu0 %v2841
        %v3098 = vpop.f32.mrf.mxu0
        %v3099 = vadd.f32 %v2895, %v3098
        %v3100 = vpop.f32.mrf.mxu0
        %v3101 = vadd.f32 %v2895, %v3100
        %3102 = vmatmul.bf16.gmra.mxu0 %v2843
        %v3103 = vpop.f32.mrf.mxu0
        %v3104 = vadd.f32 %v2895, %v3103
        %v3105 = vpop.f32.mrf.mxu0
        %v3106 = vadd.f32 %v2895, %v3105
        %3107 = vmatmul.bf16.gmra.mxu0 %v2845
        %v3108 = vpop.f32.mrf.mxu0
        %v3109 = vadd.f32 %v2895, %v3108
        %v3110 = vpop.f32.mrf.mxu0
        %v3111 = vadd.f32 %v2895, %v3110
        %3112 = vmatmul.bf16.gmra.mxu0 %v2847
        %v3113 = vpop.f32.mrf.mxu0
        %v3114 = vadd.f32 %v2895, %v3113
        %v3115 = vpop.f32.mrf.mxu0
        %v3116 = vadd.f32 %v2895, %v3115
        %3117 = vmatmul.bf16.gmra.mxu0 %v2849
        %v3118 = vpop.f32.mrf.mxu0
        %v3119 = vadd.f32 %v2895, %v3118
        %v3120 = vpop.f32.mrf.mxu0
        %v3121 = vadd.f32 %v2895, %v3120
        %3122 = vmatmul.bf16.gmra.mxu0 %v2851
        %v3123 = vpop.f32.mrf.mxu0
        %v3124 = vadd.f32 %v2895, %v3123
        %v3125 = vpop.f32.mrf.mxu0
        %v3126 = vadd.f32 %v2895, %v3125
        %3127 = vmatmul.bf16.gmra.mxu0 %v2853
        %v3128 = vpop.f32.mrf.mxu0
        %v3129 = vadd.f32 %v2895, %v3128
        %v3130 = vpop.f32.mrf.mxu0
        %v3131 = vadd.f32 %v2895, %v3130
        %3132 = vmatmul.bf16.gmra.mxu0 %v2855
        %v3133 = vpop.f32.mrf.mxu0
        %v3134 = vadd.f32 %v2895, %v3133
        %v3135 = vpop.f32.mrf.mxu0
        %v3136 = vadd.f32 %v2895, %v3135
        %3137 = vmatmul.bf16.gmra.mxu0 %v2857
        %v3138 = vpop.f32.mrf.mxu0
        %v3139 = vadd.f32 %v2895, %v3138
        %v3140 = vpop.f32.mrf.mxu0
        %v3141 = vadd.f32 %v2895, %v3140
        %3142 = vmatmul.bf16.gmra.mxu0 %v2859
        %v3143 = vpop.f32.mrf.mxu0
        %v3144 = vadd.f32 %v2895, %v3143
        %v3145 = vpop.f32.mrf.mxu0
        %v3146 = vadd.f32 %v2895, %v3145
        %3147 = vdwg.mxu0
        %3148 = vmatpush.bf16.msra.mxu0 %v3025
        %3149 = vmatpush.bf16.msra.mxu0 %v3023
        %3150 = vmatpush.bf16.msra.mxu0 %v3021
        %3151 = vmatpush.bf16.msra.mxu0 %v3019
        %3152 = vmatpush.bf16.msra.mxu0 %v3017
        %3153 = vmatpush.bf16.msra.mxu0 %v3015
        %3154 = vmatpush.bf16.msra.mxu0 %v3013
        %3155 = vmatpush.bf16.msra.mxu0 %v3011
        %3156 = vmatmul.bf16.gmra.mxu0 %v2830
        %v3157 = vpop.f32.mrf.mxu0
        %v3158 = vadd.f32 %v3069, %v3157
        %v3159 = vpop.f32.mrf.mxu0
        %v3160 = vadd.f32 %v3071, %v3159
        %3161 = vmatmul.bf16.gmra.mxu0 %v2832
        %v3162 = vpop.f32.mrf.mxu0
        %v3163 = vadd.f32 %v3074, %v3162
        %v3164 = vpop.f32.mrf.mxu0
        %v3165 = vadd.f32 %v3076, %v3164
        %3166 = vmatmul.bf16.gmra.mxu0 %v2834
        %v3167 = vpop.f32.mrf.mxu0
        %v3168 = vadd.f32 %v3079, %v3167
        %v3169 = vpop.f32.mrf.mxu0
        %v3170 = vadd.f32 %v3081, %v3169
        %3171 = vmatmul.bf16.gmra.mxu0 %v2836
        %v3172 = vpop.f32.mrf.mxu0
        %v3173 = vadd.f32 %v3084, %v3172
        %v3174 = vpop.f32.mrf.mxu0
        %v3175 = vadd.f32 %v3086, %v3174
        %3176 = vmatmul.bf16.gmra.mxu0 %v2838
        %v3177 = vpop.f32.mrf.mxu0
        %v3178 = vadd.f32 %v3089, %v3177
        %v3179 = vpop.f32.mrf.mxu0
        %v3180 = vadd.f32 %v3091, %v3179
        %3181 = vmatmul.bf16.gmra.mxu0 %v2840
        %v3182 = vpop.f32.mrf.mxu0
        %v3183 = vadd.f32 %v3094, %v3182
        %v3184 = vpop.f32.mrf.mxu0
        %v3185 = vadd.f32 %v3096, %v3184
        %3186 = vmatmul.bf16.gmra.mxu0 %v2842
        %v3187 = vpop.f32.mrf.mxu0
        %v3188 = vadd.f32 %v3099, %v3187
        %v3189 = vpop.f32.mrf.mxu0
        %v3190 = vadd.f32 %v3101, %v3189
        %3191 = vmatmul.bf16.gmra.mxu0 %v2844
        %v3192 = vpop.f32.mrf.mxu0
        %v3193 = vadd.f32 %v3104, %v3192
        %v3194 = vpop.f32.mrf.mxu0
        %v3195 = vadd.f32 %v3106, %v3194
        %3196 = vmatmul.bf16.gmra.mxu0 %v2846
        %v3197 = vpop.f32.mrf.mxu0
        %v3198 = vadd.f32 %v3109, %v3197
        %v3199 = vpop.f32.mrf.mxu0
        %v3200 = vadd.f32 %v3111, %v3199
        %3201 = vmatmul.bf16.gmra.mxu0 %v2848
        %v3202 = vpop.f32.mrf.mxu0
        %v3203 = vadd.f32 %v3114, %v3202
        %v3204 = vpop.f32.mrf.mxu0
        %v3205 = vadd.f32 %v3116, %v3204
        %3206 = vmatmul.bf16.gmra.mxu0 %v2850
        %v3207 = vpop.f32.mrf.mxu0
        %v3208 = vadd.f32 %v3119, %v3207
        %v3209 = vpop.f32.mrf.mxu0
        %v3210 = vadd.f32 %v3121, %v3209
        %3211 = vmatmul.bf16.gmra.mxu0 %v2852
        %v3212 = vpop.f32.mrf.mxu0
        %v3213 = vadd.f32 %v3124, %v3212
        %v3214 = vpop.f32.mrf.mxu0
        %v3215 = vadd.f32 %v3126, %v3214
        %3216 = vmatmul.bf16.gmra.mxu0 %v2854
        %v3217 = vpop.f32.mrf.mxu0
        %v3218 = vadd.f32 %v3129, %v3217
        %v3219 = vpop.f32.mrf.mxu0
        %v3220 = vadd.f32 %v3131, %v3219
        %3221 = vmatmul.bf16.gmra.mxu0 %v2856
        %v3222 = vpop.f32.mrf.mxu0
        %v3223 = vadd.f32 %v3134, %v3222
        %v3224 = vpop.f32.mrf.mxu0
        %v3225 = vadd.f32 %v3136, %v3224
        %3226 = vmatmul.bf16.gmra.mxu0 %v2858
        %v3227 = vpop.f32.mrf.mxu0
        %v3228 = vadd.f32 %v3139, %v3227
        %v3229 = vpop.f32.mrf.mxu0
        %v3230 = vadd.f32 %v3141, %v3229
        %3231 = vmatmul.bf16.gmra.mxu0 %v2860
        %v3232 = vpop.f32.mrf.mxu0
        %v3233 = vadd.f32 %v3144, %v3232
        %v3234 = vpop.f32.mrf.mxu0
        %v3235 = vadd.f32 %v3146, %v3234
        %3236 = vdwg.mxu0
        %3237 = vmatpush.bf16.msra.mxu0 %v3010
        %3238 = vmatpush.bf16.msra.mxu0 %v3008
        %3239 = vmatpush.bf16.msra.mxu0 %v3006
        %3240 = vmatpush.bf16.msra.mxu0 %v3004
        %3241 = vmatpush.bf16.msra.mxu0 %v3002
        %3242 = vmatpush.bf16.msra.mxu0 %v3000
        %3243 = vmatpush.bf16.msra.mxu0 %v2998
        %3244 = vmatpush.bf16.msra.mxu0 %v2996
        %3245 = vmatmul.bf16.gmra.mxu0 %v2829
        %v3246 = vpop.f32.mrf.mxu0
        %v3247 = vadd.f32 %v2896, %v3246
        %v3248 = vpop.f32.mrf.mxu0
        %v3249 = vadd.f32 %v2896, %v3248
        %3250 = vmatmul.bf16.gmra.mxu0 %v2831
        %v3251 = vpop.f32.mrf.mxu0
        %v3252 = vadd.f32 %v2896, %v3251
        %v3253 = vpop.f32.mrf.mxu0
        %v3254 = vadd.f32 %v2896, %v3253
        %3255 = vmatmul.bf16.gmra.mxu0 %v2833
        %v3256 = vpop.f32.mrf.mxu0
        %v3257 = vadd.f32 %v2896, %v3256
        %v3258 = vpop.f32.mrf.mxu0
        %v3259 = vadd.f32 %v2896, %v3258
        %3260 = vmatmul.bf16.gmra.mxu0 %v2835
        %v3261 = vpop.f32.mrf.mxu0
        %v3262 = vadd.f32 %v2896, %v3261
        %v3263 = vpop.f32.mrf.mxu0
        %v3264 = vadd.f32 %v2896, %v3263
        %3265 = vmatmul.bf16.gmra.mxu0 %v2837
        %v3266 = vpop.f32.mrf.mxu0
        %v3267 = vadd.f32 %v2896, %v3266
        %v3268 = vpop.f32.mrf.mxu0
        %v3269 = vadd.f32 %v2896, %v3268
        %3270 = vmatmul.bf16.gmra.mxu0 %v2839
        %v3271 = vpop.f32.mrf.mxu0
        %v3272 = vadd.f32 %v2896, %v3271
        %v3273 = vpop.f32.mrf.mxu0
        %v3274 = vadd.f32 %v2896, %v3273
        %3275 = vmatmul.bf16.gmra.mxu0 %v2841
        %v3276 = vpop.f32.mrf.mxu0
        %v3277 = vadd.f32 %v2896, %v3276
        %v3278 = vpop.f32.mrf.mxu0
        %v3279 = vadd.f32 %v2896, %v3278
        %3280 = vmatmul.bf16.gmra.mxu0 %v2843
        %v3281 = vpop.f32.mrf.mxu0
        %v3282 = vadd.f32 %v2896, %v3281
        %v3283 = vpop.f32.mrf.mxu0
        %v3284 = vadd.f32 %v2896, %v3283
        %3285 = vmatmul.bf16.gmra.mxu0 %v2845
        %v3286 = vpop.f32.mrf.mxu0
        %v3287 = vadd.f32 %v2896, %v3286
        %v3288 = vpop.f32.mrf.mxu0
        %v3289 = vadd.f32 %v2896, %v3288
        %3290 = vmatmul.bf16.gmra.mxu0 %v2847
        %v3291 = vpop.f32.mrf.mxu0
        %v3292 = vadd.f32 %v2896, %v3291
        %v3293 = vpop.f32.mrf.mxu0
        %v3294 = vadd.f32 %v2896, %v3293
        %3295 = vmatmul.bf16.gmra.mxu0 %v2849
        %v3296 = vpop.f32.mrf.mxu0
        %v3297 = vadd.f32 %v2896, %v3296
        %v3298 = vpop.f32.mrf.mxu0
        %v3299 = vadd.f32 %v2896, %v3298
        %3300 = vmatmul.bf16.gmra.mxu0 %v2851
        %v3301 = vpop.f32.mrf.mxu0
        %v3302 = vadd.f32 %v2896, %v3301
        %v3303 = vpop.f32.mrf.mxu0
        %v3304 = vadd.f32 %v2896, %v3303
        %3305 = vmatmul.bf16.gmra.mxu0 %v2853
        %v3306 = vpop.f32.mrf.mxu0
        %v3307 = vadd.f32 %v2896, %v3306
        %v3308 = vpop.f32.mrf.mxu0
        %v3309 = vadd.f32 %v2896, %v3308
        %3310 = vmatmul.bf16.gmra.mxu0 %v2855
        %v3311 = vpop.f32.mrf.mxu0
        %v3312 = vadd.f32 %v2896, %v3311
        %v3313 = vpop.f32.mrf.mxu0
        %v3314 = vadd.f32 %v2896, %v3313
        %3315 = vmatmul.bf16.gmra.mxu0 %v2857
        %v3316 = vpop.f32.mrf.mxu0
        %v3317 = vadd.f32 %v2896, %v3316
        %v3318 = vpop.f32.mrf.mxu0
        %v3319 = vadd.f32 %v2896, %v3318
        %3320 = vmatmul.bf16.gmra.mxu0 %v2859
        %v3321 = vpop.f32.mrf.mxu0
        %v3322 = vadd.f32 %v2896, %v3321
        %v3323 = vpop.f32.mrf.mxu0
        %v3324 = vadd.f32 %v2896, %v3323
        %3325 = vdwg.mxu0
        %3326 = vmatpush.bf16.msra.mxu0 %v3026
        %3327 = vmatpush.bf16.msra.mxu0 %v3024
        %3328 = vmatpush.bf16.msra.mxu0 %v3022
        %3329 = vmatpush.bf16.msra.mxu0 %v3020
        %3330 = vmatpush.bf16.msra.mxu0 %v3018
        %3331 = vmatpush.bf16.msra.mxu0 %v3016
        %3332 = vmatpush.bf16.msra.mxu0 %v3014
        %3333 = vmatpush.bf16.msra.mxu0 %v3012
        %3334 = vmatmul.bf16.gmra.mxu0 %v2830
        %v3335 = vpop.f32.mrf.mxu0
        %v3336 = vadd.f32 %v3247, %v3335
        %v3337 = vpop.f32.mrf.mxu0
        %v3338 = vadd.f32 %v3249, %v3337
        %3339 = vmatmul.bf16.gmra.mxu0 %v2832
        %v3340 = vpop.f32.mrf.mxu0
        %v3341 = vadd.f32 %v3252, %v3340
        %v3342 = vpop.f32.mrf.mxu0
        %v3343 = vadd.f32 %v3254, %v3342
        %3344 = vmatmul.bf16.gmra.mxu0 %v2834
        %v3345 = vpop.f32.mrf.mxu0
        %v3346 = vadd.f32 %v3257, %v3345
        %v3347 = vpop.f32.mrf.mxu0
        %v3348 = vadd.f32 %v3259, %v3347
        %3349 = vmatmul.bf16.gmra.mxu0 %v2836
        %v3350 = vpop.f32.mrf.mxu0
        %v3351 = vadd.f32 %v3262, %v3350
        %v3352 = vpop.f32.mrf.mxu0
        %v3353 = vadd.f32 %v3264, %v3352
        %3354 = vmatmul.bf16.gmra.mxu0 %v2838
        %v3355 = vpop.f32.mrf.mxu0
        %v3356 = vadd.f32 %v3267, %v3355
        %v3357 = vpop.f32.mrf.mxu0
        %v3358 = vadd.f32 %v3269, %v3357
        %3359 = vmatmul.bf16.gmra.mxu0 %v2840
        %v3360 = vpop.f32.mrf.mxu0
        %v3361 = vadd.f32 %v3272, %v3360
        %v3362 = vpop.f32.mrf.mxu0
        %v3363 = vadd.f32 %v3274, %v3362
        %3364 = vmatmul.bf16.gmra.mxu0 %v2842
        %v3365 = vpop.f32.mrf.mxu0
        %v3366 = vadd.f32 %v3277, %v3365
        %v3367 = vpop.f32.mrf.mxu0
        %v3368 = vadd.f32 %v3279, %v3367
        %3369 = vmatmul.bf16.gmra.mxu0 %v2844
        %v3370 = vpop.f32.mrf.mxu0
        %v3371 = vadd.f32 %v3282, %v3370
        %v3372 = vpop.f32.mrf.mxu0
        %v3373 = vadd.f32 %v3284, %v3372
        %3374 = vmatmul.bf16.gmra.mxu0 %v2846
        %v3375 = vpop.f32.mrf.mxu0
        %v3376 = vadd.f32 %v3287, %v3375
        %v3377 = vpop.f32.mrf.mxu0
        %v3378 = vadd.f32 %v3289, %v3377
        %3379 = vmatmul.bf16.gmra.mxu0 %v2848
        %v3380 = vpop.f32.mrf.mxu0
        %v3381 = vadd.f32 %v3292, %v3380
        %v3382 = vpop.f32.mrf.mxu0
        %v3383 = vadd.f32 %v3294, %v3382
        %3384 = vmatmul.bf16.gmra.mxu0 %v2850
        %v3385 = vpop.f32.mrf.mxu0
        %v3386 = vadd.f32 %v3297, %v3385
        %v3387 = vpop.f32.mrf.mxu0
        %v3388 = vadd.f32 %v3299, %v3387
        %3389 = vmatmul.bf16.gmra.mxu0 %v2852
        %v3390 = vpop.f32.mrf.mxu0
        %v3391 = vadd.f32 %v3302, %v3390
        %v3392 = vpop.f32.mrf.mxu0
        %v3393 = vadd.f32 %v3304, %v3392
        %3394 = vmatmul.bf16.gmra.mxu0 %v2854
        %v3395 = vpop.f32.mrf.mxu0
        %v3396 = vadd.f32 %v3307, %v3395
        %v3397 = vpop.f32.mrf.mxu0
        %v3398 = vadd.f32 %v3309, %v3397
        %3399 = vmatmul.bf16.gmra.mxu0 %v2856
        %v3400 = vpop.f32.mrf.mxu0
        %v3401 = vadd.f32 %v3312, %v3400
        %v3402 = vpop.f32.mrf.mxu0
        %v3403 = vadd.f32 %v3314, %v3402
        %3404 = vmatmul.bf16.gmra.mxu0 %v2858
        %v3405 = vpop.f32.mrf.mxu0
        %v3406 = vadd.f32 %v3317, %v3405
        %v3407 = vpop.f32.mrf.mxu0
        %v3408 = vadd.f32 %v3319, %v3407
        %3409 = vmatmul.bf16.gmra.mxu0 %v2860
        %v3410 = vpop.f32.mrf.mxu0
        %v3411 = vadd.f32 %v3322, %v3410
        %v3412 = vpop.f32.mrf.mxu0
        %v3413 = vadd.f32 %v3324, %v3412
        %3414 = vdwg.mxu0
        %v3415 = vmax.f32 %v3158, 0.0
        %v3416 = vmax.f32 %v3336, 0.0
        %v3417 = vmax.f32 %v3160, 0.0
        %v3418 = vmax.f32 %v3338, 0.0
        %v3419 = vmax.f32 %v3163, 0.0
        %v3420 = vmax.f32 %v3341, 0.0
        %v3421 = vmax.f32 %v3165, 0.0
        %v3422 = vmax.f32 %v3343, 0.0
        %v3423 = vmax.f32 %v3168, 0.0
        %v3424 = vmax.f32 %v3346, 0.0
        %v3425 = vmax.f32 %v3170, 0.0
        %v3426 = vmax.f32 %v3348, 0.0
        %v3427 = vmax.f32 %v3173, 0.0
        %v3428 = vmax.f32 %v3351, 0.0
        %v3429 = vmax.f32 %v3175, 0.0
        %v3430 = vmax.f32 %v3353, 0.0
        %v3431 = vmax.f32 %v3178, 0.0
        %v3432 = vmax.f32 %v3356, 0.0
        %v3433 = vmax.f32 %v3180, 0.0
        %v3434 = vmax.f32 %v3358, 0.0
        %v3435 = vmax.f32 %v3183, 0.0
        %v3436 = vmax.f32 %v3361, 0.0
        %v3437 = vmax.f32 %v3185, 0.0
        %v3438 = vmax.f32 %v3363, 0.0
        %v3439 = vmax.f32 %v3188, 0.0
        %v3440 = vmax.f32 %v3366, 0.0
        %v3441 = vmax.f32 %v3190, 0.0
        %v3442 = vmax.f32 %v3368, 0.0
        %v3443 = vmax.f32 %v3193, 0.0
        %v3444 = vmax.f32 %v3371, 0.0
        %v3445 = vmax.f32 %v3195, 0.0
        %v3446 = vmax.f32 %v3373, 0.0
        %v3447 = vmax.f32 %v3198, 0.0
        %v3448 = vmax.f32 %v3376, 0.0
        %v3449 = vmax.f32 %v3200, 0.0
        %v3450 = vmax.f32 %v3378, 0.0
        %v3451 = vmax.f32 %v3203, 0.0
        %v3452 = vmax.f32 %v3381, 0.0
        %v3453 = vmax.f32 %v3205, 0.0
        %v3454 = vmax.f32 %v3383, 0.0
        %v3455 = vmax.f32 %v3208, 0.0
        %v3456 = vmax.f32 %v3386, 0.0
        %v3457 = vmax.f32 %v3210, 0.0
        %v3458 = vmax.f32 %v3388, 0.0
        %v3459 = vmax.f32 %v3213, 0.0
        %v3460 = vmax.f32 %v3391, 0.0
        %v3461 = vmax.f32 %v3215, 0.0
        %v3462 = vmax.f32 %v3393, 0.0
        %v3463 = vmax.f32 %v3218, 0.0
        %v3464 = vmax.f32 %v3396, 0.0
        %v3465 = vmax.f32 %v3220, 0.0
        %v3466 = vmax.f32 %v3398, 0.0
        %v3467 = vmax.f32 %v3223, 0.0
        %v3468 = vmax.f32 %v3401, 0.0
        %v3469 = vmax.f32 %v3225, 0.0
        %v3470 = vmax.f32 %v3403, 0.0
        %v3471 = vmax.f32 %v3228, 0.0
        %v3472 = vmax.f32 %v3406, 0.0
        %v3473 = vmax.f32 %v3230, 0.0
        %v3474 = vmax.f32 %v3408, 0.0
        %v3475 = vmax.f32 %v3233, 0.0
        %v3476 = vmax.f32 %v3411, 0.0
        %v3477 = vmax.f32 %v3235, 0.0
        %v3478 = vmax.f32 %v3413, 0.0
        %v3479 = vpack.c.bf16 %v3417, %v3415
        %v3480 = vpack.c.bf16 %v3418, %v3416
        %v3481 = vpack.c.bf16 %v3421, %v3419
        %v3482 = vpack.c.bf16 %v3422, %v3420
        %v3483 = vpack.c.bf16 %v3425, %v3423
        %v3484 = vpack.c.bf16 %v3426, %v3424
        %v3485 = vpack.c.bf16 %v3429, %v3427
        %v3486 = vpack.c.bf16 %v3430, %v3428
        %v3487 = vpack.c.bf16 %v3433, %v3431
        %v3488 = vpack.c.bf16 %v3434, %v3432
        %v3489 = vpack.c.bf16 %v3437, %v3435
        %v3490 = vpack.c.bf16 %v3438, %v3436
        %v3491 = vpack.c.bf16 %v3441, %v3439
        %v3492 = vpack.c.bf16 %v3442, %v3440
        %v3493 = vpack.c.bf16 %v3445, %v3443
        %v3494 = vpack.c.bf16 %v3446, %v3444
        %v3495 = vpack.c.bf16 %v3449, %v3447
        %v3496 = vpack.c.bf16 %v3450, %v3448
        %v3497 = vpack.c.bf16 %v3453, %v3451
        %v3498 = vpack.c.bf16 %v3454, %v3452
        %v3499 = vpack.c.bf16 %v3457, %v3455
        %v3500 = vpack.c.bf16 %v3458, %v3456
        %v3501 = vpack.c.bf16 %v3461, %v3459
        %v3502 = vpack.c.bf16 %v3462, %v3460
        %v3503 = vpack.c.bf16 %v3465, %v3463
        %v3504 = vpack.c.bf16 %v3466, %v3464
        %v3505 = vpack.c.bf16 %v3469, %v3467
        %v3506 = vpack.c.bf16 %v3470, %v3468
        %v3507 = vpack.c.bf16 %v3473, %v3471
        %v3508 = vpack.c.bf16 %v3474, %v3472
        %v3509 = vpack.c.bf16 %v3477, %v3475
        %v3510 = vpack.c.bf16 %v3478, %v3476
        %v3511 = vld [vmem:[#allocation13] sm:$0xf]
        %v3512 = vld [vmem:[#allocation13 + $0x4] sm:$0xf]
        %v3513 = vld [vmem:[#allocation13 + $0x8] sm:$0xf]
        %v3514 = vld [vmem:[#allocation13 + $0xc] sm:$0xf]
        %v3515 = vld [vmem:[#allocation13 + $0x10] sm:$0xf]
        %v3516 = vld [vmem:[#allocation13 + $0x14] sm:$0xf]
        %v3517 = vld [vmem:[#allocation13 + $0x18] sm:$0xf]
        %v3518 = vld [vmem:[#allocation13 + $0x1c] sm:$0xf]
        %v3519 = vld [vmem:[#allocation13 + $0x20] sm:$0xf]
        %v3520 = vld [vmem:[#allocation13 + $0x24] sm:$0xf]
        %v3521 = vld [vmem:[#allocation13 + $0x28] sm:$0xf]
        %v3522 = vld [vmem:[#allocation13 + $0x2c] sm:$0xf]
        %v3523 = vld [vmem:[#allocation13 + $0x30] sm:$0xf]
        %v3524 = vld [vmem:[#allocation13 + $0x34] sm:$0xf]
        %v3525 = vld [vmem:[#allocation13 + $0x38] sm:$0xf]
        %v3526 = vld [vmem:[#allocation13 + $0x3c] sm:$0xf]
        %v3527 = vld [vmem:[#allocation13 + $0x40] sm:$0xf]
        %v3528 = vld [vmem:[#allocation13 + $0x44] sm:$0xf]
        %v3529 = vld [vmem:[#allocation13 + $0x48] sm:$0xf]
        %v3530 = vld [vmem:[#allocation13 + $0x4c] sm:$0xf]
        %v3531 = vld [vmem:[#allocation13 + $0x50] sm:$0xf]
        %v3532 = vld [vmem:[#allocation13 + $0x54] sm:$0xf]
        %v3533 = vld [vmem:[#allocation13 + $0x58] sm:$0xf]
        %v3534 = vld [vmem:[#allocation13 + $0x5c] sm:$0xf]
        %v3535 = vld [vmem:[#allocation13 + $0x60] sm:$0xf]
        %v3536 = vld [vmem:[#allocation13 + $0x64] sm:$0xf]
        %v3537 = vld [vmem:[#allocation13 + $0x68] sm:$0xf]
        %v3538 = vld [vmem:[#allocation13 + $0x6c] sm:$0xf]
        %v3539 = vld [vmem:[#allocation13 + $0x70] sm:$0xf]
        %v3540 = vld [vmem:[#allocation13 + $0x74] sm:$0xf]
        %v3541 = vld [vmem:[#allocation13 + $0x78] sm:$0xf]
        %v3542 = vld [vmem:[#allocation13 + $0x7c] sm:$0xf]
        %v3543 = vld [vmem:[%s10] sm:$0x1]
        %v3545 = vperm.slane %v3543, 0
        %v3579 = vunpack.c.l.b16 %v3511
        %v3580 = vunpack.c.l.b16 %v3512
        %v3581 = vunpack.c.l.b16 %v3513
        %v3582 = vunpack.c.l.b16 %v3514
        %v3583 = vunpack.c.l.b16 %v3515
        %v3584 = vunpack.c.l.b16 %v3516
        %v3585 = vunpack.c.l.b16 %v3517
        %v3586 = vunpack.c.l.b16 %v3518
        %v3587 = vunpack.c.l.b16 %v3519
        %v3588 = vunpack.c.l.b16 %v3520
        %v3589 = vunpack.c.l.b16 %v3521
        %v3590 = vunpack.c.l.b16 %v3522
        %v3591 = vunpack.c.l.b16 %v3523
        %v3592 = vunpack.c.l.b16 %v3524
        %v3593 = vunpack.c.l.b16 %v3525
        %v3594 = vunpack.c.l.b16 %v3526
        %v3595 = vunpack.c.l.b16 %v3527
        %v3596 = vunpack.c.l.b16 %v3528
        %v3597 = vunpack.c.l.b16 %v3529
        %v3598 = vunpack.c.l.b16 %v3530
        %v3599 = vunpack.c.l.b16 %v3531
        %v3600 = vunpack.c.l.b16 %v3532
        %v3601 = vunpack.c.l.b16 %v3533
        %v3602 = vunpack.c.l.b16 %v3534
        %v3603 = vunpack.c.l.b16 %v3535
        %v3604 = vunpack.c.l.b16 %v3536
        %v3605 = vunpack.c.l.b16 %v3537
        %v3606 = vunpack.c.l.b16 %v3538
        %v3607 = vunpack.c.l.b16 %v3539
        %v3608 = vunpack.c.l.b16 %v3540
        %v3609 = vunpack.c.l.b16 %v3541
        %v3610 = vunpack.c.l.b16 %v3542
        %v3611 = vpack.c.b16 %v3580, %v3579
        %v3612 = vpack.c.b16 %v3582, %v3581
        %v3613 = vpack.c.b16 %v3584, %v3583
        %v3614 = vpack.c.b16 %v3586, %v3585
        %v3615 = vpack.c.b16 %v3588, %v3587
        %v3616 = vpack.c.b16 %v3590, %v3589
        %v3617 = vpack.c.b16 %v3592, %v3591
        %v3618 = vpack.c.b16 %v3594, %v3593
        %v3619 = vpack.c.b16 %v3596, %v3595
        %v3620 = vpack.c.b16 %v3598, %v3597
        %v3621 = vpack.c.b16 %v3600, %v3599
        %v3622 = vpack.c.b16 %v3602, %v3601
        %v3623 = vpack.c.b16 %v3604, %v3603
        %v3624 = vpack.c.b16 %v3606, %v3605
        %v3625 = vpack.c.b16 %v3608, %v3607
        %v3626 = vpack.c.b16 %v3610, %v3609
        %3643 = vmatpush.bf16.msra.mxu0 %v3618
        %3644 = vmatpush.bf16.msra.mxu0 %v3617
        %3645 = vmatpush.bf16.msra.mxu0 %v3616
        %3646 = vmatpush.bf16.msra.mxu0 %v3615
        %3647 = vmatpush.bf16.msra.mxu0 %v3614
        %3648 = vmatpush.bf16.msra.mxu0 %v3613
        %3649 = vmatpush.bf16.msra.mxu0 %v3612
        %3650 = vmatpush.bf16.msra.mxu0 %v3611
        %3651 = vmatmul.bf16.gmra.mxu0 %v3479
        %v3652 = vpop.f32.mrf.mxu0
        %v3653 = vadd.f32 %v3545, %v3652
        %v3654 = vpop.f32.mrf.mxu0
        %v3655 = vadd.f32 %v3545, %v3654
        %3656 = vmatmul.bf16.gmra.mxu0 %v3481
        %v3657 = vpop.f32.mrf.mxu0
        %v3658 = vadd.f32 %v3545, %v3657
        %v3659 = vpop.f32.mrf.mxu0
        %v3660 = vadd.f32 %v3545, %v3659
        %3661 = vmatmul.bf16.gmra.mxu0 %v3483
        %v3662 = vpop.f32.mrf.mxu0
        %v3663 = vadd.f32 %v3545, %v3662
        %v3664 = vpop.f32.mrf.mxu0
        %v3665 = vadd.f32 %v3545, %v3664
        %3666 = vmatmul.bf16.gmra.mxu0 %v3485
        %v3667 = vpop.f32.mrf.mxu0
        %v3668 = vadd.f32 %v3545, %v3667
        %v3669 = vpop.f32.mrf.mxu0
        %v3670 = vadd.f32 %v3545, %v3669
        %3671 = vmatmul.bf16.gmra.mxu0 %v3487
        %v3672 = vpop.f32.mrf.mxu0
        %v3673 = vadd.f32 %v3545, %v3672
        %v3674 = vpop.f32.mrf.mxu0
        %v3675 = vadd.f32 %v3545, %v3674
        %3676 = vmatmul.bf16.gmra.mxu0 %v3489
        %v3677 = vpop.f32.mrf.mxu0
        %v3678 = vadd.f32 %v3545, %v3677
        %v3679 = vpop.f32.mrf.mxu0
        %v3680 = vadd.f32 %v3545, %v3679
        %3681 = vmatmul.bf16.gmra.mxu0 %v3491
        %v3682 = vpop.f32.mrf.mxu0
        %v3683 = vadd.f32 %v3545, %v3682
        %v3684 = vpop.f32.mrf.mxu0
        %v3685 = vadd.f32 %v3545, %v3684
        %3686 = vmatmul.bf16.gmra.mxu0 %v3493
        %v3687 = vpop.f32.mrf.mxu0
        %v3688 = vadd.f32 %v3545, %v3687
        %v3689 = vpop.f32.mrf.mxu0
        %v3690 = vadd.f32 %v3545, %v3689
        %3691 = vmatmul.bf16.gmra.mxu0 %v3495
        %v3692 = vpop.f32.mrf.mxu0
        %v3693 = vadd.f32 %v3545, %v3692
        %v3694 = vpop.f32.mrf.mxu0
        %v3695 = vadd.f32 %v3545, %v3694
        %3696 = vmatmul.bf16.gmra.mxu0 %v3497
        %v3697 = vpop.f32.mrf.mxu0
        %v3698 = vadd.f32 %v3545, %v3697
        %v3699 = vpop.f32.mrf.mxu0
        %v3700 = vadd.f32 %v3545, %v3699
        %3701 = vmatmul.bf16.gmra.mxu0 %v3499
        %v3702 = vpop.f32.mrf.mxu0
        %v3703 = vadd.f32 %v3545, %v3702
        %v3704 = vpop.f32.mrf.mxu0
        %v3705 = vadd.f32 %v3545, %v3704
        %3706 = vmatmul.bf16.gmra.mxu0 %v3501
        %v3707 = vpop.f32.mrf.mxu0
        %v3708 = vadd.f32 %v3545, %v3707
        %v3709 = vpop.f32.mrf.mxu0
        %v3710 = vadd.f32 %v3545, %v3709
        %3711 = vmatmul.bf16.gmra.mxu0 %v3503
        %v3712 = vpop.f32.mrf.mxu0
        %v3713 = vadd.f32 %v3545, %v3712
        %v3714 = vpop.f32.mrf.mxu0
        %v3715 = vadd.f32 %v3545, %v3714
        %3716 = vmatmul.bf16.gmra.mxu0 %v3505
        %v3717 = vpop.f32.mrf.mxu0
        %v3718 = vadd.f32 %v3545, %v3717
        %v3719 = vpop.f32.mrf.mxu0
        %v3720 = vadd.f32 %v3545, %v3719
        %3721 = vmatmul.bf16.gmra.mxu0 %v3507
        %v3722 = vpop.f32.mrf.mxu0
        %v3723 = vadd.f32 %v3545, %v3722
        %v3724 = vpop.f32.mrf.mxu0
        %v3725 = vadd.f32 %v3545, %v3724
        %3726 = vmatmul.bf16.gmra.mxu0 %v3509
        %v3727 = vpop.f32.mrf.mxu0
        %v3728 = vadd.f32 %v3545, %v3727
        %v3729 = vpop.f32.mrf.mxu0
        %v3730 = vadd.f32 %v3545, %v3729
        %3731 = vdwg.mxu0
        %3732 = vmatpush.bf16.msra.mxu0 %v3626
        %3733 = vmatpush.bf16.msra.mxu0 %v3625
        %3734 = vmatpush.bf16.msra.mxu0 %v3624
        %3735 = vmatpush.bf16.msra.mxu0 %v3623
        %3736 = vmatpush.bf16.msra.mxu0 %v3622
        %3737 = vmatpush.bf16.msra.mxu0 %v3621
        %3738 = vmatpush.bf16.msra.mxu0 %v3620
        %3739 = vmatpush.bf16.msra.mxu0 %v3619
        %3740 = vmatmul.bf16.gmra.mxu0 %v3480
        %v3741 = vpop.f32.mrf.mxu0
        %v3742 = vadd.f32 %v3653, %v3741
        %v3743 = vpop.f32.mrf.mxu0
        %v3744 = vadd.f32 %v3655, %v3743
        %3745 = vmatmul.bf16.gmra.mxu0 %v3482
        %v3746 = vpop.f32.mrf.mxu0
        %v3747 = vadd.f32 %v3658, %v3746
        %v3748 = vpop.f32.mrf.mxu0
        %v3749 = vadd.f32 %v3660, %v3748
        %3750 = vmatmul.bf16.gmra.mxu0 %v3484
        %v3751 = vpop.f32.mrf.mxu0
        %v3752 = vadd.f32 %v3663, %v3751
        %v3753 = vpop.f32.mrf.mxu0
        %v3754 = vadd.f32 %v3665, %v3753
        %3755 = vmatmul.bf16.gmra.mxu0 %v3486
        %v3756 = vpop.f32.mrf.mxu0
        %v3757 = vadd.f32 %v3668, %v3756
        %v3758 = vpop.f32.mrf.mxu0
        %v3759 = vadd.f32 %v3670, %v3758
        %3760 = vmatmul.bf16.gmra.mxu0 %v3488
        %v3761 = vpop.f32.mrf.mxu0
        %v3762 = vadd.f32 %v3673, %v3761
        %v3763 = vpop.f32.mrf.mxu0
        %v3764 = vadd.f32 %v3675, %v3763
        %3765 = vmatmul.bf16.gmra.mxu0 %v3490
        %v3766 = vpop.f32.mrf.mxu0
        %v3767 = vadd.f32 %v3678, %v3766
        %v3768 = vpop.f32.mrf.mxu0
        %v3769 = vadd.f32 %v3680, %v3768
        %3770 = vmatmul.bf16.gmra.mxu0 %v3492
        %v3771 = vpop.f32.mrf.mxu0
        %v3772 = vadd.f32 %v3683, %v3771
        %v3773 = vpop.f32.mrf.mxu0
        %v3774 = vadd.f32 %v3685, %v3773
        %3775 = vmatmul.bf16.gmra.mxu0 %v3494
        %v3776 = vpop.f32.mrf.mxu0
        %v3777 = vadd.f32 %v3688, %v3776
        %v3778 = vpop.f32.mrf.mxu0
        %v3779 = vadd.f32 %v3690, %v3778
        %3780 = vmatmul.bf16.gmra.mxu0 %v3496
        %v3781 = vpop.f32.mrf.mxu0
        %v3782 = vadd.f32 %v3693, %v3781
        %v3783 = vpop.f32.mrf.mxu0
        %v3784 = vadd.f32 %v3695, %v3783
        %3785 = vmatmul.bf16.gmra.mxu0 %v3498
        %v3786 = vpop.f32.mrf.mxu0
        %v3787 = vadd.f32 %v3698, %v3786
        %v3788 = vpop.f32.mrf.mxu0
        %v3789 = vadd.f32 %v3700, %v3788
        %3790 = vmatmul.bf16.gmra.mxu0 %v3500
        %v3791 = vpop.f32.mrf.mxu0
        %v3792 = vadd.f32 %v3703, %v3791
        %v3793 = vpop.f32.mrf.mxu0
        %v3794 = vadd.f32 %v3705, %v3793
        %3795 = vmatmul.bf16.gmra.mxu0 %v3502
        %v3796 = vpop.f32.mrf.mxu0
        %v3797 = vadd.f32 %v3708, %v3796
        %v3798 = vpop.f32.mrf.mxu0
        %v3799 = vadd.f32 %v3710, %v3798
        %3800 = vmatmul.bf16.gmra.mxu0 %v3504
        %v3801 = vpop.f32.mrf.mxu0
        %v3802 = vadd.f32 %v3713, %v3801
        %v3803 = vpop.f32.mrf.mxu0
        %v3804 = vadd.f32 %v3715, %v3803
        %3805 = vmatmul.bf16.gmra.mxu0 %v3506
        %v3806 = vpop.f32.mrf.mxu0
        %v3807 = vadd.f32 %v3718, %v3806
        %v3808 = vpop.f32.mrf.mxu0
        %v3809 = vadd.f32 %v3720, %v3808
        %3810 = vmatmul.bf16.gmra.mxu0 %v3508
        %v3811 = vpop.f32.mrf.mxu0
        %v3812 = vadd.f32 %v3723, %v3811
        %v3813 = vpop.f32.mrf.mxu0
        %v3814 = vadd.f32 %v3725, %v3813
        %3815 = vmatmul.bf16.gmra.mxu0 %v3510
        %v3816 = vpop.f32.mrf.mxu0
        %v3817 = vadd.f32 %v3728, %v3816
        %v3818 = vpop.f32.mrf.mxu0
        %v3819 = vadd.f32 %v3730, %v3818
        %3820 = vdwg.mxu0
        %v3821 = vmax.f32 %v3742, 0.0
        %v3822 = vmax.f32 %v3744, 0.0
        %v3823 = vmax.f32 %v3747, 0.0
        %v3824 = vmax.f32 %v3749, 0.0
        %v3825 = vmax.f32 %v3752, 0.0
        %v3826 = vmax.f32 %v3754, 0.0
        %v3827 = vmax.f32 %v3757, 0.0
        %v3828 = vmax.f32 %v3759, 0.0
        %v3829 = vmax.f32 %v3762, 0.0
        %v3830 = vmax.f32 %v3764, 0.0
        %v3831 = vmax.f32 %v3767, 0.0
        %v3832 = vmax.f32 %v3769, 0.0
        %v3833 = vmax.f32 %v3772, 0.0
        %v3834 = vmax.f32 %v3774, 0.0
        %v3835 = vmax.f32 %v3777, 0.0
        %v3836 = vmax.f32 %v3779, 0.0
        %v3837 = vmax.f32 %v3782, 0.0
        %v3838 = vmax.f32 %v3784, 0.0
        %v3839 = vmax.f32 %v3787, 0.0
        %v3840 = vmax.f32 %v3789, 0.0
        %v3841 = vmax.f32 %v3792, 0.0
        %v3842 = vmax.f32 %v3794, 0.0
        %v3843 = vmax.f32 %v3797, 0.0
        %v3844 = vmax.f32 %v3799, 0.0
        %v3845 = vmax.f32 %v3802, 0.0
        %v3846 = vmax.f32 %v3804, 0.0
        %v3847 = vmax.f32 %v3807, 0.0
        %v3848 = vmax.f32 %v3809, 0.0
        %v3849 = vmax.f32 %v3812, 0.0
        %v3850 = vmax.f32 %v3814, 0.0
        %v3851 = vmax.f32 %v3817, 0.0
        %v3852 = vmax.f32 %v3819, 0.0
        %v3853 = vpack.c.bf16 %v3822, %v3821
        %v3854 = vpack.c.bf16 %v3824, %v3823
        %v3855 = vpack.c.bf16 %v3826, %v3825
        %v3856 = vpack.c.bf16 %v3828, %v3827
        %v3857 = vpack.c.bf16 %v3830, %v3829
        %v3858 = vpack.c.bf16 %v3832, %v3831
        %v3859 = vpack.c.bf16 %v3834, %v3833
        %v3860 = vpack.c.bf16 %v3836, %v3835
        %v3861 = vpack.c.bf16 %v3838, %v3837
        %v3862 = vpack.c.bf16 %v3840, %v3839
        %v3863 = vpack.c.bf16 %v3842, %v3841
        %v3864 = vpack.c.bf16 %v3844, %v3843
        %v3865 = vpack.c.bf16 %v3846, %v3845
        %v3866 = vpack.c.bf16 %v3848, %v3847
        %v3867 = vpack.c.bf16 %v3850, %v3849
        %v3868 = vpack.c.bf16 %v3852, %v3851
        %v3869 = vld [vmem:[#allocation14] sm:$0xf]
        %v3870 = vld [vmem:[#allocation14 + $0x4] sm:$0xf]
        %v3871 = vld [vmem:[#allocation14 + $0x8] sm:$0xf]
        %v3872 = vld [vmem:[#allocation14 + $0xc] sm:$0xf]
        %v3873 = vld [vmem:[#allocation14 + $0x10] sm:$0xf]
        %v3874 = vld [vmem:[#allocation14 + $0x14] sm:$0xf]
        %v3875 = vld [vmem:[#allocation14 + $0x18] sm:$0xf]
        %v3876 = vld [vmem:[#allocation14 + $0x1c] sm:$0xf]
        %v3877 = vld [vmem:[#allocation14 + $0x20] sm:$0xf]
        %v3878 = vld [vmem:[#allocation14 + $0x24] sm:$0xf]
        %v3879 = vld [vmem:[#allocation14 + $0x28] sm:$0xf]
        %v3880 = vld [vmem:[#allocation14 + $0x2c] sm:$0xf]
        %v3881 = vld [vmem:[#allocation14 + $0x30] sm:$0xf]
        %v3882 = vld [vmem:[#allocation14 + $0x34] sm:$0xf]
        %v3883 = vld [vmem:[#allocation14 + $0x38] sm:$0xf]
        %v3884 = vld [vmem:[#allocation14 + $0x3c] sm:$0xf]
        %v3885 = vld [vmem:[%s12] sm:$0x1]
        %v3887 = vperm.slane %v3885, 0
        %v3905 = vunpack.c.l.b16 %v3869
        %v3906 = vunpack.c.l.b16 %v3870
        %v3907 = vunpack.c.l.b16 %v3871
        %v3908 = vunpack.c.l.b16 %v3872
        %v3909 = vunpack.c.l.b16 %v3873
        %v3910 = vunpack.c.l.b16 %v3874
        %v3911 = vunpack.c.l.b16 %v3875
        %v3912 = vunpack.c.l.b16 %v3876
        %v3913 = vunpack.c.l.b16 %v3877
        %v3914 = vunpack.c.l.b16 %v3878
        %v3915 = vunpack.c.l.b16 %v3879
        %v3916 = vunpack.c.l.b16 %v3880
        %v3917 = vunpack.c.l.b16 %v3881
        %v3918 = vunpack.c.l.b16 %v3882
        %v3919 = vunpack.c.l.b16 %v3883
        %v3920 = vunpack.c.l.b16 %v3884
        %v3921 = vpack.c.b16 %v3906, %v3905
        %v3922 = vpack.c.b16 %v3908, %v3907
        %v3923 = vpack.c.b16 %v3910, %v3909
        %v3924 = vpack.c.b16 %v3912, %v3911
        %v3925 = vpack.c.b16 %v3914, %v3913
        %v3926 = vpack.c.b16 %v3916, %v3915
        %v3927 = vpack.c.b16 %v3918, %v3917
        %v3928 = vpack.c.b16 %v3920, %v3919
        %3937 = vmatpush.bf16.msra.mxu0 %v3928
        %3938 = vmatpush.bf16.msra.mxu0 %v3927
        %3939 = vmatpush.bf16.msra.mxu0 %v3926
        %3940 = vmatpush.bf16.msra.mxu0 %v3925
        %3941 = vmatpush.bf16.msra.mxu0 %v3924
        %3942 = vmatpush.bf16.msra.mxu0 %v3923
        %3943 = vmatpush.bf16.msra.mxu0 %v3922
        %3944 = vmatpush.bf16.msra.mxu0 %v3921
        %3945 = vmatmul.bf16.gmra.mxu0 %v3853
        %v3946 = vpop.f32.mrf.mxu0
        %v3947 = vadd.f32 %v3887, %v3946
        %v3948 = vpop.f32.mrf.mxu0
        %v3949 = vadd.f32 %v3887, %v3948
        %3950 = vmatmul.bf16.gmra.mxu0 %v3854
        %v3951 = vpop.f32.mrf.mxu0
        %v3952 = vadd.f32 %v3887, %v3951
        %v3953 = vpop.f32.mrf.mxu0
        %v3954 = vadd.f32 %v3887, %v3953
        %3955 = vmatmul.bf16.gmra.mxu0 %v3855
        %v3956 = vpop.f32.mrf.mxu0
        %v3957 = vadd.f32 %v3887, %v3956
        %v3958 = vpop.f32.mrf.mxu0
        %v3959 = vadd.f32 %v3887, %v3958
        %3960 = vmatmul.bf16.gmra.mxu0 %v3856
        %v3961 = vpop.f32.mrf.mxu0
        %v3962 = vadd.f32 %v3887, %v3961
        %v3963 = vpop.f32.mrf.mxu0
        %v3964 = vadd.f32 %v3887, %v3963
        %3965 = vmatmul.bf16.gmra.mxu0 %v3857
        %v3966 = vpop.f32.mrf.mxu0
        %v3967 = vadd.f32 %v3887, %v3966
        %v3968 = vpop.f32.mrf.mxu0
        %v3969 = vadd.f32 %v3887, %v3968
        %3970 = vmatmul.bf16.gmra.mxu0 %v3858
        %v3971 = vpop.f32.mrf.mxu0
        %v3972 = vadd.f32 %v3887, %v3971
        %v3973 = vpop.f32.mrf.mxu0
        %v3974 = vadd.f32 %v3887, %v3973
        %3975 = vmatmul.bf16.gmra.mxu0 %v3859
        %v3976 = vpop.f32.mrf.mxu0
        %v3977 = vadd.f32 %v3887, %v3976
        %v3978 = vpop.f32.mrf.mxu0
        %v3979 = vadd.f32 %v3887, %v3978
        %3980 = vmatmul.bf16.gmra.mxu0 %v3860
        %v3981 = vpop.f32.mrf.mxu0
        %v3982 = vadd.f32 %v3887, %v3981
        %v3983 = vpop.f32.mrf.mxu0
        %v3984 = vadd.f32 %v3887, %v3983
        %3985 = vmatmul.bf16.gmra.mxu0 %v3861
        %v3986 = vpop.f32.mrf.mxu0
        %v3987 = vadd.f32 %v3887, %v3986
        %v3988 = vpop.f32.mrf.mxu0
        %v3989 = vadd.f32 %v3887, %v3988
        %3990 = vmatmul.bf16.gmra.mxu0 %v3862
        %v3991 = vpop.f32.mrf.mxu0
        %v3992 = vadd.f32 %v3887, %v3991
        %v3993 = vpop.f32.mrf.mxu0
        %v3994 = vadd.f32 %v3887, %v3993
        %3995 = vmatmul.bf16.gmra.mxu0 %v3863
        %v3996 = vpop.f32.mrf.mxu0
        %v3997 = vadd.f32 %v3887, %v3996
        %v3998 = vpop.f32.mrf.mxu0
        %v3999 = vadd.f32 %v3887, %v3998
        %4000 = vmatmul.bf16.gmra.mxu0 %v3864
        %v4001 = vpop.f32.mrf.mxu0
        %v4002 = vadd.f32 %v3887, %v4001
        %v4003 = vpop.f32.mrf.mxu0
        %v4004 = vadd.f32 %v3887, %v4003
        %4005 = vmatmul.bf16.gmra.mxu0 %v3865
        %v4006 = vpop.f32.mrf.mxu0
        %v4007 = vadd.f32 %v3887, %v4006
        %v4008 = vpop.f32.mrf.mxu0
        %v4009 = vadd.f32 %v3887, %v4008
        %4010 = vmatmul.bf16.gmra.mxu0 %v3866
        %v4011 = vpop.f32.mrf.mxu0
        %v4012 = vadd.f32 %v3887, %v4011
        %v4013 = vpop.f32.mrf.mxu0
        %v4014 = vadd.f32 %v3887, %v4013
        %4015 = vmatmul.bf16.gmra.mxu0 %v3867
        %v4016 = vpop.f32.mrf.mxu0
        %v4017 = vadd.f32 %v3887, %v4016
        %v4018 = vpop.f32.mrf.mxu0
        %v4019 = vadd.f32 %v3887, %v4018
        %4020 = vmatmul.bf16.gmra.mxu0 %v3868
        %v4021 = vpop.f32.mrf.mxu0
        %v4022 = vadd.f32 %v3887, %v4021
        %v4023 = vpop.f32.mrf.mxu0
        %v4024 = vadd.f32 %v3887, %v4023
        %4025 = vdwg.mxu0
        %v4026 = vmax.f32 %v3947, 0.0
        %v4027 = vmax.f32 %v3949, 0.0
        %v4028 = vmax.f32 %v3952, 0.0
        %v4029 = vmax.f32 %v3954, 0.0
        %v4030 = vmax.f32 %v3957, 0.0
        %v4031 = vmax.f32 %v3959, 0.0
        %v4032 = vmax.f32 %v3962, 0.0
        %v4033 = vmax.f32 %v3964, 0.0
        %v4034 = vmax.f32 %v3967, 0.0
        %v4035 = vmax.f32 %v3969, 0.0
        %v4036 = vmax.f32 %v3972, 0.0
        %v4037 = vmax.f32 %v3974, 0.0
        %v4038 = vmax.f32 %v3977, 0.0
        %v4039 = vmax.f32 %v3979, 0.0
        %v4040 = vmax.f32 %v3982, 0.0
        %v4041 = vmax.f32 %v3984, 0.0
        %v4042 = vmax.f32 %v3987, 0.0
        %v4043 = vmax.f32 %v3989, 0.0
        %v4044 = vmax.f32 %v3992, 0.0
        %v4045 = vmax.f32 %v3994, 0.0
        %v4046 = vmax.f32 %v3997, 0.0
        %v4047 = vmax.f32 %v3999, 0.0
        %v4048 = vmax.f32 %v4002, 0.0
        %v4049 = vmax.f32 %v4004, 0.0
        %v4050 = vmax.f32 %v4007, 0.0
        %v4051 = vmax.f32 %v4009, 0.0
        %v4052 = vmax.f32 %v4012, 0.0
        %v4053 = vmax.f32 %v4014, 0.0
        %v4054 = vmax.f32 %v4017, 0.0
        %v4055 = vmax.f32 %v4019, 0.0
        %v4056 = vmax.f32 %v4022, 0.0
        %v4057 = vmax.f32 %v4024, 0.0
        %v4058 = vpack.c.bf16 %v4027, %v4026
        %v4059 = vpack.c.bf16 %v4029, %v4028
        %v4060 = vpack.c.bf16 %v4031, %v4030
        %v4061 = vpack.c.bf16 %v4033, %v4032
        %v4062 = vpack.c.bf16 %v4035, %v4034
        %v4063 = vpack.c.bf16 %v4037, %v4036
        %v4064 = vpack.c.bf16 %v4039, %v4038
        %v4065 = vpack.c.bf16 %v4041, %v4040
        %v4066 = vpack.c.bf16 %v4043, %v4042
        %v4067 = vpack.c.bf16 %v4045, %v4044
        %v4068 = vpack.c.bf16 %v4047, %v4046
        %v4069 = vpack.c.bf16 %v4049, %v4048
        %v4070 = vpack.c.bf16 %v4051, %v4050
        %v4071 = vpack.c.bf16 %v4053, %v4052
        %v4072 = vpack.c.bf16 %v4055, %v4054
        %v4073 = vpack.c.bf16 %v4057, %v4056
        %v4074 = vld [vmem:[#allocation16] sm:$0xf]
        %v4075 = vld [vmem:[#allocation16 + $0x4] sm:$0xf]
        %v4076 = vld [vmem:[#allocation16 + $0x8] sm:$0xf]
        %v4077 = vld [vmem:[#allocation16 + $0xc] sm:$0xf]
        %v4078 = vld [vmem:[#allocation16 + $0x10] sm:$0xf]
        %v4079 = vld [vmem:[#allocation16 + $0x14] sm:$0xf]
        %v4080 = vld [vmem:[#allocation16 + $0x18] sm:$0xf]
        %v4081 = vld [vmem:[#allocation16 + $0x1c] sm:$0xf]
        %v4082 = vld [vmem:[#allocation16 + $0x20] sm:$0xf]
        %v4083 = vld [vmem:[#allocation16 + $0x24] sm:$0xf]
        %v4084 = vld [vmem:[#allocation16 + $0x28] sm:$0xf]
        %v4085 = vld [vmem:[#allocation16 + $0x2c] sm:$0xf]
        %v4086 = vld [vmem:[#allocation16 + $0x30] sm:$0xf]
        %v4087 = vld [vmem:[#allocation16 + $0x34] sm:$0xf]
        %v4088 = vld [vmem:[#allocation16 + $0x38] sm:$0xf]
        %v4089 = vld [vmem:[#allocation16 + $0x3c] sm:$0xf]
        %v4090 = vld [vmem:[%s14] sm:$0x1]
        %v4092 = vperm.slane %v4090, 0
        %v4110 = vunpack.c.l.b16 %v4074
        %v4111 = vunpack.c.l.b16 %v4075
        %v4112 = vunpack.c.l.b16 %v4076
        %v4113 = vunpack.c.l.b16 %v4077
        %v4114 = vunpack.c.l.b16 %v4078
        %v4115 = vunpack.c.l.b16 %v4079
        %v4116 = vunpack.c.l.b16 %v4080
        %v4117 = vunpack.c.l.b16 %v4081
        %v4118 = vunpack.c.l.b16 %v4082
        %v4119 = vunpack.c.l.b16 %v4083
        %v4120 = vunpack.c.l.b16 %v4084
        %v4121 = vunpack.c.l.b16 %v4085
        %v4122 = vunpack.c.l.b16 %v4086
        %v4123 = vunpack.c.l.b16 %v4087
        %v4124 = vunpack.c.l.b16 %v4088
        %v4125 = vunpack.c.l.b16 %v4089
        %v4126 = vpack.c.b16 %v4111, %v4110
        %v4127 = vpack.c.b16 %v4113, %v4112
        %v4128 = vpack.c.b16 %v4115, %v4114
        %v4129 = vpack.c.b16 %v4117, %v4116
        %v4130 = vpack.c.b16 %v4119, %v4118
        %v4131 = vpack.c.b16 %v4121, %v4120
        %v4132 = vpack.c.b16 %v4123, %v4122
        %v4133 = vpack.c.b16 %v4125, %v4124
        %4142 = vmatpush.bf16.msra.mxu0 %v4133
        %4143 = vmatpush.bf16.msra.mxu0 %v4132
        %4144 = vmatpush.bf16.msra.mxu0 %v4131
        %4145 = vmatpush.bf16.msra.mxu0 %v4130
        %4146 = vmatpush.bf16.msra.mxu0 %v4129
        %4147 = vmatpush.bf16.msra.mxu0 %v4128
        %4148 = vmatpush.bf16.msra.mxu0 %v4127
        %4149 = vmatpush.bf16.msra.mxu0 %v4126
        %4150 = vmatmul.bf16.gmra.mxu0 %v4058
        %v4151 = vpop.f32.mrf.mxu0
        %v4152 = vadd.f32 %v4092, %v4151
        %v4153 = vpop.f32.mrf.mxu0
        %v4154 = vadd.f32 %v4092, %v4153
        %4155 = vmatmul.bf16.gmra.mxu0 %v4059
        %v4156 = vpop.f32.mrf.mxu0
        %v4157 = vadd.f32 %v4092, %v4156
        %v4158 = vpop.f32.mrf.mxu0
        %v4159 = vadd.f32 %v4092, %v4158
        %4160 = vmatmul.bf16.gmra.mxu0 %v4060
        %v4161 = vpop.f32.mrf.mxu0
        %v4162 = vadd.f32 %v4092, %v4161
        %v4163 = vpop.f32.mrf.mxu0
        %v4164 = vadd.f32 %v4092, %v4163
        %4165 = vmatmul.bf16.gmra.mxu0 %v4061
        %v4166 = vpop.f32.mrf.mxu0
        %v4167 = vadd.f32 %v4092, %v4166
        %v4168 = vpop.f32.mrf.mxu0
        %v4169 = vadd.f32 %v4092, %v4168
        %4170 = vmatmul.bf16.gmra.mxu0 %v4062
        %v4171 = vpop.f32.mrf.mxu0
        %v4172 = vadd.f32 %v4092, %v4171
        %v4173 = vpop.f32.mrf.mxu0
        %v4174 = vadd.f32 %v4092, %v4173
        %4175 = vmatmul.bf16.gmra.mxu0 %v4063
        %v4176 = vpop.f32.mrf.mxu0
        %v4177 = vadd.f32 %v4092, %v4176
        %v4178 = vpop.f32.mrf.mxu0
        %v4179 = vadd.f32 %v4092, %v4178
        %4180 = vmatmul.bf16.gmra.mxu0 %v4064
        %v4181 = vpop.f32.mrf.mxu0
        %v4182 = vadd.f32 %v4092, %v4181
        %v4183 = vpop.f32.mrf.mxu0
        %v4184 = vadd.f32 %v4092, %v4183
        %4185 = vmatmul.bf16.gmra.mxu0 %v4065
        %v4186 = vpop.f32.mrf.mxu0
        %v4187 = vadd.f32 %v4092, %v4186
        %v4188 = vpop.f32.mrf.mxu0
        %v4189 = vadd.f32 %v4092, %v4188
        %4190 = vmatmul.bf16.gmra.mxu0 %v4066
        %v4191 = vpop.f32.mrf.mxu0
        %v4192 = vadd.f32 %v4092, %v4191
        %v4193 = vpop.f32.mrf.mxu0
        %v4194 = vadd.f32 %v4092, %v4193
        %4195 = vmatmul.bf16.gmra.mxu0 %v4067
        %v4196 = vpop.f32.mrf.mxu0
        %v4197 = vadd.f32 %v4092, %v4196
        %v4198 = vpop.f32.mrf.mxu0
        %v4199 = vadd.f32 %v4092, %v4198
        %4200 = vmatmul.bf16.gmra.mxu0 %v4068
        %v4201 = vpop.f32.mrf.mxu0
        %v4202 = vadd.f32 %v4092, %v4201
        %v4203 = vpop.f32.mrf.mxu0
        %v4204 = vadd.f32 %v4092, %v4203
        %4205 = vmatmul.bf16.gmra.mxu0 %v4069
        %v4206 = vpop.f32.mrf.mxu0
        %v4207 = vadd.f32 %v4092, %v4206
        %v4208 = vpop.f32.mrf.mxu0
        %v4209 = vadd.f32 %v4092, %v4208
        %4210 = vmatmul.bf16.gmra.mxu0 %v4070
        %v4211 = vpop.f32.mrf.mxu0
        %v4212 = vadd.f32 %v4092, %v4211
        %v4213 = vpop.f32.mrf.mxu0
        %v4214 = vadd.f32 %v4092, %v4213
        %4215 = vmatmul.bf16.gmra.mxu0 %v4071
        %v4216 = vpop.f32.mrf.mxu0
        %v4217 = vadd.f32 %v4092, %v4216
        %v4218 = vpop.f32.mrf.mxu0
        %v4219 = vadd.f32 %v4092, %v4218
        %4220 = vmatmul.bf16.gmra.mxu0 %v4072
        %v4221 = vpop.f32.mrf.mxu0
        %v4222 = vadd.f32 %v4092, %v4221
        %v4223 = vpop.f32.mrf.mxu0
        %v4224 = vadd.f32 %v4092, %v4223
        %4225 = vmatmul.bf16.gmra.mxu0 %v4073
        %v4226 = vpop.f32.mrf.mxu0
        %v4227 = vadd.f32 %v4092, %v4226
        %v4228 = vpop.f32.mrf.mxu0
        %v4229 = vadd.f32 %v4092, %v4228
        %4230 = vdwg.mxu0
        %v4231 = vmax.f32 %v4152, 0.0
        %v4232 = vmax.f32 %v4154, 0.0
        %v4233 = vmax.f32 %v4157, 0.0
        %v4234 = vmax.f32 %v4159, 0.0
        %v4235 = vmax.f32 %v4162, 0.0
        %v4236 = vmax.f32 %v4164, 0.0
        %v4237 = vmax.f32 %v4167, 0.0
        %v4238 = vmax.f32 %v4169, 0.0
        %v4239 = vmax.f32 %v4172, 0.0
        %v4240 = vmax.f32 %v4174, 0.0
        %v4241 = vmax.f32 %v4177, 0.0
        %v4242 = vmax.f32 %v4179, 0.0
        %v4243 = vmax.f32 %v4182, 0.0
        %v4244 = vmax.f32 %v4184, 0.0
        %v4245 = vmax.f32 %v4187, 0.0
        %v4246 = vmax.f32 %v4189, 0.0
        %v4247 = vmax.f32 %v4192, 0.0
        %v4248 = vmax.f32 %v4194, 0.0
        %v4249 = vmax.f32 %v4197, 0.0
        %v4250 = vmax.f32 %v4199, 0.0
        %v4251 = vmax.f32 %v4202, 0.0
        %v4252 = vmax.f32 %v4204, 0.0
        %v4253 = vmax.f32 %v4207, 0.0
        %v4254 = vmax.f32 %v4209, 0.0
        %v4255 = vmax.f32 %v4212, 0.0
        %v4256 = vmax.f32 %v4214, 0.0
        %v4257 = vmax.f32 %v4217, 0.0
        %v4258 = vmax.f32 %v4219, 0.0
        %v4259 = vmax.f32 %v4222, 0.0
        %v4260 = vmax.f32 %v4224, 0.0
        %v4261 = vmax.f32 %v4227, 0.0
        %v4262 = vmax.f32 %v4229, 0.0
        %v4263 = vpack.c.bf16 %v4232, %v4231
        %v4264 = vpack.c.bf16 %v4234, %v4233
        %v4265 = vpack.c.bf16 %v4236, %v4235
        %v4266 = vpack.c.bf16 %v4238, %v4237
        %v4267 = vpack.c.bf16 %v4240, %v4239
        %v4268 = vpack.c.bf16 %v4242, %v4241
        %v4269 = vpack.c.bf16 %v4244, %v4243
        %v4270 = vpack.c.bf16 %v4246, %v4245
        %v4271 = vpack.c.bf16 %v4248, %v4247
        %v4272 = vpack.c.bf16 %v4250, %v4249
        %v4273 = vpack.c.bf16 %v4252, %v4251
        %v4274 = vpack.c.bf16 %v4254, %v4253
        %v4275 = vpack.c.bf16 %v4256, %v4255
        %v4276 = vpack.c.bf16 %v4258, %v4257
        %v4277 = vpack.c.bf16 %v4260, %v4259
        %v4278 = vpack.c.bf16 %v4262, %v4261
        %v4279 = vld [vmem:[#allocation17] sm:$0xf]
        %v4280 = vld [vmem:[#allocation17 + $0x4] sm:$0xf]
        %v4281 = vld [vmem:[#allocation17 + $0x8] sm:$0xf]
        %v4282 = vld [vmem:[#allocation17 + $0xc] sm:$0xf]
        %v4283 = vld [vmem:[#allocation17 + $0x10] sm:$0xf]
        %v4284 = vld [vmem:[#allocation17 + $0x14] sm:$0xf]
        %v4285 = vld [vmem:[#allocation17 + $0x18] sm:$0xf]
        %v4286 = vld [vmem:[#allocation17 + $0x1c] sm:$0xf]
        %v4287 = vld [vmem:[#allocation17 + $0x20] sm:$0xf]
        %v4288 = vld [vmem:[#allocation17 + $0x24] sm:$0xf]
        %v4289 = vld [vmem:[#allocation17 + $0x28] sm:$0xf]
        %v4290 = vld [vmem:[#allocation17 + $0x2c] sm:$0xf]
        %v4291 = vld [vmem:[#allocation17 + $0x30] sm:$0xf]
        %v4292 = vld [vmem:[#allocation17 + $0x34] sm:$0xf]
        %v4293 = vld [vmem:[#allocation17 + $0x38] sm:$0xf]
        %v4294 = vld [vmem:[#allocation17 + $0x3c] sm:$0xf]
        %v4295 = vld [vmem:[%s16] sm:$0x1]
        %v4297 = vperm.slane %v4295, 0
        %v4315 = vunpack.c.l.b16 %v4279
        %v4316 = vunpack.c.l.b16 %v4280
        %v4317 = vunpack.c.l.b16 %v4281
        %v4318 = vunpack.c.l.b16 %v4282
        %v4319 = vunpack.c.l.b16 %v4283
        %v4320 = vunpack.c.l.b16 %v4284
        %v4321 = vunpack.c.l.b16 %v4285
        %v4322 = vunpack.c.l.b16 %v4286
        %v4323 = vunpack.c.l.b16 %v4287
        %v4324 = vunpack.c.l.b16 %v4288
        %v4325 = vunpack.c.l.b16 %v4289
        %v4326 = vunpack.c.l.b16 %v4290
        %v4327 = vunpack.c.l.b16 %v4291
        %v4328 = vunpack.c.l.b16 %v4292
        %v4329 = vunpack.c.l.b16 %v4293
        %v4330 = vunpack.c.l.b16 %v4294
        %v4331 = vpack.c.b16 %v4316, %v4315
        %v4332 = vpack.c.b16 %v4318, %v4317
        %v4333 = vpack.c.b16 %v4320, %v4319
        %v4334 = vpack.c.b16 %v4322, %v4321
        %v4335 = vpack.c.b16 %v4324, %v4323
        %v4336 = vpack.c.b16 %v4326, %v4325
        %v4337 = vpack.c.b16 %v4328, %v4327
        %v4338 = vpack.c.b16 %v4330, %v4329
        %4347 = vmatpush.bf16.msra.mxu0 %v4338
        %4348 = vmatpush.bf16.msra.mxu0 %v4337
        %4349 = vmatpush.bf16.msra.mxu0 %v4336
        %4350 = vmatpush.bf16.msra.mxu0 %v4335
        %4351 = vmatpush.bf16.msra.mxu0 %v4334
        %4352 = vmatpush.bf16.msra.mxu0 %v4333
        %4353 = vmatpush.bf16.msra.mxu0 %v4332
        %4354 = vmatpush.bf16.msra.mxu0 %v4331
        %4355 = vmatmul.bf16.gmra.mxu0 %v4263
        %v4356 = vpop.f32.mrf.mxu0
        %v4357 = vadd.f32 %v4297, %v4356
        %v4358 = vpop.f32.mrf.mxu0
        %v4359 = vadd.f32 %v4297, %v4358
        %4360 = vmatmul.bf16.gmra.mxu0 %v4264
        %v4361 = vpop.f32.mrf.mxu0
        %v4362 = vadd.f32 %v4297, %v4361
        %v4363 = vpop.f32.mrf.mxu0
        %v4364 = vadd.f32 %v4297, %v4363
        %4365 = vmatmul.bf16.gmra.mxu0 %v4265
        %v4366 = vpop.f32.mrf.mxu0
        %v4367 = vadd.f32 %v4297, %v4366
        %v4368 = vpop.f32.mrf.mxu0
        %v4369 = vadd.f32 %v4297, %v4368
        %4370 = vmatmul.bf16.gmra.mxu0 %v4266
        %v4371 = vpop.f32.mrf.mxu0
        %v4372 = vadd.f32 %v4297, %v4371
        %v4373 = vpop.f32.mrf.mxu0
        %v4374 = vadd.f32 %v4297, %v4373
        %4375 = vmatmul.bf16.gmra.mxu0 %v4267
        %v4376 = vpop.f32.mrf.mxu0
        %v4377 = vadd.f32 %v4297, %v4376
        %v4378 = vpop.f32.mrf.mxu0
        %v4379 = vadd.f32 %v4297, %v4378
        %4380 = vmatmul.bf16.gmra.mxu0 %v4268
        %v4381 = vpop.f32.mrf.mxu0
        %v4382 = vadd.f32 %v4297, %v4381
        %v4383 = vpop.f32.mrf.mxu0
        %v4384 = vadd.f32 %v4297, %v4383
        %4385 = vmatmul.bf16.gmra.mxu0 %v4269
        %v4386 = vpop.f32.mrf.mxu0
        %v4387 = vadd.f32 %v4297, %v4386
        %v4388 = vpop.f32.mrf.mxu0
        %v4389 = vadd.f32 %v4297, %v4388
        %4390 = vmatmul.bf16.gmra.mxu0 %v4270
        %v4391 = vpop.f32.mrf.mxu0
        %v4392 = vadd.f32 %v4297, %v4391
        %v4393 = vpop.f32.mrf.mxu0
        %v4394 = vadd.f32 %v4297, %v4393
        %4395 = vmatmul.bf16.gmra.mxu0 %v4271
        %v4396 = vpop.f32.mrf.mxu0
        %v4397 = vadd.f32 %v4297, %v4396
        %v4398 = vpop.f32.mrf.mxu0
        %v4399 = vadd.f32 %v4297, %v4398
        %4400 = vmatmul.bf16.gmra.mxu0 %v4272
        %v4401 = vpop.f32.mrf.mxu0
        %v4402 = vadd.f32 %v4297, %v4401
        %v4403 = vpop.f32.mrf.mxu0
        %v4404 = vadd.f32 %v4297, %v4403
        %4405 = vmatmul.bf16.gmra.mxu0 %v4273
        %v4406 = vpop.f32.mrf.mxu0
        %v4407 = vadd.f32 %v4297, %v4406
        %v4408 = vpop.f32.mrf.mxu0
        %v4409 = vadd.f32 %v4297, %v4408
        %4410 = vmatmul.bf16.gmra.mxu0 %v4274
        %v4411 = vpop.f32.mrf.mxu0
        %v4412 = vadd.f32 %v4297, %v4411
        %v4413 = vpop.f32.mrf.mxu0
        %v4414 = vadd.f32 %v4297, %v4413
        %4415 = vmatmul.bf16.gmra.mxu0 %v4275
        %v4416 = vpop.f32.mrf.mxu0
        %v4417 = vadd.f32 %v4297, %v4416
        %v4418 = vpop.f32.mrf.mxu0
        %v4419 = vadd.f32 %v4297, %v4418
        %4420 = vmatmul.bf16.gmra.mxu0 %v4276
        %v4421 = vpop.f32.mrf.mxu0
        %v4422 = vadd.f32 %v4297, %v4421
        %v4423 = vpop.f32.mrf.mxu0
        %v4424 = vadd.f32 %v4297, %v4423
        %4425 = vmatmul.bf16.gmra.mxu0 %v4277
        %v4426 = vpop.f32.mrf.mxu0
        %v4427 = vadd.f32 %v4297, %v4426
        %v4428 = vpop.f32.mrf.mxu0
        %v4429 = vadd.f32 %v4297, %v4428
        %4430 = vmatmul.bf16.gmra.mxu0 %v4278
        %v4431 = vpop.f32.mrf.mxu0
        %v4432 = vadd.f32 %v4297, %v4431
        %v4433 = vpop.f32.mrf.mxu0
        %v4434 = vadd.f32 %v4297, %v4433
        %4435 = vdwg.mxu0
        %4436 = vst [vmem:[%s716] sm:$0xff] %v4357
        %4437 = vst [vmem:[%s716 + $0x8] sm:$0xff] %v4359
        %4438 = vst [vmem:[%s716 + $0x10] sm:$0xff] %v4362
        %4439 = vst [vmem:[%s716 + $0x18] sm:$0xff] %v4364
        %4440 = vst [vmem:[%s716 + $0x20] sm:$0xff] %v4367
        %4441 = vst [vmem:[%s716 + $0x28] sm:$0xff] %v4369
        %4442 = vst [vmem:[%s716 + $0x30] sm:$0xff] %v4372
        %4443 = vst [vmem:[%s716 + $0x38] sm:$0xff] %v4374
        %4444 = vst [vmem:[%s716 + $0x40] sm:$0xff] %v4377
        %4445 = vst [vmem:[%s716 + $0x48] sm:$0xff] %v4379
        %4446 = vst [vmem:[%s716 + $0x50] sm:$0xff] %v4382
        %4447 = vst [vmem:[%s716 + $0x58] sm:$0xff] %v4384
        %4448 = vst [vmem:[%s716 + $0x60] sm:$0xff] %v4387
        %4449 = vst [vmem:[%s716 + $0x68] sm:$0xff] %v4389
        %4450 = vst [vmem:[%s716 + $0x70] sm:$0xff] %v4392
        %4451 = vst [vmem:[%s716 + $0x78] sm:$0xff] %v4394
        %4452 = vst [vmem:[%s716 + $0x80] sm:$0xff] %v4397
        %4453 = vst [vmem:[%s716 + $0x88] sm:$0xff] %v4399
        %4454 = vst [vmem:[%s716 + $0x90] sm:$0xff] %v4402
        %4455 = vst [vmem:[%s716 + $0x98] sm:$0xff] %v4404
        %4456 = vst [vmem:[%s716 + $0xa0] sm:$0xff] %v4407
        %4457 = vst [vmem:[%s716 + $0xa8] sm:$0xff] %v4409
        %4458 = vst [vmem:[%s716 + $0xb0] sm:$0xff] %v4412
        %4459 = vst [vmem:[%s716 + $0xb8] sm:$0xff] %v4414
        %4460 = vst [vmem:[%s716 + $0xc0] sm:$0xff] %v4417
        %4461 = vst [vmem:[%s716 + $0xc8] sm:$0xff] %v4419
        %4462 = vst [vmem:[%s716 + $0xd0] sm:$0xff] %v4422
        %4463 = vst [vmem:[%s716 + $0xd8] sm:$0xff] %v4424
        %4464 = vst [vmem:[%s716 + $0xe0] sm:$0xff] %v4427
        %4465 = vst [vmem:[%s716 + $0xe8] sm:$0xff] %v4429
        %4466 = vst [vmem:[%s716 + $0xf0] sm:$0xff] %v4432
        %4467 = vst [vmem:[%s716 + $0xf8] sm:$0xff] %v4434
        %s4468 = sand.u32 %s409, 1
        %s4469 = scalar_lea.sflag [#allocation4], %s4468
        %s4470 = sand.u32 %s409, 1
        %s4471 = smul.addr %s4470, 256
        %s4472 = scalar_lea.vmem [#allocation19], %s4471
        // Predicated region
        $region129: #{tpu_custom_call.1} parent=87 // pred_check
          %p4473 = pneg %p419
        $region130: #{tpu_custom_call.1} parent=87 // pred_check_branch
          %4475 = sbr.rel (%p4473) target = $region132
        $region131: #{tpu_custom_call.1} parent=87 // pred_region
          %s4476 = smul.u32 32, %s39
          %4478 = vsyncadd %s4469, 0
          %s4479 = smul.addr %s4476, 8
          %s4480 = scalar_lea.hbm %s17, %s4479
          %s4481 = sshll.u32 %s4472, 4
          %s4482 = int_to_ptr.vmem [resolvable:$true] %s4481
          %s4483 = sshll.u32 %s4480, 4
          %s4484 = int_to_ptr.hbm [resolvable:$true] %s4483
          %4489 = dma.vmem_to_hbm [thread:$0]  %s4482, 4096, %s4484, %s4469, 128, 128, 8
        $region132: #{tpu_custom_call.1} parent=87 // pred_fallthru
          _
      $region88: #{tpu_custom_call.1} parent=5 // pred_fallthru
        _
      %p4490 = scmp.le.s32.totalorder 2, %s34
      // Predicated region
      $region133: #{tpu_custom_call.1} parent=5 // pred_check
        %p4491 = pneg %p4490
      $region134: #{tpu_custom_call.1} parent=5 // pred_check_branch
        %4493 = sbr.rel (%p4491) target = $region136
      $region135: #{tpu_custom_call.1} parent=5 // pred_region
        %s4494 = ssub.s32 %s34, 2
        // Predicated region
        $region137: #{tpu_custom_call.1} parent=135 // pred_check
          %p4495 = pneg %p425
        $region138: #{tpu_custom_call.1} parent=135 // pred_check_branch
          %4497 = sbr.rel (%p4495) target = $region140
        $region139: #{tpu_custom_call.1} parent=135 // pred_region
          %s4498 = sand.u32 %s410, 1
          %s4499 = scalar_lea.sflag [#allocation4], %s4498
          %s4500 = sand.u32 %s410, 1
          %s4501 = smul.addr %s4500, 256
          %s4502 = scalar_lea.vmem [#allocation19], %s4501
          %4504 = dma.done %s4499, 4096
        $region140: #{tpu_custom_call.1} parent=135 // pred_fallthru
          _
      $region136: #{tpu_custom_call.1} parent=5 // pred_fallthru
        _
    $region6: #{tpu_custom_call.1} parent=1 // loop_footer
      %s38 = sadd.s32 1, %s34
    $region7: #{tpu_custom_call.1} parent=1 // loop_footer_branch
      %33 = sbr.rel target = $region3
    $region8: #{tpu_custom_call.1} parent=1 // loop_exit
      _
    %4505 = vsyncpa [#allocation3], 1
    %s4506 = scalar_lea.sflag [#allocation3], 1
    %4507 = vsyncpa %s4506, 1
    %4508 = vsyncpa [#allocation6], 1
    %4509 = vsyncpa [#allocation9], 1
    %4510 = vsyncpa [#allocation12], 1
    %4511 = vsyncpa [#allocation15], 1
    %4512 = vsyncpa [#allocation18], 1
    %4513 = vsyncpa [#allocation4], 1
    %s4514 = scalar_lea.sflag [#allocation4], 1
    %4515 = vsyncpa %s4514, 1

// kernel: tpu_custom_call.1
$region0: #{tpu_custom_call.1}
  #allocation0 [shape = 'u32[]', space=smem, size = 0x4, offset = 0x4, fixed_abs, tag = 'smem constant byte address 0x4 - core index']
  #allocation1 [shape = 'u32[72,128]{1,0:T(1,128)}', space=vmem, size = 0x9000, scoped, tag = 'internal scratch']
  %s0 = inlined_call_operand.hbm [shape: bf16[512,256], index: 0, kind: input, shape index: {}]
  %s1 = inlined_call_operand.hbm [shape: bf16[256,256], index: 1, kind: input, shape index: {}]
  %s2 = inlined_call_operand.hbm [shape: f32[1,256], index: 2, kind: input, shape index: {}]
  %s3 = inlined_call_operand.hbm [shape: bf16[256,256], index: 3, kind: input, shape index: {}]
  %s4 = inlined_call_operand.vmem [shape: f32[1,256], index: 4, kind: input, shape index: {}]
  %s5 = inlined_call_operand.hbm [shape: bf16[256,256], index: 5, kind: input, shape index: {}]
  %s6 = inlined_call_operand.vmem [shape: f32[1,256], index: 6, kind: input, shape index: {}]
  %s7 = inlined_call_operand.hbm [shape: bf16[256,256], index: 7, kind: input, shape index: {}]
  %s8 = inlined_call_operand.vmem [shape: f32[1,256], index: 8, kind: input, shape index: {}]
  %s9 = inlined_call_operand.hbm [shape: bf16[256,128], index: 9, kind: input, shape index: {}]
  %s10 = inlined_call_operand.vmem [shape: f32[1,128], index: 10, kind: input, shape index: {}]
  %s11 = inlined_call_operand.hbm [shape: bf16[128,128], index: 11, kind: input, shape index: {}]
  %s12 = inlined_call_operand.vmem [shape: f32[1,128], index: 12, kind: input, shape index: {}]
  %s13 = inlined_call_operand.hbm [shape: bf16[128,128], index: 13, kind: input, shape index: {}]
  %s14 = inlined_call_operand.vmem [shape: f32[1,128], index: 14, kind: input, shape index: {}]
  %s15 = inlined_call_operand.hbm [shape: bf16[128,128], index: 15, kind: input, shape index: {}]
  %s16 = inlined_call_operand.vmem [shape: f32[1,128], index: 16, kind: input, shape index: {}]
  %s17 = inlined_call_operand.hbm [shape: f32[512,128], index: 17, kind: output, shape index: {}]
  %s18 = sld [smem:[#allocation0]]
  $region141: #{tpu_custom_call.1} parent=0
    _
  %s20 = ssub.s32 1, %s18
  %s21 = scalar_select 0, %s20, %s18
  $region1: #{tpu_custom_call.1} parent=0
    #allocation2 [shape = 'u8[262144]{0}', space=vmem, size = 0x40000, scoped, tag = 'input window, operand 0']
    #allocation3 [shape = 's32[2]{0}', space=sflag, size = 0x8, scoped, tag = 'scoped memory for tpu_custom_call.1']
    #allocation4 [shape = 's32[2]{0}', space=sflag, size = 0x8, scoped, tag = 'scoped memory for tpu_custom_call.1']
    #allocation5 [shape = 'u8[131072]{0}', space=vmem, size = 0x20000, scoped, tag = 'input window, operand 1, single buffered']
    #allocation6 [shape = 's32[1]{0}', space=sflag, size = 0x4, scoped, tag = 'scoped memory for tpu_custom_call.1']
    #allocation7 [shape = 'u8[1024]{0}', space=vmem, size = 0x400, scoped, tag = 'input window, operand 2, single buffered']
    #allocation8 [shape = 'u8[131072]{0}', space=vmem, size = 0x20000, scoped, tag = 'input window, operand 3, single buffered']
    #allocation9 [shape = 's32[1]{0}', space=sflag, size = 0x4, scoped, tag = 'scoped memory for tpu_custom_call.1']
    #allocation10 [shape = 'u8[131072]{0}', space=vmem, size = 0x20000, scoped, tag = 'input window, operand 5, single buffered']
    #allocation11 [shape = 'u8[131072]{0}', space=vmem, size = 0x20000, scoped, tag = 'input window, operand 7, single buffered']
    #allocation12 [shape = 's32[1]{0}', space=sflag, size = 0x4, scoped, tag = 'scoped memory for tpu_custom_call.1']
    #allocation13 [shape = 'u8[65536]{0}', space=vmem, size = 0x10000, scoped, tag = 'input window, operand 9, single buffered']
    #allocation14 [shape = 'u8[32768]{0}', space=vmem, size = 0x8000, scoped, tag = 'input window, operand 11, single buffered']
    #allocation15 [shape = 's32[1]{0}', space=sflag, size = 0x4, scoped, tag = 'scoped memory for tpu_custom_call.1']
    #allocation16 [shape = 'u8[32768]{0}', space=vmem, size = 0x8000, scoped, tag = 'input window, operand 13, single buffered']
    #allocation17 [shape = 'u8[32768]{0}', space=vmem, size = 0x8000, scoped, tag = 'input window, operand 15, single buffered']
    #allocation18 [shape = 's32[1]{0}', space=sflag, size = 0x4, scoped, tag = 'scoped memory for tpu_custom_call.1']
    #allocation19 [shape = 'u8[262144]{0}', space=vmem, size = 0x40000, scoped, tag = 'output window, operand 0']
    %22 = vsyncpa [#allocation3], 0
    %s23 = scalar_lea.sflag [#allocation3], 1
    %24 = vsyncpa %s23, 0
    %25 = vsyncpa [#allocation6], 0
    %26 = vsyncpa [#allocation9], 0
    %27 = vsyncpa [#allocation12], 0
    %28 = vsyncpa [#allocation15], 0
    %29 = vsyncpa [#allocation18], 0
    %30 = vsyncpa [#allocation4], 0
    %s31 = scalar_lea.sflag [#allocation4], 1
    %32 = vsyncpa %s31, 0
    loop: start=0, step=1, limit=4
    $region2: #{tpu_custom_call.1} parent=1 // loop_pre_header
      _
    $region3: #{tpu_custom_call.1} parent=1 // loop_header
      %s34 = sphi 0, %s38
      %p35 = scmp.ge.s32.totalorder %s34, 4
      %s44 = sphi 0, %s46
      %s47 = sphi 0, %s44
      %s48 = sphi 0, %s47
      %s64 = sphi 0, %s48
      %s68 = sphi 0, %s68
      %s70 = sphi 0, %s68
      %s71 = sphi 0, %s70
      %s85 = sphi 0, %s71
      %s89 = sphi 0, %s89
      %s91 = sphi 0, %s89
      %s92 = sphi 0, %s91
      %s106 = sphi 0, %s92
      %s110 = sphi 0, %s110
      %s112 = sphi 0, %s110
      %s113 = sphi 0, %s112
      %s127 = sphi 0, %s113
      %s131 = sphi 0, %s131
      %s133 = sphi 0, %s131
      %s134 = sphi 0, %s133
      %s148 = sphi 0, %s134
      %s152 = sphi 0, %s152
      %s154 = sphi 0, %s152
      %s155 = sphi 0, %s154
      %s169 = sphi 0, %s155
      %s173 = sphi 0, %s173
      %s175 = sphi 0, %s173
      %s176 = sphi 0, %s175
      %s190 = sphi 0, %s176
      %s194 = sphi 0, %s194
      %s196 = sphi 0, %s194
      %s197 = sphi 0, %s196
      %s211 = sphi 0, %s197
      %s215 = sphi 0, %s215
      %s217 = sphi 0, %s215
      %s218 = sphi 0, %s217
      %s232 = sphi 0, %s218
      %s236 = sphi 0, %s236
      %s238 = sphi 0, %s236
      %s239 = sphi 0, %s238
      %s253 = sphi 0, %s239
      %s257 = sphi 0, %s257
      %s259 = sphi 0, %s257
      %s260 = sphi 0, %s259
      %s274 = sphi 0, %s260
      %s278 = sphi 0, %s278
      %s280 = sphi 0, %s278
      %s281 = sphi 0, %s280
      %s295 = sphi 0, %s281
      %s299 = sphi 0, %s299
      %s301 = sphi 0, %s299
      %s302 = sphi 0, %s301
      %s316 = sphi 0, %s302
      %s320 = sphi 0, %s320
      %s322 = sphi 0, %s320
      %s323 = sphi 0, %s322
      %s337 = sphi 0, %s323
      %s341 = sphi 0, %s341
      %s343 = sphi 0, %s341
      %s344 = sphi 0, %s343
      %s358 = sphi 0, %s344
      %s362 = sphi 0, %s362
      %s364 = sphi 0, %s362
      %s365 = sphi 0, %s364
      %s379 = sphi 0, %s365
      %s383 = sphi 0, %s383
      %s385 = sphi 0, %s383
      %s386 = sphi 0, %s385
      %s400 = sphi 0, %s386
      %s406 = sphi 0, %s408
      %s409 = sphi 0, %s406
      %s410 = sphi 0, %s409
      %s426 = sphi 0, %s410
    $region4: #{tpu_custom_call.1} parent=1 // loop_header_branch
      %37 = sbr.rel (%p35) target = $region8
    $region5: #{tpu_custom_call.1} parent=1 // loop_body
      %s39 = ssub.s32 %s34, 1
      %s40 = ssub.s32 %s34, 2
      %s41 = sadd.s32 %s34, 1
      %s42 = ssub.s32 %s34, %s41
      %p43 = scmp.eq.s32.totalorder %s42, 0
      %s45 = sadd.s32 %s44, 1
      %s46 = scalar_select %p43, %s44, %s45
      %p49 = pneg %p43
      %p50 = scmp.eq.s32.totalorder %s34, 1
      %p51 = por %p49, %p50
      %p52 = scmp.ne.s32.totalorder %s44, %s47
      %p53 = scmp.eq.s32.totalorder %s34, 0
      %p54 = por %p52, %p53
      %p55 = scmp.ne.s32.totalorder %s44, %s47
      %p56 = scmp.eq.s32.totalorder %s39, 1
      %p57 = por %p55, %p56
      %p58 = scmp.ne.s32.totalorder %s47, %s48
      %p59 = scmp.eq.s32.totalorder %s39, 0
      %p60 = por %p58, %p59
      %p61 = scmp.ne.s32.totalorder %s47, %s48
      %p62 = scmp.eq.s32.totalorder %s40, 1
      %p63 = por %p61, %p62
      %p65 = scmp.ne.s32.totalorder %s48, %s64
      %p66 = scmp.eq.s32.totalorder %s40, 0
      %p67 = por %p65, %p66
      %s69 = sadd.s32 %s68, 1
      %p72 = scmp.eq.s32.totalorder %s34, 1
      %p73 = scmp.ne.s32.totalorder %s68, %s70
      %p74 = scmp.eq.s32.totalorder %s34, 0
      %p75 = por %p73, %p74
      %p76 = scmp.ne.s32.totalorder %s68, %s70
      %p77 = scmp.eq.s32.totalorder %s39, 1
      %p78 = por %p76, %p77
      %p79 = scmp.ne.s32.totalorder %s70, %s71
      %p80 = scmp.eq.s32.totalorder %s39, 0
      %p81 = por %p79, %p80
      %p82 = scmp.ne.s32.totalorder %s70, %s71
      %p83 = scmp.eq.s32.totalorder %s40, 1
      %p84 = por %p82, %p83
      %p86 = scmp.ne.s32.totalorder %s71, %s85
      %p87 = scmp.eq.s32.totalorder %s40, 0
      %p88 = por %p86, %p87
      %s90 = sadd.s32 %s89, 1
      %p93 = scmp.eq.s32.totalorder %s34, 1
      %p94 = scmp.ne.s32.totalorder %s89, %s91
      %p95 = scmp.eq.s32.totalorder %s34, 0
      %p96 = por %p94, %p95
      %p97 = scmp.ne.s32.totalorder %s89, %s91
      %p98 = scmp.eq.s32.totalorder %s39, 1
      %p99 = por %p97, %p98
      %p100 = scmp.ne.s32.totalorder %s91, %s92
      %p101 = scmp.eq.s32.totalorder %s39, 0
      %p102 = por %p100, %p101
      %p103 = scmp.ne.s32.totalorder %s91, %s92
      %p104 = scmp.eq.s32.totalorder %s40, 1
      %p105 = por %p103, %p104
      %p107 = scmp.ne.s32.totalorder %s92, %s106
      %p108 = scmp.eq.s32.totalorder %s40, 0
      %p109 = por %p107, %p108
      %s111 = sadd.s32 %s110, 1
      %p114 = scmp.eq.s32.totalorder %s34, 1
      %p115 = scmp.ne.s32.totalorder %s110, %s112
      %p116 = scmp.eq.s32.totalorder %s34, 0
      %p117 = por %p115, %p116
      %p118 = scmp.ne.s32.totalorder %s110, %s112
      %p119 = scmp.eq.s32.totalorder %s39, 1
      %p120 = por %p118, %p119
      %p121 = scmp.ne.s32.totalorder %s112, %s113
      %p122 = scmp.eq.s32.totalorder %s39, 0
      %p123 = por %p121, %p122
      %p124 = scmp.ne.s32.totalorder %s112, %s113
      %p125 = scmp.eq.s32.totalorder %s40, 1
      %p126 = por %p124, %p125
      %p128 = scmp.ne.s32.totalorder %s113, %s127
      %p129 = scmp.eq.s32.totalorder %s40, 0
      %p130 = por %p128, %p129
      %s132 = sadd.s32 %s131, 1
      %p135 = scmp.eq.s32.totalorder %s34, 1
      %p136 = scmp.ne.s32.totalorder %s131, %s133
      %p137 = scmp.eq.s32.totalorder %s34, 0
      %p138 = por %p136, %p137
      %p139 = scmp.ne.s32.totalorder %s131, %s133
      %p140 = scmp.eq.s32.totalorder %s39, 1
      %p141 = por %p139, %p140
      %p142 = scmp.ne.s32.totalorder %s133, %s134
      %p143 = scmp.eq.s32.totalorder %s39, 0
      %p144 = por %p142, %p143
      %p145 = scmp.ne.s32.totalorder %s133, %s134
      %p146 = scmp.eq.s32.totalorder %s40, 1
      %p147 = por %p145, %p146
      %p149 = scmp.ne.s32.totalorder %s134, %s148
      %p150 = scmp.eq.s32.totalorder %s40, 0
      %p151 = por %p149, %p150
      %s153 = sadd.s32 %s152, 1
      %p156 = scmp.eq.s32.totalorder %s34, 1
      %p157 = scmp.ne.s32.totalorder %s152, %s154
      %p158 = scmp.eq.s32.totalorder %s34, 0
      %p159 = por %p157, %p158
      %p160 = scmp.ne.s32.totalorder %s152, %s154
      %p161 = scmp.eq.s32.totalorder %s39, 1
      %p162 = por %p160, %p161
      %p163 = scmp.ne.s32.totalorder %s154, %s155
      %p164 = scmp.eq.s32.totalorder %s39, 0
      %p165 = por %p163, %p164
      %p166 = scmp.ne.s32.totalorder %s154, %s155
      %p167 = scmp.eq.s32.totalorder %s40, 1
      %p168 = por %p166, %p167
      %p170 = scmp.ne.s32.totalorder %s155, %s169
      %p171 = scmp.eq.s32.totalorder %s40, 0
      %p172 = por %p170, %p171
      %s174 = sadd.s32 %s173, 1
      %p177 = scmp.eq.s32.totalorder %s34, 1
      %p178 = scmp.ne.s32.totalorder %s173, %s175
      %p179 = scmp.eq.s32.totalorder %s34, 0
      %p180 = por %p178, %p179
      %p181 = scmp.ne.s32.totalorder %s173, %s175
      %p182 = scmp.eq.s32.totalorder %s39, 1
      %p183 = por %p181, %p182
      %p184 = scmp.ne.s32.totalorder %s175, %s176
      %p185 = scmp.eq.s32.totalorder %s39, 0
      %p186 = por %p184, %p185
      %p187 = scmp.ne.s32.totalorder %s175, %s176
      %p188 = scmp.eq.s32.totalorder %s40, 1
      %p189 = por %p187, %p188
      %p191 = scmp.ne.s32.totalorder %s176, %s190
      %p192 = scmp.eq.s32.totalorder %s40, 0
      %p193 = por %p191, %p192
      %s195 = sadd.s32 %s194, 1
      %p198 = scmp.eq.s32.totalorder %s34, 1
      %p199 = scmp.ne.s32.totalorder %s194, %s196
      %p200 = scmp.eq.s32.totalorder %s34, 0
      %p201 = por %p199, %p200
      %p202 = scmp.ne.s32.totalorder %s194, %s196
      %p203 = scmp.eq.s32.totalorder %s39, 1
      %p204 = por %p202, %p203
      %p205 = scmp.ne.s32.totalorder %s196, %s197
      %p206 = scmp.eq.s32.totalorder %s39, 0
      %p207 = por %p205, %p206
      %p208 = scmp.ne.s32.totalorder %s196, %s197
      %p209 = scmp.eq.s32.totalorder %s40, 1
      %p210 = por %p208, %p209
      %p212 = scmp.ne.s32.totalorder %s197, %s211
      %p213 = scmp.eq.s32.totalorder %s40, 0
      %p214 = por %p212, %p213
      %s216 = sadd.s32 %s215, 1
      %p219 = scmp.eq.s32.totalorder %s34, 1
      %p220 = scmp.ne.s32.totalorder %s215, %s217
      %p221 = scmp.eq.s32.totalorder %s34, 0
      %p222 = por %p220, %p221
      %p223 = scmp.ne.s32.totalorder %s215, %s217
      %p224 = scmp.eq.s32.totalorder %s39, 1
      %p225 = por %p223, %p224
      %p226 = scmp.ne.s32.totalorder %s217, %s218
      %p227 = scmp.eq.s32.totalorder %s39, 0
      %p228 = por %p226, %p227
      %p229 = scmp.ne.s32.totalorder %s217, %s218
      %p230 = scmp.eq.s32.totalorder %s40, 1
      %p231 = por %p229, %p230
      %p233 = scmp.ne.s32.totalorder %s218, %s232
      %p234 = scmp.eq.s32.totalorder %s40, 0
      %p235 = por %p233, %p234
      %s237 = sadd.s32 %s236, 1
      %p240 = scmp.eq.s32.totalorder %s34, 1
      %p241 = scmp.ne.s32.totalorder %s236, %s238
      %p242 = scmp.eq.s32.totalorder %s34, 0
      %p243 = por %p241, %p242
      %p244 = scmp.ne.s32.totalorder %s236, %s238
      %p245 = scmp.eq.s32.totalorder %s39, 1
      %p246 = por %p244, %p245
      %p247 = scmp.ne.s32.totalorder %s238, %s239
      %p248 = scmp.eq.s32.totalorder %s39, 0
      %p249 = por %p247, %p248
      %p250 = scmp.ne.s32.totalorder %s238, %s239
      %p251 = scmp.eq.s32.totalorder %s40, 1
      %p252 = por %p250, %p251
      %p254 = scmp.ne.s32.totalorder %s239, %s253
      %p255 = scmp.eq.s32.totalorder %s40, 0
      %p256 = por %p254, %p255
      %s258 = sadd.s32 %s257, 1
      %p261 = scmp.eq.s32.totalorder %s34, 1
      %p262 = scmp.ne.s32.totalorder %s257, %s259
      %p263 = scmp.eq.s32.totalorder %s34, 0
      %p264 = por %p262, %p263
      %p265 = scmp.ne.s32.totalorder %s257, %s259
      %p266 = scmp.eq.s32.totalorder %s39, 1
      %p267 = por %p265, %p266
      %p268 = scmp.ne.s32.totalorder %s259, %s260
      %p269 = scmp.eq.s32.totalorder %s39, 0
      %p270 = por %p268, %p269
      %p271 = scmp.ne.s32.totalorder %s259, %s260
      %p272 = scmp.eq.s32.totalorder %s40, 1
      %p273 = por %p271, %p272
      %p275 = scmp.ne.s32.totalorder %s260, %s274
      %p276 = scmp.eq.s32.totalorder %s40, 0
      %p277 = por %p275, %p276
      %s279 = sadd.s32 %s278, 1
      %p282 = scmp.eq.s32.totalorder %s34, 1
      %p283 = scmp.ne.s32.totalorder %s278, %s280
      %p284 = scmp.eq.s32.totalorder %s34, 0
      %p285 = por %p283, %p284
      %p286 = scmp.ne.s32.totalorder %s278, %s280
      %p287 = scmp.eq.s32.totalorder %s39, 1
      %p288 = por %p286, %p287
      %p289 = scmp.ne.s32.totalorder %s280, %s281
      %p290 = scmp.eq.s32.totalorder %s39, 0
      %p291 = por %p289, %p290
      %p292 = scmp.ne.s32.totalorder %s280, %s281
      %p293 = scmp.eq.s32.totalorder %s40, 1
      %p294 = por %p292, %p293
      %p296 = scmp.ne.s32.totalorder %s281, %s295
      %p297 = scmp.eq.s32.totalorder %s40, 0
      %p298 = por %p296, %p297
      %s300 = sadd.s32 %s299, 1
      %p303 = scmp.eq.s32.totalorder %s34, 1
      %p304 = scmp.ne.s32.totalorder %s299, %s301
      %p305 = scmp.eq.s32.totalorder %s34, 0
      %p306 = por %p304, %p305
      %p307 = scmp.ne.s32.totalorder %s299, %s301
      %p308 = scmp.eq.s32.totalorder %s39, 1
      %p309 = por %p307, %p308
      %p310 = scmp.ne.s32.totalorder %s301, %s302
      %p311 = scmp.eq.s32.totalorder %s39, 0
      %p312 = por %p310, %p311
      %p313 = scmp.ne.s32.totalorder %s301, %s302
      %p314 = scmp.eq.s32.totalorder %s40, 1
      %p315 = por %p313, %p314
      %p317 = scmp.ne.s32.totalorder %s302, %s316
      %p318 = scmp.eq.s32.totalorder %s40, 0
      %p319 = por %p317, %p318
      %s321 = sadd.s32 %s320, 1
      %p324 = scmp.eq.s32.totalorder %s34, 1
      %p325 = scmp.ne.s32.totalorder %s320, %s322
      %p326 = scmp.eq.s32.totalorder %s34, 0
      %p327 = por %p325, %p326
      %p328 = scmp.ne.s32.totalorder %s320, %s322
      %p329 = scmp.eq.s32.totalorder %s39, 1
      %p330 = por %p328, %p329
      %p331 = scmp.ne.s32.totalorder %s322, %s323
      %p332 = scmp.eq.s32.totalorder %s39, 0
      %p333 = por %p331, %p332
      %p334 = scmp.ne.s32.totalorder %s322, %s323
      %p335 = scmp.eq.s32.totalorder %s40, 1
      %p336 = por %p334, %p335
      %p338 = scmp.ne.s32.totalorder %s323, %s337
      %p339 = scmp.eq.s32.totalorder %s40, 0
      %p340 = por %p338, %p339
      %s342 = sadd.s32 %s341, 1
      %p345 = scmp.eq.s32.totalorder %s34, 1
      %p346 = scmp.ne.s32.totalorder %s341, %s343
      %p347 = scmp.eq.s32.totalorder %s34, 0
      %p348 = por %p346, %p347
      %p349 = scmp.ne.s32.totalorder %s341, %s343
      %p350 = scmp.eq.s32.totalorder %s39, 1
      %p351 = por %p349, %p350
      %p352 = scmp.ne.s32.totalorder %s343, %s344
      %p353 = scmp.eq.s32.totalorder %s39, 0
      %p354 = por %p352, %p353
      %p355 = scmp.ne.s32.totalorder %s343, %s344
      %p356 = scmp.eq.s32.totalorder %s40, 1
      %p357 = por %p355, %p356
      %p359 = scmp.ne.s32.totalorder %s344, %s358
      %p360 = scmp.eq.s32.totalorder %s40, 0
      %p361 = por %p359, %p360
      %s363 = sadd.s32 %s362, 1
      %p366 = scmp.eq.s32.totalorder %s34, 1
      %p367 = scmp.ne.s32.totalorder %s362, %s364
      %p368 = scmp.eq.s32.totalorder %s34, 0
      %p369 = por %p367, %p368
      %p370 = scmp.ne.s32.totalorder %s362, %s364
      %p371 = scmp.eq.s32.totalorder %s39, 1
      %p372 = por %p370, %p371
      %p373 = scmp.ne.s32.totalorder %s364, %s365
      %p374 = scmp.eq.s32.totalorder %s39, 0
      %p375 = por %p373, %p374
      %p376 = scmp.ne.s32.totalorder %s364, %s365
      %p377 = scmp.eq.s32.totalorder %s40, 1
      %p378 = por %p376, %p377
      %p380 = scmp.ne.s32.totalorder %s365, %s379
      %p381 = scmp.eq.s32.totalorder %s40, 0
      %p382 = por %p380, %p381
      %s384 = sadd.s32 %s383, 1
      %p387 = scmp.eq.s32.totalorder %s34, 1
      %p388 = scmp.ne.s32.totalorder %s383, %s385
      %p389 = scmp.eq.s32.totalorder %s34, 0
      %p390 = por %p388, %p389
      %p391 = scmp.ne.s32.totalorder %s383, %s385
      %p392 = scmp.eq.s32.totalorder %s39, 1
      %p393 = por %p391, %p392
      %p394 = scmp.ne.s32.totalorder %s385, %s386
      %p395 = scmp.eq.s32.totalorder %s39, 0
      %p396 = por %p394, %p395
      %p397 = scmp.ne.s32.totalorder %s385, %s386
      %p398 = scmp.eq.s32.totalorder %s40, 1
      %p399 = por %p397, %p398
      %p401 = scmp.ne.s32.totalorder %s386, %s400
      %p402 = scmp.eq.s32.totalorder %s40, 0
      %p403 = por %p401, %p402
      %s404 = ssub.s32 %s34, %s41
      %p405 = scmp.eq.s32.totalorder %s404, 0
      %s407 = sadd.s32 %s406, 1
      %s408 = scalar_select %p405, %s406, %s407
      %p411 = pneg %p405
      %p412 = scmp.eq.s32.totalorder %s34, 1
      %p413 = por %p411, %p412
      %p414 = scmp.ne.s32.totalorder %s406, %s409
      %p415 = scmp.eq.s32.totalorder %s34, 0
      %p416 = por %p414, %p415
      %p417 = scmp.ne.s32.totalorder %s406, %s409
      %p418 = scmp.eq.s32.totalorder %s39, 1
      %p419 = por %p417, %p418
      %p420 = scmp.ne.s32.totalorder %s409, %s410
      %p421 = scmp.eq.s32.totalorder %s39, 0
      %p422 = por %p420, %p421
      %p423 = scmp.ne.s32.totalorder %s409, %s410
      %p424 = scmp.eq.s32.totalorder %s40, 1
      %p425 = por %p423, %p424
      %p427 = scmp.ne.s32.totalorder %s410, %s426
      %p428 = scmp.eq.s32.totalorder %s40, 0
      %p429 = por %p427, %p428
      %p430 = scmp.le.s32.totalorder 1, %s34
      %p431 = scmp.lt.s32.totalorder %s34, 3
      %p432 = pnand %p430, %p431
      %p433 = pneg %p432
      // Predicated region
      $region9: #{tpu_custom_call.1} parent=5 // pred_check
        _
      $region10: #{tpu_custom_call.1} parent=5 // pred_check_branch
        %435 = sbr.rel (%p432) target = $region12
      $region11: #{tpu_custom_call.1} parent=5 // pred_region
        %s436 = ssub.s32 %s34, 1
        // Predicated region
        $region13: #{tpu_custom_call.1} parent=11 // pred_check
          %p437 = pneg %p81
        $region14: #{tpu_custom_call.1} parent=11 // pred_check_branch
          %439 = sbr.rel (%p437) target = $region16
        $region15: #{tpu_custom_call.1} parent=11 // pred_region
          %441 = vsyncadd [#allocation6], 0
          %s442 = sshll.u32 %s1, 4
          %s443 = int_to_ptr.hbm [resolvable:$true] %s442
          %s444 = sshll.u32 [#allocation5], 4
          %s445 = int_to_ptr.vmem [resolvable:$true] %s444
          %450 = dma.hbm_to_vmem [thread:$0]  %s443, 4096, %s445, [#allocation6], 128, 128, 8
        $region16: #{tpu_custom_call.1} parent=11 // pred_fallthru
          _
        // Predicated region
        $region17: #{tpu_custom_call.1} parent=11 // pred_check
          %p451 = pneg %p102
        $region18: #{tpu_custom_call.1} parent=11 // pred_check_branch
          %453 = sbr.rel (%p451) target = $region20
        $region19: #{tpu_custom_call.1} parent=11 // pred_region
          %455 = vsyncadd [#allocation6], 0
          %s457 = sshll.u32 %s2, 4
          %s458 = int_to_ptr.hbm [resolvable:$true] %s457
          %s459 = sshll.u32 [#allocation7], 4
          %s460 = int_to_ptr.vmem [resolvable:$true] %s459
          %462 = dma.hbm_to_vmem [thread:$0]  %s458, 32, %s460, [#allocation6]
        $region20: #{tpu_custom_call.1} parent=11 // pred_fallthru
          _
        // Predicated region
        $region21: #{tpu_custom_call.1} parent=11 // pred_check
          %p463 = pneg %p123
        $region22: #{tpu_custom_call.1} parent=11 // pred_check_branch
          %465 = sbr.rel (%p463) target = $region24
        $region23: #{tpu_custom_call.1} parent=11 // pred_region
          %467 = vsyncadd [#allocation9], 0
          %s468 = sshll.u32 %s3, 4
          %s469 = int_to_ptr.hbm [resolvable:$true] %s468
          %s470 = sshll.u32 [#allocation8], 4
          %s471 = int_to_ptr.vmem [resolvable:$true] %s470
          %476 = dma.hbm_to_vmem [thread:$0]  %s469, 4096, %s471, [#allocation9], 128, 128, 8
        $region24: #{tpu_custom_call.1} parent=11 // pred_fallthru
          _
        // Predicated region
        $region25: #{tpu_custom_call.1} parent=11 // pred_check
          %p477 = pneg %p144
        $region26: #{tpu_custom_call.1} parent=11 // pred_check_branch
          %479 = sbr.rel (%p477) target = $region28
        $region27: #{tpu_custom_call.1} parent=11 // pred_region
          _
        $region28: #{tpu_custom_call.1} parent=11 // pred_fallthru
          _
        // Predicated region
        $region29: #{tpu_custom_call.1} parent=11 // pred_check
          %p480 = pneg %p165
        $region30: #{tpu_custom_call.1} parent=11 // pred_check_branch
          %482 = sbr.rel (%p480) target = $region32
        $region31: #{tpu_custom_call.1} parent=11 // pred_region
          %484 = vsyncadd [#allocation9], 0
          %s485 = sshll.u32 %s5, 4
          %s486 = int_to_ptr.hbm [resolvable:$true] %s485
          %s487 = sshll.u32 [#allocation10], 4
          %s488 = int_to_ptr.vmem [resolvable:$true] %s487
          %493 = dma.hbm_to_vmem [thread:$0]  %s486, 4096, %s488, [#allocation9], 128, 128, 8
        $region32: #{tpu_custom_call.1} parent=11 // pred_fallthru
          _
        // Predicated region
        $region33: #{tpu_custom_call.1} parent=11 // pred_check
          %p494 = pneg %p186
        $region34: #{tpu_custom_call.1} parent=11 // pred_check_branch
          %496 = sbr.rel (%p494) target = $region36
        $region35: #{tpu_custom_call.1} parent=11 // pred_region
          _
        $region36: #{tpu_custom_call.1} parent=11 // pred_fallthru
          _
        // Predicated region
        $region37: #{tpu_custom_call.1} parent=11 // pred_check
          %p497 = pneg %p207
        $region38: #{tpu_custom_call.1} parent=11 // pred_check_branch
          %499 = sbr.rel (%p497) target = $region40
        $region39: #{tpu_custom_call.1} parent=11 // pred_region
          %501 = vsyncadd [#allocation12], 0
          %s502 = sshll.u32 %s7, 4
          %s503 = int_to_ptr.hbm [resolvable:$true] %s502
          %s504 = sshll.u32 [#allocation11], 4
          %s505 = int_to_ptr.vmem [resolvable:$true] %s504
          %510 = dma.hbm_to_vmem [thread:$0]  %s503, 4096, %s505, [#allocation12], 128, 128, 8
        $region40: #{tpu_custom_call.1} parent=11 // pred_fallthru
          _
        // Predicated region
        $region41: #{tpu_custom_call.1} parent=11 // pred_check
          %p511 = pneg %p228
        $region42: #{tpu_custom_call.1} parent=11 // pred_check_branch
          %513 = sbr.rel (%p511) target = $region44
        $region43: #{tpu_custom_call.1} parent=11 // pred_region
          _
        $region44: #{tpu_custom_call.1} parent=11 // pred_fallthru
          _
        // Predicated region
        $region45: #{tpu_custom_call.1} parent=11 // pred_check
          %p514 = pneg %p249
        $region46: #{tpu_custom_call.1} parent=11 // pred_check_branch
          %516 = sbr.rel (%p514) target = $region48
        $region47: #{tpu_custom_call.1} parent=11 // pred_region
          %518 = vsyncadd [#allocation12], 0
          %s519 = sshll.u32 %s9, 4
          %s520 = int_to_ptr.hbm [resolvable:$true] %s519
          %s521 = sshll.u32 [#allocation13], 4
          %s522 = int_to_ptr.vmem [resolvable:$true] %s521
          %527 = dma.hbm_to_vmem [thread:$0]  %s520, 2048, %s522, [#allocation12], 64, 64, 4
        $region48: #{tpu_custom_call.1} parent=11 // pred_fallthru
          _
        // Predicated region
        $region49: #{tpu_custom_call.1} parent=11 // pred_check
          %p528 = pneg %p270
        $region50: #{tpu_custom_call.1} parent=11 // pred_check_branch
          %530 = sbr.rel (%p528) target = $region52
        $region51: #{tpu_custom_call.1} parent=11 // pred_region
          _
        $region52: #{tpu_custom_call.1} parent=11 // pred_fallthru
          _
        // Predicated region
        $region53: #{tpu_custom_call.1} parent=11 // pred_check
          %p531 = pneg %p291
        $region54: #{tpu_custom_call.1} parent=11 // pred_check_branch
          %533 = sbr.rel (%p531) target = $region56
        $region55: #{tpu_custom_call.1} parent=11 // pred_region
          %535 = vsyncadd [#allocation15], 0
          %s536 = sshll.u32 %s11, 4
          %s537 = int_to_ptr.hbm [resolvable:$true] %s536
          %s538 = sshll.u32 [#allocation14], 4
          %s539 = int_to_ptr.vmem [resolvable:$true] %s538
          %544 = dma.hbm_to_vmem [thread:$0]  %s537, 1024, %s539, [#allocation15], 64, 64, 4
        $region56: #{tpu_custom_call.1} parent=11 // pred_fallthru
          _
        // Predicated region
        $region57: #{tpu_custom_call.1} parent=11 // pred_check
          %p545 = pneg %p312
        $region58: #{tpu_custom_call.1} parent=11 // pred_check_branch
          %547 = sbr.rel (%p545) target = $region60
        $region59: #{tpu_custom_call.1} parent=11 // pred_region
          _
        $region60: #{tpu_custom_call.1} parent=11 // pred_fallthru
          _
        // Predicated region
        $region61: #{tpu_custom_call.1} parent=11 // pred_check
          %p548 = pneg %p333
        $region62: #{tpu_custom_call.1} parent=11 // pred_check_branch
          %550 = sbr.rel (%p548) target = $region64
        $region63: #{tpu_custom_call.1} parent=11 // pred_region
          %552 = vsyncadd [#allocation15], 0
          %s553 = sshll.u32 %s13, 4
          %s554 = int_to_ptr.hbm [resolvable:$true] %s553
          %s555 = sshll.u32 [#allocation16], 4
          %s556 = int_to_ptr.vmem [resolvable:$true] %s555
          %561 = dma.hbm_to_vmem [thread:$0]  %s554, 1024, %s556, [#allocation15], 64, 64, 4
        $region64: #{tpu_custom_call.1} parent=11 // pred_fallthru
          _
        // Predicated region
        $region65: #{tpu_custom_call.1} parent=11 // pred_check
          %p562 = pneg %p354
        $region66: #{tpu_custom_call.1} parent=11 // pred_check_branch
          %564 = sbr.rel (%p562) target = $region68
        $region67: #{tpu_custom_call.1} parent=11 // pred_region
          _
        $region68: #{tpu_custom_call.1} parent=11 // pred_fallthru
          _
        // Predicated region
        $region69: #{tpu_custom_call.1} parent=11 // pred_check
          %p565 = pneg %p375
        $region70: #{tpu_custom_call.1} parent=11 // pred_check_branch
          %567 = sbr.rel (%p565) target = $region72
        $region71: #{tpu_custom_call.1} parent=11 // pred_region
          %569 = vsyncadd [#allocation18], 0
          %s570 = sshll.u32 %s15, 4
          %s571 = int_to_ptr.hbm [resolvable:$true] %s570
          %s572 = sshll.u32 [#allocation17], 4
          %s573 = int_to_ptr.vmem [resolvable:$true] %s572
          %578 = dma.hbm_to_vmem [thread:$0]  %s571, 1024, %s573, [#allocation18], 64, 64, 4
        $region72: #{tpu_custom_call.1} parent=11 // pred_fallthru
          _
        // Predicated region
        $region73: #{tpu_custom_call.1} parent=11 // pred_check
          %p579 = pneg %p396
        $region74: #{tpu_custom_call.1} parent=11 // pred_check_branch
          %581 = sbr.rel (%p579) target = $region76
        $region75: #{tpu_custom_call.1} parent=11 // pred_region
          _
        $region76: #{tpu_custom_call.1} parent=11 // pred_fallthru
          _
      $region12: #{tpu_custom_call.1} parent=5 // pred_fallthru
        _
      %p582 = scmp.lt.s32.totalorder %s34, 2
      // Predicated region
      $region77: #{tpu_custom_call.1} parent=5 // pred_check
        %p583 = pneg %p582
      $region78: #{tpu_custom_call.1} parent=5 // pred_check_branch
        %585 = sbr.rel (%p583) target = $region80
      $region79: #{tpu_custom_call.1} parent=5 // pred_region
        // Predicated region
        $region81: #{tpu_custom_call.1} parent=79 // pred_check
          %p586 = pneg %p54
        $region82: #{tpu_custom_call.1} parent=79 // pred_check_branch
          %588 = sbr.rel (%p586) target = $region84
        $region83: #{tpu_custom_call.1} parent=79 // pred_region
          %s589 = sand.u32 %s44, 1
          %s590 = scalar_lea.sflag [#allocation3], %s589
          %s591 = sand.u32 %s44, 1
          %s592 = smul.addr %s591, 256
          %s593 = scalar_lea.vmem [#allocation2], %s592
          %s594 = smul.u32 32, %s34
          %596 = vsyncadd %s590, 0
          %s597 = smul.addr %s594, 2
          %s598 = smul.addr %s597, 4
          %s599 = scalar_lea.hbm %s0, %s598
          %s600 = sshll.u32 %s599, 4
          %s601 = int_to_ptr.hbm [resolvable:$true] %s600
          %s602 = sshll.u32 %s593, 4
          %s603 = int_to_ptr.vmem [resolvable:$true] %s602
          %608 = dma.hbm_to_vmem [thread:$0]  %s601, 4096, %s603, %s590, 128, 128, 8
        $region84: #{tpu_custom_call.1} parent=79 // pred_fallthru
          _
      $region80: #{tpu_custom_call.1} parent=5 // pred_fallthru
        _
      %p609 = scmp.le.s32.totalorder 1, %s34
      %p610 = scmp.lt.s32.totalorder %s34, 3
      %p611 = pnand %p609, %p610
      %p612 = pneg %p611
      // Predicated region
      $region85: #{tpu_custom_call.1} parent=5 // pred_check
        _
      $region86: #{tpu_custom_call.1} parent=5 // pred_check_branch
        %614 = sbr.rel (%p611) target = $region88
      $region87: #{tpu_custom_call.1} parent=5 // pred_region
        %s615 = ssub.s32 %s34, 1
        %s616 = sand.u32 %s47, 1
        %s617 = scalar_lea.sflag [#allocation3], %s616
        %s618 = sand.u32 %s47, 1
        %s619 = smul.addr %s618, 256
        %s620 = scalar_lea.vmem [#allocation2], %s619
        // Predicated region
        $region89: #{tpu_custom_call.1} parent=87 // pred_check
          %p621 = pneg %p60
        $region90: #{tpu_custom_call.1} parent=87 // pred_check_branch
          %623 = sbr.rel (%p621) target = $region92
        $region91: #{tpu_custom_call.1} parent=87 // pred_region
          %625 = dma.done %s617, 4096
        $region92: #{tpu_custom_call.1} parent=87 // pred_fallthru
          _
        // Predicated region
        $region93: #{tpu_custom_call.1} parent=87 // pred_check
          %p626 = pneg %p81
        $region94: #{tpu_custom_call.1} parent=87 // pred_check_branch
          %628 = sbr.rel (%p626) target = $region96
        $region95: #{tpu_custom_call.1} parent=87 // pred_region
          %630 = dma.done [#allocation6], 4096
        $region96: #{tpu_custom_call.1} parent=87 // pred_fallthru
          _
        // Predicated region
        $region97: #{tpu_custom_call.1} parent=87 // pred_check
          %p631 = pneg %p102
        $region98: #{tpu_custom_call.1} parent=87 // pred_check_branch
          %633 = sbr.rel (%p631) target = $region100
        $region99: #{tpu_custom_call.1} parent=87 // pred_region
          %635 = dma.done [#allocation6], 32
        $region100: #{tpu_custom_call.1} parent=87 // pred_fallthru
          _
        // Predicated region
        $region101: #{tpu_custom_call.1} parent=87 // pred_check
          %p636 = pneg %p123
        $region102: #{tpu_custom_call.1} parent=87 // pred_check_branch
          %638 = sbr.rel (%p636) target = $region104
        $region103: #{tpu_custom_call.1} parent=87 // pred_region
          %640 = dma.done [#allocation9], 4096
        $region104: #{tpu_custom_call.1} parent=87 // pred_fallthru
          _
        // Predicated region
        $region105: #{tpu_custom_call.1} parent=87 // pred_check
          %p641 = pneg %p165
        $region106: #{tpu_custom_call.1} parent=87 // pred_check_branch
          %643 = sbr.rel (%p641) target = $region108
        $region107: #{tpu_custom_call.1} parent=87 // pred_region
          %645 = dma.done [#allocation9], 4096
        $region108: #{tpu_custom_call.1} parent=87 // pred_fallthru
          _
        // Predicated region
        $region109: #{tpu_custom_call.1} parent=87 // pred_check
          %p646 = pneg %p207
        $region110: #{tpu_custom_call.1} parent=87 // pred_check_branch
          %648 = sbr.rel (%p646) target = $region112
        $region111: #{tpu_custom_call.1} parent=87 // pred_region
          %650 = dma.done [#allocation12], 4096
        $region112: #{tpu_custom_call.1} parent=87 // pred_fallthru
          _
        // Predicated region
        $region113: #{tpu_custom_call.1} parent=87 // pred_check
          %p651 = pneg %p249
        $region114: #{tpu_custom_call.1} parent=87 // pred_check_branch
          %653 = sbr.rel (%p651) target = $region116
        $region115: #{tpu_custom_call.1} parent=87 // pred_region
          %655 = dma.done [#allocation12], 2048
        $region116: #{tpu_custom_call.1} parent=87 // pred_fallthru
          _
        // Predicated region
        $region117: #{tpu_custom_call.1} parent=87 // pred_check
          %p656 = pneg %p291
        $region118: #{tpu_custom_call.1} parent=87 // pred_check_branch
          %658 = sbr.rel (%p656) target = $region120
        $region119: #{tpu_custom_call.1} parent=87 // pred_region
          %660 = dma.done [#allocation15], 1024
        $region120: #{tpu_custom_call.1} parent=87 // pred_fallthru
          _
        // Predicated region
        $region121: #{tpu_custom_call.1} parent=87 // pred_check
          %p661 = pneg %p333
        $region122: #{tpu_custom_call.1} parent=87 // pred_check_branch
          %663 = sbr.rel (%p661) target = $region124
        $region123: #{tpu_custom_call.1} parent=87 // pred_region
          %665 = dma.done [#allocation15], 1024
        $region124: #{tpu_custom_call.1} parent=87 // pred_fallthru
          _
        // Predicated region
        $region125: #{tpu_custom_call.1} parent=87 // pred_check
          %p666 = pneg %p375
        $region126: #{tpu_custom_call.1} parent=87 // pred_check_branch
          %668 = sbr.rel (%p666) target = $region128
        $region127: #{tpu_custom_call.1} parent=87 // pred_region
          %670 = dma.done [#allocation18], 1024
        $region128: #{tpu_custom_call.1} parent=87 // pred_fallthru
          _
        %s671 = sand.u32 %s47, 1
        %s672 = scalar_lea.sflag [#allocation3], %s671
        %s673 = sand.u32 %s47, 1
        %s674 = smul.addr %s673, 256
        %s675 = scalar_lea.vmem [#allocation2], %s674
        %p676 = pneg %p60
        %p677 = pneg %p57
        %p678 = pneg %p81
        %p679 = pneg %p78
        %p680 = pneg %p102
        %p681 = pneg %p99
        %p682 = pneg %p123
        %p683 = pneg %p120
        %p684 = pneg %p144
        %p685 = pneg %p141
        %p686 = pneg %p165
        %p687 = pneg %p162
        %p688 = pneg %p186
        %p689 = pneg %p183
        %p690 = pneg %p207
        %p691 = pneg %p204
        %p692 = pneg %p228
        %p693 = pneg %p225
        %p694 = pneg %p249
        %p695 = pneg %p246
        %p696 = pneg %p270
        %p697 = pneg %p267
        %p698 = pneg %p291
        %p699 = pneg %p288
        %p700 = pneg %p312
        %p701 = pneg %p309
        %p702 = pneg %p333
        %p703 = pneg %p330
        %p704 = pneg %p354
        %p705 = pneg %p351
        %p706 = pneg %p375
        %p707 = pneg %p372
        %p708 = pneg %p396
        %p709 = pneg %p393
        %p710 = pneg %p422
        %p711 = pneg %p419
        %s712 = sand.u32 %s409, 1
        %s713 = scalar_lea.sflag [#allocation4], %s712
        %s714 = sand.u32 %s409, 1
        %s715 = smul.addr %s714, 256
        %s716 = scalar_lea.vmem [#allocation19], %s715
        %s717 = smul.u32 32, %s39
        %s718 = smul.u32 32, %s39
        %v719 = vld [vmem:[%s620] sm:$0xff]
        %v720 = vld [vmem:[%s620 + $0x8] sm:$0xff]
        %v721 = vld [vmem:[%s620 + $0x10] sm:$0xff]
        %v722 = vld [vmem:[%s620 + $0x18] sm:$0xff]
        %v723 = vld [vmem:[%s620 + $0x20] sm:$0xff]
        %v724 = vld [vmem:[%s620 + $0x28] sm:$0xff]
        %v725 = vld [vmem:[%s620 + $0x30] sm:$0xff]
        %v726 = vld [vmem:[%s620 + $0x38] sm:$0xff]
        %v727 = vld [vmem:[%s620 + $0x40] sm:$0xff]
        %v728 = vld [vmem:[%s620 + $0x48] sm:$0xff]
        %v729 = vld [vmem:[%s620 + $0x50] sm:$0xff]
        %v730 = vld [vmem:[%s620 + $0x58] sm:$0xff]
        %v731 = vld [vmem:[%s620 + $0x60] sm:$0xff]
        %v732 = vld [vmem:[%s620 + $0x68] sm:$0xff]
        %v733 = vld [vmem:[%s620 + $0x70] sm:$0xff]
        %v734 = vld [vmem:[%s620 + $0x78] sm:$0xff]
        %v735 = vld [vmem:[%s620 + $0x80] sm:$0xff]
        %v736 = vld [vmem:[%s620 + $0x88] sm:$0xff]
        %v737 = vld [vmem:[%s620 + $0x90] sm:$0xff]
        %v738 = vld [vmem:[%s620 + $0x98] sm:$0xff]
        %v739 = vld [vmem:[%s620 + $0xa0] sm:$0xff]
        %v740 = vld [vmem:[%s620 + $0xa8] sm:$0xff]
        %v741 = vld [vmem:[%s620 + $0xb0] sm:$0xff]
        %v742 = vld [vmem:[%s620 + $0xb8] sm:$0xff]
        %v743 = vld [vmem:[%s620 + $0xc0] sm:$0xff]
        %v744 = vld [vmem:[%s620 + $0xc8] sm:$0xff]
        %v745 = vld [vmem:[%s620 + $0xd0] sm:$0xff]
        %v746 = vld [vmem:[%s620 + $0xd8] sm:$0xff]
        %v747 = vld [vmem:[%s620 + $0xe0] sm:$0xff]
        %v748 = vld [vmem:[%s620 + $0xe8] sm:$0xff]
        %v749 = vld [vmem:[%s620 + $0xf0] sm:$0xff]
        %v750 = vld [vmem:[%s620 + $0xf8] sm:$0xff]
        %v751 = vld [vmem:[#allocation5] sm:$0xff]
        %v752 = vld [vmem:[#allocation5 + $0x8] sm:$0xff]
        %v753 = vld [vmem:[#allocation5 + $0x10] sm:$0xff]
        %v754 = vld [vmem:[#allocation5 + $0x18] sm:$0xff]
        %v755 = vld [vmem:[#allocation5 + $0x20] sm:$0xff]
        %v756 = vld [vmem:[#allocation5 + $0x28] sm:$0xff]
        %v757 = vld [vmem:[#allocation5 + $0x30] sm:$0xff]
        %v758 = vld [vmem:[#allocation5 + $0x38] sm:$0xff]
        %v759 = vld [vmem:[#allocation5 + $0x40] sm:$0xff]
        %v760 = vld [vmem:[#allocation5 + $0x48] sm:$0xff]
        %v761 = vld [vmem:[#allocation5 + $0x50] sm:$0xff]
        %v762 = vld [vmem:[#allocation5 + $0x58] sm:$0xff]
        %v763 = vld [vmem:[#allocation5 + $0x60] sm:$0xff]
        %v764 = vld [vmem:[#allocation5 + $0x68] sm:$0xff]
        %v765 = vld [vmem:[#allocation5 + $0x70] sm:$0xff]
        %v766 = vld [vmem:[#allocation5 + $0x78] sm:$0xff]
        %v767 = vld [vmem:[#allocation5 + $0x80] sm:$0xff]
        %v768 = vld [vmem:[#allocation5 + $0x88] sm:$0xff]
        %v769 = vld [vmem:[#allocation5 + $0x90] sm:$0xff]
        %v770 = vld [vmem:[#allocation5 + $0x98] sm:$0xff]
        %v771 = vld [vmem:[#allocation5 + $0xa0] sm:$0xff]
        %v772 = vld [vmem:[#allocation5 + $0xa8] sm:$0xff]
        %v773 = vld [vmem:[#allocation5 + $0xb0] sm:$0xff]
        %v774 = vld [vmem:[#allocation5 + $0xb8] sm:$0xff]
        %v775 = vld [vmem:[#allocation5 + $0xc0] sm:$0xff]
        %v776 = vld [vmem:[#allocation5 + $0xc8] sm:$0xff]
        %v777 = vld [vmem:[#allocation5 + $0xd0] sm:$0xff]
        %v778 = vld [vmem:[#allocation5 + $0xd8] sm:$0xff]
        %v779 = vld [vmem:[#allocation5 + $0xe0] sm:$0xff]
        %v780 = vld [vmem:[#allocation5 + $0xe8] sm:$0xff]
        %v781 = vld [vmem:[#allocation5 + $0xf0] sm:$0xff]
        %v782 = vld [vmem:[#allocation5 + $0xf8] sm:$0xff]
        %v783 = vld [vmem:[#allocation7] sm:$0x3]
        %v785 = vperm.slane %v783, 0
        %v786 = vperm.slane %v783, 1
        %v821 = vunpack.c.l.b16 %v719
        %v822 = vunpack.c.h.b16 %v719
        %v823 = vunpack.c.l.b16 %v720
        %v824 = vunpack.c.h.b16 %v720
        %v825 = vunpack.c.l.b16 %v721
        %v826 = vunpack.c.h.b16 %v721
        %v827 = vunpack.c.l.b16 %v722
        %v828 = vunpack.c.h.b16 %v722
        %v829 = vunpack.c.l.b16 %v723
        %v830 = vunpack.c.h.b16 %v723
        %v831 = vunpack.c.l.b16 %v724
        %v832 = vunpack.c.h.b16 %v724
        %v833 = vunpack.c.l.b16 %v725
        %v834 = vunpack.c.h.b16 %v725
        %v835 = vunpack.c.l.b16 %v726
        %v836 = vunpack.c.h.b16 %v726
        %v837 = vunpack.c.l.b16 %v727
        %v838 = vunpack.c.h.b16 %v727
        %v839 = vunpack.c.l.b16 %v728
        %v840 = vunpack.c.h.b16 %v728
        %v841 = vunpack.c.l.b16 %v729
        %v842 = vunpack.c.h.b16 %v729
        %v843 = vunpack.c.l.b16 %v730
        %v844 = vunpack.c.h.b16 %v730
        %v845 = vunpack.c.l.b16 %v731
        %v846 = vunpack.c.h.b16 %v731
        %v847 = vunpack.c.l.b16 %v732
        %v848 = vunpack.c.h.b16 %v732
        %v849 = vunpack.c.l.b16 %v733
        %v850 = vunpack.c.h.b16 %v733
        %v851 = vunpack.c.l.b16 %v734
        %v852 = vunpack.c.h.b16 %v734
        %v853 = vunpack.c.l.b16 %v735
        %v854 = vunpack.c.h.b16 %v735
        %v855 = vunpack.c.l.b16 %v736
        %v856 = vunpack.c.h.b16 %v736
        %v857 = vunpack.c.l.b16 %v737
        %v858 = vunpack.c.h.b16 %v737
        %v859 = vunpack.c.l.b16 %v738
        %v860 = vunpack.c.h.b16 %v738
        %v861 = vunpack.c.l.b16 %v739
        %v862 = vunpack.c.h.b16 %v739
        %v863 = vunpack.c.l.b16 %v740
        %v864 = vunpack.c.h.b16 %v740
        %v865 = vunpack.c.l.b16 %v741
        %v866 = vunpack.c.h.b16 %v741
        %v867 = vunpack.c.l.b16 %v742
        %v868 = vunpack.c.h.b16 %v742
        %v869 = vunpack.c.l.b16 %v743
        %v870 = vunpack.c.h.b16 %v743
        %v871 = vunpack.c.l.b16 %v744
        %v872 = vunpack.c.h.b16 %v744
        %v873 = vunpack.c.l.b16 %v745
        %v874 = vunpack.c.h.b16 %v745
        %v875 = vunpack.c.l.b16 %v746
        %v876 = vunpack.c.h.b16 %v746
        %v877 = vunpack.c.l.b16 %v747
        %v878 = vunpack.c.h.b16 %v747
        %v879 = vunpack.c.l.b16 %v748
        %v880 = vunpack.c.h.b16 %v748
        %v881 = vunpack.c.l.b16 %v749
        %v882 = vunpack.c.h.b16 %v749
        %v883 = vunpack.c.l.b16 %v750
        %v884 = vunpack.c.h.b16 %v750
        %v885 = vpack.c.b16 %v823, %v821
        %v886 = vpack.c.b16 %v824, %v822
        %v887 = vpack.c.b16 %v827, %v825
        %v888 = vpack.c.b16 %v828, %v826
        %v889 = vpack.c.b16 %v831, %v829
        %v890 = vpack.c.b16 %v832, %v830
        %v891 = vpack.c.b16 %v835, %v833
        %v892 = vpack.c.b16 %v836, %v834
        %v893 = vpack.c.b16 %v839, %v837
        %v894 = vpack.c.b16 %v840, %v838
        %v895 = vpack.c.b16 %v843, %v841
        %v896 = vpack.c.b16 %v844, %v842
        %v897 = vpack.c.b16 %v847, %v845
        %v898 = vpack.c.b16 %v848, %v846
        %v899 = vpack.c.b16 %v851, %v849
        %v900 = vpack.c.b16 %v852, %v850
        %v901 = vpack.c.b16 %v855, %v853
        %v902 = vpack.c.b16 %v856, %v854
        %v903 = vpack.c.b16 %v859, %v857
        %v904 = vpack.c.b16 %v860, %v858
        %v905 = vpack.c.b16 %v863, %v861
        %v906 = vpack.c.b16 %v864, %v862
        %v907 = vpack.c.b16 %v867, %v865
        %v908 = vpack.c.b16 %v868, %v866
        %v909 = vpack.c.b16 %v871, %v869
        %v910 = vpack.c.b16 %v872, %v870
        %v911 = vpack.c.b16 %v875, %v873
        %v912 = vpack.c.b16 %v876, %v874
        %v913 = vpack.c.b16 %v879, %v877
        %v914 = vpack.c.b16 %v880, %v878
        %v915 = vpack.c.b16 %v883, %v881
        %v916 = vpack.c.b16 %v884, %v882
        %v981 = vunpack.c.l.b16 %v751
        %v982 = vunpack.c.h.b16 %v751
        %v983 = vunpack.c.l.b16 %v752
        %v984 = vunpack.c.h.b16 %v752
        %v985 = vunpack.c.l.b16 %v753
        %v986 = vunpack.c.h.b16 %v753
        %v987 = vunpack.c.l.b16 %v754
        %v988 = vunpack.c.h.b16 %v754
        %v989 = vunpack.c.l.b16 %v755
        %v990 = vunpack.c.h.b16 %v755
        %v991 = vunpack.c.l.b16 %v756
        %v992 = vunpack.c.h.b16 %v756
        %v993 = vunpack.c.l.b16 %v757
        %v994 = vunpack.c.h.b16 %v757
        %v995 = vunpack.c.l.b16 %v758
        %v996 = vunpack.c.h.b16 %v758
        %v997 = vunpack.c.l.b16 %v759
        %v998 = vunpack.c.h.b16 %v759
        %v999 = vunpack.c.l.b16 %v760
        %v1000 = vunpack.c.h.b16 %v760
        %v1001 = vunpack.c.l.b16 %v761
        %v1002 = vunpack.c.h.b16 %v761
        %v1003 = vunpack.c.l.b16 %v762
        %v1004 = vunpack.c.h.b16 %v762
        %v1005 = vunpack.c.l.b16 %v763
        %v1006 = vunpack.c.h.b16 %v763
        %v1007 = vunpack.c.l.b16 %v764
        %v1008 = vunpack.c.h.b16 %v764
        %v1009 = vunpack.c.l.b16 %v765
        %v1010 = vunpack.c.h.b16 %v765
        %v1011 = vunpack.c.l.b16 %v766
        %v1012 = vunpack.c.h.b16 %v766
        %v1013 = vunpack.c.l.b16 %v767
        %v1014 = vunpack.c.h.b16 %v767
        %v1015 = vunpack.c.l.b16 %v768
        %v1016 = vunpack.c.h.b16 %v768
        %v1017 = vunpack.c.l.b16 %v769
        %v1018 = vunpack.c.h.b16 %v769
        %v1019 = vunpack.c.l.b16 %v770
        %v1020 = vunpack.c.h.b16 %v770
        %v1021 = vunpack.c.l.b16 %v771
        %v1022 = vunpack.c.h.b16 %v771
        %v1023 = vunpack.c.l.b16 %v772
        %v1024 = vunpack.c.h.b16 %v772
        %v1025 = vunpack.c.l.b16 %v773
        %v1026 = vunpack.c.h.b16 %v773
        %v1027 = vunpack.c.l.b16 %v774
        %v1028 = vunpack.c.h.b16 %v774
        %v1029 = vunpack.c.l.b16 %v775
        %v1030 = vunpack.c.h.b16 %v775
        %v1031 = vunpack.c.l.b16 %v776
        %v1032 = vunpack.c.h.b16 %v776
        %v1033 = vunpack.c.l.b16 %v777
        %v1034 = vunpack.c.h.b16 %v777
        %v1035 = vunpack.c.l.b16 %v778
        %v1036 = vunpack.c.h.b16 %v778
        %v1037 = vunpack.c.l.b16 %v779
        %v1038 = vunpack.c.h.b16 %v779
        %v1039 = vunpack.c.l.b16 %v780
        %v1040 = vunpack.c.h.b16 %v780
        %v1041 = vunpack.c.l.b16 %v781
        %v1042 = vunpack.c.h.b16 %v781
        %v1043 = vunpack.c.l.b16 %v782
        %v1044 = vunpack.c.h.b16 %v782
        %v1045 = vpack.c.b16 %v983, %v981
        %v1046 = vpack.c.b16 %v984, %v982
        %v1047 = vpack.c.b16 %v987, %v985
        %v1048 = vpack.c.b16 %v988, %v986
        %v1049 = vpack.c.b16 %v991, %v989
        %v1050 = vpack.c.b16 %v992, %v990
        %v1051 = vpack.c.b16 %v995, %v993
        %v1052 = vpack.c.b16 %v996, %v994
        %v1053 = vpack.c.b16 %v999, %v997
        %v1054 = vpack.c.b16 %v1000, %v998
        %v1055 = vpack.c.b16 %v1003, %v1001
        %v1056 = vpack.c.b16 %v1004, %v1002
        %v1057 = vpack.c.b16 %v1007, %v1005
        %v1058 = vpack.c.b16 %v1008, %v1006
        %v1059 = vpack.c.b16 %v1011, %v1009
        %v1060 = vpack.c.b16 %v1012, %v1010
        %v1061 = vpack.c.b16 %v1015, %v1013
        %v1062 = vpack.c.b16 %v1016, %v1014
        %v1063 = vpack.c.b16 %v1019, %v1017
        %v1064 = vpack.c.b16 %v1020, %v1018
        %v1065 = vpack.c.b16 %v1023, %v1021
        %v1066 = vpack.c.b16 %v1024, %v1022
        %v1067 = vpack.c.b16 %v1027, %v1025
        %v1068 = vpack.c.b16 %v1028, %v1026
        %v1069 = vpack.c.b16 %v1031, %v1029
        %v1070 = vpack.c.b16 %v1032, %v1030
        %v1071 = vpack.c.b16 %v1035, %v1033
        %v1072 = vpack.c.b16 %v1036, %v1034
        %v1073 = vpack.c.b16 %v1039, %v1037
        %v1074 = vpack.c.b16 %v1040, %v1038
        %v1075 = vpack.c.b16 %v1043, %v1041
        %v1076 = vpack.c.b16 %v1044, %v1042
        %1109 = vmatpush.bf16.msra.mxu0 %v1059
        %1110 = vmatpush.bf16.msra.mxu0 %v1057
        %1111 = vmatpush.bf16.msra.mxu0 %v1055
        %1112 = vmatpush.bf16.msra.mxu0 %v1053
        %1113 = vmatpush.bf16.msra.mxu0 %v1051
        %1114 = vmatpush.bf16.msra.mxu0 %v1049
        %1115 = vmatpush.bf16.msra.mxu0 %v1047
        %1116 = vmatpush.bf16.msra.mxu0 %v1045
        %1117 = vmatmul.bf16.gmra.mxu0 %v885
        %v1118 = vpop.f32.mrf.mxu0
        %v1119 = vadd.f32 %v785, %v1118
        %v1120 = vpop.f32.mrf.mxu0
        %v1121 = vadd.f32 %v785, %v1120
        %1122 = vmatmul.bf16.gmra.mxu0 %v887
        %v1123 = vpop.f32.mrf.mxu0
        %v1124 = vadd.f32 %v785, %v1123
        %v1125 = vpop.f32.mrf.mxu0
        %v1126 = vadd.f32 %v785, %v1125
        %1127 = vmatmul.bf16.gmra.mxu0 %v889
        %v1128 = vpop.f32.mrf.mxu0
        %v1129 = vadd.f32 %v785, %v1128
        %v1130 = vpop.f32.mrf.mxu0
        %v1131 = vadd.f32 %v785, %v1130
        %1132 = vmatmul.bf16.gmra.mxu0 %v891
        %v1133 = vpop.f32.mrf.mxu0
        %v1134 = vadd.f32 %v785, %v1133
        %v1135 = vpop.f32.mrf.mxu0
        %v1136 = vadd.f32 %v785, %v1135
        %1137 = vmatmul.bf16.gmra.mxu0 %v893
        %v1138 = vpop.f32.mrf.mxu0
        %v1139 = vadd.f32 %v785, %v1138
        %v1140 = vpop.f32.mrf.mxu0
        %v1141 = vadd.f32 %v785, %v1140
        %1142 = vmatmul.bf16.gmra.mxu0 %v895
        %v1143 = vpop.f32.mrf.mxu0
        %v1144 = vadd.f32 %v785, %v1143
        %v1145 = vpop.f32.mrf.mxu0
        %v1146 = vadd.f32 %v785, %v1145
        %1147 = vmatmul.bf16.gmra.mxu0 %v897
        %v1148 = vpop.f32.mrf.mxu0
        %v1149 = vadd.f32 %v785, %v1148
        %v1150 = vpop.f32.mrf.mxu0
        %v1151 = vadd.f32 %v785, %v1150
        %1152 = vmatmul.bf16.gmra.mxu0 %v899
        %v1153 = vpop.f32.mrf.mxu0
        %v1154 = vadd.f32 %v785, %v1153
        %v1155 = vpop.f32.mrf.mxu0
        %v1156 = vadd.f32 %v785, %v1155
        %1157 = vmatmul.bf16.gmra.mxu0 %v901
        %v1158 = vpop.f32.mrf.mxu0
        %v1159 = vadd.f32 %v785, %v1158
        %v1160 = vpop.f32.mrf.mxu0
        %v1161 = vadd.f32 %v785, %v1160
        %1162 = vmatmul.bf16.gmra.mxu0 %v903
        %v1163 = vpop.f32.mrf.mxu0
        %v1164 = vadd.f32 %v785, %v1163
        %v1165 = vpop.f32.mrf.mxu0
        %v1166 = vadd.f32 %v785, %v1165
        %1167 = vmatmul.bf16.gmra.mxu0 %v905
        %v1168 = vpop.f32.mrf.mxu0
        %v1169 = vadd.f32 %v785, %v1168
        %v1170 = vpop.f32.mrf.mxu0
        %v1171 = vadd.f32 %v785, %v1170
        %1172 = vmatmul.bf16.gmra.mxu0 %v907
        %v1173 = vpop.f32.mrf.mxu0
        %v1174 = vadd.f32 %v785, %v1173
        %v1175 = vpop.f32.mrf.mxu0
        %v1176 = vadd.f32 %v785, %v1175
        %1177 = vmatmul.bf16.gmra.mxu0 %v909
        %v1178 = vpop.f32.mrf.mxu0
        %v1179 = vadd.f32 %v785, %v1178
        %v1180 = vpop.f32.mrf.mxu0
        %v1181 = vadd.f32 %v785, %v1180
        %1182 = vmatmul.bf16.gmra.mxu0 %v911
        %v1183 = vpop.f32.mrf.mxu0
        %v1184 = vadd.f32 %v785, %v1183
        %v1185 = vpop.f32.mrf.mxu0
        %v1186 = vadd.f32 %v785, %v1185
        %1187 = vmatmul.bf16.gmra.mxu0 %v913
        %v1188 = vpop.f32.mrf.mxu0
        %v1189 = vadd.f32 %v785, %v1188
        %v1190 = vpop.f32.mrf.mxu0
        %v1191 = vadd.f32 %v785, %v1190
        %1192 = vmatmul.bf16.gmra.mxu0 %v915
        %v1193 = vpop.f32.mrf.mxu0
        %v1194 = vadd.f32 %v785, %v1193
        %v1195 = vpop.f32.mrf.mxu0
        %v1196 = vadd.f32 %v785, %v1195
        %1197 = vdwg.mxu0
        %1198 = vmatpush.bf16.msra.mxu0 %v1075
        %1199 = vmatpush.bf16.msra.mxu0 %v1073
        %1200 = vmatpush.bf16.msra.mxu0 %v1071
        %1201 = vmatpush.bf16.msra.mxu0 %v1069
        %1202 = vmatpush.bf16.msra.mxu0 %v1067
        %1203 = vmatpush.bf16.msra.mxu0 %v1065
        %1204 = vmatpush.bf16.msra.mxu0 %v1063
        %1205 = vmatpush.bf16.msra.mxu0 %v1061
        %1206 = vmatmul.bf16.gmra.mxu0 %v886
        %v1207 = vpop.f32.mrf.mxu0
        %v1208 = vadd.f32 %v1119, %v1207
        %v1209 = vpop.f32.mrf.mxu0
        %v1210 = vadd.f32 %v1121, %v1209
        %1211 = vmatmul.bf16.gmra.mxu0 %v888
        %v1212 = vpop.f32.mrf.mxu0
        %v1213 = vadd.f32 %v1124, %v1212
        %v1214 = vpop.f32.mrf.mxu0
        %v1215 = vadd.f32 %v1126, %v1214
        %1216 = vmatmul.bf16.gmra.mxu0 %v890
        %v1217 = vpop.f32.mrf.mxu0
        %v1218 = vadd.f32 %v1129, %v1217
        %v1219 = vpop.f32.mrf.mxu0
        %v1220 = vadd.f32 %v1131, %v1219
        %1221 = vmatmul.bf16.gmra.mxu0 %v892
        %v1222 = vpop.f32.mrf.mxu0
        %v1223 = vadd.f32 %v1134, %v1222
        %v1224 = vpop.f32.mrf.mxu0
        %v1225 = vadd.f32 %v1136, %v1224
        %1226 = vmatmul.bf16.gmra.mxu0 %v894
        %v1227 = vpop.f32.mrf.mxu0
        %v1228 = vadd.f32 %v1139, %v1227
        %v1229 = vpop.f32.mrf.mxu0
        %v1230 = vadd.f32 %v1141, %v1229
        %1231 = vmatmul.bf16.gmra.mxu0 %v896
        %v1232 = vpop.f32.mrf.mxu0
        %v1233 = vadd.f32 %v1144, %v1232
        %v1234 = vpop.f32.mrf.mxu0
        %v1235 = vadd.f32 %v1146, %v1234
        %1236 = vmatmul.bf16.gmra.mxu0 %v898
        %v1237 = vpop.f32.mrf.mxu0
        %v1238 = vadd.f32 %v1149, %v1237
        %v1239 = vpop.f32.mrf.mxu0
        %v1240 = vadd.f32 %v1151, %v1239
        %1241 = vmatmul.bf16.gmra.mxu0 %v900
        %v1242 = vpop.f32.mrf.mxu0
        %v1243 = vadd.f32 %v1154, %v1242
        %v1244 = vpop.f32.mrf.mxu0
        %v1245 = vadd.f32 %v1156, %v1244
        %1246 = vmatmul.bf16.gmra.mxu0 %v902
        %v1247 = vpop.f32.mrf.mxu0
        %v1248 = vadd.f32 %v1159, %v1247
        %v1249 = vpop.f32.mrf.mxu0
        %v1250 = vadd.f32 %v1161, %v1249
        %1251 = vmatmul.bf16.gmra.mxu0 %v904
        %v1252 = vpop.f32.mrf.mxu0
        %v1253 = vadd.f32 %v1164, %v1252
        %v1254 = vpop.f32.mrf.mxu0
        %v1255 = vadd.f32 %v1166, %v1254
        %1256 = vmatmul.bf16.gmra.mxu0 %v906
        %v1257 = vpop.f32.mrf.mxu0
        %v1258 = vadd.f32 %v1169, %v1257
        %v1259 = vpop.f32.mrf.mxu0
        %v1260 = vadd.f32 %v1171, %v1259
        %1261 = vmatmul.bf16.gmra.mxu0 %v908
        %v1262 = vpop.f32.mrf.mxu0
        %v1263 = vadd.f32 %v1174, %v1262
        %v1264 = vpop.f32.mrf.mxu0
        %v1265 = vadd.f32 %v1176, %v1264
        %1266 = vmatmul.bf16.gmra.mxu0 %v910
        %v1267 = vpop.f32.mrf.mxu0
        %v1268 = vadd.f32 %v1179, %v1267
        %v1269 = vpop.f32.mrf.mxu0
        %v1270 = vadd.f32 %v1181, %v1269
        %1271 = vmatmul.bf16.gmra.mxu0 %v912
        %v1272 = vpop.f32.mrf.mxu0
        %v1273 = vadd.f32 %v1184, %v1272
        %v1274 = vpop.f32.mrf.mxu0
        %v1275 = vadd.f32 %v1186, %v1274
        %1276 = vmatmul.bf16.gmra.mxu0 %v914
        %v1277 = vpop.f32.mrf.mxu0
        %v1278 = vadd.f32 %v1189, %v1277
        %v1279 = vpop.f32.mrf.mxu0
        %v1280 = vadd.f32 %v1191, %v1279
        %1281 = vmatmul.bf16.gmra.mxu0 %v916
        %v1282 = vpop.f32.mrf.mxu0
        %v1283 = vadd.f32 %v1194, %v1282
        %v1284 = vpop.f32.mrf.mxu0
        %v1285 = vadd.f32 %v1196, %v1284
        %1286 = vdwg.mxu0
        %1287 = vmatpush.bf16.msra.mxu0 %v1060
        %1288 = vmatpush.bf16.msra.mxu0 %v1058
        %1289 = vmatpush.bf16.msra.mxu0 %v1056
        %1290 = vmatpush.bf16.msra.mxu0 %v1054
        %1291 = vmatpush.bf16.msra.mxu0 %v1052
        %1292 = vmatpush.bf16.msra.mxu0 %v1050
        %1293 = vmatpush.bf16.msra.mxu0 %v1048
        %1294 = vmatpush.bf16.msra.mxu0 %v1046
        %1295 = vmatmul.bf16.gmra.mxu0 %v885
        %v1296 = vpop.f32.mrf.mxu0
        %v1297 = vadd.f32 %v786, %v1296
        %v1298 = vpop.f32.mrf.mxu0
        %v1299 = vadd.f32 %v786, %v1298
        %1300 = vmatmul.bf16.gmra.mxu0 %v887
        %v1301 = vpop.f32.mrf.mxu0
        %v1302 = vadd.f32 %v786, %v1301
        %v1303 = vpop.f32.mrf.mxu0
        %v1304 = vadd.f32 %v786, %v1303
        %1305 = vmatmul.bf16.gmra.mxu0 %v889
        %v1306 = vpop.f32.mrf.mxu0
        %v1307 = vadd.f32 %v786, %v1306
        %v1308 = vpop.f32.mrf.mxu0
        %v1309 = vadd.f32 %v786, %v1308
        %1310 = vmatmul.bf16.gmra.mxu0 %v891
        %v1311 = vpop.f32.mrf.mxu0
        %v1312 = vadd.f32 %v786, %v1311
        %v1313 = vpop.f32.mrf.mxu0
        %v1314 = vadd.f32 %v786, %v1313
        %1315 = vmatmul.bf16.gmra.mxu0 %v893
        %v1316 = vpop.f32.mrf.mxu0
        %v1317 = vadd.f32 %v786, %v1316
        %v1318 = vpop.f32.mrf.mxu0
        %v1319 = vadd.f32 %v786, %v1318
        %1320 = vmatmul.bf16.gmra.mxu0 %v895
        %v1321 = vpop.f32.mrf.mxu0
        %v1322 = vadd.f32 %v786, %v1321
        %v1323 = vpop.f32.mrf.mxu0
        %v1324 = vadd.f32 %v786, %v1323
        %1325 = vmatmul.bf16.gmra.mxu0 %v897
        %v1326 = vpop.f32.mrf.mxu0
        %v1327 = vadd.f32 %v786, %v1326
        %v1328 = vpop.f32.mrf.mxu0
        %v1329 = vadd.f32 %v786, %v1328
        %1330 = vmatmul.bf16.gmra.mxu0 %v899
        %v1331 = vpop.f32.mrf.mxu0
        %v1332 = vadd.f32 %v786, %v1331
        %v1333 = vpop.f32.mrf.mxu0
        %v1334 = vadd.f32 %v786, %v1333
        %1335 = vmatmul.bf16.gmra.mxu0 %v901
        %v1336 = vpop.f32.mrf.mxu0
        %v1337 = vadd.f32 %v786, %v1336
        %v1338 = vpop.f32.mrf.mxu0
        %v1339 = vadd.f32 %v786, %v1338
        %1340 = vmatmul.bf16.gmra.mxu0 %v903
        %v1341 = vpop.f32.mrf.mxu0
        %v1342 = vadd.f32 %v786, %v1341
        %v1343 = vpop.f32.mrf.mxu0
        %v1344 = vadd.f32 %v786, %v1343
        %1345 = vmatmul.bf16.gmra.mxu0 %v905
        %v1346 = vpop.f32.mrf.mxu0
        %v1347 = vadd.f32 %v786, %v1346
        %v1348 = vpop.f32.mrf.mxu0
        %v1349 = vadd.f32 %v786, %v1348
        %1350 = vmatmul.bf16.gmra.mxu0 %v907
        %v1351 = vpop.f32.mrf.mxu0
        %v1352 = vadd.f32 %v786, %v1351
        %v1353 = vpop.f32.mrf.mxu0
        %v1354 = vadd.f32 %v786, %v1353
        %1355 = vmatmul.bf16.gmra.mxu0 %v909
        %v1356 = vpop.f32.mrf.mxu0
        %v1357 = vadd.f32 %v786, %v1356
        %v1358 = vpop.f32.mrf.mxu0
        %v1359 = vadd.f32 %v786, %v1358
        %1360 = vmatmul.bf16.gmra.mxu0 %v911
        %v1361 = vpop.f32.mrf.mxu0
        %v1362 = vadd.f32 %v786, %v1361
        %v1363 = vpop.f32.mrf.mxu0
        %v1364 = vadd.f32 %v786, %v1363
        %1365 = vmatmul.bf16.gmra.mxu0 %v913
        %v1366 = vpop.f32.mrf.mxu0
        %v1367 = vadd.f32 %v786, %v1366
        %v1368 = vpop.f32.mrf.mxu0
        %v1369 = vadd.f32 %v786, %v1368
        %1370 = vmatmul.bf16.gmra.mxu0 %v915
        %v1371 = vpop.f32.mrf.mxu0
        %v1372 = vadd.f32 %v786, %v1371
        %v1373 = vpop.f32.mrf.mxu0
        %v1374 = vadd.f32 %v786, %v1373
        %1375 = vdwg.mxu0
        %1376 = vmatpush.bf16.msra.mxu0 %v1076
        %1377 = vmatpush.bf16.msra.mxu0 %v1074
        %1378 = vmatpush.bf16.msra.mxu0 %v1072
        %1379 = vmatpush.bf16.msra.mxu0 %v1070
        %1380 = vmatpush.bf16.msra.mxu0 %v1068
        %1381 = vmatpush.bf16.msra.mxu0 %v1066
        %1382 = vmatpush.bf16.msra.mxu0 %v1064
        %1383 = vmatpush.bf16.msra.mxu0 %v1062
        %1384 = vmatmul.bf16.gmra.mxu0 %v886
        %v1385 = vpop.f32.mrf.mxu0
        %v1386 = vadd.f32 %v1297, %v1385
        %v1387 = vpop.f32.mrf.mxu0
        %v1388 = vadd.f32 %v1299, %v1387
        %1389 = vmatmul.bf16.gmra.mxu0 %v888
        %v1390 = vpop.f32.mrf.mxu0
        %v1391 = vadd.f32 %v1302, %v1390
        %v1392 = vpop.f32.mrf.mxu0
        %v1393 = vadd.f32 %v1304, %v1392
        %1394 = vmatmul.bf16.gmra.mxu0 %v890
        %v1395 = vpop.f32.mrf.mxu0
        %v1396 = vadd.f32 %v1307, %v1395
        %v1397 = vpop.f32.mrf.mxu0
        %v1398 = vadd.f32 %v1309, %v1397
        %1399 = vmatmul.bf16.gmra.mxu0 %v892
        %v1400 = vpop.f32.mrf.mxu0
        %v1401 = vadd.f32 %v1312, %v1400
        %v1402 = vpop.f32.mrf.mxu0
        %v1403 = vadd.f32 %v1314, %v1402
        %1404 = vmatmul.bf16.gmra.mxu0 %v894
        %v1405 = vpop.f32.mrf.mxu0
        %v1406 = vadd.f32 %v1317, %v1405
        %v1407 = vpop.f32.mrf.mxu0
        %v1408 = vadd.f32 %v1319, %v1407
        %1409 = vmatmul.bf16.gmra.mxu0 %v896
        %v1410 = vpop.f32.mrf.mxu0
        %v1411 = vadd.f32 %v1322, %v1410
        %v1412 = vpop.f32.mrf.mxu0
        %v1413 = vadd.f32 %v1324, %v1412
        %1414 = vmatmul.bf16.gmra.mxu0 %v898
        %v1415 = vpop.f32.mrf.mxu0
        %v1416 = vadd.f32 %v1327, %v1415
        %v1417 = vpop.f32.mrf.mxu0
        %v1418 = vadd.f32 %v1329, %v1417
        %1419 = vmatmul.bf16.gmra.mxu0 %v900
        %v1420 = vpop.f32.mrf.mxu0
        %v1421 = vadd.f32 %v1332, %v1420
        %v1422 = vpop.f32.mrf.mxu0
        %v1423 = vadd.f32 %v1334, %v1422
        %1424 = vmatmul.bf16.gmra.mxu0 %v902
        %v1425 = vpop.f32.mrf.mxu0
        %v1426 = vadd.f32 %v1337, %v1425
        %v1427 = vpop.f32.mrf.mxu0
        %v1428 = vadd.f32 %v1339, %v1427
        %1429 = vmatmul.bf16.gmra.mxu0 %v904
        %v1430 = vpop.f32.mrf.mxu0
        %v1431 = vadd.f32 %v1342, %v1430
        %v1432 = vpop.f32.mrf.mxu0
        %v1433 = vadd.f32 %v1344, %v1432
        %1434 = vmatmul.bf16.gmra.mxu0 %v906
        %v1435 = vpop.f32.mrf.mxu0
        %v1436 = vadd.f32 %v1347, %v1435
        %v1437 = vpop.f32.mrf.mxu0
        %v1438 = vadd.f32 %v1349, %v1437
        %1439 = vmatmul.bf16.gmra.mxu0 %v908
        %v1440 = vpop.f32.mrf.mxu0
        %v1441 = vadd.f32 %v1352, %v1440
        %v1442 = vpop.f32.mrf.mxu0
        %v1443 = vadd.f32 %v1354, %v1442
        %1444 = vmatmul.bf16.gmra.mxu0 %v910
        %v1445 = vpop.f32.mrf.mxu0
        %v1446 = vadd.f32 %v1357, %v1445
        %v1447 = vpop.f32.mrf.mxu0
        %v1448 = vadd.f32 %v1359, %v1447
        %1449 = vmatmul.bf16.gmra.mxu0 %v912
        %v1450 = vpop.f32.mrf.mxu0
        %v1451 = vadd.f32 %v1362, %v1450
        %v1452 = vpop.f32.mrf.mxu0
        %v1453 = vadd.f32 %v1364, %v1452
        %1454 = vmatmul.bf16.gmra.mxu0 %v914
        %v1455 = vpop.f32.mrf.mxu0
        %v1456 = vadd.f32 %v1367, %v1455
        %v1457 = vpop.f32.mrf.mxu0
        %v1458 = vadd.f32 %v1369, %v1457
        %1459 = vmatmul.bf16.gmra.mxu0 %v916
        %v1460 = vpop.f32.mrf.mxu0
        %v1461 = vadd.f32 %v1372, %v1460
        %v1462 = vpop.f32.mrf.mxu0
        %v1463 = vadd.f32 %v1374, %v1462
        %1464 = vdwg.mxu0
        %v1465 = vmax.f32 %v1208, 0.0
        %v1466 = vmax.f32 %v1386, 0.0
        %v1467 = vmax.f32 %v1210, 0.0
        %v1468 = vmax.f32 %v1388, 0.0
        %v1469 = vmax.f32 %v1213, 0.0
        %v1470 = vmax.f32 %v1391, 0.0
        %v1471 = vmax.f32 %v1215, 0.0
        %v1472 = vmax.f32 %v1393, 0.0
        %v1473 = vmax.f32 %v1218, 0.0
        %v1474 = vmax.f32 %v1396, 0.0
        %v1475 = vmax.f32 %v1220, 0.0
        %v1476 = vmax.f32 %v1398, 0.0
        %v1477 = vmax.f32 %v1223, 0.0
        %v1478 = vmax.f32 %v1401, 0.0
        %v1479 = vmax.f32 %v1225, 0.0
        %v1480 = vmax.f32 %v1403, 0.0
        %v1481 = vmax.f32 %v1228, 0.0
        %v1482 = vmax.f32 %v1406, 0.0
        %v1483 = vmax.f32 %v1230, 0.0
        %v1484 = vmax.f32 %v1408, 0.0
        %v1485 = vmax.f32 %v1233, 0.0
        %v1486 = vmax.f32 %v1411, 0.0
        %v1487 = vmax.f32 %v1235, 0.0
        %v1488 = vmax.f32 %v1413, 0.0
        %v1489 = vmax.f32 %v1238, 0.0
        %v1490 = vmax.f32 %v1416, 0.0
        %v1491 = vmax.f32 %v1240, 0.0
        %v1492 = vmax.f32 %v1418, 0.0
        %v1493 = vmax.f32 %v1243, 0.0
        %v1494 = vmax.f32 %v1421, 0.0
        %v1495 = vmax.f32 %v1245, 0.0
        %v1496 = vmax.f32 %v1423, 0.0
        %v1497 = vmax.f32 %v1248, 0.0
        %v1498 = vmax.f32 %v1426, 0.0
        %v1499 = vmax.f32 %v1250, 0.0
        %v1500 = vmax.f32 %v1428, 0.0
        %v1501 = vmax.f32 %v1253, 0.0
        %v1502 = vmax.f32 %v1431, 0.0
        %v1503 = vmax.f32 %v1255, 0.0
        %v1504 = vmax.f32 %v1433, 0.0
        %v1505 = vmax.f32 %v1258, 0.0
        %v1506 = vmax.f32 %v1436, 0.0
        %v1507 = vmax.f32 %v1260, 0.0
        %v1508 = vmax.f32 %v1438, 0.0
        %v1509 = vmax.f32 %v1263, 0.0
        %v1510 = vmax.f32 %v1441, 0.0
        %v1511 = vmax.f32 %v1265, 0.0
        %v1512 = vmax.f32 %v1443, 0.0
        %v1513 = vmax.f32 %v1268, 0.0
        %v1514 = vmax.f32 %v1446, 0.0
        %v1515 = vmax.f32 %v1270, 0.0
        %v1516 = vmax.f32 %v1448, 0.0
        %v1517 = vmax.f32 %v1273, 0.0
        %v1518 = vmax.f32 %v1451, 0.0
        %v1519 = vmax.f32 %v1275, 0.0
        %v1520 = vmax.f32 %v1453, 0.0
        %v1521 = vmax.f32 %v1278, 0.0
        %v1522 = vmax.f32 %v1456, 0.0
        %v1523 = vmax.f32 %v1280, 0.0
        %v1524 = vmax.f32 %v1458, 0.0
        %v1525 = vmax.f32 %v1283, 0.0
        %v1526 = vmax.f32 %v1461, 0.0
        %v1527 = vmax.f32 %v1285, 0.0
        %v1528 = vmax.f32 %v1463, 0.0
        %v1529 = vpack.c.bf16 %v1467, %v1465
        %v1530 = vpack.c.bf16 %v1468, %v1466
        %v1531 = vpack.c.bf16 %v1471, %v1469
        %v1532 = vpack.c.bf16 %v1472, %v1470
        %v1533 = vpack.c.bf16 %v1475, %v1473
        %v1534 = vpack.c.bf16 %v1476, %v1474
        %v1535 = vpack.c.bf16 %v1479, %v1477
        %v1536 = vpack.c.bf16 %v1480, %v1478
        %v1537 = vpack.c.bf16 %v1483, %v1481
        %v1538 = vpack.c.bf16 %v1484, %v1482
        %v1539 = vpack.c.bf16 %v1487, %v1485
        %v1540 = vpack.c.bf16 %v1488, %v1486
        %v1541 = vpack.c.bf16 %v1491, %v1489
        %v1542 = vpack.c.bf16 %v1492, %v1490
        %v1543 = vpack.c.bf16 %v1495, %v1493
        %v1544 = vpack.c.bf16 %v1496, %v1494
        %v1545 = vpack.c.bf16 %v1499, %v1497
        %v1546 = vpack.c.bf16 %v1500, %v1498
        %v1547 = vpack.c.bf16 %v1503, %v1501
        %v1548 = vpack.c.bf16 %v1504, %v1502
        %v1549 = vpack.c.bf16 %v1507, %v1505
        %v1550 = vpack.c.bf16 %v1508, %v1506
        %v1551 = vpack.c.bf16 %v1511, %v1509
        %v1552 = vpack.c.bf16 %v1512, %v1510
        %v1553 = vpack.c.bf16 %v1515, %v1513
        %v1554 = vpack.c.bf16 %v1516, %v1514
        %v1555 = vpack.c.bf16 %v1519, %v1517
        %v1556 = vpack.c.bf16 %v1520, %v1518
        %v1557 = vpack.c.bf16 %v1523, %v1521
        %v1558 = vpack.c.bf16 %v1524, %v1522
        %v1559 = vpack.c.bf16 %v1527, %v1525
        %v1560 = vpack.c.bf16 %v1528, %v1526
        %v1561 = vld [vmem:[#allocation8] sm:$0xff]
        %v1562 = vld [vmem:[#allocation8 + $0x8] sm:$0xff]
        %v1563 = vld [vmem:[#allocation8 + $0x10] sm:$0xff]
        %v1564 = vld [vmem:[#allocation8 + $0x18] sm:$0xff]
        %v1565 = vld [vmem:[#allocation8 + $0x20] sm:$0xff]
        %v1566 = vld [vmem:[#allocation8 + $0x28] sm:$0xff]
        %v1567 = vld [vmem:[#allocation8 + $0x30] sm:$0xff]
        %v1568 = vld [vmem:[#allocation8 + $0x38] sm:$0xff]
        %v1569 = vld [vmem:[#allocation8 + $0x40] sm:$0xff]
        %v1570 = vld [vmem:[#allocation8 + $0x48] sm:$0xff]
        %v1571 = vld [vmem:[#allocation8 + $0x50] sm:$0xff]
        %v1572 = vld [vmem:[#allocation8 + $0x58] sm:$0xff]
        %v1573 = vld [vmem:[#allocation8 + $0x60] sm:$0xff]
        %v1574 = vld [vmem:[#allocation8 + $0x68] sm:$0xff]
        %v1575 = vld [vmem:[#allocation8 + $0x70] sm:$0xff]
        %v1576 = vld [vmem:[#allocation8 + $0x78] sm:$0xff]
        %v1577 = vld [vmem:[#allocation8 + $0x80] sm:$0xff]
        %v1578 = vld [vmem:[#allocation8 + $0x88] sm:$0xff]
        %v1579 = vld [vmem:[#allocation8 + $0x90] sm:$0xff]
        %v1580 = vld [vmem:[#allocation8 + $0x98] sm:$0xff]
        %v1581 = vld [vmem:[#allocation8 + $0xa0] sm:$0xff]
        %v1582 = vld [vmem:[#allocation8 + $0xa8] sm:$0xff]
        %v1583 = vld [vmem:[#allocation8 + $0xb0] sm:$0xff]
        %v1584 = vld [vmem:[#allocation8 + $0xb8] sm:$0xff]
        %v1585 = vld [vmem:[#allocation8 + $0xc0] sm:$0xff]
        %v1586 = vld [vmem:[#allocation8 + $0xc8] sm:$0xff]
        %v1587 = vld [vmem:[#allocation8 + $0xd0] sm:$0xff]
        %v1588 = vld [vmem:[#allocation8 + $0xd8] sm:$0xff]
        %v1589 = vld [vmem:[#allocation8 + $0xe0] sm:$0xff]
        %v1590 = vld [vmem:[#allocation8 + $0xe8] sm:$0xff]
        %v1591 = vld [vmem:[#allocation8 + $0xf0] sm:$0xff]
        %v1592 = vld [vmem:[#allocation8 + $0xf8] sm:$0xff]
        %v1593 = vld [vmem:[%s4] sm:$0x3]
        %v1595 = vperm.slane %v1593, 0
        %v1596 = vperm.slane %v1593, 1
        %v1631 = vunpack.c.l.b16 %v1561
        %v1632 = vunpack.c.h.b16 %v1561
        %v1633 = vunpack.c.l.b16 %v1562
        %v1634 = vunpack.c.h.b16 %v1562
        %v1635 = vunpack.c.l.b16 %v1563
        %v1636 = vunpack.c.h.b16 %v1563
        %v1637 = vunpack.c.l.b16 %v1564
        %v1638 = vunpack.c.h.b16 %v1564
        %v1639 = vunpack.c.l.b16 %v1565
        %v1640 = vunpack.c.h.b16 %v1565
        %v1641 = vunpack.c.l.b16 %v1566
        %v1642 = vunpack.c.h.b16 %v1566
        %v1643 = vunpack.c.l.b16 %v1567
        %v1644 = vunpack.c.h.b16 %v1567
        %v1645 = vunpack.c.l.b16 %v1568
        %v1646 = vunpack.c.h.b16 %v1568
        %v1647 = vunpack.c.l.b16 %v1569
        %v1648 = vunpack.c.h.b16 %v1569
        %v1649 = vunpack.c.l.b16 %v1570
        %v1650 = vunpack.c.h.b16 %v1570
        %v1651 = vunpack.c.l.b16 %v1571
        %v1652 = vunpack.c.h.b16 %v1571
        %v1653 = vunpack.c.l.b16 %v1572
        %v1654 = vunpack.c.h.b16 %v1572
        %v1655 = vunpack.c.l.b16 %v1573
        %v1656 = vunpack.c.h.b16 %v1573
        %v1657 = vunpack.c.l.b16 %v1574
        %v1658 = vunpack.c.h.b16 %v1574
        %v1659 = vunpack.c.l.b16 %v1575
        %v1660 = vunpack.c.h.b16 %v1575
        %v1661 = vunpack.c.l.b16 %v1576
        %v1662 = vunpack.c.h.b16 %v1576
        %v1663 = vunpack.c.l.b16 %v1577
        %v1664 = vunpack.c.h.b16 %v1577
        %v1665 = vunpack.c.l.b16 %v1578
        %v1666 = vunpack.c.h.b16 %v1578
        %v1667 = vunpack.c.l.b16 %v1579
        %v1668 = vunpack.c.h.b16 %v1579
        %v1669 = vunpack.c.l.b16 %v1580
        %v1670 = vunpack.c.h.b16 %v1580
        %v1671 = vunpack.c.l.b16 %v1581
        %v1672 = vunpack.c.h.b16 %v1581
        %v1673 = vunpack.c.l.b16 %v1582
        %v1674 = vunpack.c.h.b16 %v1582
        %v1675 = vunpack.c.l.b16 %v1583
        %v1676 = vunpack.c.h.b16 %v1583
        %v1677 = vunpack.c.l.b16 %v1584
        %v1678 = vunpack.c.h.b16 %v1584
        %v1679 = vunpack.c.l.b16 %v1585
        %v1680 = vunpack.c.h.b16 %v1585
        %v1681 = vunpack.c.l.b16 %v1586
        %v1682 = vunpack.c.h.b16 %v1586
        %v1683 = vunpack.c.l.b16 %v1587
        %v1684 = vunpack.c.h.b16 %v1587
        %v1685 = vunpack.c.l.b16 %v1588
        %v1686 = vunpack.c.h.b16 %v1588
        %v1687 = vunpack.c.l.b16 %v1589
        %v1688 = vunpack.c.h.b16 %v1589
        %v1689 = vunpack.c.l.b16 %v1590
        %v1690 = vunpack.c.h.b16 %v1590
        %v1691 = vunpack.c.l.b16 %v1591
        %v1692 = vunpack.c.h.b16 %v1591
        %v1693 = vunpack.c.l.b16 %v1592
        %v1694 = vunpack.c.h.b16 %v1592
        %v1695 = vpack.c.b16 %v1633, %v1631
        %v1696 = vpack.c.b16 %v1634, %v1632
        %v1697 = vpack.c.b16 %v1637, %v1635
        %v1698 = vpack.c.b16 %v1638, %v1636
        %v1699 = vpack.c.b16 %v1641, %v1639
        %v1700 = vpack.c.b16 %v1642, %v1640
        %v1701 = vpack.c.b16 %v1645, %v1643
        %v1702 = vpack.c.b16 %v1646, %v1644
        %v1703 = vpack.c.b16 %v1649, %v1647
        %v1704 = vpack.c.b16 %v1650, %v1648
        %v1705 = vpack.c.b16 %v1653, %v1651
        %v1706 = vpack.c.b16 %v1654, %v1652
        %v1707 = vpack.c.b16 %v1657, %v1655
        %v1708 = vpack.c.b16 %v1658, %v1656
        %v1709 = vpack.c.b16 %v1661, %v1659
        %v1710 = vpack.c.b16 %v1662, %v1660
        %v1711 = vpack.c.b16 %v1665, %v1663
        %v1712 = vpack.c.b16 %v1666, %v1664
        %v1713 = vpack.c.b16 %v1669, %v1667
        %v1714 = vpack.c.b16 %v1670, %v1668
        %v1715 = vpack.c.b16 %v1673, %v1671
        %v1716 = vpack.c.b16 %v1674, %v1672
        %v1717 = vpack.c.b16 %v1677, %v1675
        %v1718 = vpack.c.b16 %v1678, %v1676
        %v1719 = vpack.c.b16 %v1681, %v1679
        %v1720 = vpack.c.b16 %v1682, %v1680
        %v1721 = vpack.c.b16 %v1685, %v1683
        %v1722 = vpack.c.b16 %v1686, %v1684
        %v1723 = vpack.c.b16 %v1689, %v1687
        %v1724 = vpack.c.b16 %v1690, %v1688
        %v1725 = vpack.c.b16 %v1693, %v1691
        %v1726 = vpack.c.b16 %v1694, %v1692
        %1759 = vmatpush.bf16.msra.mxu0 %v1709
        %1760 = vmatpush.bf16.msra.mxu0 %v1707
        %1761 = vmatpush.bf16.msra.mxu0 %v1705
        %1762 = vmatpush.bf16.msra.mxu0 %v1703
        %1763 = vmatpush.bf16.msra.mxu0 %v1701
        %1764 = vmatpush.bf16.msra.mxu0 %v1699
        %1765 = vmatpush.bf16.msra.mxu0 %v1697
        %1766 = vmatpush.bf16.msra.mxu0 %v1695
        %1767 = vmatmul.bf16.gmra.mxu0 %v1529
        %v1768 = vpop.f32.mrf.mxu0
        %v1769 = vadd.f32 %v1595, %v1768
        %v1770 = vpop.f32.mrf.mxu0
        %v1771 = vadd.f32 %v1595, %v1770
        %1772 = vmatmul.bf16.gmra.mxu0 %v1531
        %v1773 = vpop.f32.mrf.mxu0
        %v1774 = vadd.f32 %v1595, %v1773
        %v1775 = vpop.f32.mrf.mxu0
        %v1776 = vadd.f32 %v1595, %v1775
        %1777 = vmatmul.bf16.gmra.mxu0 %v1533
        %v1778 = vpop.f32.mrf.mxu0
        %v1779 = vadd.f32 %v1595, %v1778
        %v1780 = vpop.f32.mrf.mxu0
        %v1781 = vadd.f32 %v1595, %v1780
        %1782 = vmatmul.bf16.gmra.mxu0 %v1535
        %v1783 = vpop.f32.mrf.mxu0
        %v1784 = vadd.f32 %v1595, %v1783
        %v1785 = vpop.f32.mrf.mxu0
        %v1786 = vadd.f32 %v1595, %v1785
        %1787 = vmatmul.bf16.gmra.mxu0 %v1537
        %v1788 = vpop.f32.mrf.mxu0
        %v1789 = vadd.f32 %v1595, %v1788
        %v1790 = vpop.f32.mrf.mxu0
        %v1791 = vadd.f32 %v1595, %v1790
        %1792 = vmatmul.bf16.gmra.mxu0 %v1539
        %v1793 = vpop.f32.mrf.mxu0
        %v1794 = vadd.f32 %v1595, %v1793
        %v1795 = vpop.f32.mrf.mxu0
        %v1796 = vadd.f32 %v1595, %v1795
        %1797 = vmatmul.bf16.gmra.mxu0 %v1541
        %v1798 = vpop.f32.mrf.mxu0
        %v1799 = vadd.f32 %v1595, %v1798
        %v1800 = vpop.f32.mrf.mxu0
        %v1801 = vadd.f32 %v1595, %v1800
        %1802 = vmatmul.bf16.gmra.mxu0 %v1543
        %v1803 = vpop.f32.mrf.mxu0
        %v1804 = vadd.f32 %v1595, %v1803
        %v1805 = vpop.f32.mrf.mxu0
        %v1806 = vadd.f32 %v1595, %v1805
        %1807 = vmatmul.bf16.gmra.mxu0 %v1545
        %v1808 = vpop.f32.mrf.mxu0
        %v1809 = vadd.f32 %v1595, %v1808
        %v1810 = vpop.f32.mrf.mxu0
        %v1811 = vadd.f32 %v1595, %v1810
        %1812 = vmatmul.bf16.gmra.mxu0 %v1547
        %v1813 = vpop.f32.mrf.mxu0
        %v1814 = vadd.f32 %v1595, %v1813
        %v1815 = vpop.f32.mrf.mxu0
        %v1816 = vadd.f32 %v1595, %v1815
        %1817 = vmatmul.bf16.gmra.mxu0 %v1549
        %v1818 = vpop.f32.mrf.mxu0
        %v1819 = vadd.f32 %v1595, %v1818
        %v1820 = vpop.f32.mrf.mxu0
        %v1821 = vadd.f32 %v1595, %v1820
        %1822 = vmatmul.bf16.gmra.mxu0 %v1551
        %v1823 = vpop.f32.mrf.mxu0
        %v1824 = vadd.f32 %v1595, %v1823
        %v1825 = vpop.f32.mrf.mxu0
        %v1826 = vadd.f32 %v1595, %v1825
        %1827 = vmatmul.bf16.gmra.mxu0 %v1553
        %v1828 = vpop.f32.mrf.mxu0
        %v1829 = vadd.f32 %v1595, %v1828
        %v1830 = vpop.f32.mrf.mxu0
        %v1831 = vadd.f32 %v1595, %v1830
        %1832 = vmatmul.bf16.gmra.mxu0 %v1555
        %v1833 = vpop.f32.mrf.mxu0
        %v1834 = vadd.f32 %v1595, %v1833
        %v1835 = vpop.f32.mrf.mxu0
        %v1836 = vadd.f32 %v1595, %v1835
        %1837 = vmatmul.bf16.gmra.mxu0 %v1557
        %v1838 = vpop.f32.mrf.mxu0
        %v1839 = vadd.f32 %v1595, %v1838
        %v1840 = vpop.f32.mrf.mxu0
        %v1841 = vadd.f32 %v1595, %v1840
        %1842 = vmatmul.bf16.gmra.mxu0 %v1559
        %v1843 = vpop.f32.mrf.mxu0
        %v1844 = vadd.f32 %v1595, %v1843
        %v1845 = vpop.f32.mrf.mxu0
        %v1846 = vadd.f32 %v1595, %v1845
        %1847 = vdwg.mxu0
        %1848 = vmatpush.bf16.msra.mxu0 %v1725
        %1849 = vmatpush.bf16.msra.mxu0 %v1723
        %1850 = vmatpush.bf16.msra.mxu0 %v1721
        %1851 = vmatpush.bf16.msra.mxu0 %v1719
        %1852 = vmatpush.bf16.msra.mxu0 %v1717
        %1853 = vmatpush.bf16.msra.mxu0 %v1715
        %1854 = vmatpush.bf16.msra.mxu0 %v1713
        %1855 = vmatpush.bf16.msra.mxu0 %v1711
        %1856 = vmatmul.bf16.gmra.mxu0 %v1530
        %v1857 = vpop.f32.mrf.mxu0
        %v1858 = vadd.f32 %v1769, %v1857
        %v1859 = vpop.f32.mrf.mxu0
        %v1860 = vadd.f32 %v1771, %v1859
        %1861 = vmatmul.bf16.gmra.mxu0 %v1532
        %v1862 = vpop.f32.mrf.mxu0
        %v1863 = vadd.f32 %v1774, %v1862
        %v1864 = vpop.f32.mrf.mxu0
        %v1865 = vadd.f32 %v1776, %v1864
        %1866 = vmatmul.bf16.gmra.mxu0 %v1534
        %v1867 = vpop.f32.mrf.mxu0
        %v1868 = vadd.f32 %v1779, %v1867
        %v1869 = vpop.f32.mrf.mxu0
        %v1870 = vadd.f32 %v1781, %v1869
        %1871 = vmatmul.bf16.gmra.mxu0 %v1536
        %v1872 = vpop.f32.mrf.mxu0
        %v1873 = vadd.f32 %v1784, %v1872
        %v1874 = vpop.f32.mrf.mxu0
        %v1875 = vadd.f32 %v1786, %v1874
        %1876 = vmatmul.bf16.gmra.mxu0 %v1538
        %v1877 = vpop.f32.mrf.mxu0
        %v1878 = vadd.f32 %v1789, %v1877
        %v1879 = vpop.f32.mrf.mxu0
        %v1880 = vadd.f32 %v1791, %v1879
        %1881 = vmatmul.bf16.gmra.mxu0 %v1540
        %v1882 = vpop.f32.mrf.mxu0
        %v1883 = vadd.f32 %v1794, %v1882
        %v1884 = vpop.f32.mrf.mxu0
        %v1885 = vadd.f32 %v1796, %v1884
        %1886 = vmatmul.bf16.gmra.mxu0 %v1542
        %v1887 = vpop.f32.mrf.mxu0
        %v1888 = vadd.f32 %v1799, %v1887
        %v1889 = vpop.f32.mrf.mxu0
        %v1890 = vadd.f32 %v1801, %v1889
        %1891 = vmatmul.bf16.gmra.mxu0 %v1544
        %v1892 = vpop.f32.mrf.mxu0
        %v1893 = vadd.f32 %v1804, %v1892
        %v1894 = vpop.f32.mrf.mxu0
        %v1895 = vadd.f32 %v1806, %v1894
        %1896 = vmatmul.bf16.gmra.mxu0 %v1546
        %v1897 = vpop.f32.mrf.mxu0
        %v1898 = vadd.f32 %v1809, %v1897
        %v1899 = vpop.f32.mrf.mxu0
        %v1900 = vadd.f32 %v1811, %v1899
        %1901 = vmatmul.bf16.gmra.mxu0 %v1548
        %v1902 = vpop.f32.mrf.mxu0
        %v1903 = vadd.f32 %v1814, %v1902
        %v1904 = vpop.f32.mrf.mxu0
        %v1905 = vadd.f32 %v1816, %v1904
        %1906 = vmatmul.bf16.gmra.mxu0 %v1550
        %v1907 = vpop.f32.mrf.mxu0
        %v1908 = vadd.f32 %v1819, %v1907
        %v1909 = vpop.f32.mrf.mxu0
        %v1910 = vadd.f32 %v1821, %v1909
        %1911 = vmatmul.bf16.gmra.mxu0 %v1552
        %v1912 = vpop.f32.mrf.mxu0
        %v1913 = vadd.f32 %v1824, %v1912
        %v1914 = vpop.f32.mrf.mxu0
        %v1915 = vadd.f32 %v1826, %v1914
        %1916 = vmatmul.bf16.gmra.mxu0 %v1554
        %v1917 = vpop.f32.mrf.mxu0
        %v1918 = vadd.f32 %v1829, %v1917
        %v1919 = vpop.f32.mrf.mxu0
        %v1920 = vadd.f32 %v1831, %v1919
        %1921 = vmatmul.bf16.gmra.mxu0 %v1556
        %v1922 = vpop.f32.mrf.mxu0
        %v1923 = vadd.f32 %v1834, %v1922
        %v1924 = vpop.f32.mrf.mxu0
        %v1925 = vadd.f32 %v1836, %v1924
        %1926 = vmatmul.bf16.gmra.mxu0 %v1558
        %v1927 = vpop.f32.mrf.mxu0
        %v1928 = vadd.f32 %v1839, %v1927
        %v1929 = vpop.f32.mrf.mxu0
        %v1930 = vadd.f32 %v1841, %v1929
        %1931 = vmatmul.bf16.gmra.mxu0 %v1560
        %v1932 = vpop.f32.mrf.mxu0
        %v1933 = vadd.f32 %v1844, %v1932
        %v1934 = vpop.f32.mrf.mxu0
        %v1935 = vadd.f32 %v1846, %v1934
        %1936 = vdwg.mxu0
        %1937 = vmatpush.bf16.msra.mxu0 %v1710
        %1938 = vmatpush.bf16.msra.mxu0 %v1708
        %1939 = vmatpush.bf16.msra.mxu0 %v1706
        %1940 = vmatpush.bf16.msra.mxu0 %v1704
        %1941 = vmatpush.bf16.msra.mxu0 %v1702
        %1942 = vmatpush.bf16.msra.mxu0 %v1700
        %1943 = vmatpush.bf16.msra.mxu0 %v1698
        %1944 = vmatpush.bf16.msra.mxu0 %v1696
        %1945 = vmatmul.bf16.gmra.mxu0 %v1529
        %v1946 = vpop.f32.mrf.mxu0
        %v1947 = vadd.f32 %v1596, %v1946
        %v1948 = vpop.f32.mrf.mxu0
        %v1949 = vadd.f32 %v1596, %v1948
        %1950 = vmatmul.bf16.gmra.mxu0 %v1531
        %v1951 = vpop.f32.mrf.mxu0
        %v1952 = vadd.f32 %v1596, %v1951
        %v1953 = vpop.f32.mrf.mxu0
        %v1954 = vadd.f32 %v1596, %v1953
        %1955 = vmatmul.bf16.gmra.mxu0 %v1533
        %v1956 = vpop.f32.mrf.mxu0
        %v1957 = vadd.f32 %v1596, %v1956
        %v1958 = vpop.f32.mrf.mxu0
        %v1959 = vadd.f32 %v1596, %v1958
        %1960 = vmatmul.bf16.gmra.mxu0 %v1535
        %v1961 = vpop.f32.mrf.mxu0
        %v1962 = vadd.f32 %v1596, %v1961
        %v1963 = vpop.f32.mrf.mxu0
        %v1964 = vadd.f32 %v1596, %v1963
        %1965 = vmatmul.bf16.gmra.mxu0 %v1537
        %v1966 = vpop.f32.mrf.mxu0
        %v1967 = vadd.f32 %v1596, %v1966
        %v1968 = vpop.f32.mrf.mxu0
        %v1969 = vadd.f32 %v1596, %v1968
        %1970 = vmatmul.bf16.gmra.mxu0 %v1539
        %v1971 = vpop.f32.mrf.mxu0
        %v1972 = vadd.f32 %v1596, %v1971
        %v1973 = vpop.f32.mrf.mxu0
        %v1974 = vadd.f32 %v1596, %v1973
        %1975 = vmatmul.bf16.gmra.mxu0 %v1541
        %v1976 = vpop.f32.mrf.mxu0
        %v1977 = vadd.f32 %v1596, %v1976
        %v1978 = vpop.f32.mrf.mxu0
        %v1979 = vadd.f32 %v1596, %v1978
        %1980 = vmatmul.bf16.gmra.mxu0 %v1543
        %v1981 = vpop.f32.mrf.mxu0
        %v1982 = vadd.f32 %v1596, %v1981
        %v1983 = vpop.f32.mrf.mxu0
        %v1984 = vadd.f32 %v1596, %v1983
        %1985 = vmatmul.bf16.gmra.mxu0 %v1545
        %v1986 = vpop.f32.mrf.mxu0
        %v1987 = vadd.f32 %v1596, %v1986
        %v1988 = vpop.f32.mrf.mxu0
        %v1989 = vadd.f32 %v1596, %v1988
        %1990 = vmatmul.bf16.gmra.mxu0 %v1547
        %v1991 = vpop.f32.mrf.mxu0
        %v1992 = vadd.f32 %v1596, %v1991
        %v1993 = vpop.f32.mrf.mxu0
        %v1994 = vadd.f32 %v1596, %v1993
        %1995 = vmatmul.bf16.gmra.mxu0 %v1549
        %v1996 = vpop.f32.mrf.mxu0
        %v1997 = vadd.f32 %v1596, %v1996
        %v1998 = vpop.f32.mrf.mxu0
        %v1999 = vadd.f32 %v1596, %v1998
        %2000 = vmatmul.bf16.gmra.mxu0 %v1551
        %v2001 = vpop.f32.mrf.mxu0
        %v2002 = vadd.f32 %v1596, %v2001
        %v2003 = vpop.f32.mrf.mxu0
        %v2004 = vadd.f32 %v1596, %v2003
        %2005 = vmatmul.bf16.gmra.mxu0 %v1553
        %v2006 = vpop.f32.mrf.mxu0
        %v2007 = vadd.f32 %v1596, %v2006
        %v2008 = vpop.f32.mrf.mxu0
        %v2009 = vadd.f32 %v1596, %v2008
        %2010 = vmatmul.bf16.gmra.mxu0 %v1555
        %v2011 = vpop.f32.mrf.mxu0
        %v2012 = vadd.f32 %v1596, %v2011
        %v2013 = vpop.f32.mrf.mxu0
        %v2014 = vadd.f32 %v1596, %v2013
        %2015 = vmatmul.bf16.gmra.mxu0 %v1557
        %v2016 = vpop.f32.mrf.mxu0
        %v2017 = vadd.f32 %v1596, %v2016
        %v2018 = vpop.f32.mrf.mxu0
        %v2019 = vadd.f32 %v1596, %v2018
        %2020 = vmatmul.bf16.gmra.mxu0 %v1559
        %v2021 = vpop.f32.mrf.mxu0
        %v2022 = vadd.f32 %v1596, %v2021
        %v2023 = vpop.f32.mrf.mxu0
        %v2024 = vadd.f32 %v1596, %v2023
        %2025 = vdwg.mxu0
        %2026 = vmatpush.bf16.msra.mxu0 %v1726
        %2027 = vmatpush.bf16.msra.mxu0 %v1724
        %2028 = vmatpush.bf16.msra.mxu0 %v1722
        %2029 = vmatpush.bf16.msra.mxu0 %v1720
        %2030 = vmatpush.bf16.msra.mxu0 %v1718
        %2031 = vmatpush.bf16.msra.mxu0 %v1716
        %2032 = vmatpush.bf16.msra.mxu0 %v1714
        %2033 = vmatpush.bf16.msra.mxu0 %v1712
        %2034 = vmatmul.bf16.gmra.mxu0 %v1530
        %v2035 = vpop.f32.mrf.mxu0
        %v2036 = vadd.f32 %v1947, %v2035
        %v2037 = vpop.f32.mrf.mxu0
        %v2038 = vadd.f32 %v1949, %v2037
        %2039 = vmatmul.bf16.gmra.mxu0 %v1532
        %v2040 = vpop.f32.mrf.mxu0
        %v2041 = vadd.f32 %v1952, %v2040
        %v2042 = vpop.f32.mrf.mxu0
        %v2043 = vadd.f32 %v1954, %v2042
        %2044 = vmatmul.bf16.gmra.mxu0 %v1534
        %v2045 = vpop.f32.mrf.mxu0
        %v2046 = vadd.f32 %v1957, %v2045
        %v2047 = vpop.f32.mrf.mxu0
        %v2048 = vadd.f32 %v1959, %v2047
        %2049 = vmatmul.bf16.gmra.mxu0 %v1536
        %v2050 = vpop.f32.mrf.mxu0
        %v2051 = vadd.f32 %v1962, %v2050
        %v2052 = vpop.f32.mrf.mxu0
        %v2053 = vadd.f32 %v1964, %v2052
        %2054 = vmatmul.bf16.gmra.mxu0 %v1538
        %v2055 = vpop.f32.mrf.mxu0
        %v2056 = vadd.f32 %v1967, %v2055
        %v2057 = vpop.f32.mrf.mxu0
        %v2058 = vadd.f32 %v1969, %v2057
        %2059 = vmatmul.bf16.gmra.mxu0 %v1540
        %v2060 = vpop.f32.mrf.mxu0
        %v2061 = vadd.f32 %v1972, %v2060
        %v2062 = vpop.f32.mrf.mxu0
        %v2063 = vadd.f32 %v1974, %v2062
        %2064 = vmatmul.bf16.gmra.mxu0 %v1542
        %v2065 = vpop.f32.mrf.mxu0
        %v2066 = vadd.f32 %v1977, %v2065
        %v2067 = vpop.f32.mrf.mxu0
        %v2068 = vadd.f32 %v1979, %v2067
        %2069 = vmatmul.bf16.gmra.mxu0 %v1544
        %v2070 = vpop.f32.mrf.mxu0
        %v2071 = vadd.f32 %v1982, %v2070
        %v2072 = vpop.f32.mrf.mxu0
        %v2073 = vadd.f32 %v1984, %v2072
        %2074 = vmatmul.bf16.gmra.mxu0 %v1546
        %v2075 = vpop.f32.mrf.mxu0
        %v2076 = vadd.f32 %v1987, %v2075
        %v2077 = vpop.f32.mrf.mxu0
        %v2078 = vadd.f32 %v1989, %v2077
        %2079 = vmatmul.bf16.gmra.mxu0 %v1548
        %v2080 = vpop.f32.mrf.mxu0
        %v2081 = vadd.f32 %v1992, %v2080
        %v2082 = vpop.f32.mrf.mxu0
        %v2083 = vadd.f32 %v1994, %v2082
        %2084 = vmatmul.bf16.gmra.mxu0 %v1550
        %v2085 = vpop.f32.mrf.mxu0
        %v2086 = vadd.f32 %v1997, %v2085
        %v2087 = vpop.f32.mrf.mxu0
        %v2088 = vadd.f32 %v1999, %v2087
        %2089 = vmatmul.bf16.gmra.mxu0 %v1552
        %v2090 = vpop.f32.mrf.mxu0
        %v2091 = vadd.f32 %v2002, %v2090
        %v2092 = vpop.f32.mrf.mxu0
        %v2093 = vadd.f32 %v2004, %v2092
        %2094 = vmatmul.bf16.gmra.mxu0 %v1554
        %v2095 = vpop.f32.mrf.mxu0
        %v2096 = vadd.f32 %v2007, %v2095
        %v2097 = vpop.f32.mrf.mxu0
        %v2098 = vadd.f32 %v2009, %v2097
        %2099 = vmatmul.bf16.gmra.mxu0 %v1556
        %v2100 = vpop.f32.mrf.mxu0
        %v2101 = vadd.f32 %v2012, %v2100
        %v2102 = vpop.f32.mrf.mxu0
        %v2103 = vadd.f32 %v2014, %v2102
        %2104 = vmatmul.bf16.gmra.mxu0 %v1558
        %v2105 = vpop.f32.mrf.mxu0
        %v2106 = vadd.f32 %v2017, %v2105
        %v2107 = vpop.f32.mrf.mxu0
        %v2108 = vadd.f32 %v2019, %v2107
        %2109 = vmatmul.bf16.gmra.mxu0 %v1560
        %v2110 = vpop.f32.mrf.mxu0
        %v2111 = vadd.f32 %v2022, %v2110
        %v2112 = vpop.f32.mrf.mxu0
        %v2113 = vadd.f32 %v2024, %v2112
        %2114 = vdwg.mxu0
        %v2115 = vmax.f32 %v1858, 0.0
        %v2116 = vmax.f32 %v2036, 0.0
        %v2117 = vmax.f32 %v1860, 0.0
        %v2118 = vmax.f32 %v2038, 0.0
        %v2119 = vmax.f32 %v1863, 0.0
        %v2120 = vmax.f32 %v2041, 0.0
        %v2121 = vmax.f32 %v1865, 0.0
        %v2122 = vmax.f32 %v2043, 0.0
        %v2123 = vmax.f32 %v1868, 0.0
        %v2124 = vmax.f32 %v2046, 0.0
        %v2125 = vmax.f32 %v1870, 0.0
        %v2126 = vmax.f32 %v2048, 0.0
        %v2127 = vmax.f32 %v1873, 0.0
        %v2128 = vmax.f32 %v2051, 0.0
        %v2129 = vmax.f32 %v1875, 0.0
        %v2130 = vmax.f32 %v2053, 0.0
        %v2131 = vmax.f32 %v1878, 0.0
        %v2132 = vmax.f32 %v2056, 0.0
        %v2133 = vmax.f32 %v1880, 0.0
        %v2134 = vmax.f32 %v2058, 0.0
        %v2135 = vmax.f32 %v1883, 0.0
        %v2136 = vmax.f32 %v2061, 0.0
        %v2137 = vmax.f32 %v1885, 0.0
        %v2138 = vmax.f32 %v2063, 0.0
        %v2139 = vmax.f32 %v1888, 0.0
        %v2140 = vmax.f32 %v2066, 0.0
        %v2141 = vmax.f32 %v1890, 0.0
        %v2142 = vmax.f32 %v2068, 0.0
        %v2143 = vmax.f32 %v1893, 0.0
        %v2144 = vmax.f32 %v2071, 0.0
        %v2145 = vmax.f32 %v1895, 0.0
        %v2146 = vmax.f32 %v2073, 0.0
        %v2147 = vmax.f32 %v1898, 0.0
        %v2148 = vmax.f32 %v2076, 0.0
        %v2149 = vmax.f32 %v1900, 0.0
        %v2150 = vmax.f32 %v2078, 0.0
        %v2151 = vmax.f32 %v1903, 0.0
        %v2152 = vmax.f32 %v2081, 0.0
        %v2153 = vmax.f32 %v1905, 0.0
        %v2154 = vmax.f32 %v2083, 0.0
        %v2155 = vmax.f32 %v1908, 0.0
        %v2156 = vmax.f32 %v2086, 0.0
        %v2157 = vmax.f32 %v1910, 0.0
        %v2158 = vmax.f32 %v2088, 0.0
        %v2159 = vmax.f32 %v1913, 0.0
        %v2160 = vmax.f32 %v2091, 0.0
        %v2161 = vmax.f32 %v1915, 0.0
        %v2162 = vmax.f32 %v2093, 0.0
        %v2163 = vmax.f32 %v1918, 0.0
        %v2164 = vmax.f32 %v2096, 0.0
        %v2165 = vmax.f32 %v1920, 0.0
        %v2166 = vmax.f32 %v2098, 0.0
        %v2167 = vmax.f32 %v1923, 0.0
        %v2168 = vmax.f32 %v2101, 0.0
        %v2169 = vmax.f32 %v1925, 0.0
        %v2170 = vmax.f32 %v2103, 0.0
        %v2171 = vmax.f32 %v1928, 0.0
        %v2172 = vmax.f32 %v2106, 0.0
        %v2173 = vmax.f32 %v1930, 0.0
        %v2174 = vmax.f32 %v2108, 0.0
        %v2175 = vmax.f32 %v1933, 0.0
        %v2176 = vmax.f32 %v2111, 0.0
        %v2177 = vmax.f32 %v1935, 0.0
        %v2178 = vmax.f32 %v2113, 0.0
        %v2179 = vpack.c.bf16 %v2117, %v2115
        %v2180 = vpack.c.bf16 %v2118, %v2116
        %v2181 = vpack.c.bf16 %v2121, %v2119
        %v2182 = vpack.c.bf16 %v2122, %v2120
        %v2183 = vpack.c.bf16 %v2125, %v2123
        %v2184 = vpack.c.bf16 %v2126, %v2124
        %v2185 = vpack.c.bf16 %v2129, %v2127
        %v2186 = vpack.c.bf16 %v2130, %v2128
        %v2187 = vpack.c.bf16 %v2133, %v2131
        %v2188 = vpack.c.bf16 %v2134, %v2132
        %v2189 = vpack.c.bf16 %v2137, %v2135
        %v2190 = vpack.c.bf16 %v2138, %v2136
        %v2191 = vpack.c.bf16 %v2141, %v2139
        %v2192 = vpack.c.bf16 %v2142, %v2140
        %v2193 = vpack.c.bf16 %v2145, %v2143
        %v2194 = vpack.c.bf16 %v2146, %v2144
        %v2195 = vpack.c.bf16 %v2149, %v2147
        %v2196 = vpack.c.bf16 %v2150, %v2148
        %v2197 = vpack.c.bf16 %v2153, %v2151
        %v2198 = vpack.c.bf16 %v2154, %v2152
        %v2199 = vpack.c.bf16 %v2157, %v2155
        %v2200 = vpack.c.bf16 %v2158, %v2156
        %v2201 = vpack.c.bf16 %v2161, %v2159
        %v2202 = vpack.c.bf16 %v2162, %v2160
        %v2203 = vpack.c.bf16 %v2165, %v2163
        %v2204 = vpack.c.bf16 %v2166, %v2164
        %v2205 = vpack.c.bf16 %v2169, %v2167
        %v2206 = vpack.c.bf16 %v2170, %v2168
        %v2207 = vpack.c.bf16 %v2173, %v2171
        %v2208 = vpack.c.bf16 %v2174, %v2172
        %v2209 = vpack.c.bf16 %v2177, %v2175
        %v2210 = vpack.c.bf16 %v2178, %v2176
        %v2211 = vld [vmem:[#allocation10] sm:$0xff]
        %v2212 = vld [vmem:[#allocation10 + $0x8] sm:$0xff]
        %v2213 = vld [vmem:[#allocation10 + $0x10] sm:$0xff]
        %v2214 = vld [vmem:[#allocation10 + $0x18] sm:$0xff]
        %v2215 = vld [vmem:[#allocation10 + $0x20] sm:$0xff]
        %v2216 = vld [vmem:[#allocation10 + $0x28] sm:$0xff]
        %v2217 = vld [vmem:[#allocation10 + $0x30] sm:$0xff]
        %v2218 = vld [vmem:[#allocation10 + $0x38] sm:$0xff]
        %v2219 = vld [vmem:[#allocation10 + $0x40] sm:$0xff]
        %v2220 = vld [vmem:[#allocation10 + $0x48] sm:$0xff]
        %v2221 = vld [vmem:[#allocation10 + $0x50] sm:$0xff]
        %v2222 = vld [vmem:[#allocation10 + $0x58] sm:$0xff]
        %v2223 = vld [vmem:[#allocation10 + $0x60] sm:$0xff]
        %v2224 = vld [vmem:[#allocation10 + $0x68] sm:$0xff]
        %v2225 = vld [vmem:[#allocation10 + $0x70] sm:$0xff]
        %v2226 = vld [vmem:[#allocation10 + $0x78] sm:$0xff]
        %v2227 = vld [vmem:[#allocation10 + $0x80] sm:$0xff]
        %v2228 = vld [vmem:[#allocation10 + $0x88] sm:$0xff]
        %v2229 = vld [vmem:[#allocation10 + $0x90] sm:$0xff]
        %v2230 = vld [vmem:[#allocation10 + $0x98] sm:$0xff]
        %v2231 = vld [vmem:[#allocation10 + $0xa0] sm:$0xff]
        %v2232 = vld [vmem:[#allocation10 + $0xa8] sm:$0xff]
        %v2233 = vld [vmem:[#allocation10 + $0xb0] sm:$0xff]
        %v2234 = vld [vmem:[#allocation10 + $0xb8] sm:$0xff]
        %v2235 = vld [vmem:[#allocation10 + $0xc0] sm:$0xff]
        %v2236 = vld [vmem:[#allocation10 + $0xc8] sm:$0xff]
        %v2237 = vld [vmem:[#allocation10 + $0xd0] sm:$0xff]
        %v2238 = vld [vmem:[#allocation10 + $0xd8] sm:$0xff]
        %v2239 = vld [vmem:[#allocation10 + $0xe0] sm:$0xff]
        %v2240 = vld [vmem:[#allocation10 + $0xe8] sm:$0xff]
        %v2241 = vld [vmem:[#allocation10 + $0xf0] sm:$0xff]
        %v2242 = vld [vmem:[#allocation10 + $0xf8] sm:$0xff]
        %v2243 = vld [vmem:[%s6] sm:$0x3]
        %v2245 = vperm.slane %v2243, 0
        %v2246 = vperm.slane %v2243, 1
        %v2281 = vunpack.c.l.b16 %v2211
        %v2282 = vunpack.c.h.b16 %v2211
        %v2283 = vunpack.c.l.b16 %v2212
        %v2284 = vunpack.c.h.b16 %v2212
        %v2285 = vunpack.c.l.b16 %v2213
        %v2286 = vunpack.c.h.b16 %v2213
        %v2287 = vunpack.c.l.b16 %v2214
        %v2288 = vunpack.c.h.b16 %v2214
        %v2289 = vunpack.c.l.b16 %v2215
        %v2290 = vunpack.c.h.b16 %v2215
        %v2291 = vunpack.c.l.b16 %v2216
        %v2292 = vunpack.c.h.b16 %v2216
        %v2293 = vunpack.c.l.b16 %v2217
        %v2294 = vunpack.c.h.b16 %v2217
        %v2295 = vunpack.c.l.b16 %v2218
        %v2296 = vunpack.c.h.b16 %v2218
        %v2297 = vunpack.c.l.b16 %v2219
        %v2298 = vunpack.c.h.b16 %v2219
        %v2299 = vunpack.c.l.b16 %v2220
        %v2300 = vunpack.c.h.b16 %v2220
        %v2301 = vunpack.c.l.b16 %v2221
        %v2302 = vunpack.c.h.b16 %v2221
        %v2303 = vunpack.c.l.b16 %v2222
        %v2304 = vunpack.c.h.b16 %v2222
        %v2305 = vunpack.c.l.b16 %v2223
        %v2306 = vunpack.c.h.b16 %v2223
        %v2307 = vunpack.c.l.b16 %v2224
        %v2308 = vunpack.c.h.b16 %v2224
        %v2309 = vunpack.c.l.b16 %v2225
        %v2310 = vunpack.c.h.b16 %v2225
        %v2311 = vunpack.c.l.b16 %v2226
        %v2312 = vunpack.c.h.b16 %v2226
        %v2313 = vunpack.c.l.b16 %v2227
        %v2314 = vunpack.c.h.b16 %v2227
        %v2315 = vunpack.c.l.b16 %v2228
        %v2316 = vunpack.c.h.b16 %v2228
        %v2317 = vunpack.c.l.b16 %v2229
        %v2318 = vunpack.c.h.b16 %v2229
        %v2319 = vunpack.c.l.b16 %v2230
        %v2320 = vunpack.c.h.b16 %v2230
        %v2321 = vunpack.c.l.b16 %v2231
        %v2322 = vunpack.c.h.b16 %v2231
        %v2323 = vunpack.c.l.b16 %v2232
        %v2324 = vunpack.c.h.b16 %v2232
        %v2325 = vunpack.c.l.b16 %v2233
        %v2326 = vunpack.c.h.b16 %v2233
        %v2327 = vunpack.c.l.b16 %v2234
        %v2328 = vunpack.c.h.b16 %v2234
        %v2329 = vunpack.c.l.b16 %v2235
        %v2330 = vunpack.c.h.b16 %v2235
        %v2331 = vunpack.c.l.b16 %v2236
        %v2332 = vunpack.c.h.b16 %v2236
        %v2333 = vunpack.c.l.b16 %v2237
        %v2334 = vunpack.c.h.b16 %v2237
        %v2335 = vunpack.c.l.b16 %v2238
        %v2336 = vunpack.c.h.b16 %v2238
        %v2337 = vunpack.c.l.b16 %v2239
        %v2338 = vunpack.c.h.b16 %v2239
        %v2339 = vunpack.c.l.b16 %v2240
        %v2340 = vunpack.c.h.b16 %v2240
        %v2341 = vunpack.c.l.b16 %v2241
        %v2342 = vunpack.c.h.b16 %v2241
        %v2343 = vunpack.c.l.b16 %v2242
        %v2344 = vunpack.c.h.b16 %v2242
        %v2345 = vpack.c.b16 %v2283, %v2281
        %v2346 = vpack.c.b16 %v2284, %v2282
        %v2347 = vpack.c.b16 %v2287, %v2285
        %v2348 = vpack.c.b16 %v2288, %v2286
        %v2349 = vpack.c.b16 %v2291, %v2289
        %v2350 = vpack.c.b16 %v2292, %v2290
        %v2351 = vpack.c.b16 %v2295, %v2293
        %v2352 = vpack.c.b16 %v2296, %v2294
        %v2353 = vpack.c.b16 %v2299, %v2297
        %v2354 = vpack.c.b16 %v2300, %v2298
        %v2355 = vpack.c.b16 %v2303, %v2301
        %v2356 = vpack.c.b16 %v2304, %v2302
        %v2357 = vpack.c.b16 %v2307, %v2305
        %v2358 = vpack.c.b16 %v2308, %v2306
        %v2359 = vpack.c.b16 %v2311, %v2309
        %v2360 = vpack.c.b16 %v2312, %v2310
        %v2361 = vpack.c.b16 %v2315, %v2313
        %v2362 = vpack.c.b16 %v2316, %v2314
        %v2363 = vpack.c.b16 %v2319, %v2317
        %v2364 = vpack.c.b16 %v2320, %v2318
        %v2365 = vpack.c.b16 %v2323, %v2321
        %v2366 = vpack.c.b16 %v2324, %v2322
        %v2367 = vpack.c.b16 %v2327, %v2325
        %v2368 = vpack.c.b16 %v2328, %v2326
        %v2369 = vpack.c.b16 %v2331, %v2329
        %v2370 = vpack.c.b16 %v2332, %v2330
        %v2371 = vpack.c.b16 %v2335, %v2333
        %v2372 = vpack.c.b16 %v2336, %v2334
        %v2373 = vpack.c.b16 %v2339, %v2337
        %v2374 = vpack.c.b16 %v2340, %v2338
        %v2375 = vpack.c.b16 %v2343, %v2341
        %v2376 = vpack.c.b16 %v2344, %v2342
        %2409 = vmatpush.bf16.msra.mxu0 %v2359
        %2410 = vmatpush.bf16.msra.mxu0 %v2357
        %2411 = vmatpush.bf16.msra.mxu0 %v2355
        %2412 = vmatpush.bf16.msra.mxu0 %v2353
        %2413 = vmatpush.bf16.msra.mxu0 %v2351
        %2414 = vmatpush.bf16.msra.mxu0 %v2349
        %2415 = vmatpush.bf16.msra.mxu0 %v2347
        %2416 = vmatpush.bf16.msra.mxu0 %v2345
        %2417 = vmatmul.bf16.gmra.mxu0 %v2179
        %v2418 = vpop.f32.mrf.mxu0
        %v2419 = vadd.f32 %v2245, %v2418
        %v2420 = vpop.f32.mrf.mxu0
        %v2421 = vadd.f32 %v2245, %v2420
        %2422 = vmatmul.bf16.gmra.mxu0 %v2181
        %v2423 = vpop.f32.mrf.mxu0
        %v2424 = vadd.f32 %v2245, %v2423
        %v2425 = vpop.f32.mrf.mxu0
        %v2426 = vadd.f32 %v2245, %v2425
        %2427 = vmatmul.bf16.gmra.mxu0 %v2183
        %v2428 = vpop.f32.mrf.mxu0
        %v2429 = vadd.f32 %v2245, %v2428
        %v2430 = vpop.f32.mrf.mxu0
        %v2431 = vadd.f32 %v2245, %v2430
        %2432 = vmatmul.bf16.gmra.mxu0 %v2185
        %v2433 = vpop.f32.mrf.mxu0
        %v2434 = vadd.f32 %v2245, %v2433
        %v2435 = vpop.f32.mrf.mxu0
        %v2436 = vadd.f32 %v2245, %v2435
        %2437 = vmatmul.bf16.gmra.mxu0 %v2187
        %v2438 = vpop.f32.mrf.mxu0
        %v2439 = vadd.f32 %v2245, %v2438
        %v2440 = vpop.f32.mrf.mxu0
        %v2441 = vadd.f32 %v2245, %v2440
        %2442 = vmatmul.bf16.gmra.mxu0 %v2189
        %v2443 = vpop.f32.mrf.mxu0
        %v2444 = vadd.f32 %v2245, %v2443
        %v2445 = vpop.f32.mrf.mxu0
        %v2446 = vadd.f32 %v2245, %v2445
        %2447 = vmatmul.bf16.gmra.mxu0 %v2191
        %v2448 = vpop.f32.mrf.mxu0
        %v2449 = vadd.f32 %v2245, %v2448
        %v2450 = vpop.f32.mrf.mxu0
        %v2451 = vadd.f32 %v2245, %v2450
        %2452 = vmatmul.bf16.gmra.mxu0 %v2193
        %v2453 = vpop.f32.mrf.mxu0
        %v2454 = vadd.f32 %v2245, %v2453
        %v2455 = vpop.f32.mrf.mxu0
        %v2456 = vadd.f32 %v2245, %v2455
        %2457 = vmatmul.bf16.gmra.mxu0 %v2195
        %v2458 = vpop.f32.mrf.mxu0
        %v2459 = vadd.f32 %v2245, %v2458
        %v2460 = vpop.f32.mrf.mxu0
        %v2461 = vadd.f32 %v2245, %v2460
        %2462 = vmatmul.bf16.gmra.mxu0 %v2197
        %v2463 = vpop.f32.mrf.mxu0
        %v2464 = vadd.f32 %v2245, %v2463
        %v2465 = vpop.f32.mrf.mxu0
        %v2466 = vadd.f32 %v2245, %v2465
        %2467 = vmatmul.bf16.gmra.mxu0 %v2199
        %v2468 = vpop.f32.mrf.mxu0
        %v2469 = vadd.f32 %v2245, %v2468
        %v2470 = vpop.f32.mrf.mxu0
        %v2471 = vadd.f32 %v2245, %v2470
        %2472 = vmatmul.bf16.gmra.mxu0 %v2201
        %v2473 = vpop.f32.mrf.mxu0
        %v2474 = vadd.f32 %v2245, %v2473
        %v2475 = vpop.f32.mrf.mxu0
        %v2476 = vadd.f32 %v2245, %v2475
        %2477 = vmatmul.bf16.gmra.mxu0 %v2203
        %v2478 = vpop.f32.mrf.mxu0
        %v2479 = vadd.f32 %v2245, %v2478
        %v2480 = vpop.f32.mrf.mxu0
        %v2481 = vadd.f32 %v2245, %v2480
        %2482 = vmatmul.bf16.gmra.mxu0 %v2205
        %v2483 = vpop.f32.mrf.mxu0
        %v2484 = vadd.f32 %v2245, %v2483
        %v2485 = vpop.f32.mrf.mxu0
        %v2486 = vadd.f32 %v2245, %v2485
        %2487 = vmatmul.bf16.gmra.mxu0 %v2207
        %v2488 = vpop.f32.mrf.mxu0
        %v2489 = vadd.f32 %v2245, %v2488
        %v2490 = vpop.f32.mrf.mxu0
        %v2491 = vadd.f32 %v2245, %v2490
        %2492 = vmatmul.bf16.gmra.mxu0 %v2209
        %v2493 = vpop.f32.mrf.mxu0
        %v2494 = vadd.f32 %v2245, %v2493
        %v2495 = vpop.f32.mrf.mxu0
        %v2496 = vadd.f32 %v2245, %v2495
        %2497 = vdwg.mxu0
        %2498 = vmatpush.bf16.msra.mxu0 %v2375
        %2499 = vmatpush.bf16.msra.mxu0 %v2373
        %2500 = vmatpush.bf16.msra.mxu0 %v2371
        %2501 = vmatpush.bf16.msra.mxu0 %v2369
        %2502 = vmatpush.bf16.msra.mxu0 %v2367
        %2503 = vmatpush.bf16.msra.mxu0 %v2365
        %2504 = vmatpush.bf16.msra.mxu0 %v2363
        %2505 = vmatpush.bf16.msra.mxu0 %v2361
        %2506 = vmatmul.bf16.gmra.mxu0 %v2180
        %v2507 = vpop.f32.mrf.mxu0
        %v2508 = vadd.f32 %v2419, %v2507
        %v2509 = vpop.f32.mrf.mxu0
        %v2510 = vadd.f32 %v2421, %v2509
        %2511 = vmatmul.bf16.gmra.mxu0 %v2182
        %v2512 = vpop.f32.mrf.mxu0
        %v2513 = vadd.f32 %v2424, %v2512
        %v2514 = vpop.f32.mrf.mxu0
        %v2515 = vadd.f32 %v2426, %v2514
        %2516 = vmatmul.bf16.gmra.mxu0 %v2184
        %v2517 = vpop.f32.mrf.mxu0
        %v2518 = vadd.f32 %v2429, %v2517
        %v2519 = vpop.f32.mrf.mxu0
        %v2520 = vadd.f32 %v2431, %v2519
        %2521 = vmatmul.bf16.gmra.mxu0 %v2186
        %v2522 = vpop.f32.mrf.mxu0
        %v2523 = vadd.f32 %v2434, %v2522
        %v2524 = vpop.f32.mrf.mxu0
        %v2525 = vadd.f32 %v2436, %v2524
        %2526 = vmatmul.bf16.gmra.mxu0 %v2188
        %v2527 = vpop.f32.mrf.mxu0
        %v2528 = vadd.f32 %v2439, %v2527
        %v2529 = vpop.f32.mrf.mxu0
        %v2530 = vadd.f32 %v2441, %v2529
        %2531 = vmatmul.bf16.gmra.mxu0 %v2190
        %v2532 = vpop.f32.mrf.mxu0
        %v2533 = vadd.f32 %v2444, %v2532
        %v2534 = vpop.f32.mrf.mxu0
        %v2535 = vadd.f32 %v2446, %v2534
        %2536 = vmatmul.bf16.gmra.mxu0 %v2192
        %v2537 = vpop.f32.mrf.mxu0
        %v2538 = vadd.f32 %v2449, %v2537
        %v2539 = vpop.f32.mrf.mxu0
        %v2540 = vadd.f32 %v2451, %v2539
        %2541 = vmatmul.bf16.gmra.mxu0 %v2194
        %v2542 = vpop.f32.mrf.mxu0
        %v2543 = vadd.f32 %v2454, %v2542
        %v2544 = vpop.f32.mrf.mxu0
        %v2545 = vadd.f32 %v2456, %v2544
        %2546 = vmatmul.bf16.gmra.mxu0 %v2196
        %v2547 = vpop.f32.mrf.mxu0
        %v2548 = vadd.f32 %v2459, %v2547
        %v2549 = vpop.f32.mrf.mxu0
        %v2550 = vadd.f32 %v2461, %v2549
        %2551 = vmatmul.bf16.gmra.mxu0 %v2198
        %v2552 = vpop.f32.mrf.mxu0
        %v2553 = vadd.f32 %v2464, %v2552
        %v2554 = vpop.f32.mrf.mxu0
        %v2555 = vadd.f32 %v2466, %v2554
        %2556 = vmatmul.bf16.gmra.mxu0 %v2200
        %v2557 = vpop.f32.mrf.mxu0
        %v2558 = vadd.f32 %v2469, %v2557
        %v2559 = vpop.f32.mrf.mxu0
        %v2560 = vadd.f32 %v2471, %v2559
        %2561 = vmatmul.bf16.gmra.mxu0 %v2202
        %v2562 = vpop.f32.mrf.mxu0
        %v2563 = vadd.f32 %v2474, %v2562
        %v2564 = vpop.f32.mrf.mxu0
        %v2565 = vadd.f32 %v2476, %v2564
        %2566 = vmatmul.bf16.gmra.mxu0 %v2204
        %v2567 = vpop.f32.mrf.mxu0
        %v2568 = vadd.f32 %v2479, %v2567
        %v2569 = vpop.f32.mrf.mxu0
        %v2570 = vadd.f32 %v2481, %v2569
        %2571 = vmatmul.bf16.gmra.mxu0 %v2206
        %v2572 = vpop.f32.mrf.mxu0
        %v2573 = vadd.f32 %v2484, %v2572
        %v2574 = vpop.f32.mrf.mxu0
        %v2575 = vadd.f32 %v2486, %v2574
        %2576 = vmatmul.bf16.gmra.mxu0 %v2208
        %v2577 = vpop.f32.mrf.mxu0
        %v2578 = vadd.f32 %v2489, %v2577
        %v2579 = vpop.f32.mrf.mxu0
        %v2580 = vadd.f32 %v2491, %v2579
        %2581 = vmatmul.bf16.gmra.mxu0 %v2210
        %v2582 = vpop.f32.mrf.mxu0
        %v2583 = vadd.f32 %v2494, %v2582
        %v2584 = vpop.f32.mrf.mxu0
        %v2585 = vadd.f32 %v2496, %v2584
        %2586 = vdwg.mxu0
        %2587 = vmatpush.bf16.msra.mxu0 %v2360
        %2588 = vmatpush.bf16.msra.mxu0 %v2358
        %2589 = vmatpush.bf16.msra.mxu0 %v2356
        %2590 = vmatpush.bf16.msra.mxu0 %v2354
        %2591 = vmatpush.bf16.msra.mxu0 %v2352
        %2592 = vmatpush.bf16.msra.mxu0 %v2350
        %2593 = vmatpush.bf16.msra.mxu0 %v2348
        %2594 = vmatpush.bf16.msra.mxu0 %v2346
        %2595 = vmatmul.bf16.gmra.mxu0 %v2179
        %v2596 = vpop.f32.mrf.mxu0
        %v2597 = vadd.f32 %v2246, %v2596
        %v2598 = vpop.f32.mrf.mxu0
        %v2599 = vadd.f32 %v2246, %v2598
        %2600 = vmatmul.bf16.gmra.mxu0 %v2181
        %v2601 = vpop.f32.mrf.mxu0
        %v2602 = vadd.f32 %v2246, %v2601
        %v2603 = vpop.f32.mrf.mxu0
        %v2604 = vadd.f32 %v2246, %v2603
        %2605 = vmatmul.bf16.gmra.mxu0 %v2183
        %v2606 = vpop.f32.mrf.mxu0
        %v2607 = vadd.f32 %v2246, %v2606
        %v2608 = vpop.f32.mrf.mxu0
        %v2609 = vadd.f32 %v2246, %v2608
        %2610 = vmatmul.bf16.gmra.mxu0 %v2185
        %v2611 = vpop.f32.mrf.mxu0
        %v2612 = vadd.f32 %v2246, %v2611
        %v2613 = vpop.f32.mrf.mxu0
        %v2614 = vadd.f32 %v2246, %v2613
        %2615 = vmatmul.bf16.gmra.mxu0 %v2187
        %v2616 = vpop.f32.mrf.mxu0
        %v2617 = vadd.f32 %v2246, %v2616
        %v2618 = vpop.f32.mrf.mxu0
        %v2619 = vadd.f32 %v2246, %v2618
        %2620 = vmatmul.bf16.gmra.mxu0 %v2189
        %v2621 = vpop.f32.mrf.mxu0
        %v2622 = vadd.f32 %v2246, %v2621
        %v2623 = vpop.f32.mrf.mxu0
        %v2624 = vadd.f32 %v2246, %v2623
        %2625 = vmatmul.bf16.gmra.mxu0 %v2191
        %v2626 = vpop.f32.mrf.mxu0
        %v2627 = vadd.f32 %v2246, %v2626
        %v2628 = vpop.f32.mrf.mxu0
        %v2629 = vadd.f32 %v2246, %v2628
        %2630 = vmatmul.bf16.gmra.mxu0 %v2193
        %v2631 = vpop.f32.mrf.mxu0
        %v2632 = vadd.f32 %v2246, %v2631
        %v2633 = vpop.f32.mrf.mxu0
        %v2634 = vadd.f32 %v2246, %v2633
        %2635 = vmatmul.bf16.gmra.mxu0 %v2195
        %v2636 = vpop.f32.mrf.mxu0
        %v2637 = vadd.f32 %v2246, %v2636
        %v2638 = vpop.f32.mrf.mxu0
        %v2639 = vadd.f32 %v2246, %v2638
        %2640 = vmatmul.bf16.gmra.mxu0 %v2197
        %v2641 = vpop.f32.mrf.mxu0
        %v2642 = vadd.f32 %v2246, %v2641
        %v2643 = vpop.f32.mrf.mxu0
        %v2644 = vadd.f32 %v2246, %v2643
        %2645 = vmatmul.bf16.gmra.mxu0 %v2199
        %v2646 = vpop.f32.mrf.mxu0
        %v2647 = vadd.f32 %v2246, %v2646
        %v2648 = vpop.f32.mrf.mxu0
        %v2649 = vadd.f32 %v2246, %v2648
        %2650 = vmatmul.bf16.gmra.mxu0 %v2201
        %v2651 = vpop.f32.mrf.mxu0
        %v2652 = vadd.f32 %v2246, %v2651
        %v2653 = vpop.f32.mrf.mxu0
        %v2654 = vadd.f32 %v2246, %v2653
        %2655 = vmatmul.bf16.gmra.mxu0 %v2203
        %v2656 = vpop.f32.mrf.mxu0
        %v2657 = vadd.f32 %v2246, %v2656
        %v2658 = vpop.f32.mrf.mxu0
        %v2659 = vadd.f32 %v2246, %v2658
        %2660 = vmatmul.bf16.gmra.mxu0 %v2205
        %v2661 = vpop.f32.mrf.mxu0
        %v2662 = vadd.f32 %v2246, %v2661
        %v2663 = vpop.f32.mrf.mxu0
        %v2664 = vadd.f32 %v2246, %v2663
        %2665 = vmatmul.bf16.gmra.mxu0 %v2207
        %v2666 = vpop.f32.mrf.mxu0
        %v2667 = vadd.f32 %v2246, %v2666
        %v2668 = vpop.f32.mrf.mxu0
        %v2669 = vadd.f32 %v2246, %v2668
        %2670 = vmatmul.bf16.gmra.mxu0 %v2209
        %v2671 = vpop.f32.mrf.mxu0
        %v2672 = vadd.f32 %v2246, %v2671
        %v2673 = vpop.f32.mrf.mxu0
        %v2674 = vadd.f32 %v2246, %v2673
        %2675 = vdwg.mxu0
        %2676 = vmatpush.bf16.msra.mxu0 %v2376
        %2677 = vmatpush.bf16.msra.mxu0 %v2374
        %2678 = vmatpush.bf16.msra.mxu0 %v2372
        %2679 = vmatpush.bf16.msra.mxu0 %v2370
        %2680 = vmatpush.bf16.msra.mxu0 %v2368
        %2681 = vmatpush.bf16.msra.mxu0 %v2366
        %2682 = vmatpush.bf16.msra.mxu0 %v2364
        %2683 = vmatpush.bf16.msra.mxu0 %v2362
        %2684 = vmatmul.bf16.gmra.mxu0 %v2180
        %v2685 = vpop.f32.mrf.mxu0
        %v2686 = vadd.f32 %v2597, %v2685
        %v2687 = vpop.f32.mrf.mxu0
        %v2688 = vadd.f32 %v2599, %v2687
        %2689 = vmatmul.bf16.gmra.mxu0 %v2182
        %v2690 = vpop.f32.mrf.mxu0
        %v2691 = vadd.f32 %v2602, %v2690
        %v2692 = vpop.f32.mrf.mxu0
        %v2693 = vadd.f32 %v2604, %v2692
        %2694 = vmatmul.bf16.gmra.mxu0 %v2184
        %v2695 = vpop.f32.mrf.mxu0
        %v2696 = vadd.f32 %v2607, %v2695
        %v2697 = vpop.f32.mrf.mxu0
        %v2698 = vadd.f32 %v2609, %v2697
        %2699 = vmatmul.bf16.gmra.mxu0 %v2186
        %v2700 = vpop.f32.mrf.mxu0
        %v2701 = vadd.f32 %v2612, %v2700
        %v2702 = vpop.f32.mrf.mxu0
        %v2703 = vadd.f32 %v2614, %v2702
        %2704 = vmatmul.bf16.gmra.mxu0 %v2188
        %v2705 = vpop.f32.mrf.mxu0
        %v2706 = vadd.f32 %v2617, %v2705
        %v2707 = vpop.f32.mrf.mxu0
        %v2708 = vadd.f32 %v2619, %v2707
        %2709 = vmatmul.bf16.gmra.mxu0 %v2190
        %v2710 = vpop.f32.mrf.mxu0
        %v2711 = vadd.f32 %v2622, %v2710
        %v2712 = vpop.f32.mrf.mxu0
        %v2713 = vadd.f32 %v2624, %v2712
        %2714 = vmatmul.bf16.gmra.mxu0 %v2192
        %v2715 = vpop.f32.mrf.mxu0
        %v2716 = vadd.f32 %v2627, %v2715
        %v2717 = vpop.f32.mrf.mxu0
        %v2718 = vadd.f32 %v2629, %v2717
        %2719 = vmatmul.bf16.gmra.mxu0 %v2194
        %v2720 = vpop.f32.mrf.mxu0
        %v2721 = vadd.f32 %v2632, %v2720
        %v2722 = vpop.f32.mrf.mxu0
        %v2723 = vadd.f32 %v2634, %v2722
        %2724 = vmatmul.bf16.gmra.mxu0 %v2196
        %v2725 = vpop.f32.mrf.mxu0
        %v2726 = vadd.f32 %v2637, %v2725
        %v2727 = vpop.f32.mrf.mxu0
        %v2728 = vadd.f32 %v2639, %v2727
        %2729 = vmatmul.bf16.gmra.mxu0 %v2198
        %v2730 = vpop.f32.mrf.mxu0
        %v2731 = vadd.f32 %v2642, %v2730
        %v2732 = vpop.f32.mrf.mxu0
        %v2733 = vadd.f32 %v2644, %v2732
        %2734 = vmatmul.bf16.gmra.mxu0 %v2200
        %v2735 = vpop.f32.mrf.mxu0
        %v2736 = vadd.f32 %v2647, %v2735
        %v2737 = vpop.f32.mrf.mxu0
        %v2738 = vadd.f32 %v2649, %v2737
        %2739 = vmatmul.bf16.gmra.mxu0 %v2202
        %v2740 = vpop.f32.mrf.mxu0
        %v2741 = vadd.f32 %v2652, %v2740
        %v2742 = vpop.f32.mrf.mxu0
        %v2743 = vadd.f32 %v2654, %v2742
        %2744 = vmatmul.bf16.gmra.mxu0 %v2204
        %v2745 = vpop.f32.mrf.mxu0
        %v2746 = vadd.f32 %v2657, %v2745
        %v2747 = vpop.f32.mrf.mxu0
        %v2748 = vadd.f32 %v2659, %v2747
        %2749 = vmatmul.bf16.gmra.mxu0 %v2206
        %v2750 = vpop.f32.mrf.mxu0
        %v2751 = vadd.f32 %v2662, %v2750
        %v2752 = vpop.f32.mrf.mxu0
        %v2753 = vadd.f32 %v2664, %v2752
        %2754 = vmatmul.bf16.gmra.mxu0 %v2208
        %v2755 = vpop.f32.mrf.mxu0
        %v2756 = vadd.f32 %v2667, %v2755
        %v2757 = vpop.f32.mrf.mxu0
        %v2758 = vadd.f32 %v2669, %v2757
        %2759 = vmatmul.bf16.gmra.mxu0 %v2210
        %v2760 = vpop.f32.mrf.mxu0
        %v2761 = vadd.f32 %v2672, %v2760
        %v2762 = vpop.f32.mrf.mxu0
        %v2763 = vadd.f32 %v2674, %v2762
        %2764 = vdwg.mxu0
        %v2765 = vmax.f32 %v2508, 0.0
        %v2766 = vmax.f32 %v2686, 0.0
        %v2767 = vmax.f32 %v2510, 0.0
        %v2768 = vmax.f32 %v2688, 0.0
        %v2769 = vmax.f32 %v2513, 0.0
        %v2770 = vmax.f32 %v2691, 0.0
        %v2771 = vmax.f32 %v2515, 0.0
        %v2772 = vmax.f32 %v2693, 0.0
        %v2773 = vmax.f32 %v2518, 0.0
        %v2774 = vmax.f32 %v2696, 0.0
        %v2775 = vmax.f32 %v2520, 0.0
        %v2776 = vmax.f32 %v2698, 0.0
        %v2777 = vmax.f32 %v2523, 0.0
        %v2778 = vmax.f32 %v2701, 0.0
        %v2779 = vmax.f32 %v2525, 0.0
        %v2780 = vmax.f32 %v2703, 0.0
        %v2781 = vmax.f32 %v2528, 0.0
        %v2782 = vmax.f32 %v2706, 0.0
        %v2783 = vmax.f32 %v2530, 0.0
        %v2784 = vmax.f32 %v2708, 0.0
        %v2785 = vmax.f32 %v2533, 0.0
        %v2786 = vmax.f32 %v2711, 0.0
        %v2787 = vmax.f32 %v2535, 0.0
        %v2788 = vmax.f32 %v2713, 0.0
        %v2789 = vmax.f32 %v2538, 0.0
        %v2790 = vmax.f32 %v2716, 0.0
        %v2791 = vmax.f32 %v2540, 0.0
        %v2792 = vmax.f32 %v2718, 0.0
        %v2793 = vmax.f32 %v2543, 0.0
        %v2794 = vmax.f32 %v2721, 0.0
        %v2795 = vmax.f32 %v2545, 0.0
        %v2796 = vmax.f32 %v2723, 0.0
        %v2797 = vmax.f32 %v2548, 0.0
        %v2798 = vmax.f32 %v2726, 0.0
        %v2799 = vmax.f32 %v2550, 0.0
        %v2800 = vmax.f32 %v2728, 0.0
        %v2801 = vmax.f32 %v2553, 0.0
        %v2802 = vmax.f32 %v2731, 0.0
        %v2803 = vmax.f32 %v2555, 0.0
        %v2804 = vmax.f32 %v2733, 0.0
        %v2805 = vmax.f32 %v2558, 0.0
        %v2806 = vmax.f32 %v2736, 0.0
        %v2807 = vmax.f32 %v2560, 0.0
        %v2808 = vmax.f32 %v2738, 0.0
        %v2809 = vmax.f32 %v2563, 0.0
        %v2810 = vmax.f32 %v2741, 0.0
        %v2811 = vmax.f32 %v2565, 0.0
        %v2812 = vmax.f32 %v2743, 0.0
        %v2813 = vmax.f32 %v2568, 0.0
        %v2814 = vmax.f32 %v2746, 0.0
        %v2815 = vmax.f32 %v2570, 0.0
        %v2816 = vmax.f32 %v2748, 0.0
        %v2817 = vmax.f32 %v2573, 0.0
        %v2818 = vmax.f32 %v2751, 0.0
        %v2819 = vmax.f32 %v2575, 0.0
        %v2820 = vmax.f32 %v2753, 0.0
        %v2821 = vmax.f32 %v2578, 0.0
        %v2822 = vmax.f32 %v2756, 0.0
        %v2823 = vmax.f32 %v2580, 0.0
        %v2824 = vmax.f32 %v2758, 0.0
        %v2825 = vmax.f32 %v2583, 0.0
        %v2826 = vmax.f32 %v2761, 0.0
        %v2827 = vmax.f32 %v2585, 0.0
        %v2828 = vmax.f32 %v2763, 0.0
        %v2829 = vpack.c.bf16 %v2767, %v2765
        %v2830 = vpack.c.bf16 %v2768, %v2766
        %v2831 = vpack.c.bf16 %v2771, %v2769
        %v2832 = vpack.c.bf16 %v2772, %v2770
        %v2833 = vpack.c.bf16 %v2775, %v2773
        %v2834 = vpack.c.bf16 %v2776, %v2774
        %v2835 = vpack.c.bf16 %v2779, %v2777
        %v2836 = vpack.c.bf16 %v2780, %v2778
        %v2837 = vpack.c.bf16 %v2783, %v2781
        %v2838 = vpack.c.bf16 %v2784, %v2782
        %v2839 = vpack.c.bf16 %v2787, %v2785
        %v2840 = vpack.c.bf16 %v2788, %v2786
        %v2841 = vpack.c.bf16 %v2791, %v2789
        %v2842 = vpack.c.bf16 %v2792, %v2790
        %v2843 = vpack.c.bf16 %v2795, %v2793
        %v2844 = vpack.c.bf16 %v2796, %v2794
        %v2845 = vpack.c.bf16 %v2799, %v2797
        %v2846 = vpack.c.bf16 %v2800, %v2798
        %v2847 = vpack.c.bf16 %v2803, %v2801
        %v2848 = vpack.c.bf16 %v2804, %v2802
        %v2849 = vpack.c.bf16 %v2807, %v2805
        %v2850 = vpack.c.bf16 %v2808, %v2806
        %v2851 = vpack.c.bf16 %v2811, %v2809
        %v2852 = vpack.c.bf16 %v2812, %v2810
        %v2853 = vpack.c.bf16 %v2815, %v2813
        %v2854 = vpack.c.bf16 %v2816, %v2814
        %v2855 = vpack.c.bf16 %v2819, %v2817
        %v2856 = vpack.c.bf16 %v2820, %v2818
        %v2857 = vpack.c.bf16 %v2823, %v2821
        %v2858 = vpack.c.bf16 %v2824, %v2822
        %v2859 = vpack.c.bf16 %v2827, %v2825
        %v2860 = vpack.c.bf16 %v2828, %v2826
        %v2861 = vld [vmem:[#allocation11] sm:$0xff]
        %v2862 = vld [vmem:[#allocation11 + $0x8] sm:$0xff]
        %v2863 = vld [vmem:[#allocation11 + $0x10] sm:$0xff]
        %v2864 = vld [vmem:[#allocation11 + $0x18] sm:$0xff]
        %v2865 = vld [vmem:[#allocation11 + $0x20] sm:$0xff]
        %v2866 = vld [vmem:[#allocation11 + $0x28] sm:$0xff]
        %v2867 = vld [vmem:[#allocation11 + $0x30] sm:$0xff]
        %v2868 = vld [vmem:[#allocation11 + $0x38] sm:$0xff]
        %v2869 = vld [vmem:[#allocation11 + $0x40] sm:$0xff]
        %v2870 = vld [vmem:[#allocation11 + $0x48] sm:$0xff]
        %v2871 = vld [vmem:[#allocation11 + $0x50] sm:$0xff]
        %v2872 = vld [vmem:[#allocation11 + $0x58] sm:$0xff]
        %v2873 = vld [vmem:[#allocation11 + $0x60] sm:$0xff]
        %v2874 = vld [vmem:[#allocation11 + $0x68] sm:$0xff]
        %v2875 = vld [vmem:[#allocation11 + $0x70] sm:$0xff]
        %v2876 = vld [vmem:[#allocation11 + $0x78] sm:$0xff]
        %v2877 = vld [vmem:[#allocation11 + $0x80] sm:$0xff]
        %v2878 = vld [vmem:[#allocation11 + $0x88] sm:$0xff]
        %v2879 = vld [vmem:[#allocation11 + $0x90] sm:$0xff]
        %v2880 = vld [vmem:[#allocation11 + $0x98] sm:$0xff]
        %v2881 = vld [vmem:[#allocation11 + $0xa0] sm:$0xff]
        %v2882 = vld [vmem:[#allocation11 + $0xa8] sm:$0xff]
        %v2883 = vld [vmem:[#allocation11 + $0xb0] sm:$0xff]
        %v2884 = vld [vmem:[#allocation11 + $0xb8] sm:$0xff]
        %v2885 = vld [vmem:[#allocation11 + $0xc0] sm:$0xff]
        %v2886 = vld [vmem:[#allocation11 + $0xc8] sm:$0xff]
        %v2887 = vld [vmem:[#allocation11 + $0xd0] sm:$0xff]
        %v2888 = vld [vmem:[#allocation11 + $0xd8] sm:$0xff]
        %v2889 = vld [vmem:[#allocation11 + $0xe0] sm:$0xff]
        %v2890 = vld [vmem:[#allocation11 + $0xe8] sm:$0xff]
        %v2891 = vld [vmem:[#allocation11 + $0xf0] sm:$0xff]
        %v2892 = vld [vmem:[#allocation11 + $0xf8] sm:$0xff]
        %v2893 = vld [vmem:[%s8] sm:$0x3]
        %v2895 = vperm.slane %v2893, 0
        %v2896 = vperm.slane %v2893, 1
        %v2931 = vunpack.c.l.b16 %v2861
        %v2932 = vunpack.c.h.b16 %v2861
        %v2933 = vunpack.c.l.b16 %v2862
        %v2934 = vunpack.c.h.b16 %v2862
        %v2935 = vunpack.c.l.b16 %v2863
        %v2936 = vunpack.c.h.b16 %v2863
        %v2937 = vunpack.c.l.b16 %v2864
        %v2938 = vunpack.c.h.b16 %v2864
        %v2939 = vunpack.c.l.b16 %v2865
        %v2940 = vunpack.c.h.b16 %v2865
        %v2941 = vunpack.c.l.b16 %v2866
        %v2942 = vunpack.c.h.b16 %v2866
        %v2943 = vunpack.c.l.b16 %v2867
        %v2944 = vunpack.c.h.b16 %v2867
        %v2945 = vunpack.c.l.b16 %v2868
        %v2946 = vunpack.c.h.b16 %v2868
        %v2947 = vunpack.c.l.b16 %v2869
        %v2948 = vunpack.c.h.b16 %v2869
        %v2949 = vunpack.c.l.b16 %v2870
        %v2950 = vunpack.c.h.b16 %v2870
        %v2951 = vunpack.c.l.b16 %v2871
        %v2952 = vunpack.c.h.b16 %v2871
        %v2953 = vunpack.c.l.b16 %v2872
        %v2954 = vunpack.c.h.b16 %v2872
        %v2955 = vunpack.c.l.b16 %v2873
        %v2956 = vunpack.c.h.b16 %v2873
        %v2957 = vunpack.c.l.b16 %v2874
        %v2958 = vunpack.c.h.b16 %v2874
        %v2959 = vunpack.c.l.b16 %v2875
        %v2960 = vunpack.c.h.b16 %v2875
        %v2961 = vunpack.c.l.b16 %v2876
        %v2962 = vunpack.c.h.b16 %v2876
        %v2963 = vunpack.c.l.b16 %v2877
        %v2964 = vunpack.c.h.b16 %v2877
        %v2965 = vunpack.c.l.b16 %v2878
        %v2966 = vunpack.c.h.b16 %v2878
        %v2967 = vunpack.c.l.b16 %v2879
        %v2968 = vunpack.c.h.b16 %v2879
        %v2969 = vunpack.c.l.b16 %v2880
        %v2970 = vunpack.c.h.b16 %v2880
        %v2971 = vunpack.c.l.b16 %v2881
        %v2972 = vunpack.c.h.b16 %v2881
        %v2973 = vunpack.c.l.b16 %v2882
        %v2974 = vunpack.c.h.b16 %v2882
        %v2975 = vunpack.c.l.b16 %v2883
        %v2976 = vunpack.c.h.b16 %v2883
        %v2977 = vunpack.c.l.b16 %v2884
        %v2978 = vunpack.c.h.b16 %v2884
        %v2979 = vunpack.c.l.b16 %v2885
        %v2980 = vunpack.c.h.b16 %v2885
        %v2981 = vunpack.c.l.b16 %v2886
        %v2982 = vunpack.c.h.b16 %v2886
        %v2983 = vunpack.c.l.b16 %v2887
        %v2984 = vunpack.c.h.b16 %v2887
        %v2985 = vunpack.c.l.b16 %v2888
        %v2986 = vunpack.c.h.b16 %v2888
        %v2987 = vunpack.c.l.b16 %v2889
        %v2988 = vunpack.c.h.b16 %v2889
        %v2989 = vunpack.c.l.b16 %v2890
        %v2990 = vunpack.c.h.b16 %v2890
        %v2991 = vunpack.c.l.b16 %v2891
        %v2992 = vunpack.c.h.b16 %v2891
        %v2993 = vunpack.c.l.b16 %v2892
        %v2994 = vunpack.c.h.b16 %v2892
        %v2995 = vpack.c.b16 %v2933, %v2931
        %v2996 = vpack.c.b16 %v2934, %v2932
        %v2997 = vpack.c.b16 %v2937, %v2935
        %v2998 = vpack.c.b16 %v2938, %v2936
        %v2999 = vpack.c.b16 %v2941, %v2939
        %v3000 = vpack.c.b16 %v2942, %v2940
        %v3001 = vpack.c.b16 %v2945, %v2943
        %v3002 = vpack.c.b16 %v2946, %v2944
        %v3003 = vpack.c.b16 %v2949, %v2947
        %v3004 = vpack.c.b16 %v2950, %v2948
        %v3005 = vpack.c.b16 %v2953, %v2951
        %v3006 = vpack.c.b16 %v2954, %v2952
        %v3007 = vpack.c.b16 %v2957, %v2955
        %v3008 = vpack.c.b16 %v2958, %v2956
        %v3009 = vpack.c.b16 %v2961, %v2959
        %v3010 = vpack.c.b16 %v2962, %v2960
        %v3011 = vpack.c.b16 %v2965, %v2963
        %v3012 = vpack.c.b16 %v2966, %v2964
        %v3013 = vpack.c.b16 %v2969, %v2967
        %v3014 = vpack.c.b16 %v2970, %v2968
        %v3015 = vpack.c.b16 %v2973, %v2971
        %v3016 = vpack.c.b16 %v2974, %v2972
        %v3017 = vpack.c.b16 %v2977, %v2975
        %v3018 = vpack.c.b16 %v2978, %v2976
        %v3019 = vpack.c.b16 %v2981, %v2979
        %v3020 = vpack.c.b16 %v2982, %v2980
        %v3021 = vpack.c.b16 %v2985, %v2983
        %v3022 = vpack.c.b16 %v2986, %v2984
        %v3023 = vpack.c.b16 %v2989, %v2987
        %v3024 = vpack.c.b16 %v2990, %v2988
        %v3025 = vpack.c.b16 %v2993, %v2991
        %v3026 = vpack.c.b16 %v2994, %v2992
        %3059 = vmatpush.bf16.msra.mxu0 %v3009
        %3060 = vmatpush.bf16.msra.mxu0 %v3007
        %3061 = vmatpush.bf16.msra.mxu0 %v3005
        %3062 = vmatpush.bf16.msra.mxu0 %v3003
        %3063 = vmatpush.bf16.msra.mxu0 %v3001
        %3064 = vmatpush.bf16.msra.mxu0 %v2999
        %3065 = vmatpush.bf16.msra.mxu0 %v2997
        %3066 = vmatpush.bf16.msra.mxu0 %v2995
        %3067 = vmatmul.bf16.gmra.mxu0 %v2829
        %v3068 = vpop.f32.mrf.mxu0
        %v3069 = vadd.f32 %v2895, %v3068
        %v3070 = vpop.f32.mrf.mxu0
        %v3071 = vadd.f32 %v2895, %v3070
        %3072 = vmatmul.bf16.gmra.mxu0 %v2831
        %v3073 = vpop.f32.mrf.mxu0
        %v3074 = vadd.f32 %v2895, %v3073
        %v3075 = vpop.f32.mrf.mxu0
        %v3076 = vadd.f32 %v2895, %v3075
        %3077 = vmatmul.bf16.gmra.mxu0 %v2833
        %v3078 = vpop.f32.mrf.mxu0
        %v3079 = vadd.f32 %v2895, %v3078
        %v3080 = vpop.f32.mrf.mxu0
        %v3081 = vadd.f32 %v2895, %v3080
        %3082 = vmatmul.bf16.gmra.mxu0 %v2835
        %v3083 = vpop.f32.mrf.mxu0
        %v3084 = vadd.f32 %v2895, %v3083
        %v3085 = vpop.f32.mrf.mxu0
        %v3086 = vadd.f32 %v2895, %v3085
        %3087 = vmatmul.bf16.gmra.mxu0 %v2837
        %v3088 = vpop.f32.mrf.mxu0
        %v3089 = vadd.f32 %v2895, %v3088
        %v3090 = vpop.f32.mrf.mxu0
        %v3091 = vadd.f32 %v2895, %v3090
        %3092 = vmatmul.bf16.gmra.mxu0 %v2839
        %v3093 = vpop.f32.mrf.mxu0
        %v3094 = vadd.f32 %v2895, %v3093
        %v3095 = vpop.f32.mrf.mxu0
        %v3096 = vadd.f32 %v2895, %v3095
        %3097 = vmatmul.bf16.gmra.mxu0 %v2841
        %v3098 = vpop.f32.mrf.mxu0
        %v3099 = vadd.f32 %v2895, %v3098
        %v3100 = vpop.f32.mrf.mxu0
        %v3101 = vadd.f32 %v2895, %v3100
        %3102 = vmatmul.bf16.gmra.mxu0 %v2843
        %v3103 = vpop.f32.mrf.mxu0
        %v3104 = vadd.f32 %v2895, %v3103
        %v3105 = vpop.f32.mrf.mxu0
        %v3106 = vadd.f32 %v2895, %v3105
        %3107 = vmatmul.bf16.gmra.mxu0 %v2845
        %v3108 = vpop.f32.mrf.mxu0
        %v3109 = vadd.f32 %v2895, %v3108
        %v3110 = vpop.f32.mrf.mxu0
        %v3111 = vadd.f32 %v2895, %v3110
        %3112 = vmatmul.bf16.gmra.mxu0 %v2847
        %v3113 = vpop.f32.mrf.mxu0
        %v3114 = vadd.f32 %v2895, %v3113
        %v3115 = vpop.f32.mrf.mxu0
        %v3116 = vadd.f32 %v2895, %v3115
        %3117 = vmatmul.bf16.gmra.mxu0 %v2849
        %v3118 = vpop.f32.mrf.mxu0
        %v3119 = vadd.f32 %v2895, %v3118
        %v3120 = vpop.f32.mrf.mxu0
        %v3121 = vadd.f32 %v2895, %v3120
        %3122 = vmatmul.bf16.gmra.mxu0 %v2851
        %v3123 = vpop.f32.mrf.mxu0
        %v3124 = vadd.f32 %v2895, %v3123
        %v3125 = vpop.f32.mrf.mxu0
        %v3126 = vadd.f32 %v2895, %v3125
        %3127 = vmatmul.bf16.gmra.mxu0 %v2853
        %v3128 = vpop.f32.mrf.mxu0
        %v3129 = vadd.f32 %v2895, %v3128
        %v3130 = vpop.f32.mrf.mxu0
        %v3131 = vadd.f32 %v2895, %v3130
        %3132 = vmatmul.bf16.gmra.mxu0 %v2855
        %v3133 = vpop.f32.mrf.mxu0
        %v3134 = vadd.f32 %v2895, %v3133
        %v3135 = vpop.f32.mrf.mxu0
        %v3136 = vadd.f32 %v2895, %v3135
        %3137 = vmatmul.bf16.gmra.mxu0 %v2857
        %v3138 = vpop.f32.mrf.mxu0
        %v3139 = vadd.f32 %v2895, %v3138
        %v3140 = vpop.f32.mrf.mxu0
        %v3141 = vadd.f32 %v2895, %v3140
        %3142 = vmatmul.bf16.gmra.mxu0 %v2859
        %v3143 = vpop.f32.mrf.mxu0
        %v3144 = vadd.f32 %v2895, %v3143
        %v3145 = vpop.f32.mrf.mxu0
        %v3146 = vadd.f32 %v2895, %v3145
        %3147 = vdwg.mxu0
        %3148 = vmatpush.bf16.msra.mxu0 %v3025
        %3149 = vmatpush.bf16.msra.mxu0 %v3023
        %3150 = vmatpush.bf16.msra.mxu0 %v3021
        %3151 = vmatpush.bf16.msra.mxu0 %v3019
        %3152 = vmatpush.bf16.msra.mxu0 %v3017
        %3153 = vmatpush.bf16.msra.mxu0 %v3015
        %3154 = vmatpush.bf16.msra.mxu0 %v3013
        %3155 = vmatpush.bf16.msra.mxu0 %v3011
        %3156 = vmatmul.bf16.gmra.mxu0 %v2830
        %v3157 = vpop.f32.mrf.mxu0
        %v3158 = vadd.f32 %v3069, %v3157
        %v3159 = vpop.f32.mrf.mxu0
        %v3160 = vadd.f32 %v3071, %v3159
        %3161 = vmatmul.bf16.gmra.mxu0 %v2832
        %v3162 = vpop.f32.mrf.mxu0
        %v3163 = vadd.f32 %v3074, %v3162
        %v3164 = vpop.f32.mrf.mxu0
        %v3165 = vadd.f32 %v3076, %v3164
        %3166 = vmatmul.bf16.gmra.mxu0 %v2834
        %v3167 = vpop.f32.mrf.mxu0
        %v3168 = vadd.f32 %v3079, %v3167
        %v3169 = vpop.f32.mrf.mxu0
        %v3170 = vadd.f32 %v3081, %v3169
        %3171 = vmatmul.bf16.gmra.mxu0 %v2836
        %v3172 = vpop.f32.mrf.mxu0
        %v3173 = vadd.f32 %v3084, %v3172
        %v3174 = vpop.f32.mrf.mxu0
        %v3175 = vadd.f32 %v3086, %v3174
        %3176 = vmatmul.bf16.gmra.mxu0 %v2838
        %v3177 = vpop.f32.mrf.mxu0
        %v3178 = vadd.f32 %v3089, %v3177
        %v3179 = vpop.f32.mrf.mxu0
        %v3180 = vadd.f32 %v3091, %v3179
        %3181 = vmatmul.bf16.gmra.mxu0 %v2840
        %v3182 = vpop.f32.mrf.mxu0
        %v3183 = vadd.f32 %v3094, %v3182
        %v3184 = vpop.f32.mrf.mxu0
        %v3185 = vadd.f32 %v3096, %v3184
        %3186 = vmatmul.bf16.gmra.mxu0 %v2842
        %v3187 = vpop.f32.mrf.mxu0
        %v3188 = vadd.f32 %v3099, %v3187
        %v3189 = vpop.f32.mrf.mxu0
        %v3190 = vadd.f32 %v3101, %v3189
        %3191 = vmatmul.bf16.gmra.mxu0 %v2844
        %v3192 = vpop.f32.mrf.mxu0
        %v3193 = vadd.f32 %v3104, %v3192
        %v3194 = vpop.f32.mrf.mxu0
        %v3195 = vadd.f32 %v3106, %v3194
        %3196 = vmatmul.bf16.gmra.mxu0 %v2846
        %v3197 = vpop.f32.mrf.mxu0
        %v3198 = vadd.f32 %v3109, %v3197
        %v3199 = vpop.f32.mrf.mxu0
        %v3200 = vadd.f32 %v3111, %v3199
        %3201 = vmatmul.bf16.gmra.mxu0 %v2848
        %v3202 = vpop.f32.mrf.mxu0
        %v3203 = vadd.f32 %v3114, %v3202
        %v3204 = vpop.f32.mrf.mxu0
        %v3205 = vadd.f32 %v3116, %v3204
        %3206 = vmatmul.bf16.gmra.mxu0 %v2850
        %v3207 = vpop.f32.mrf.mxu0
        %v3208 = vadd.f32 %v3119, %v3207
        %v3209 = vpop.f32.mrf.mxu0
        %v3210 = vadd.f32 %v3121, %v3209
        %3211 = vmatmul.bf16.gmra.mxu0 %v2852
        %v3212 = vpop.f32.mrf.mxu0
        %v3213 = vadd.f32 %v3124, %v3212
        %v3214 = vpop.f32.mrf.mxu0
        %v3215 = vadd.f32 %v3126, %v3214
        %3216 = vmatmul.bf16.gmra.mxu0 %v2854
        %v3217 = vpop.f32.mrf.mxu0
        %v3218 = vadd.f32 %v3129, %v3217
        %v3219 = vpop.f32.mrf.mxu0
        %v3220 = vadd.f32 %v3131, %v3219
        %3221 = vmatmul.bf16.gmra.mxu0 %v2856
        %v3222 = vpop.f32.mrf.mxu0
        %v3223 = vadd.f32 %v3134, %v3222
        %v3224 = vpop.f32.mrf.mxu0
        %v3225 = vadd.f32 %v3136, %v3224
        %3226 = vmatmul.bf16.gmra.mxu0 %v2858
        %v3227 = vpop.f32.mrf.mxu0
        %v3228 = vadd.f32 %v3139, %v3227
        %v3229 = vpop.f32.mrf.mxu0
        %v3230 = vadd.f32 %v3141, %v3229
        %3231 = vmatmul.bf16.gmra.mxu0 %v2860
        %v3232 = vpop.f32.mrf.mxu0
        %v3233 = vadd.f32 %v3144, %v3232
        %v3234 = vpop.f32.mrf.mxu0
        %v3235 = vadd.f32 %v3146, %v3234
        %3236 = vdwg.mxu0
        %3237 = vmatpush.bf16.msra.mxu0 %v3010
        %3238 = vmatpush.bf16.msra.mxu0 %v3008
        %3239 = vmatpush.bf16.msra.mxu0 %v3006
        %3240 = vmatpush.bf16.msra.mxu0 %v3004
        %3241 = vmatpush.bf16.msra.mxu0 %v3002
        %3242 = vmatpush.bf16.msra.mxu0 %v3000
        %3243 = vmatpush.bf16.msra.mxu0 %v2998
        %3244 = vmatpush.bf16.msra.mxu0 %v2996
        %3245 = vmatmul.bf16.gmra.mxu0 %v2829
        %v3246 = vpop.f32.mrf.mxu0
        %v3247 = vadd.f32 %v2896, %v3246
        %v3248 = vpop.f32.mrf.mxu0
        %v3249 = vadd.f32 %v2896, %v3248
        %3250 = vmatmul.bf16.gmra.mxu0 %v2831
        %v3251 = vpop.f32.mrf.mxu0
        %v3252 = vadd.f32 %v2896, %v3251
        %v3253 = vpop.f32.mrf.mxu0
        %v3254 = vadd.f32 %v2896, %v3253
        %3255 = vmatmul.bf16.gmra.mxu0 %v2833
        %v3256 = vpop.f32.mrf.mxu0
        %v3257 = vadd.f32 %v2896, %v3256
        %v3258 = vpop.f32.mrf.mxu0
        %v3259 = vadd.f32 %v2896, %v3258
        %3260 = vmatmul.bf16.gmra.mxu0 %v2835
        %v3261 = vpop.f32.mrf.mxu0
        %v3262 = vadd.f32 %v2896, %v3261
        %v3263 = vpop.f32.mrf.mxu0
        %v3264 = vadd.f32 %v2896, %v3263
        %3265 = vmatmul.bf16.gmra.mxu0 %v2837
        %v3266 = vpop.f32.mrf.mxu0
        %v3267 = vadd.f32 %v2896, %v3266
        %v3268 = vpop.f32.mrf.mxu0
        %v3269 = vadd.f32 %v2896, %v3268
        %3270 = vmatmul.bf16.gmra.mxu0 %v2839
        %v3271 = vpop.f32.mrf.mxu0
        %v3272 = vadd.f32 %v2896, %v3271
        %v3273 = vpop.f32.mrf.mxu0
        %v3274 = vadd.f32 %v2896, %v3273
        %3275 = vmatmul.bf16.gmra.mxu0 %v2841
        %v3276 = vpop.f32.mrf.mxu0
        %v3277 = vadd.f32 %v2896, %v3276
        %v3278 = vpop.f32.mrf.mxu0
        %v3279 = vadd.f32 %v2896, %v3278
        %3280 = vmatmul.bf16.gmra.mxu0 %v2843
        %v3281 = vpop.f32.mrf.mxu0
        %v3282 = vadd.f32 %v2896, %v3281
        %v3283 = vpop.f32.mrf.mxu0
        %v3284 = vadd.f32 %v2896, %v3283
        %3285 = vmatmul.bf16.gmra.mxu0 %v2845
        %v3286 = vpop.f32.mrf.mxu0
        %v3287 = vadd.f32 %v2896, %v3286
        %v3288 = vpop.f32.mrf.mxu0
        %v3289 = vadd.f32 %v2896, %v3288
        %3290 = vmatmul.bf16.gmra.mxu0 %v2847
        %v3291 = vpop.f32.mrf.mxu0
        %v3292 = vadd.f32 %v2896, %v3291
        %v3293 = vpop.f32.mrf.mxu0
        %v3294 = vadd.f32 %v2896, %v3293
        %3295 = vmatmul.bf16.gmra.mxu0 %v2849
        %v3296 = vpop.f32.mrf.mxu0
        %v3297 = vadd.f32 %v2896, %v3296
        %v3298 = vpop.f32.mrf.mxu0
        %v3299 = vadd.f32 %v2896, %v3298
        %3300 = vmatmul.bf16.gmra.mxu0 %v2851
        %v3301 = vpop.f32.mrf.mxu0
        %v3302 = vadd.f32 %v2896, %v3301
        %v3303 = vpop.f32.mrf.mxu0
        %v3304 = vadd.f32 %v2896, %v3303
        %3305 = vmatmul.bf16.gmra.mxu0 %v2853
        %v3306 = vpop.f32.mrf.mxu0
        %v3307 = vadd.f32 %v2896, %v3306
        %v3308 = vpop.f32.mrf.mxu0
        %v3309 = vadd.f32 %v2896, %v3308
        %3310 = vmatmul.bf16.gmra.mxu0 %v2855
        %v3311 = vpop.f32.mrf.mxu0
        %v3312 = vadd.f32 %v2896, %v3311
        %v3313 = vpop.f32.mrf.mxu0
        %v3314 = vadd.f32 %v2896, %v3313
        %3315 = vmatmul.bf16.gmra.mxu0 %v2857
        %v3316 = vpop.f32.mrf.mxu0
        %v3317 = vadd.f32 %v2896, %v3316
        %v3318 = vpop.f32.mrf.mxu0
        %v3319 = vadd.f32 %v2896, %v3318
        %3320 = vmatmul.bf16.gmra.mxu0 %v2859
        %v3321 = vpop.f32.mrf.mxu0
        %v3322 = vadd.f32 %v2896, %v3321
        %v3323 = vpop.f32.mrf.mxu0
        %v3324 = vadd.f32 %v2896, %v3323
        %3325 = vdwg.mxu0
        %3326 = vmatpush.bf16.msra.mxu0 %v3026
        %3327 = vmatpush.bf16.msra.mxu0 %v3024
        %3328 = vmatpush.bf16.msra.mxu0 %v3022
        %3329 = vmatpush.bf16.msra.mxu0 %v3020
        %3330 = vmatpush.bf16.msra.mxu0 %v3018
        %3331 = vmatpush.bf16.msra.mxu0 %v3016
        %3332 = vmatpush.bf16.msra.mxu0 %v3014
        %3333 = vmatpush.bf16.msra.mxu0 %v3012
        %3334 = vmatmul.bf16.gmra.mxu0 %v2830
        %v3335 = vpop.f32.mrf.mxu0
        %v3336 = vadd.f32 %v3247, %v3335
        %v3337 = vpop.f32.mrf.mxu0
        %v3338 = vadd.f32 %v3249, %v3337
        %3339 = vmatmul.bf16.gmra.mxu0 %v2832
        %v3340 = vpop.f32.mrf.mxu0
        %v3341 = vadd.f32 %v3252, %v3340
        %v3342 = vpop.f32.mrf.mxu0
        %v3343 = vadd.f32 %v3254, %v3342
        %3344 = vmatmul.bf16.gmra.mxu0 %v2834
        %v3345 = vpop.f32.mrf.mxu0
        %v3346 = vadd.f32 %v3257, %v3345
        %v3347 = vpop.f32.mrf.mxu0
        %v3348 = vadd.f32 %v3259, %v3347
        %3349 = vmatmul.bf16.gmra.mxu0 %v2836
        %v3350 = vpop.f32.mrf.mxu0
        %v3351 = vadd.f32 %v3262, %v3350
        %v3352 = vpop.f32.mrf.mxu0
        %v3353 = vadd.f32 %v3264, %v3352
        %3354 = vmatmul.bf16.gmra.mxu0 %v2838
        %v3355 = vpop.f32.mrf.mxu0
        %v3356 = vadd.f32 %v3267, %v3355
        %v3357 = vpop.f32.mrf.mxu0
        %v3358 = vadd.f32 %v3269, %v3357
        %3359 = vmatmul.bf16.gmra.mxu0 %v2840
        %v3360 = vpop.f32.mrf.mxu0
        %v3361 = vadd.f32 %v3272, %v3360
        %v3362 = vpop.f32.mrf.mxu0
        %v3363 = vadd.f32 %v3274, %v3362
        %3364 = vmatmul.bf16.gmra.mxu0 %v2842
        %v3365 = vpop.f32.mrf.mxu0
        %v3366 = vadd.f32 %v3277, %v3365
        %v3367 = vpop.f32.mrf.mxu0
        %v3368 = vadd.f32 %v3279, %v3367
        %3369 = vmatmul.bf16.gmra.mxu0 %v2844
        %v3370 = vpop.f32.mrf.mxu0
        %v3371 = vadd.f32 %v3282, %v3370
        %v3372 = vpop.f32.mrf.mxu0
        %v3373 = vadd.f32 %v3284, %v3372
        %3374 = vmatmul.bf16.gmra.mxu0 %v2846
        %v3375 = vpop.f32.mrf.mxu0
        %v3376 = vadd.f32 %v3287, %v3375
        %v3377 = vpop.f32.mrf.mxu0
        %v3378 = vadd.f32 %v3289, %v3377
        %3379 = vmatmul.bf16.gmra.mxu0 %v2848
        %v3380 = vpop.f32.mrf.mxu0
        %v3381 = vadd.f32 %v3292, %v3380
        %v3382 = vpop.f32.mrf.mxu0
        %v3383 = vadd.f32 %v3294, %v3382
        %3384 = vmatmul.bf16.gmra.mxu0 %v2850
        %v3385 = vpop.f32.mrf.mxu0
        %v3386 = vadd.f32 %v3297, %v3385
        %v3387 = vpop.f32.mrf.mxu0
        %v3388 = vadd.f32 %v3299, %v3387
        %3389 = vmatmul.bf16.gmra.mxu0 %v2852
        %v3390 = vpop.f32.mrf.mxu0
        %v3391 = vadd.f32 %v3302, %v3390
        %v3392 = vpop.f32.mrf.mxu0
        %v3393 = vadd.f32 %v3304, %v3392
        %3394 = vmatmul.bf16.gmra.mxu0 %v2854
        %v3395 = vpop.f32.mrf.mxu0
        %v3396 = vadd.f32 %v3307, %v3395
        %v3397 = vpop.f32.mrf.mxu0
        %v3398 = vadd.f32 %v3309, %v3397
        %3399 = vmatmul.bf16.gmra.mxu0 %v2856
        %v3400 = vpop.f32.mrf.mxu0
        %v3401 = vadd.f32 %v3312, %v3400
        %v3402 = vpop.f32.mrf.mxu0
        %v3403 = vadd.f32 %v3314, %v3402
        %3404 = vmatmul.bf16.gmra.mxu0 %v2858
        %v3405 = vpop.f32.mrf.mxu0
        %v3406 = vadd.f32 %v3317, %v3405
        %v3407 = vpop.f32.mrf.mxu0
        %v3408 = vadd.f32 %v3319, %v3407
        %3409 = vmatmul.bf16.gmra.mxu0 %v2860
        %v3410 = vpop.f32.mrf.mxu0
        %v3411 = vadd.f32 %v3322, %v3410
        %v3412 = vpop.f32.mrf.mxu0
        %v3413 = vadd.f32 %v3324, %v3412
        %3414 = vdwg.mxu0
        %v3415 = vmax.f32 %v3158, 0.0
        %v3416 = vmax.f32 %v3336, 0.0
        %v3417 = vmax.f32 %v3160, 0.0
        %v3418 = vmax.f32 %v3338, 0.0
        %v3419 = vmax.f32 %v3163, 0.0
        %v3420 = vmax.f32 %v3341, 0.0
        %v3421 = vmax.f32 %v3165, 0.0
        %v3422 = vmax.f32 %v3343, 0.0
        %v3423 = vmax.f32 %v3168, 0.0
        %v3424 = vmax.f32 %v3346, 0.0
        %v3425 = vmax.f32 %v3170, 0.0
        %v3426 = vmax.f32 %v3348, 0.0
        %v3427 = vmax.f32 %v3173, 0.0
        %v3428 = vmax.f32 %v3351, 0.0
        %v3429 = vmax.f32 %v3175, 0.0
        %v3430 = vmax.f32 %v3353, 0.0
        %v3431 = vmax.f32 %v3178, 0.0
        %v3432 = vmax.f32 %v3356, 0.0
        %v3433 = vmax.f32 %v3180, 0.0
        %v3434 = vmax.f32 %v3358, 0.0
        %v3435 = vmax.f32 %v3183, 0.0
        %v3436 = vmax.f32 %v3361, 0.0
        %v3437 = vmax.f32 %v3185, 0.0
        %v3438 = vmax.f32 %v3363, 0.0
        %v3439 = vmax.f32 %v3188, 0.0
        %v3440 = vmax.f32 %v3366, 0.0
        %v3441 = vmax.f32 %v3190, 0.0
        %v3442 = vmax.f32 %v3368, 0.0
        %v3443 = vmax.f32 %v3193, 0.0
        %v3444 = vmax.f32 %v3371, 0.0
        %v3445 = vmax.f32 %v3195, 0.0
        %v3446 = vmax.f32 %v3373, 0.0
        %v3447 = vmax.f32 %v3198, 0.0
        %v3448 = vmax.f32 %v3376, 0.0
        %v3449 = vmax.f32 %v3200, 0.0
        %v3450 = vmax.f32 %v3378, 0.0
        %v3451 = vmax.f32 %v3203, 0.0
        %v3452 = vmax.f32 %v3381, 0.0
        %v3453 = vmax.f32 %v3205, 0.0
        %v3454 = vmax.f32 %v3383, 0.0
        %v3455 = vmax.f32 %v3208, 0.0
        %v3456 = vmax.f32 %v3386, 0.0
        %v3457 = vmax.f32 %v3210, 0.0
        %v3458 = vmax.f32 %v3388, 0.0
        %v3459 = vmax.f32 %v3213, 0.0
        %v3460 = vmax.f32 %v3391, 0.0
        %v3461 = vmax.f32 %v3215, 0.0
        %v3462 = vmax.f32 %v3393, 0.0
        %v3463 = vmax.f32 %v3218, 0.0
        %v3464 = vmax.f32 %v3396, 0.0
        %v3465 = vmax.f32 %v3220, 0.0
        %v3466 = vmax.f32 %v3398, 0.0
        %v3467 = vmax.f32 %v3223, 0.0
        %v3468 = vmax.f32 %v3401, 0.0
        %v3469 = vmax.f32 %v3225, 0.0
        %v3470 = vmax.f32 %v3403, 0.0
        %v3471 = vmax.f32 %v3228, 0.0
        %v3472 = vmax.f32 %v3406, 0.0
        %v3473 = vmax.f32 %v3230, 0.0
        %v3474 = vmax.f32 %v3408, 0.0
        %v3475 = vmax.f32 %v3233, 0.0
        %v3476 = vmax.f32 %v3411, 0.0
        %v3477 = vmax.f32 %v3235, 0.0
        %v3478 = vmax.f32 %v3413, 0.0
        %v3479 = vpack.c.bf16 %v3417, %v3415
        %v3480 = vpack.c.bf16 %v3418, %v3416
        %v3481 = vpack.c.bf16 %v3421, %v3419
        %v3482 = vpack.c.bf16 %v3422, %v3420
        %v3483 = vpack.c.bf16 %v3425, %v3423
        %v3484 = vpack.c.bf16 %v3426, %v3424
        %v3485 = vpack.c.bf16 %v3429, %v3427
        %v3486 = vpack.c.bf16 %v3430, %v3428
        %v3487 = vpack.c.bf16 %v3433, %v3431
        %v3488 = vpack.c.bf16 %v3434, %v3432
        %v3489 = vpack.c.bf16 %v3437, %v3435
        %v3490 = vpack.c.bf16 %v3438, %v3436
        %v3491 = vpack.c.bf16 %v3441, %v3439
        %v3492 = vpack.c.bf16 %v3442, %v3440
        %v3493 = vpack.c.bf16 %v3445, %v3443
        %v3494 = vpack.c.bf16 %v3446, %v3444
        %v3495 = vpack.c.bf16 %v3449, %v3447
        %v3496 = vpack.c.bf16 %v3450, %v3448
        %v3497 = vpack.c.bf16 %v3453, %v3451
        %v3498 = vpack.c.bf16 %v3454, %v3452
        %v3499 = vpack.c.bf16 %v3457, %v3455
        %v3500 = vpack.c.bf16 %v3458, %v3456
        %v3501 = vpack.c.bf16 %v3461, %v3459
        %v3502 = vpack.c.bf16 %v3462, %v3460
        %v3503 = vpack.c.bf16 %v3465, %v3463
        %v3504 = vpack.c.bf16 %v3466, %v3464
        %v3505 = vpack.c.bf16 %v3469, %v3467
        %v3506 = vpack.c.bf16 %v3470, %v3468
        %v3507 = vpack.c.bf16 %v3473, %v3471
        %v3508 = vpack.c.bf16 %v3474, %v3472
        %v3509 = vpack.c.bf16 %v3477, %v3475
        %v3510 = vpack.c.bf16 %v3478, %v3476
        %v3511 = vld [vmem:[#allocation13] sm:$0xf]
        %v3512 = vld [vmem:[#allocation13 + $0x4] sm:$0xf]
        %v3513 = vld [vmem:[#allocation13 + $0x8] sm:$0xf]
        %v3514 = vld [vmem:[#allocation13 + $0xc] sm:$0xf]
        %v3515 = vld [vmem:[#allocation13 + $0x10] sm:$0xf]
        %v3516 = vld [vmem:[#allocation13 + $0x14] sm:$0xf]
        %v3517 = vld [vmem:[#allocation13 + $0x18] sm:$0xf]
        %v3518 = vld [vmem:[#allocation13 + $0x1c] sm:$0xf]
        %v3519 = vld [vmem:[#allocation13 + $0x20] sm:$0xf]
        %v3520 = vld [vmem:[#allocation13 + $0x24] sm:$0xf]
        %v3521 = vld [vmem:[#allocation13 + $0x28] sm:$0xf]
        %v3522 = vld [vmem:[#allocation13 + $0x2c] sm:$0xf]
        %v3523 = vld [vmem:[#allocation13 + $0x30] sm:$0xf]
        %v3524 = vld [vmem:[#allocation13 + $0x34] sm:$0xf]
        %v3525 = vld [vmem:[#allocation13 + $0x38] sm:$0xf]
        %v3526 = vld [vmem:[#allocation13 + $0x3c] sm:$0xf]
        %v3527 = vld [vmem:[#allocation13 + $0x40] sm:$0xf]
        %v3528 = vld [vmem:[#allocation13 + $0x44] sm:$0xf]
        %v3529 = vld [vmem:[#allocation13 + $0x48] sm:$0xf]
        %v3530 = vld [vmem:[#allocation13 + $0x4c] sm:$0xf]
        %v3531 = vld [vmem:[#allocation13 + $0x50] sm:$0xf]
        %v3532 = vld [vmem:[#allocation13 + $0x54] sm:$0xf]
        %v3533 = vld [vmem:[#allocation13 + $0x58] sm:$0xf]
        %v3534 = vld [vmem:[#allocation13 + $0x5c] sm:$0xf]
        %v3535 = vld [vmem:[#allocation13 + $0x60] sm:$0xf]
        %v3536 = vld [vmem:[#allocation13 + $0x64] sm:$0xf]
        %v3537 = vld [vmem:[#allocation13 + $0x68] sm:$0xf]
        %v3538 = vld [vmem:[#allocation13 + $0x6c] sm:$0xf]
        %v3539 = vld [vmem:[#allocation13 + $0x70] sm:$0xf]
        %v3540 = vld [vmem:[#allocation13 + $0x74] sm:$0xf]
        %v3541 = vld [vmem:[#allocation13 + $0x78] sm:$0xf]
        %v3542 = vld [vmem:[#allocation13 + $0x7c] sm:$0xf]
        %v3543 = vld [vmem:[%s10] sm:$0x1]
        %v3545 = vperm.slane %v3543, 0
        %v3579 = vunpack.c.l.b16 %v3511
        %v3580 = vunpack.c.l.b16 %v3512
        %v3581 = vunpack.c.l.b16 %v3513
        %v3582 = vunpack.c.l.b16 %v3514
        %v3583 = vunpack.c.l.b16 %v3515
        %v3584 = vunpack.c.l.b16 %v3516
        %v3585 = vunpack.c.l.b16 %v3517
        %v3586 = vunpack.c.l.b16 %v3518
        %v3587 = vunpack.c.l.b16 %v3519
        %v3588 = vunpack.c.l.b16 %v3520
        %v3589 = vunpack.c.l.b16 %v3521
        %v3590 = vunpack.c.l.b16 %v3522
        %v3591 = vunpack.c.l.b16 %v3523
        %v3592 = vunpack.c.l.b16 %v3524
        %v3593 = vunpack.c.l.b16 %v3525
        %v3594 = vunpack.c.l.b16 %v3526
        %v3595 = vunpack.c.l.b16 %v3527
        %v3596 = vunpack.c.l.b16 %v3528
        %v3597 = vunpack.c.l.b16 %v3529
        %v3598 = vunpack.c.l.b16 %v3530
        %v3599 = vunpack.c.l.b16 %v3531
        %v3600 = vunpack.c.l.b16 %v3532
        %v3601 = vunpack.c.l.b16 %v3533
        %v3602 = vunpack.c.l.b16 %v3534
        %v3603 = vunpack.c.l.b16 %v3535
        %v3604 = vunpack.c.l.b16 %v3536
        %v3605 = vunpack.c.l.b16 %v3537
        %v3606 = vunpack.c.l.b16 %v3538
        %v3607 = vunpack.c.l.b16 %v3539
        %v3608 = vunpack.c.l.b16 %v3540
        %v3609 = vunpack.c.l.b16 %v3541
        %v3610 = vunpack.c.l.b16 %v3542
        %v3611 = vpack.c.b16 %v3580, %v3579
        %v3612 = vpack.c.b16 %v3582, %v3581
        %v3613 = vpack.c.b16 %v3584, %v3583
        %v3614 = vpack.c.b16 %v3586, %v3585
        %v3615 = vpack.c.b16 %v3588, %v3587
        %v3616 = vpack.c.b16 %v3590, %v3589
        %v3617 = vpack.c.b16 %v3592, %v3591
        %v3618 = vpack.c.b16 %v3594, %v3593
        %v3619 = vpack.c.b16 %v3596, %v3595
        %v3620 = vpack.c.b16 %v3598, %v3597
        %v3621 = vpack.c.b16 %v3600, %v3599
        %v3622 = vpack.c.b16 %v3602, %v3601
        %v3623 = vpack.c.b16 %v3604, %v3603
        %v3624 = vpack.c.b16 %v3606, %v3605
        %v3625 = vpack.c.b16 %v3608, %v3607
        %v3626 = vpack.c.b16 %v3610, %v3609
        %3643 = vmatpush.bf16.msra.mxu0 %v3618
        %3644 = vmatpush.bf16.msra.mxu0 %v3617
        %3645 = vmatpush.bf16.msra.mxu0 %v3616
        %3646 = vmatpush.bf16.msra.mxu0 %v3615
        %3647 = vmatpush.bf16.msra.mxu0 %v3614
        %3648 = vmatpush.bf16.msra.mxu0 %v3613
        %3649 = vmatpush.bf16.msra.mxu0 %v3612
        %3650 = vmatpush.bf16.msra.mxu0 %v3611
        %3651 = vmatmul.bf16.gmra.mxu0 %v3479
        %v3652 = vpop.f32.mrf.mxu0
        %v3653 = vadd.f32 %v3545, %v3652
        %v3654 = vpop.f32.mrf.mxu0
        %v3655 = vadd.f32 %v3545, %v3654
        %3656 = vmatmul.bf16.gmra.mxu0 %v3481
        %v3657 = vpop.f32.mrf.mxu0
        %v3658 = vadd.f32 %v3545, %v3657
        %v3659 = vpop.f32.mrf.mxu0
        %v3660 = vadd.f32 %v3545, %v3659
        %3661 = vmatmul.bf16.gmra.mxu0 %v3483
        %v3662 = vpop.f32.mrf.mxu0
        %v3663 = vadd.f32 %v3545, %v3662
        %v3664 = vpop.f32.mrf.mxu0
        %v3665 = vadd.f32 %v3545, %v3664
        %3666 = vmatmul.bf16.gmra.mxu0 %v3485
        %v3667 = vpop.f32.mrf.mxu0
        %v3668 = vadd.f32 %v3545, %v3667
        %v3669 = vpop.f32.mrf.mxu0
        %v3670 = vadd.f32 %v3545, %v3669
        %3671 = vmatmul.bf16.gmra.mxu0 %v3487
        %v3672 = vpop.f32.mrf.mxu0
        %v3673 = vadd.f32 %v3545, %v3672
        %v3674 = vpop.f32.mrf.mxu0
        %v3675 = vadd.f32 %v3545, %v3674
        %3676 = vmatmul.bf16.gmra.mxu0 %v3489
        %v3677 = vpop.f32.mrf.mxu0
        %v3678 = vadd.f32 %v3545, %v3677
        %v3679 = vpop.f32.mrf.mxu0
        %v3680 = vadd.f32 %v3545, %v3679
        %3681 = vmatmul.bf16.gmra.mxu0 %v3491
        %v3682 = vpop.f32.mrf.mxu0
        %v3683 = vadd.f32 %v3545, %v3682
        %v3684 = vpop.f32.mrf.mxu0
        %v3685 = vadd.f32 %v3545, %v3684
        %3686 = vmatmul.bf16.gmra.mxu0 %v3493
        %v3687 = vpop.f32.mrf.mxu0
        %v3688 = vadd.f32 %v3545, %v3687
        %v3689 = vpop.f32.mrf.mxu0
        %v3690 = vadd.f32 %v3545, %v3689
        %3691 = vmatmul.bf16.gmra.mxu0 %v3495
        %v3692 = vpop.f32.mrf.mxu0
        %v3693 = vadd.f32 %v3545, %v3692
        %v3694 = vpop.f32.mrf.mxu0
        %v3695 = vadd.f32 %v3545, %v3694
        %3696 = vmatmul.bf16.gmra.mxu0 %v3497
        %v3697 = vpop.f32.mrf.mxu0
        %v3698 = vadd.f32 %v3545, %v3697
        %v3699 = vpop.f32.mrf.mxu0
        %v3700 = vadd.f32 %v3545, %v3699
        %3701 = vmatmul.bf16.gmra.mxu0 %v3499
        %v3702 = vpop.f32.mrf.mxu0
        %v3703 = vadd.f32 %v3545, %v3702
        %v3704 = vpop.f32.mrf.mxu0
        %v3705 = vadd.f32 %v3545, %v3704
        %3706 = vmatmul.bf16.gmra.mxu0 %v3501
        %v3707 = vpop.f32.mrf.mxu0
        %v3708 = vadd.f32 %v3545, %v3707
        %v3709 = vpop.f32.mrf.mxu0
        %v3710 = vadd.f32 %v3545, %v3709
        %3711 = vmatmul.bf16.gmra.mxu0 %v3503
        %v3712 = vpop.f32.mrf.mxu0
        %v3713 = vadd.f32 %v3545, %v3712
        %v3714 = vpop.f32.mrf.mxu0
        %v3715 = vadd.f32 %v3545, %v3714
        %3716 = vmatmul.bf16.gmra.mxu0 %v3505
        %v3717 = vpop.f32.mrf.mxu0
        %v3718 = vadd.f32 %v3545, %v3717
        %v3719 = vpop.f32.mrf.mxu0
        %v3720 = vadd.f32 %v3545, %v3719
        %3721 = vmatmul.bf16.gmra.mxu0 %v3507
        %v3722 = vpop.f32.mrf.mxu0
        %v3723 = vadd.f32 %v3545, %v3722
        %v3724 = vpop.f32.mrf.mxu0
        %v3725 = vadd.f32 %v3545, %v3724
        %3726 = vmatmul.bf16.gmra.mxu0 %v3509
        %v3727 = vpop.f32.mrf.mxu0
        %v3728 = vadd.f32 %v3545, %v3727
        %v3729 = vpop.f32.mrf.mxu0
        %v3730 = vadd.f32 %v3545, %v3729
        %3731 = vdwg.mxu0
        %3732 = vmatpush.bf16.msra.mxu0 %v3626
        %3733 = vmatpush.bf16.msra.mxu0 %v3625
        %3734 = vmatpush.bf16.msra.mxu0 %v3624
        %3735 = vmatpush.bf16.msra.mxu0 %v3623
        %3736 = vmatpush.bf16.msra.mxu0 %v3622
        %3737 = vmatpush.bf16.msra.mxu0 %v3621
        %3738 = vmatpush.bf16.msra.mxu0 %v3620
        %3739 = vmatpush.bf16.msra.mxu0 %v3619
        %3740 = vmatmul.bf16.gmra.mxu0 %v3480
        %v3741 = vpop.f32.mrf.mxu0
        %v3742 = vadd.f32 %v3653, %v3741
        %v3743 = vpop.f32.mrf.mxu0
        %v3744 = vadd.f32 %v3655, %v3743
        %3745 = vmatmul.bf16.gmra.mxu0 %v3482
        %v3746 = vpop.f32.mrf.mxu0
        %v3747 = vadd.f32 %v3658, %v3746
        %v3748 = vpop.f32.mrf.mxu0
        %v3749 = vadd.f32 %v3660, %v3748
        %3750 = vmatmul.bf16.gmra.mxu0 %v3484
        %v3751 = vpop.f32.mrf.mxu0
        %v3752 = vadd.f32 %v3663, %v3751
        %v3753 = vpop.f32.mrf.mxu0
        %v3754 = vadd.f32 %v3665, %v3753
        %3755 = vmatmul.bf16.gmra.mxu0 %v3486
        %v3756 = vpop.f32.mrf.mxu0
        %v3757 = vadd.f32 %v3668, %v3756
        %v3758 = vpop.f32.mrf.mxu0
        %v3759 = vadd.f32 %v3670, %v3758
        %3760 = vmatmul.bf16.gmra.mxu0 %v3488
        %v3761 = vpop.f32.mrf.mxu0
        %v3762 = vadd.f32 %v3673, %v3761
        %v3763 = vpop.f32.mrf.mxu0
        %v3764 = vadd.f32 %v3675, %v3763
        %3765 = vmatmul.bf16.gmra.mxu0 %v3490
        %v3766 = vpop.f32.mrf.mxu0
        %v3767 = vadd.f32 %v3678, %v3766
        %v3768 = vpop.f32.mrf.mxu0
        %v3769 = vadd.f32 %v3680, %v3768
        %3770 = vmatmul.bf16.gmra.mxu0 %v3492
        %v3771 = vpop.f32.mrf.mxu0
        %v3772 = vadd.f32 %v3683, %v3771
        %v3773 = vpop.f32.mrf.mxu0
        %v3774 = vadd.f32 %v3685, %v3773
        %3775 = vmatmul.bf16.gmra.mxu0 %v3494
        %v3776 = vpop.f32.mrf.mxu0
        %v3777 = vadd.f32 %v3688, %v3776
        %v3778 = vpop.f32.mrf.mxu0
        %v3779 = vadd.f32 %v3690, %v3778
        %3780 = vmatmul.bf16.gmra.mxu0 %v3496
        %v3781 = vpop.f32.mrf.mxu0
        %v3782 = vadd.f32 %v3693, %v3781
        %v3783 = vpop.f32.mrf.mxu0
        %v3784 = vadd.f32 %v3695, %v3783
        %3785 = vmatmul.bf16.gmra.mxu0 %v3498
        %v3786 = vpop.f32.mrf.mxu0
        %v3787 = vadd.f32 %v3698, %v3786
        %v3788 = vpop.f32.mrf.mxu0
        %v3789 = vadd.f32 %v3700, %v3788
        %3790 = vmatmul.bf16.gmra.mxu0 %v3500
        %v3791 = vpop.f32.mrf.mxu0
        %v3792 = vadd.f32 %v3703, %v3791
        %v3793 = vpop.f32.mrf.mxu0
        %v3794 = vadd.f32 %v3705, %v3793
        %3795 = vmatmul.bf16.gmra.mxu0 %v3502
        %v3796 = vpop.f32.mrf.mxu0
        %v3797 = vadd.f32 %v3708, %v3796
        %v3798 = vpop.f32.mrf.mxu0
        %v3799 = vadd.f32 %v3710, %v3798
        %3800 = vmatmul.bf16.gmra.mxu0 %v3504
        %v3801 = vpop.f32.mrf.mxu0
        %v3802 = vadd.f32 %v3713, %v3801
        %v3803 = vpop.f32.mrf.mxu0
        %v3804 = vadd.f32 %v3715, %v3803
        %3805 = vmatmul.bf16.gmra.mxu0 %v3506
        %v3806 = vpop.f32.mrf.mxu0
        %v3807 = vadd.f32 %v3718, %v3806
        %v3808 = vpop.f32.mrf.mxu0
        %v3809 = vadd.f32 %v3720, %v3808
        %3810 = vmatmul.bf16.gmra.mxu0 %v3508
        %v3811 = vpop.f32.mrf.mxu0
        %v3812 = vadd.f32 %v3723, %v3811
        %v3813 = vpop.f32.mrf.mxu0
        %v3814 = vadd.f32 %v3725, %v3813
        %3815 = vmatmul.bf16.gmra.mxu0 %v3510
        %v3816 = vpop.f32.mrf.mxu0
        %v3817 = vadd.f32 %v3728, %v3816
        %v3818 = vpop.f32.mrf.mxu0
        %v3819 = vadd.f32 %v3730, %v3818
        %3820 = vdwg.mxu0
        %v3821 = vmax.f32 %v3742, 0.0
        %v3822 = vmax.f32 %v3744, 0.0
        %v3823 = vmax.f32 %v3747, 0.0
        %v3824 = vmax.f32 %v3749, 0.0
        %v3825 = vmax.f32 %v3752, 0.0
        %v3826 = vmax.f32 %v3754, 0.0
        %v3827 = vmax.f32 %v3757, 0.0
        %v3828 = vmax.f32 %v3759, 0.0
        %v3829 = vmax.f32 %v3762, 0.0
        %v3830 = vmax.f32 %v3764, 0.0
        %v3831 = vmax.f32 %v3767, 0.0
        %v3832 = vmax.f32 %v3769, 0.0
        %v3833 = vmax.f32 %v3772, 0.0
        %v3834 = vmax.f32 %v3774, 0.0
        %v3835 = vmax.f32 %v3777, 0.0
        %v3836 = vmax.f32 %v3779, 0.0
        %v3837 = vmax.f32 %v3782, 0.0
        %v3838 = vmax.f32 %v3784, 0.0
        %v3839 = vmax.f32 %v3787, 0.0
        %v3840 = vmax.f32 %v3789, 0.0
        %v3841 = vmax.f32 %v3792, 0.0
        %v3842 = vmax.f32 %v3794, 0.0
        %v3843 = vmax.f32 %v3797, 0.0
        %v3844 = vmax.f32 %v3799, 0.0
        %v3845 = vmax.f32 %v3802, 0.0
        %v3846 = vmax.f32 %v3804, 0.0
        %v3847 = vmax.f32 %v3807, 0.0
        %v3848 = vmax.f32 %v3809, 0.0
        %v3849 = vmax.f32 %v3812, 0.0
        %v3850 = vmax.f32 %v3814, 0.0
        %v3851 = vmax.f32 %v3817, 0.0
        %v3852 = vmax.f32 %v3819, 0.0
        %v3853 = vpack.c.bf16 %v3822, %v3821
        %v3854 = vpack.c.bf16 %v3824, %v3823
        %v3855 = vpack.c.bf16 %v3826, %v3825
        %v3856 = vpack.c.bf16 %v3828, %v3827
        %v3857 = vpack.c.bf16 %v3830, %v3829
        %v3858 = vpack.c.bf16 %v3832, %v3831
        %v3859 = vpack.c.bf16 %v3834, %v3833
        %v3860 = vpack.c.bf16 %v3836, %v3835
        %v3861 = vpack.c.bf16 %v3838, %v3837
        %v3862 = vpack.c.bf16 %v3840, %v3839
        %v3863 = vpack.c.bf16 %v3842, %v3841
        %v3864 = vpack.c.bf16 %v3844, %v3843
        %v3865 = vpack.c.bf16 %v3846, %v3845
        %v3866 = vpack.c.bf16 %v3848, %v3847
        %v3867 = vpack.c.bf16 %v3850, %v3849
        %v3868 = vpack.c.bf16 %v3852, %v3851
        %v3869 = vld [vmem:[#allocation14] sm:$0xf]
        %v3870 = vld [vmem:[#allocation14 + $0x4] sm:$0xf]
        %v3871 = vld [vmem:[#allocation14 + $0x8] sm:$0xf]
        %v3872 = vld [vmem:[#allocation14 + $0xc] sm:$0xf]
        %v3873 = vld [vmem:[#allocation14 + $0x10] sm:$0xf]
        %v3874 = vld [vmem:[#allocation14 + $0x14] sm:$0xf]
        %v3875 = vld [vmem:[#allocation14 + $0x18] sm:$0xf]
        %v3876 = vld [vmem:[#allocation14 + $0x1c] sm:$0xf]
        %v3877 = vld [vmem:[#allocation14 + $0x20] sm:$0xf]
        %v3878 = vld [vmem:[#allocation14 + $0x24] sm:$0xf]
        %v3879 = vld [vmem:[#allocation14 + $0x28] sm:$0xf]
        %v3880 = vld [vmem:[#allocation14 + $0x2c] sm:$0xf]
        %v3881 = vld [vmem:[#allocation14 + $0x30] sm:$0xf]
        %v3882 = vld [vmem:[#allocation14 + $0x34] sm:$0xf]
        %v3883 = vld [vmem:[#allocation14 + $0x38] sm:$0xf]
        %v3884 = vld [vmem:[#allocation14 + $0x3c] sm:$0xf]
        %v3885 = vld [vmem:[%s12] sm:$0x1]
        %v3887 = vperm.slane %v3885, 0
        %v3905 = vunpack.c.l.b16 %v3869
        %v3906 = vunpack.c.l.b16 %v3870
        %v3907 = vunpack.c.l.b16 %v3871
        %v3908 = vunpack.c.l.b16 %v3872
        %v3909 = vunpack.c.l.b16 %v3873
        %v3910 = vunpack.c.l.b16 %v3874
        %v3911 = vunpack.c.l.b16 %v3875
        %v3912 = vunpack.c.l.b16 %v3876
        %v3913 = vunpack.c.l.b16 %v3877
        %v3914 = vunpack.c.l.b16 %v3878
        %v3915 = vunpack.c.l.b16 %v3879
        %v3916 = vunpack.c.l.b16 %v3880
        %v3917 = vunpack.c.l.b16 %v3881
        %v3918 = vunpack.c.l.b16 %v3882
        %v3919 = vunpack.c.l.b16 %v3883
        %v3920 = vunpack.c.l.b16 %v3884
        %v3921 = vpack.c.b16 %v3906, %v3905
        %v3922 = vpack.c.b16 %v3908, %v3907
        %v3923 = vpack.c.b16 %v3910, %v3909
        %v3924 = vpack.c.b16 %v3912, %v3911
        %v3925 = vpack.c.b16 %v3914, %v3913
        %v3926 = vpack.c.b16 %v3916, %v3915
        %v3927 = vpack.c.b16 %v3918, %v3917
        %v3928 = vpack.c.b16 %v3920, %v3919
        %3937 = vmatpush.bf16.msra.mxu0 %v3928
        %3938 = vmatpush.bf16.msra.mxu0 %v3927
        %3939 = vmatpush.bf16.msra.mxu0 %v3926
        %3940 = vmatpush.bf16.msra.mxu0 %v3925
        %3941 = vmatpush.bf16.msra.mxu0 %v3924
        %3942 = vmatpush.bf16.msra.mxu0 %v3923
        %3943 = vmatpush.bf16.msra.mxu0 %v3922
        %3944 = vmatpush.bf16.msra.mxu0 %v3921
        %3945 = vmatmul.bf16.gmra.mxu0 %v3853
        %v3946 = vpop.f32.mrf.mxu0
        %v3947 = vadd.f32 %v3887, %v3946
        %v3948 = vpop.f32.mrf.mxu0
        %v3949 = vadd.f32 %v3887, %v3948
        %3950 = vmatmul.bf16.gmra.mxu0 %v3854
        %v3951 = vpop.f32.mrf.mxu0
        %v3952 = vadd.f32 %v3887, %v3951
        %v3953 = vpop.f32.mrf.mxu0
        %v3954 = vadd.f32 %v3887, %v3953
        %3955 = vmatmul.bf16.gmra.mxu0 %v3855
        %v3956 = vpop.f32.mrf.mxu0
        %v3957 = vadd.f32 %v3887, %v3956
        %v3958 = vpop.f32.mrf.mxu0
        %v3959 = vadd.f32 %v3887, %v3958
        %3960 = vmatmul.bf16.gmra.mxu0 %v3856
        %v3961 = vpop.f32.mrf.mxu0
        %v3962 = vadd.f32 %v3887, %v3961
        %v3963 = vpop.f32.mrf.mxu0
        %v3964 = vadd.f32 %v3887, %v3963
        %3965 = vmatmul.bf16.gmra.mxu0 %v3857
        %v3966 = vpop.f32.mrf.mxu0
        %v3967 = vadd.f32 %v3887, %v3966
        %v3968 = vpop.f32.mrf.mxu0
        %v3969 = vadd.f32 %v3887, %v3968
        %3970 = vmatmul.bf16.gmra.mxu0 %v3858
        %v3971 = vpop.f32.mrf.mxu0
        %v3972 = vadd.f32 %v3887, %v3971
        %v3973 = vpop.f32.mrf.mxu0
        %v3974 = vadd.f32 %v3887, %v3973
        %3975 = vmatmul.bf16.gmra.mxu0 %v3859
        %v3976 = vpop.f32.mrf.mxu0
        %v3977 = vadd.f32 %v3887, %v3976
        %v3978 = vpop.f32.mrf.mxu0
        %v3979 = vadd.f32 %v3887, %v3978
        %3980 = vmatmul.bf16.gmra.mxu0 %v3860
        %v3981 = vpop.f32.mrf.mxu0
        %v3982 = vadd.f32 %v3887, %v3981
        %v3983 = vpop.f32.mrf.mxu0
        %v3984 = vadd.f32 %v3887, %v3983
        %3985 = vmatmul.bf16.gmra.mxu0 %v3861
        %v3986 = vpop.f32.mrf.mxu0
        %v3987 = vadd.f32 %v3887, %v3986
        %v3988 = vpop.f32.mrf.mxu0
        %v3989 = vadd.f32 %v3887, %v3988
        %3990 = vmatmul.bf16.gmra.mxu0 %v3862
        %v3991 = vpop.f32.mrf.mxu0
        %v3992 = vadd.f32 %v3887, %v3991
        %v3993 = vpop.f32.mrf.mxu0
        %v3994 = vadd.f32 %v3887, %v3993
        %3995 = vmatmul.bf16.gmra.mxu0 %v3863
        %v3996 = vpop.f32.mrf.mxu0
        %v3997 = vadd.f32 %v3887, %v3996
        %v3998 = vpop.f32.mrf.mxu0
        %v3999 = vadd.f32 %v3887, %v3998
        %4000 = vmatmul.bf16.gmra.mxu0 %v3864
        %v4001 = vpop.f32.mrf.mxu0
        %v4002 = vadd.f32 %v3887, %v4001
        %v4003 = vpop.f32.mrf.mxu0
        %v4004 = vadd.f32 %v3887, %v4003
        %4005 = vmatmul.bf16.gmra.mxu0 %v3865
        %v4006 = vpop.f32.mrf.mxu0
        %v4007 = vadd.f32 %v3887, %v4006
        %v4008 = vpop.f32.mrf.mxu0
        %v4009 = vadd.f32 %v3887, %v4008
        %4010 = vmatmul.bf16.gmra.mxu0 %v3866
        %v4011 = vpop.f32.mrf.mxu0
        %v4012 = vadd.f32 %v3887, %v4011
        %v4013 = vpop.f32.mrf.mxu0
        %v4014 = vadd.f32 %v3887, %v4013
        %4015 = vmatmul.bf16.gmra.mxu0 %v3867
        %v4016 = vpop.f32.mrf.mxu0
        %v4017 = vadd.f32 %v3887, %v4016
        %v4018 = vpop.f32.mrf.mxu0
        %v4019 = vadd.f32 %v3887, %v4018
        %4020 = vmatmul.bf16.gmra.mxu0 %v3868
        %v4021 = vpop.f32.mrf.mxu0
        %v4022 = vadd.f32 %v3887, %v4021
        %v4023 = vpop.f32.mrf.mxu0
        %v4024 = vadd.f32 %v3887, %v4023
        %4025 = vdwg.mxu0
        %v4026 = vmax.f32 %v3947, 0.0
        %v4027 = vmax.f32 %v3949, 0.0
        %v4028 = vmax.f32 %v3952, 0.0
        %v4029 = vmax.f32 %v3954, 0.0
        %v4030 = vmax.f32 %v3957, 0.0
        %v4031 = vmax.f32 %v3959, 0.0
        %v4032 = vmax.f32 %v3962, 0.0
        %v4033 = vmax.f32 %v3964, 0.0
        %v4034 = vmax.f32 %v3967, 0.0
        %v4035 = vmax.f32 %v3969, 0.0
        %v4036 = vmax.f32 %v3972, 0.0
        %v4037 = vmax.f32 %v3974, 0.0
        %v4038 = vmax.f32 %v3977, 0.0
        %v4039 = vmax.f32 %v3979, 0.0
        %v4040 = vmax.f32 %v3982, 0.0
        %v4041 = vmax.f32 %v3984, 0.0
        %v4042 = vmax.f32 %v3987, 0.0
        %v4043 = vmax.f32 %v3989, 0.0
        %v4044 = vmax.f32 %v3992, 0.0
        %v4045 = vmax.f32 %v3994, 0.0
        %v4046 = vmax.f32 %v3997, 0.0
        %v4047 = vmax.f32 %v3999, 0.0
        %v4048 = vmax.f32 %v4002, 0.0
        %v4049 = vmax.f32 %v4004, 0.0
        %v4050 = vmax.f32 %v4007, 0.0
        %v4051 = vmax.f32 %v4009, 0.0
        %v4052 = vmax.f32 %v4012, 0.0
        %v4053 = vmax.f32 %v4014, 0.0
        %v4054 = vmax.f32 %v4017, 0.0
        %v4055 = vmax.f32 %v4019, 0.0
        %v4056 = vmax.f32 %v4022, 0.0
        %v4057 = vmax.f32 %v4024, 0.0
        %v4058 = vpack.c.bf16 %v4027, %v4026
        %v4059 = vpack.c.bf16 %v4029, %v4028
        %v4060 = vpack.c.bf16 %v4031, %v4030
        %v4061 = vpack.c.bf16 %v4033, %v4032
        %v4062 = vpack.c.bf16 %v4035, %v4034
        %v4063 = vpack.c.bf16 %v4037, %v4036
        %v4064 = vpack.c.bf16 %v4039, %v4038
        %v4065 = vpack.c.bf16 %v4041, %v4040
        %v4066 = vpack.c.bf16 %v4043, %v4042
        %v4067 = vpack.c.bf16 %v4045, %v4044
        %v4068 = vpack.c.bf16 %v4047, %v4046
        %v4069 = vpack.c.bf16 %v4049, %v4048
        %v4070 = vpack.c.bf16 %v4051, %v4050
        %v4071 = vpack.c.bf16 %v4053, %v4052
        %v4072 = vpack.c.bf16 %v4055, %v4054
        %v4073 = vpack.c.bf16 %v4057, %v4056
        %v4074 = vld [vmem:[#allocation16] sm:$0xf]
        %v4075 = vld [vmem:[#allocation16 + $0x4] sm:$0xf]
        %v4076 = vld [vmem:[#allocation16 + $0x8] sm:$0xf]
        %v4077 = vld [vmem:[#allocation16 + $0xc] sm:$0xf]
        %v4078 = vld [vmem:[#allocation16 + $0x10] sm:$0xf]
        %v4079 = vld [vmem:[#allocation16 + $0x14] sm:$0xf]
        %v4080 = vld [vmem:[#allocation16 + $0x18] sm:$0xf]
        %v4081 = vld [vmem:[#allocation16 + $0x1c] sm:$0xf]
        %v4082 = vld [vmem:[#allocation16 + $0x20] sm:$0xf]
        %v4083 = vld [vmem:[#allocation16 + $0x24] sm:$0xf]
        %v4084 = vld [vmem:[#allocation16 + $0x28] sm:$0xf]
        %v4085 = vld [vmem:[#allocation16 + $0x2c] sm:$0xf]
        %v4086 = vld [vmem:[#allocation16 + $0x30] sm:$0xf]
        %v4087 = vld [vmem:[#allocation16 + $0x34] sm:$0xf]
        %v4088 = vld [vmem:[#allocation16 + $0x38] sm:$0xf]
        %v4089 = vld [vmem:[#allocation16 + $0x3c] sm:$0xf]
        %v4090 = vld [vmem:[%s14] sm:$0x1]
        %v4092 = vperm.slane %v4090, 0
        %v4110 = vunpack.c.l.b16 %v4074
        %v4111 = vunpack.c.l.b16 %v4075
        %v4112 = vunpack.c.l.b16 %v4076
        %v4113 = vunpack.c.l.b16 %v4077
        %v4114 = vunpack.c.l.b16 %v4078
        %v4115 = vunpack.c.l.b16 %v4079
        %v4116 = vunpack.c.l.b16 %v4080
        %v4117 = vunpack.c.l.b16 %v4081
        %v4118 = vunpack.c.l.b16 %v4082
        %v4119 = vunpack.c.l.b16 %v4083
        %v4120 = vunpack.c.l.b16 %v4084
        %v4121 = vunpack.c.l.b16 %v4085
        %v4122 = vunpack.c.l.b16 %v4086
        %v4123 = vunpack.c.l.b16 %v4087
        %v4124 = vunpack.c.l.b16 %v4088
        %v4125 = vunpack.c.l.b16 %v4089
        %v4126 = vpack.c.b16 %v4111, %v4110
        %v4127 = vpack.c.b16 %v4113, %v4112
        %v4128 = vpack.c.b16 %v4115, %v4114
        %v4129 = vpack.c.b16 %v4117, %v4116
        %v4130 = vpack.c.b16 %v4119, %v4118
        %v4131 = vpack.c.b16 %v4121, %v4120
        %v4132 = vpack.c.b16 %v4123, %v4122
        %v4133 = vpack.c.b16 %v4125, %v4124
        %4142 = vmatpush.bf16.msra.mxu0 %v4133
        %4143 = vmatpush.bf16.msra.mxu0 %v4132
        %4144 = vmatpush.bf16.msra.mxu0 %v4131
        %4145 = vmatpush.bf16.msra.mxu0 %v4130
        %4146 = vmatpush.bf16.msra.mxu0 %v4129
        %4147 = vmatpush.bf16.msra.mxu0 %v4128
        %4148 = vmatpush.bf16.msra.mxu0 %v4127
        %4149 = vmatpush.bf16.msra.mxu0 %v4126
        %4150 = vmatmul.bf16.gmra.mxu0 %v4058
        %v4151 = vpop.f32.mrf.mxu0
        %v4152 = vadd.f32 %v4092, %v4151
        %v4153 = vpop.f32.mrf.mxu0
        %v4154 = vadd.f32 %v4092, %v4153
        %4155 = vmatmul.bf16.gmra.mxu0 %v4059
        %v4156 = vpop.f32.mrf.mxu0
        %v4157 = vadd.f32 %v4092, %v4156
        %v4158 = vpop.f32.mrf.mxu0
        %v4159 = vadd.f32 %v4092, %v4158
        %4160 = vmatmul.bf16.gmra.mxu0 %v4060
        %v4161 = vpop.f32.mrf.mxu0
        %v4162 = vadd.f32 %v4092, %v4161
        %v4163 = vpop.f32.mrf.mxu0
        %v4164 = vadd.f32 %v4092, %v4163
        %4165 = vmatmul.bf16.gmra.mxu0 %v4061
        %v4166 = vpop.f32.mrf.mxu0
        %v4167 = vadd.f32 %v4092, %v4166
        %v4168 = vpop.f32.mrf.mxu0
        %v4169 = vadd.f32 %v4092, %v4168
        %4170 = vmatmul.bf16.gmra.mxu0 %v4062
        %v4171 = vpop.f32.mrf.mxu0
        %v4172 = vadd.f32 %v4092, %v4171
        %v4173 = vpop.f32.mrf.mxu0
        %v4174 = vadd.f32 %v4092, %v4173
        %4175 = vmatmul.bf16.gmra.mxu0 %v4063
        %v4176 = vpop.f32.mrf.mxu0
        %v4177 = vadd.f32 %v4092, %v4176
        %v4178 = vpop.f32.mrf.mxu0
        %v4179 = vadd.f32 %v4092, %v4178
        %4180 = vmatmul.bf16.gmra.mxu0 %v4064
        %v4181 = vpop.f32.mrf.mxu0
        %v4182 = vadd.f32 %v4092, %v4181
        %v4183 = vpop.f32.mrf.mxu0
        %v4184 = vadd.f32 %v4092, %v4183
        %4185 = vmatmul.bf16.gmra.mxu0 %v4065
        %v4186 = vpop.f32.mrf.mxu0
        %v4187 = vadd.f32 %v4092, %v4186
        %v4188 = vpop.f32.mrf.mxu0
        %v4189 = vadd.f32 %v4092, %v4188
        %4190 = vmatmul.bf16.gmra.mxu0 %v4066
        %v4191 = vpop.f32.mrf.mxu0
        %v4192 = vadd.f32 %v4092, %v4191
        %v4193 = vpop.f32.mrf.mxu0
        %v4194 = vadd.f32 %v4092, %v4193
        %4195 = vmatmul.bf16.gmra.mxu0 %v4067
        %v4196 = vpop.f32.mrf.mxu0
        %v4197 = vadd.f32 %v4092, %v4196
        %v4198 = vpop.f32.mrf.mxu0
        %v4199 = vadd.f32 %v4092, %v4198
        %4200 = vmatmul.bf16.gmra.mxu0 %v4068
        %v4201 = vpop.f32.mrf.mxu0
        %v4202 = vadd.f32 %v4092, %v4201
        %v4203 = vpop.f32.mrf.mxu0
        %v4204 = vadd.f32 %v4092, %v4203
        %4205 = vmatmul.bf16.gmra.mxu0 %v4069
        %v4206 = vpop.f32.mrf.mxu0
        %v4207 = vadd.f32 %v4092, %v4206
        %v4208 = vpop.f32.mrf.mxu0
        %v4209 = vadd.f32 %v4092, %v4208
        %4210 = vmatmul.bf16.gmra.mxu0 %v4070
        %v4211 = vpop.f32.mrf.mxu0
        %v4212 = vadd.f32 %v4092, %v4211
        %v4213 = vpop.f32.mrf.mxu0
        %v4214 = vadd.f32 %v4092, %v4213
        %4215 = vmatmul.bf16.gmra.mxu0 %v4071
        %v4216 = vpop.f32.mrf.mxu0
        %v4217 = vadd.f32 %v4092, %v4216
        %v4218 = vpop.f32.mrf.mxu0
        %v4219 = vadd.f32 %v4092, %v4218
        %4220 = vmatmul.bf16.gmra.mxu0 %v4072
        %v4221 = vpop.f32.mrf.mxu0
        %v4222 = vadd.f32 %v4092, %v4221
        %v4223 = vpop.f32.mrf.mxu0
        %v4224 = vadd.f32 %v4092, %v4223
        %4225 = vmatmul.bf16.gmra.mxu0 %v4073
        %v4226 = vpop.f32.mrf.mxu0
        %v4227 = vadd.f32 %v4092, %v4226
        %v4228 = vpop.f32.mrf.mxu0
        %v4229 = vadd.f32 %v4092, %v4228
        %4230 = vdwg.mxu0
        %v4231 = vmax.f32 %v4152, 0.0
        %v4232 = vmax.f32 %v4154, 0.0
        %v4233 = vmax.f32 %v4157, 0.0
        %v4234 = vmax.f32 %v4159, 0.0
        %v4235 = vmax.f32 %v4162, 0.0
        %v4236 = vmax.f32 %v4164, 0.0
        %v4237 = vmax.f32 %v4167, 0.0
        %v4238 = vmax.f32 %v4169, 0.0
        %v4239 = vmax.f32 %v4172, 0.0
        %v4240 = vmax.f32 %v4174, 0.0
        %v4241 = vmax.f32 %v4177, 0.0
        %v4242 = vmax.f32 %v4179, 0.0
        %v4243 = vmax.f32 %v4182, 0.0
        %v4244 = vmax.f32 %v4184, 0.0
        %v4245 = vmax.f32 %v4187, 0.0
        %v4246 = vmax.f32 %v4189, 0.0
        %v4247 = vmax.f32 %v4192, 0.0
        %v4248 = vmax.f32 %v4194, 0.0
        %v4249 = vmax.f32 %v4197, 0.0
        %v4250 = vmax.f32 %v4199, 0.0
        %v4251 = vmax.f32 %v4202, 0.0
        %v4252 = vmax.f32 %v4204, 0.0
        %v4253 = vmax.f32 %v4207, 0.0
        %v4254 = vmax.f32 %v4209, 0.0
        %v4255 = vmax.f32 %v4212, 0.0
        %v4256 = vmax.f32 %v4214, 0.0
        %v4257 = vmax.f32 %v4217, 0.0
        %v4258 = vmax.f32 %v4219, 0.0
        %v4259 = vmax.f32 %v4222, 0.0
        %v4260 = vmax.f32 %v4224, 0.0
        %v4261 = vmax.f32 %v4227, 0.0
        %v4262 = vmax.f32 %v4229, 0.0
        %v4263 = vpack.c.bf16 %v4232, %v4231
        %v4264 = vpack.c.bf16 %v4234, %v4233
        %v4265 = vpack.c.bf16 %v4236, %v4235
        %v4266 = vpack.c.bf16 %v4238, %v4237
        %v4267 = vpack.c.bf16 %v4240, %v4239
        %v4268 = vpack.c.bf16 %v4242, %v4241
        %v4269 = vpack.c.bf16 %v4244, %v4243
        %v4270 = vpack.c.bf16 %v4246, %v4245
        %v4271 = vpack.c.bf16 %v4248, %v4247
        %v4272 = vpack.c.bf16 %v4250, %v4249
        %v4273 = vpack.c.bf16 %v4252, %v4251
        %v4274 = vpack.c.bf16 %v4254, %v4253
        %v4275 = vpack.c.bf16 %v4256, %v4255
        %v4276 = vpack.c.bf16 %v4258, %v4257
        %v4277 = vpack.c.bf16 %v4260, %v4259
        %v4278 = vpack.c.bf16 %v4262, %v4261
        %v4279 = vld [vmem:[#allocation17] sm:$0xf]
        %v4280 = vld [vmem:[#allocation17 + $0x4] sm:$0xf]
        %v4281 = vld [vmem:[#allocation17 + $0x8] sm:$0xf]
        %v4282 = vld [vmem:[#allocation17 + $0xc] sm:$0xf]
        %v4283 = vld [vmem:[#allocation17 + $0x10] sm:$0xf]
        %v4284 = vld [vmem:[#allocation17 + $0x14] sm:$0xf]
        %v4285 = vld [vmem:[#allocation17 + $0x18] sm:$0xf]
        %v4286 = vld [vmem:[#allocation17 + $0x1c] sm:$0xf]
        %v4287 = vld [vmem:[#allocation17 + $0x20] sm:$0xf]
        %v4288 = vld [vmem:[#allocation17 + $0x24] sm:$0xf]
        %v4289 = vld [vmem:[#allocation17 + $0x28] sm:$0xf]
        %v4290 = vld [vmem:[#allocation17 + $0x2c] sm:$0xf]
        %v4291 = vld [vmem:[#allocation17 + $0x30] sm:$0xf]
        %v4292 = vld [vmem:[#allocation17 + $0x34] sm:$0xf]
        %v4293 = vld [vmem:[#allocation17 + $0x38] sm:$0xf]
        %v4294 = vld [vmem:[#allocation17 + $0x3c] sm:$0xf]
        %v4295 = vld [vmem:[%s16] sm:$0x1]
        %v4297 = vperm.slane %v4295, 0
        %v4315 = vunpack.c.l.b16 %v4279
        %v4316 = vunpack.c.l.b16 %v4280
        %v4317 = vunpack.c.l.b16 %v4281
        %v4318 = vunpack.c.l.b16 %v4282
        %v4319 = vunpack.c.l.b16 %v4283
        %v4320 = vunpack.c.l.b16 %v4284
        %v4321 = vunpack.c.l.b16 %v4285
        %v4322 = vunpack.c.l.b16 %v4286
        %v4323 = vunpack.c.l.b16 %v4287
        %v4324 = vunpack.c.l.b16 %v4288
        %v4325 = vunpack.c.l.b16 %v4289
        %v4326 = vunpack.c.l.b16 %v4290
        %v4327 = vunpack.c.l.b16 %v4291
        %v4328 = vunpack.c.l.b16 %v4292
        %v4329 = vunpack.c.l.b16 %v4293
        %v4330 = vunpack.c.l.b16 %v4294
        %v4331 = vpack.c.b16 %v4316, %v4315
        %v4332 = vpack.c.b16 %v4318, %v4317
        %v4333 = vpack.c.b16 %v4320, %v4319
        %v4334 = vpack.c.b16 %v4322, %v4321
        %v4335 = vpack.c.b16 %v4324, %v4323
        %v4336 = vpack.c.b16 %v4326, %v4325
        %v4337 = vpack.c.b16 %v4328, %v4327
        %v4338 = vpack.c.b16 %v4330, %v4329
        %4347 = vmatpush.bf16.msra.mxu0 %v4338
        %4348 = vmatpush.bf16.msra.mxu0 %v4337
        %4349 = vmatpush.bf16.msra.mxu0 %v4336
        %4350 = vmatpush.bf16.msra.mxu0 %v4335
        %4351 = vmatpush.bf16.msra.mxu0 %v4334
        %4352 = vmatpush.bf16.msra.mxu0 %v4333
        %4353 = vmatpush.bf16.msra.mxu0 %v4332
        %4354 = vmatpush.bf16.msra.mxu0 %v4331
        %4355 = vmatmul.bf16.gmra.mxu0 %v4263
        %v4356 = vpop.f32.mrf.mxu0
        %v4357 = vadd.f32 %v4297, %v4356
        %v4358 = vpop.f32.mrf.mxu0
        %v4359 = vadd.f32 %v4297, %v4358
        %4360 = vmatmul.bf16.gmra.mxu0 %v4264
        %v4361 = vpop.f32.mrf.mxu0
        %v4362 = vadd.f32 %v4297, %v4361
        %v4363 = vpop.f32.mrf.mxu0
        %v4364 = vadd.f32 %v4297, %v4363
        %4365 = vmatmul.bf16.gmra.mxu0 %v4265
        %v4366 = vpop.f32.mrf.mxu0
        %v4367 = vadd.f32 %v4297, %v4366
        %v4368 = vpop.f32.mrf.mxu0
        %v4369 = vadd.f32 %v4297, %v4368
        %4370 = vmatmul.bf16.gmra.mxu0 %v4266
        %v4371 = vpop.f32.mrf.mxu0
        %v4372 = vadd.f32 %v4297, %v4371
        %v4373 = vpop.f32.mrf.mxu0
        %v4374 = vadd.f32 %v4297, %v4373
        %4375 = vmatmul.bf16.gmra.mxu0 %v4267
        %v4376 = vpop.f32.mrf.mxu0
        %v4377 = vadd.f32 %v4297, %v4376
        %v4378 = vpop.f32.mrf.mxu0
        %v4379 = vadd.f32 %v4297, %v4378
        %4380 = vmatmul.bf16.gmra.mxu0 %v4268
        %v4381 = vpop.f32.mrf.mxu0
        %v4382 = vadd.f32 %v4297, %v4381
        %v4383 = vpop.f32.mrf.mxu0
        %v4384 = vadd.f32 %v4297, %v4383
        %4385 = vmatmul.bf16.gmra.mxu0 %v4269
        %v4386 = vpop.f32.mrf.mxu0
        %v4387 = vadd.f32 %v4297, %v4386
        %v4388 = vpop.f32.mrf.mxu0
        %v4389 = vadd.f32 %v4297, %v4388
        %4390 = vmatmul.bf16.gmra.mxu0 %v4270
        %v4391 = vpop.f32.mrf.mxu0
        %v4392 = vadd.f32 %v4297, %v4391
        %v4393 = vpop.f32.mrf.mxu0
        %v4394 = vadd.f32 %v4297, %v4393
        %4395 = vmatmul.bf16.gmra.mxu0 %v4271
        %v4396 = vpop.f32.mrf.mxu0
        %v4397 = vadd.f32 %v4297, %v4396
        %v4398 = vpop.f32.mrf.mxu0
        %v4399 = vadd.f32 %v4297, %v4398
        %4400 = vmatmul.bf16.gmra.mxu0 %v4272
        %v4401 = vpop.f32.mrf.mxu0
        %v4402 = vadd.f32 %v4297, %v4401
        %v4403 = vpop.f32.mrf.mxu0
        %v4404 = vadd.f32 %v4297, %v4403
        %4405 = vmatmul.bf16.gmra.mxu0 %v4273
        %v4406 = vpop.f32.mrf.mxu0
        %v4407 = vadd.f32 %v4297, %v4406
        %v4408 = vpop.f32.mrf.mxu0
        %v4409 = vadd.f32 %v4297, %v4408
        %4410 = vmatmul.bf16.gmra.mxu0 %v4274
        %v4411 = vpop.f32.mrf.mxu0
        %v4412 = vadd.f32 %v4297, %v4411
        %v4413 = vpop.f32.mrf.mxu0
        %v4414 = vadd.f32 %v4297, %v4413
        %4415 = vmatmul.bf16.gmra.mxu0 %v4275
        %v4416 = vpop.f32.mrf.mxu0
        %v4417 = vadd.f32 %v4297, %v4416
        %v4418 = vpop.f32.mrf.mxu0
        %v4419 = vadd.f32 %v4297, %v4418
        %4420 = vmatmul.bf16.gmra.mxu0 %v4276
        %v4421 = vpop.f32.mrf.mxu0
        %v4422 = vadd.f32 %v4297, %v4421
        %v4423 = vpop.f32.mrf.mxu0
        %v4424 = vadd.f32 %v4297, %v4423
        %4425 = vmatmul.bf16.gmra.mxu0 %v4277
        %v4426 = vpop.f32.mrf.mxu0
        %v4427 = vadd.f32 %v4297, %v4426
        %v4428 = vpop.f32.mrf.mxu0
        %v4429 = vadd.f32 %v4297, %v4428
        %4430 = vmatmul.bf16.gmra.mxu0 %v4278
        %v4431 = vpop.f32.mrf.mxu0
        %v4432 = vadd.f32 %v4297, %v4431
        %v4433 = vpop.f32.mrf.mxu0
        %v4434 = vadd.f32 %v4297, %v4433
        %4435 = vdwg.mxu0
        %4436 = vst [vmem:[%s716] sm:$0xff] %v4357
        %4437 = vst [vmem:[%s716 + $0x8] sm:$0xff] %v4359
        %4438 = vst [vmem:[%s716 + $0x10] sm:$0xff] %v4362
        %4439 = vst [vmem:[%s716 + $0x18] sm:$0xff] %v4364
        %4440 = vst [vmem:[%s716 + $0x20] sm:$0xff] %v4367
        %4441 = vst [vmem:[%s716 + $0x28] sm:$0xff] %v4369
        %4442 = vst [vmem:[%s716 + $0x30] sm:$0xff] %v4372
        %4443 = vst [vmem:[%s716 + $0x38] sm:$0xff] %v4374
        %4444 = vst [vmem:[%s716 + $0x40] sm:$0xff] %v4377
        %4445 = vst [vmem:[%s716 + $0x48] sm:$0xff] %v4379
        %4446 = vst [vmem:[%s716 + $0x50] sm:$0xff] %v4382
        %4447 = vst [vmem:[%s716 + $0x58] sm:$0xff] %v4384
        %4448 = vst [vmem:[%s716 + $0x60] sm:$0xff] %v4387
        %4449 = vst [vmem:[%s716 + $0x68] sm:$0xff] %v4389
        %4450 = vst [vmem:[%s716 + $0x70] sm:$0xff] %v4392
        %4451 = vst [vmem:[%s716 + $0x78] sm:$0xff] %v4394
        %4452 = vst [vmem:[%s716 + $0x80] sm:$0xff] %v4397
        %4453 = vst [vmem:[%s716 + $0x88] sm:$0xff] %v4399
        %4454 = vst [vmem:[%s716 + $0x90] sm:$0xff] %v4402
        %4455 = vst [vmem:[%s716 + $0x98] sm:$0xff] %v4404
        %4456 = vst [vmem:[%s716 + $0xa0] sm:$0xff] %v4407
        %4457 = vst [vmem:[%s716 + $0xa8] sm:$0xff] %v4409
        %4458 = vst [vmem:[%s716 + $0xb0] sm:$0xff] %v4412
        %4459 = vst [vmem:[%s716 + $0xb8] sm:$0xff] %v4414
        %4460 = vst [vmem:[%s716 + $0xc0] sm:$0xff] %v4417
        %4461 = vst [vmem:[%s716 + $0xc8] sm:$0xff] %v4419
        %4462 = vst [vmem:[%s716 + $0xd0] sm:$0xff] %v4422
        %4463 = vst [vmem:[%s716 + $0xd8] sm:$0xff] %v4424
        %4464 = vst [vmem:[%s716 + $0xe0] sm:$0xff] %v4427
        %4465 = vst [vmem:[%s716 + $0xe8] sm:$0xff] %v4429
        %4466 = vst [vmem:[%s716 + $0xf0] sm:$0xff] %v4432
        %4467 = vst [vmem:[%s716 + $0xf8] sm:$0xff] %v4434
        %s4468 = sand.u32 %s409, 1
        %s4469 = scalar_lea.sflag [#allocation4], %s4468
        %s4470 = sand.u32 %s409, 1
        %s4471 = smul.addr %s4470, 256
        %s4472 = scalar_lea.vmem [#allocation19], %s4471
        // Predicated region
        $region129: #{tpu_custom_call.1} parent=87 // pred_check
          %p4473 = pneg %p419
        $region130: #{tpu_custom_call.1} parent=87 // pred_check_branch
          %4475 = sbr.rel (%p4473) target = $region132
        $region131: #{tpu_custom_call.1} parent=87 // pred_region
          %s4476 = smul.u32 32, %s39
          %4478 = vsyncadd %s4469, 0
          %s4479 = smul.addr %s4476, 8
          %s4480 = scalar_lea.hbm %s17, %s4479
          %s4481 = sshll.u32 %s4472, 4
          %s4482 = int_to_ptr.vmem [resolvable:$true] %s4481
          %s4483 = sshll.u32 %s4480, 4
          %s4484 = int_to_ptr.hbm [resolvable:$true] %s4483
          %4489 = dma.vmem_to_hbm [thread:$0]  %s4482, 4096, %s4484, %s4469, 128, 128, 8
        $region132: #{tpu_custom_call.1} parent=87 // pred_fallthru
          _
      $region88: #{tpu_custom_call.1} parent=5 // pred_fallthru
        _
      %p4490 = scmp.le.s32.totalorder 2, %s34
      // Predicated region
      $region133: #{tpu_custom_call.1} parent=5 // pred_check
        %p4491 = pneg %p4490
      $region134: #{tpu_custom_call.1} parent=5 // pred_check_branch
        %4493 = sbr.rel (%p4491) target = $region136
      $region135: #{tpu_custom_call.1} parent=5 // pred_region
        %s4494 = ssub.s32 %s34, 2
        // Predicated region
        $region137: #{tpu_custom_call.1} parent=135 // pred_check
          %p4495 = pneg %p425
        $region138: #{tpu_custom_call.1} parent=135 // pred_check_branch
          %4497 = sbr.rel (%p4495) target = $region140
        $region139: #{tpu_custom_call.1} parent=135 // pred_region
          %s4498 = sand.u32 %s410, 1
          %s4499 = scalar_lea.sflag [#allocation4], %s4498
          %s4500 = sand.u32 %s410, 1
          %s4501 = smul.addr %s4500, 256
          %s4502 = scalar_lea.vmem [#allocation19], %s4501
          %4504 = dma.done %s4499, 4096
        $region140: #{tpu_custom_call.1} parent=135 // pred_fallthru
          _
      $region136: #{tpu_custom_call.1} parent=5 // pred_fallthru
        _
    $region6: #{tpu_custom_call.1} parent=1 // loop_footer
      %s38 = sadd.s32 1, %s34
    $region7: #{tpu_custom_call.1} parent=1 // loop_footer_branch
      %33 = sbr.rel target = $region3
    $region8: #{tpu_custom_call.1} parent=1 // loop_exit
      _
    %4505 = vsyncpa [#allocation3], 1
    %s4506 = scalar_lea.sflag [#allocation3], 1
    %4507 = vsyncpa %s4506, 1
    %4508 = vsyncpa [#allocation6], 1
    %4509 = vsyncpa [#allocation9], 1
    %4510 = vsyncpa [#allocation12], 1
    %4511 = vsyncpa [#allocation15], 1
    %4512 = vsyncpa [#allocation18], 1
    %4513 = vsyncpa [#allocation4], 1
    %s4514 = scalar_lea.sflag [#allocation4], 1
    %4515 = vsyncpa %s4514, 1

</llo_original>
